<compile_context>
chip_gen: v6e
topology: v6e:2x2x1
jax: 0.10.0
libtpu: 0.0.40
codegen_flags: <defaults>
</compile_context>

<pallas_src>
import jax
import jax.numpy as jnp
from jax.experimental import pallas as pl
from jax.experimental.pallas import tpu as pltpu

# (kernel_size, stride, padding) and (Cin, Cout) for the five Conv3d layers.
CONV_CFG = [(4, 2, 2), (4, 2, 1), (3, 2, 1), (3, 2, 1), (3, 2, 1)]
CONV_CHANNELS = [(4, 32), (32, 64), (64, 128), (128, 256), (256, 256)]
BN_EPS = 1e-5
_VMEM_LIMIT = 32 * 1024 * 1024   # explicit scoped-VMEM budget (fits v7x 64 MiB)


def _conv_out(sz, k, s, p):
    return (sz + 2 * p - k) // s + 1


# ---------------------------------------------------------------------------
# Fused Pallas kernel #1: one Conv3d layer as an M-tiled matmul
#   out = relu(patches @ w + bias) * bn_scale + bn_shift   (ReLU before BN,
#   matching nn.Sequential(Conv3d, ReLU, BatchNorm3d) in the spec)
# ---------------------------------------------------------------------------
def _conv_mm_kernel(x_ref, w_ref, aff_ref, o_ref):
    acc = jnp.dot(x_ref[...], w_ref[...], preferred_element_type=jnp.float32)
    acc = acc + aff_ref[0:1, :]                     # conv bias      (f32)
    acc = jnp.maximum(acc, 0.0)                     # ReLU
    acc = acc * aff_ref[1:2, :] + aff_ref[2:3, :]   # folded eval-mode BN (f32)
    o_ref[...] = acc.astype(o_ref.dtype)


def fused_conv_matmul(x, w, aff, *, tm=256):
    """x: (M, K) bf16, w: (K, N) bf16, aff: (3, N) f32 -> (M, N) bf16."""
    M, K = x.shape
    N = w.shape[1]
    bm = tm if M > tm else M          # full-dim block when M is small
    grid = (pl.cdiv(M, bm),)
    return pl.pallas_call(
        _conv_mm_kernel,
        out_shape=jax.ShapeDtypeStruct((M, N), jnp.bfloat16),
        grid=grid,
        in_specs=[
            pl.BlockSpec((bm, K), lambda i: (i, 0)),
            pl.BlockSpec((K, N), lambda i: (0, 0)),
            pl.BlockSpec((3, N), lambda i: (0, 0)),
        ],
        out_specs=pl.BlockSpec((bm, N), lambda i: (i, 0)),
        compiler_params=pltpu.CompilerParams(
            dimension_semantics=("parallel",),
            vmem_limit_bytes=_VMEM_LIMIT),
    )(x, w, aff)


# ---------------------------------------------------------------------------
# Fused Pallas kernel #2: fc1 (Linear+ReLU+Dropout[eval]) + fc2, one call,
# both weights VMEM-resident.
# ---------------------------------------------------------------------------
def _mlp_kernel(x_ref, w1_ref, b1_ref, w2_ref, b2_ref, o_ref):
    h = jnp.dot(x_ref[...], w1_ref[...], preferred_element_type=jnp.float32)
    h = jnp.maximum(h + b1_ref[...], 0.0)
    # TODO(synk): Dropout(0.3) is identity in eval mode; training-mode dropout
    # (and training-mode BatchNorm batch statistics) are not modeled.
    o = jnp.dot(h.astype(w2_ref.dtype), w2_ref[...],
                preferred_element_type=jnp.float32)
    o_ref[...] = (o + b2_ref[...]).astype(o_ref.dtype)


def fused_mlp(x, w1, b1, w2, b2):
    """x: (M, 512) bf16 -> (M, 128) f32."""
    M, K1 = x.shape
    H = w1.shape[1]
    O = w2.shape[1]
    return pl.pallas_call(
        _mlp_kernel,
        out_shape=jax.ShapeDtypeStruct((M, O), jnp.float32),
        grid=(1,),
        in_specs=[
            pl.BlockSpec((M, K1), lambda i: (0, 0)),
            pl.BlockSpec((K1, H), lambda i: (0, 0)),
            pl.BlockSpec((1, H), lambda i: (0, 0)),
            pl.BlockSpec((H, O), lambda i: (0, 0)),
            pl.BlockSpec((1, O), lambda i: (0, 0)),
        ],
        out_specs=pl.BlockSpec((M, O), lambda i: (0, 0)),
        compiler_params=pltpu.CompilerParams(
            dimension_semantics=("arbitrary",),
            vmem_limit_bytes=_VMEM_LIMIT),
    )(x, w1, b1, w2, b2)


# ---------------------------------------------------------------------------
# Channels-last im2col (no 8-D transposes; channel axis stays lane-dense)
# ---------------------------------------------------------------------------
def _im2col_ndhwc(x, k, stride, pad):
    """x: (N, D, H, W, C) -> patches (N*OD*OH*OW, k^3*C), channel fastest."""
    n, d, h, w, c = x.shape
    od = _conv_out(d, k, stride, pad)
    oh = _conv_out(h, k, stride, pad)
    ow = _conv_out(w, k, stride, pad)
    xp = jnp.pad(x, ((0, 0), (pad, pad), (pad, pad), (pad, pad), (0, 0)))
    cols = []
    for kd in range(k):
        for kh in range(k):
            for kw in range(k):
                cols.append(xp[:,
                               kd:kd + stride * od:stride,
                               kh:kh + stride * oh:stride,
                               kw:kw + stride * ow:stride, :])
    # Stack on a new axis just before the channel axis; reshape (no transpose)
    # gives K ordering (kd, kh, kw, c) matching the packed weight layout.
    p = jnp.stack(cols, axis=4)                   # (N, OD, OH, OW, k^3, C)
    patches = p.reshape(n * od * oh * ow, k * k * k * c)
    # TODO(synk): for large spatial inputs, generate these patches inside the
    # kernel (scalar-prefetched offsets) instead of materializing them in HBM.
    return patches, (od, oh, ow)


# ---------------------------------------------------------------------------
# Full BabyC3D forward (takes pre-packed weights)
# ---------------------------------------------------------------------------
def baby_c3d_forward(x_ncdhw, packed):
    # Single layout conversion at model input: NCDHW -> NDHWC (+ bf16 cast).
    x = jnp.transpose(x_ncdhw, (0, 2, 3, 4, 1)).astype(jnp.bfloat16)
    n = x.shape[0]
    # TODO(synk): conv3/conv4/conv5 (M <= 16 here) could additionally be fused
    # into a single weight-resident kernel; kept per-layer for clarity.
    for (wk, aff), (k, s, p) in zip(packed["convs"], CONV_CFG):
        patches, (od, oh, ow) = _im2col_ndhwc(x, k, s, p)
        out = fused_conv_matmul(patches, wk, aff)
        x = out.reshape(n, od, oh, ow, aff.shape[1])
    feat = x.reshape(n, -1)  # (N, 512) in NDHWC order; fc1 weight pre-permuted
    return fused_mlp(feat, packed["fc1_w"], packed["fc1_b"],
                     packed["fc2_w"], packed["fc2_b"])


# ---------------------------------------------------------------------------
# Parameter init (deterministic, PyTorch-like) and one-time weight packing
# ---------------------------------------------------------------------------
def _conv_init(key, cout, cin, k):
    k1, k2 = jax.random.split(key)
    bound = 1.0 / float(cin * k ** 3) ** 0.5
    w = jax.random.uniform(k1, (cout, cin, k, k, k), jnp.float32, -bound, bound)
    b = jax.random.uniform(k2, (cout,), jnp.float32, -bound, bound)
    return w, b


def _bn_init(key, c):
    k1, k2 = jax.random.split(key)
    gamma = 1.0 + 0.1 * jax.random.normal(k1, (c,), jnp.float32)
    beta = 0.1 * jax.random.normal(k2, (c,), jnp.float32)
    mean = jnp.zeros((c,), jnp.float32)   # running_mean init
    var = jnp.ones((c,), jnp.float32)     # running_var init
    return gamma, beta, mean, var


def _lin_init(key, cout, cin):
    k1, k2 = jax.random.split(key)
    bound = 1.0 / float(cin) ** 0.5
    w = jax.random.uniform(k1, (cout, cin), jnp.float32, -bound, bound)
    b = jax.random.uniform(k2, (cout,), jnp.float32, -bound, bound)
    return w, b


def init_params(key):
    keys = jax.random.split(key, 12)
    params = {"convs": [], "bns": []}
    for i, ((cin, cout), (k, _, _)) in enumerate(zip(CONV_CHANNELS, CONV_CFG)):
        params["convs"].append(_conv_init(keys[i], cout, cin, k))
        params["bns"].append(_bn_init(keys[5 + i], cout))
    params["fc1"] = _lin_init(keys[10], 256, 512)
    params["fc2"] = _lin_init(keys[11], 128, 256)
    return params


def pack_params(params, in_spatial):
    """One-time packing (outside the jitted forward):
      * conv weights -> (k^3*Cin, Cout) bf16 matching the im2col K ordering,
      * eval-mode BN folded into a (3, Cout) f32 [bias, scale, shift] operand,
      * fc weights transposed to (in, out) bf16, with fc1's columns permuted
        to the NDHWC flatten order (so no NCDHW transpose in the forward)."""
    packed = {"convs": []}
    d, h, w = in_spatial
    for (wt, b), (g, be, m, v), (k, s, p) in zip(params["convs"],
                                                 params["bns"], CONV_CFG):
        cout, cin = wt.shape[0], wt.shape[1]
        wk = jnp.transpose(wt, (2, 3, 4, 1, 0)).reshape(k * k * k * cin, cout)
        scale = g / jnp.sqrt(v + BN_EPS)          # eval-mode BN fold
        shift = be - m * scale
        aff = jnp.stack([b, scale, shift], axis=0).astype(jnp.float32)
        packed["convs"].append((wk.astype(jnp.bfloat16), aff))
        d, h, w = (_conv_out(d, k, s, p), _conv_out(h, k, s, p),
                   _conv_out(w, k, s, p))
    c_last = CONV_CHANNELS[-1][1]
    w1, b1 = params["fc1"]
    w1 = w1.reshape(w1.shape[0], c_last, d, h, w)
    w1 = jnp.transpose(w1, (0, 2, 3, 4, 1)).reshape(w1.shape[0], -1)
    packed["fc1_w"] = w1.T.astype(jnp.bfloat16)               # (512, 256)
    packed["fc1_b"] = b1.reshape(1, -1).astype(jnp.float32)
    w2, b2 = params["fc2"]
    packed["fc2_w"] = w2.T.astype(jnp.bfloat16)               # (256, 128)
    packed["fc2_b"] = b2.reshape(1, -1).astype(jnp.float32)
    return packed


if __name__ == "__main__":
    key = jax.random.PRNGKey(0)
    pkey, xkey = jax.random.split(key)
    params = init_params(pkey)

    # (N, C, D, H, W) = (2, 4, 34, 8, 8): conv features flatten to exactly 512.
    x = jax.random.normal(xkey, (2, 4, 34, 8, 8), jnp.float32)

    packed = pack_params(params, in_spatial=x.shape[2:])   # one-time packing

    fwd = jax.jit(baby_c3d_forward)
    out = fwd(x, packed)
    out = jax.block_until_ready(out)
    assert out.shape == (2, 128), out.shape
    assert bool(jnp.all(jnp.isfinite(out)))
    print("KERNEL_OK")
</pallas_src>

<mosaic_0001>
module attributes {stable_mosaic.version = 11 : i64} {
  func.func @_conv_mm_kernel(%arg0: i32, %arg1: memref<256x256xbf16, #tpu.memory_space<vmem>>, %arg2: memref<256x32xbf16, #tpu.memory_space<vmem>>, %arg3: memref<3x32xf32, #tpu.memory_space<vmem>>, %arg4: memref<256x32xbf16, #tpu.memory_space<vmem>>) attributes {dimension_semantics = [#tpu.dimension_semantics<parallel>], iteration_bounds = array<i64: 4>, scalar_prefetch = 0 : i64, scratch_operands = 0 : i64, tpu.core_type = #tpu.core_type<tc>, window_params = [{transform_indices = @transform_0, window_bounds = array<i64: 256, 256>}, {pipeline_mode = #tpu.pipeline_mode<synchronous>, transform_indices = @transform_1, window_bounds = array<i64: 256, 32>}, {pipeline_mode = #tpu.pipeline_mode<synchronous>, transform_indices = @transform_2, window_bounds = array<i64: 3, 32>}, {transform_indices = @transform_3, window_bounds = array<i64: 256, 32>}]} {
    %c0 = arith.constant 0 : index
    %c0_0 = arith.constant 0 : index
    %0 = vector.load %arg1[%c0, %c0_0] : memref<256x256xbf16, #tpu.memory_space<vmem>>, vector<256x256xbf16>
    %c0_1 = arith.constant 0 : index
    %c0_2 = arith.constant 0 : index
    %1 = vector.load %arg2[%c0_1, %c0_2] : memref<256x32xbf16, #tpu.memory_space<vmem>>, vector<256x32xbf16>
    %cst = arith.constant dense<0.000000e+00> : vector<256x32xf32>
    %2 = tpu.matmul %0, %1, %cst {dimension_numbers = #tpu.dot_dimension_numbers<[1], [0], [0], [1], [0, 0, 1, 1], [], []>} : vector<256x256xbf16>, vector<256x32xbf16>, vector<256x32xf32> -> vector<256x32xf32>
    %c0_3 = arith.constant 0 : index
    %c0_4 = arith.constant 0 : index
    %3 = vector.load %arg3[%c0_3, %c0_4] : memref<3x32xf32, #tpu.memory_space<vmem>>, vector<1x32xf32>
    %4 = vector.broadcast %3 : vector<1x32xf32> to vector<256x32xf32>
    %5 = arith.addf %2, %4 : vector<256x32xf32>
    %cst_5 = arith.constant 0.000000e+00 : f32
    %6 = vector.broadcast %cst_5 : f32 to vector<256x32xf32>
    %7 = arith.maximumf %5, %6 : vector<256x32xf32>
    %c1 = arith.constant 1 : index
    %c0_6 = arith.constant 0 : index
    %8 = vector.load %arg3[%c1, %c0_6] : memref<3x32xf32, #tpu.memory_space<vmem>>, vector<1x32xf32>
    %9 = vector.broadcast %8 : vector<1x32xf32> to vector<256x32xf32>
    %10 = arith.mulf %7, %9 : vector<256x32xf32>
    %c2 = arith.constant 2 : index
    %c0_7 = arith.constant 0 : index
    %11 = vector.load %arg3[%c2, %c0_7] : memref<3x32xf32, #tpu.memory_space<vmem>>, vector<1x32xf32>
    %12 = vector.broadcast %11 : vector<1x32xf32> to vector<256x32xf32>
    %13 = arith.addf %10, %12 : vector<256x32xf32>
    %14 = arith.truncf %13 : vector<256x32xf32> to vector<256x32xbf16>
    %c0_8 = arith.constant 0 : index
    %c0_9 = arith.constant 0 : index
    %15 = vector.load %arg4[%c0_8, %c0_9] : memref<256x32xbf16, #tpu.memory_space<vmem>>, vector<256x32xbf16>
    tpu.vector_store %arg4[%c0_8, %c0_9], %14 {strides = array<i32>} : memref<256x32xbf16, #tpu.memory_space<vmem>>, vector<256x32xbf16>,
    return
  }
  func.func @transform_0(%arg0: i32) -> (i32, i32) {
    %c0_i32 = arith.constant 0 : i32
    %c0_i32_0 = arith.constant 0 : i32
    return %arg0, %c0_i32 : i32, i32
  }
  func.func @transform_1(%arg0: i32) -> (i32, i32) {
    %c0_i32 = arith.constant 0 : i32
    %c0_i32_0 = arith.constant 0 : i32
    %c0_i32_1 = arith.constant 0 : i32
    return %c0_i32, %c0_i32_0 : i32, i32
  }
  func.func @transform_2(%arg0: i32) -> (i32, i32) {
    %c0_i32 = arith.constant 0 : i32
    %c0_i32_0 = arith.constant 0 : i32
    %c0_i32_1 = arith.constant 0 : i32
    return %c0_i32, %c0_i32_0 : i32, i32
  }
  func.func @transform_3(%arg0: i32) -> (i32, i32) {
    %c0_i32 = arith.constant 0 : i32
    %c0_i32_0 = arith.constant 0 : i32
    return %arg0, %c0_i32 : i32, i32
  }
}

module attributes {stable_mosaic.version = 11 : i64} {
  func.func @_conv_mm_kernel(%arg0: i32, %arg1: memref<72x2048xbf16, #tpu.memory_space<vmem>>, %arg2: memref<2048x64xbf16, #tpu.memory_space<vmem>>, %arg3: memref<3x64xf32, #tpu.memory_space<vmem>>, %arg4: memref<72x64xbf16, #tpu.memory_space<vmem>>) attributes {dimension_semantics = [#tpu.dimension_semantics<parallel>], iteration_bounds = array<i64: 1>, scalar_prefetch = 0 : i64, scratch_operands = 0 : i64, tpu.core_type = #tpu.core_type<tc>, window_params = [{transform_indices = @transform_0, window_bounds = array<i64: 72, 2048>}, {pipeline_mode = #tpu.pipeline_mode<synchronous>, transform_indices = @transform_1, window_bounds = array<i64: 2048, 64>}, {pipeline_mode = #tpu.pipeline_mode<synchronous>, transform_indices = @transform_2, window_bounds = array<i64: 3, 64>}, {transform_indices = @transform_3, window_bounds = array<i64: 72, 64>}]} {
    %c0 = arith.constant 0 : index
    %c0_0 = arith.constant 0 : index
    %0 = vector.load %arg1[%c0, %c0_0] : memref<72x2048xbf16, #tpu.memory_space<vmem>>, vector<72x2048xbf16>
    %c0_1 = arith.constant 0 : index
    %c0_2 = arith.constant 0 : index
    %1 = vector.load %arg2[%c0_1, %c0_2] : memref<2048x64xbf16, #tpu.memory_space<vmem>>, vector<2048x64xbf16>
    %cst = arith.constant dense<0.000000e+00> : vector<72x64xf32>
    %2 = tpu.matmul %0, %1, %cst {dimension_numbers = #tpu.dot_dimension_numbers<[1], [0], [0], [1], [0, 0, 1, 1], [], []>} : vector<72x2048xbf16>, vector<2048x64xbf16>, vector<72x64xf32> -> vector<72x64xf32>
    %c0_3 = arith.constant 0 : index
    %c0_4 = arith.constant 0 : index
    %3 = vector.load %arg3[%c0_3, %c0_4] : memref<3x64xf32, #tpu.memory_space<vmem>>, vector<1x64xf32>
    %4 = vector.broadcast %3 : vector<1x64xf32> to vector<72x64xf32>
    %5 = arith.addf %2, %4 : vector<72x64xf32>
    %cst_5 = arith.constant 0.000000e+00 : f32
    %6 = vector.broadcast %cst_5 : f32 to vector<72x64xf32>
    %7 = arith.maximumf %5, %6 : vector<72x64xf32>
    %c1 = arith.constant 1 : index
    %c0_6 = arith.constant 0 : index
    %8 = vector.load %arg3[%c1, %c0_6] : memref<3x64xf32, #tpu.memory_space<vmem>>, vector<1x64xf32>
    %9 = vector.broadcast %8 : vector<1x64xf32> to vector<72x64xf32>
    %10 = arith.mulf %7, %9 : vector<72x64xf32>
    %c2 = arith.constant 2 : index
    %c0_7 = arith.constant 0 : index
    %11 = vector.load %arg3[%c2, %c0_7] : memref<3x64xf32, #tpu.memory_space<vmem>>, vector<1x64xf32>
    %12 = vector.broadcast %11 : vector<1x64xf32> to vector<72x64xf32>
    %13 = arith.addf %10, %12 : vector<72x64xf32>
    %14 = arith.truncf %13 : vector<72x64xf32> to vector<72x64xbf16>
    %c0_8 = arith.constant 0 : index
    %c0_9 = arith.constant 0 : index
    %15 = vector.load %arg4[%c0_8, %c0_9] : memref<72x64xbf16, #tpu.memory_space<vmem>>, vector<72x64xbf16>
    tpu.vector_store %arg4[%c0_8, %c0_9], %14 {strides = array<i32>} : memref<72x64xbf16, #tpu.memory_space<vmem>>, vector<72x64xbf16>,
    return
  }
  func.func @transform_0(%arg0: i32) -> (i32, i32) {
    %c0_i32 = arith.constant 0 : i32
    %c0_i32_0 = arith.constant 0 : i32
    return %arg0, %c0_i32 : i32, i32
  }
  func.func @transform_1(%arg0: i32) -> (i32, i32) {
    %c0_i32 = arith.constant 0 : i32
    %c0_i32_0 = arith.constant 0 : i32
    %c0_i32_1 = arith.constant 0 : i32
    return %c0_i32, %c0_i32_0 : i32, i32
  }
  func.func @transform_2(%arg0: i32) -> (i32, i32) {
    %c0_i32 = arith.constant 0 : i32
    %c0_i32_0 = arith.constant 0 : i32
    %c0_i32_1 = arith.constant 0 : i32
    return %c0_i32, %c0_i32_0 : i32, i32
  }
  func.func @transform_3(%arg0: i32) -> (i32, i32) {
    %c0_i32 = arith.constant 0 : i32
    %c0_i32_0 = arith.constant 0 : i32
    return %arg0, %c0_i32 : i32, i32
  }
}

module attributes {stable_mosaic.version = 11 : i64} {
  func.func @_conv_mm_kernel(%arg0: i32, %arg1: memref<10x1728xbf16, #tpu.memory_space<vmem>>, %arg2: memref<1728x128xbf16, #tpu.memory_space<vmem>>, %arg3: memref<3x128xf32, #tpu.memory_space<vmem>>, %arg4: memref<10x128xbf16, #tpu.memory_space<vmem>>) attributes {dimension_semantics = [#tpu.dimension_semantics<parallel>], iteration_bounds = array<i64: 1>, scalar_prefetch = 0 : i64, scratch_operands = 0 : i64, tpu.core_type = #tpu.core_type<tc>, window_params = [{transform_indices = @transform_0, window_bounds = array<i64: 10, 1728>}, {pipeline_mode = #tpu.pipeline_mode<synchronous>, transform_indices = @transform_1, window_bounds = array<i64: 1728, 128>}, {pipeline_mode = #tpu.pipeline_mode<synchronous>, transform_indices = @transform_2, window_bounds = array<i64: 3, 128>}, {transform_indices = @transform_3, window_bounds = array<i64: 10, 128>}]} {
    %c0 = arith.constant 0 : index
    %c0_0 = arith.constant 0 : index
    %0 = vector.load %arg1[%c0, %c0_0] : memref<10x1728xbf16, #tpu.memory_space<vmem>>, vector<10x1728xbf16>
    %c0_1 = arith.constant 0 : index
    %c0_2 = arith.constant 0 : index
    %1 = vector.load %arg2[%c0_1, %c0_2] : memref<1728x128xbf16, #tpu.memory_space<vmem>>, vector<1728x128xbf16>
    %cst = arith.constant dense<0.000000e+00> : vector<10x128xf32>
    %2 = tpu.matmul %0, %1, %cst {dimension_numbers = #tpu.dot_dimension_numbers<[1], [0], [0], [1], [0, 0, 1, 1], [], []>} : vector<10x1728xbf16>, vector<1728x128xbf16>, vector<10x128xf32> -> vector<10x128xf32>
    %c0_3 = arith.constant 0 : index
    %c0_4 = arith.constant 0 : index
    %3 = vector.load %arg3[%c0_3, %c0_4] : memref<3x128xf32, #tpu.memory_space<vmem>>, vector<1x128xf32>
    %4 = vector.broadcast %3 : vector<1x128xf32> to vector<10x128xf32>
    %5 = arith.addf %2, %4 : vector<10x128xf32>
    %cst_5 = arith.constant 0.000000e+00 : f32
    %6 = vector.broadcast %cst_5 : f32 to vector<10x128xf32>
    %7 = arith.maximumf %5, %6 : vector<10x128xf32>
    %c1 = arith.constant 1 : index
    %c0_6 = arith.constant 0 : index
    %8 = vector.load %arg3[%c1, %c0_6] : memref<3x128xf32, #tpu.memory_space<vmem>>, vector<1x128xf32>
    %9 = vector.broadcast %8 : vector<1x128xf32> to vector<10x128xf32>
    %10 = arith.mulf %7, %9 : vector<10x128xf32>
    %c2 = arith.constant 2 : index
    %c0_7 = arith.constant 0 : index
    %11 = vector.load %arg3[%c2, %c0_7] : memref<3x128xf32, #tpu.memory_space<vmem>>, vector<1x128xf32>
    %12 = vector.broadcast %11 : vector<1x128xf32> to vector<10x128xf32>
    %13 = arith.addf %10, %12 : vector<10x128xf32>
    %14 = arith.truncf %13 : vector<10x128xf32> to vector<10x128xbf16>
    %c0_8 = arith.constant 0 : index
    %c0_9 = arith.constant 0 : index
    %15 = vector.load %arg4[%c0_8, %c0_9] : memref<10x128xbf16, #tpu.memory_space<vmem>>, vector<10x128xbf16>
    tpu.vector_store %arg4[%c0_8, %c0_9], %14 {strides = array<i32>} : memref<10x128xbf16, #tpu.memory_space<vmem>>, vector<10x128xbf16>,
    return
  }
  func.func @transform_0(%arg0: i32) -> (i32, i32) {
    %c0_i32 = arith.constant 0 : i32
    %c0_i32_0 = arith.constant 0 : i32
    return %arg0, %c0_i32 : i32, i32
  }
  func.func @transform_1(%arg0: i32) -> (i32, i32) {
    %c0_i32 = arith.constant 0 : i32
    %c0_i32_0 = arith.constant 0 : i32
    %c0_i32_1 = arith.constant 0 : i32
    return %c0_i32, %c0_i32_0 : i32, i32
  }
  func.func @transform_2(%arg0: i32) -> (i32, i32) {
    %c0_i32 = arith.constant 0 : i32
    %c0_i32_0 = arith.constant 0 : i32
    %c0_i32_1 = arith.constant 0 : i32
    return %c0_i32, %c0_i32_0 : i32, i32
  }
  func.func @transform_3(%arg0: i32) -> (i32, i32) {
    %c0_i32 = arith.constant 0 : i32
    %c0_i32_0 = arith.constant 0 : i32
    return %arg0, %c0_i32 : i32, i32
  }
}

module attributes {stable_mosaic.version = 11 : i64} {
  func.func @_conv_mm_kernel(%arg0: i32, %arg1: memref<6x3456xbf16, #tpu.memory_space<vmem>>, %arg2: memref<3456x256xbf16, #tpu.memory_space<vmem>>, %arg3: memref<3x256xf32, #tpu.memory_space<vmem>>, %arg4: memref<6x256xbf16, #tpu.memory_space<vmem>>) attributes {dimension_semantics = [#tpu.dimension_semantics<parallel>], iteration_bounds = array<i64: 1>, scalar_prefetch = 0 : i64, scratch_operands = 0 : i64, tpu.core_type = #tpu.core_type<tc>, window_params = [{transform_indices = @transform_0, window_bounds = array<i64: 6, 3456>}, {pipeline_mode = #tpu.pipeline_mode<synchronous>, transform_indices = @transform_1, window_bounds = array<i64: 3456, 256>}, {pipeline_mode = #tpu.pipeline_mode<synchronous>, transform_indices = @transform_2, window_bounds = array<i64: 3, 256>}, {transform_indices = @transform_3, window_bounds = array<i64: 6, 256>}]} {
    %c0 = arith.constant 0 : index
    %c0_0 = arith.constant 0 : index
    %0 = vector.load %arg1[%c0, %c0_0] : memref<6x3456xbf16, #tpu.memory_space<vmem>>, vector<6x3456xbf16>
    %c0_1 = arith.constant 0 : index
    %c0_2 = arith.constant 0 : index
    %1 = vector.load %arg2[%c0_1, %c0_2] : memref<3456x256xbf16, #tpu.memory_space<vmem>>, vector<3456x256xbf16>
    %cst = arith.constant dense<0.000000e+00> : vector<6x256xf32>
    %2 = tpu.matmul %0, %1, %cst {dimension_numbers = #tpu.dot_dimension_numbers<[1], [0], [0], [1], [0, 0, 1, 1], [], []>} : vector<6x3456xbf16>, vector<3456x256xbf16>, vector<6x256xf32> -> vector<6x256xf32>
    %c0_3 = arith.constant 0 : index
    %c0_4 = arith.constant 0 : index
    %3 = vector.load %arg3[%c0_3, %c0_4] : memref<3x256xf32, #tpu.memory_space<vmem>>, vector<1x256xf32>
    %4 = vector.broadcast %3 : vector<1x256xf32> to vector<6x256xf32>
    %5 = arith.addf %2, %4 : vector<6x256xf32>
    %cst_5 = arith.constant 0.000000e+00 : f32
    %6 = vector.broadcast %cst_5 : f32 to vector<6x256xf32>
    %7 = arith.maximumf %5, %6 : vector<6x256xf32>
    %c1 = arith.constant 1 : index
    %c0_6 = arith.constant 0 : index
    %8 = vector.load %arg3[%c1, %c0_6] : memref<3x256xf32, #tpu.memory_space<vmem>>, vector<1x256xf32>
    %9 = vector.broadcast %8 : vector<1x256xf32> to vector<6x256xf32>
    %10 = arith.mulf %7, %9 : vector<6x256xf32>
    %c2 = arith.constant 2 : index
    %c0_7 = arith.constant 0 : index
    %11 = vector.load %arg3[%c2, %c0_7] : memref<3x256xf32, #tpu.memory_space<vmem>>, vector<1x256xf32>
    %12 = vector.broadcast %11 : vector<1x256xf32> to vector<6x256xf32>
    %13 = arith.addf %10, %12 : vector<6x256xf32>
    %14 = arith.truncf %13 : vector<6x256xf32> to vector<6x256xbf16>
    %c0_8 = arith.constant 0 : index
    %c0_9 = arith.constant 0 : index
    %15 = vector.load %arg4[%c0_8, %c0_9] : memref<6x256xbf16, #tpu.memory_space<vmem>>, vector<6x256xbf16>
    tpu.vector_store %arg4[%c0_8, %c0_9], %14 {strides = array<i32>} : memref<6x256xbf16, #tpu.memory_space<vmem>>, vector<6x256xbf16>,
    return
  }
  func.func @transform_0(%arg0: i32) -> (i32, i32) {
    %c0_i32 = arith.constant 0 : i32
    %c0_i32_0 = arith.constant 0 : i32
    return %arg0, %c0_i32 : i32, i32
  }
  func.func @transform_1(%arg0: i32) -> (i32, i32) {
    %c0_i32 = arith.constant 0 : i32
    %c0_i32_0 = arith.constant 0 : i32
    %c0_i32_1 = arith.constant 0 : i32
    return %c0_i32, %c0_i32_0 : i32, i32
  }
  func.func @transform_2(%arg0: i32) -> (i32, i32) {
    %c0_i32 = arith.constant 0 : i32
    %c0_i32_0 = arith.constant 0 : i32
    %c0_i32_1 = arith.constant 0 : i32
    return %c0_i32, %c0_i32_0 : i32, i32
  }
  func.func @transform_3(%arg0: i32) -> (i32, i32) {
    %c0_i32 = arith.constant 0 : i32
    %c0_i32_0 = arith.constant 0 : i32
    return %arg0, %c0_i32 : i32, i32
  }
}

module attributes {stable_mosaic.version = 11 : i64} {
  func.func @_conv_mm_kernel(%arg0: i32, %arg1: memref<4x6912xbf16, #tpu.memory_space<vmem>>, %arg2: memref<6912x256xbf16, #tpu.memory_space<vmem>>, %arg3: memref<3x256xf32, #tpu.memory_space<vmem>>, %arg4: memref<4x256xbf16, #tpu.memory_space<vmem>>) attributes {dimension_semantics = [#tpu.dimension_semantics<parallel>], iteration_bounds = array<i64: 1>, scalar_prefetch = 0 : i64, scratch_operands = 0 : i64, tpu.core_type = #tpu.core_type<tc>, window_params = [{transform_indices = @transform_0, window_bounds = array<i64: 4, 6912>}, {pipeline_mode = #tpu.pipeline_mode<synchronous>, transform_indices = @transform_1, window_bounds = array<i64: 6912, 256>}, {pipeline_mode = #tpu.pipeline_mode<synchronous>, transform_indices = @transform_2, window_bounds = array<i64: 3, 256>}, {transform_indices = @transform_3, window_bounds = array<i64: 4, 256>}]} {
    %c0 = arith.constant 0 : index
    %c0_0 = arith.constant 0 : index
    %0 = vector.load %arg1[%c0, %c0_0] : memref<4x6912xbf16, #tpu.memory_space<vmem>>, vector<4x6912xbf16>
    %c0_1 = arith.constant 0 : index
    %c0_2 = arith.constant 0 : index
    %1 = vector.load %arg2[%c0_1, %c0_2] : memref<6912x256xbf16, #tpu.memory_space<vmem>>, vector<6912x256xbf16>
    %cst = arith.constant dense<0.000000e+00> : vector<4x256xf32>
    %2 = tpu.matmul %0, %1, %cst {dimension_numbers = #tpu.dot_dimension_numbers<[1], [0], [0], [1], [0, 0, 1, 1], [], []>} : vector<4x6912xbf16>, vector<6912x256xbf16>, vector<4x256xf32> -> vector<4x256xf32>
    %c0_3 = arith.constant 0 : index
    %c0_4 = arith.constant 0 : index
    %3 = vector.load %arg3[%c0_3, %c0_4] : memref<3x256xf32, #tpu.memory_space<vmem>>, vector<1x256xf32>
    %4 = vector.broadcast %3 : vector<1x256xf32> to vector<4x256xf32>
    %5 = arith.addf %2, %4 : vector<4x256xf32>
    %cst_5 = arith.constant 0.000000e+00 : f32
    %6 = vector.broadcast %cst_5 : f32 to vector<4x256xf32>
    %7 = arith.maximumf %5, %6 : vector<4x256xf32>
    %c1 = arith.constant 1 : index
    %c0_6 = arith.constant 0 : index
    %8 = vector.load %arg3[%c1, %c0_6] : memref<3x256xf32, #tpu.memory_space<vmem>>, vector<1x256xf32>
    %9 = vector.broadcast %8 : vector<1x256xf32> to vector<4x256xf32>
    %10 = arith.mulf %7, %9 : vector<4x256xf32>
    %c2 = arith.constant 2 : index
    %c0_7 = arith.constant 0 : index
    %11 = vector.load %arg3[%c2, %c0_7] : memref<3x256xf32, #tpu.memory_space<vmem>>, vector<1x256xf32>
    %12 = vector.broadcast %11 : vector<1x256xf32> to vector<4x256xf32>
    %13 = arith.addf %10, %12 : vector<4x256xf32>
    %14 = arith.truncf %13 : vector<4x256xf32> to vector<4x256xbf16>
    %c0_8 = arith.constant 0 : index
    %c0_9 = arith.constant 0 : index
    %15 = vector.load %arg4[%c0_8, %c0_9] : memref<4x256xbf16, #tpu.memory_space<vmem>>, vector<4x256xbf16>
    tpu.vector_store %arg4[%c0_8, %c0_9], %14 {strides = array<i32>} : memref<4x256xbf16, #tpu.memory_space<vmem>>, vector<4x256xbf16>,
    return
  }
  func.func @transform_0(%arg0: i32) -> (i32, i32) {
    %c0_i32 = arith.constant 0 : i32
    %c0_i32_0 = arith.constant 0 : i32
    return %arg0, %c0_i32 : i32, i32
  }
  func.func @transform_1(%arg0: i32) -> (i32, i32) {
    %c0_i32 = arith.constant 0 : i32
    %c0_i32_0 = arith.constant 0 : i32
    %c0_i32_1 = arith.constant 0 : i32
    return %c0_i32, %c0_i32_0 : i32, i32
  }
  func.func @transform_2(%arg0: i32) -> (i32, i32) {
    %c0_i32 = arith.constant 0 : i32
    %c0_i32_0 = arith.constant 0 : i32
    %c0_i32_1 = arith.constant 0 : i32
    return %c0_i32, %c0_i32_0 : i32, i32
  }
  func.func @transform_3(%arg0: i32) -> (i32, i32) {
    %c0_i32 = arith.constant 0 : i32
    %c0_i32_0 = arith.constant 0 : i32
    return %arg0, %c0_i32 : i32, i32
  }
}

module attributes {stable_mosaic.version = 11 : i64} {
  func.func @_mlp_kernel(%arg0: i32, %arg1: memref<2x512xbf16, #tpu.memory_space<vmem>>, %arg2: memref<512x256xbf16, #tpu.memory_space<vmem>>, %arg3: memref<1x256xf32, #tpu.memory_space<vmem>>, %arg4: memref<256x128xbf16, #tpu.memory_space<vmem>>, %arg5: memref<1x128xf32, #tpu.memory_space<vmem>>, %arg6: memref<2x128xf32, #tpu.memory_space<vmem>>) attributes {dimension_semantics = [#tpu.dimension_semantics<arbitrary>], iteration_bounds = array<i64: 1>, scalar_prefetch = 0 : i64, scratch_operands = 0 : i64, tpu.core_type = #tpu.core_type<tc>, window_params = [{pipeline_mode = #tpu.pipeline_mode<synchronous>, transform_indices = @transform_0, window_bounds = array<i64: 2, 512>}, {pipeline_mode = #tpu.pipeline_mode<synchronous>, transform_indices = @transform_1, window_bounds = array<i64: 512, 256>}, {pipeline_mode = #tpu.pipeline_mode<synchronous>, transform_indices = @transform_2, window_bounds = array<i64: 1, 256>}, {pipeline_mode = #tpu.pipeline_mode<synchronous>, transform_indices = @transform_3, window_bounds = array<i64: 256, 128>}, {pipeline_mode = #tpu.pipeline_mode<synchronous>, transform_indices = @transform_4, window_bounds = array<i64: 1, 128>}, {pipeline_mode = #tpu.pipeline_mode<synchronous>, transform_indices = @transform_5, window_bounds = array<i64: 2, 128>}]} {
    %c0 = arith.constant 0 : index
    %c0_0 = arith.constant 0 : index
    %0 = vector.load %arg1[%c0, %c0_0] : memref<2x512xbf16, #tpu.memory_space<vmem>>, vector<2x512xbf16>
    %c0_1 = arith.constant 0 : index
    %c0_2 = arith.constant 0 : index
    %1 = vector.load %arg2[%c0_1, %c0_2] : memref<512x256xbf16, #tpu.memory_space<vmem>>, vector<512x256xbf16>
    %cst = arith.constant dense<0.000000e+00> : vector<2x256xf32>
    %2 = tpu.matmul %0, %1, %cst {dimension_numbers = #tpu.dot_dimension_numbers<[1], [0], [0], [1], [0, 0, 1, 1], [], []>} : vector<2x512xbf16>, vector<512x256xbf16>, vector<2x256xf32> -> vector<2x256xf32>
    %c0_3 = arith.constant 0 : index
    %c0_4 = arith.constant 0 : index
    %3 = vector.load %arg3[%c0_3, %c0_4] : memref<1x256xf32, #tpu.memory_space<vmem>>, vector<1x256xf32>
    %4 = vector.broadcast %3 : vector<1x256xf32> to vector<2x256xf32>
    %5 = arith.addf %2, %4 : vector<2x256xf32>
    %cst_5 = arith.constant 0.000000e+00 : f32
    %6 = vector.broadcast %cst_5 : f32 to vector<2x256xf32>
    %7 = arith.maximumf %5, %6 : vector<2x256xf32>
    %8 = arith.truncf %7 : vector<2x256xf32> to vector<2x256xbf16>
    %c0_6 = arith.constant 0 : index
    %c0_7 = arith.constant 0 : index
    %9 = vector.load %arg4[%c0_6, %c0_7] : memref<256x128xbf16, #tpu.memory_space<vmem>>, vector<256x128xbf16>
    %cst_8 = arith.constant dense<0.000000e+00> : vector<2x128xf32>
    %10 = tpu.matmul %8, %9, %cst_8 {dimension_numbers = #tpu.dot_dimension_numbers<[1], [0], [0], [1], [0, 0, 1, 1], [], []>} : vector<2x256xbf16>, vector<256x128xbf16>, vector<2x128xf32> -> vector<2x128xf32>
    %c0_9 = arith.constant 0 : index
    %c0_10 = arith.constant 0 : index
    %11 = vector.load %arg5[%c0_9, %c0_10] : memref<1x128xf32, #tpu.memory_space<vmem>>, vector<1x128xf32>
    %12 = vector.broadcast %11 : vector<1x128xf32> to vector<2x128xf32>
    %13 = arith.addf %10, %12 : vector<2x128xf32>
    %c0_11 = arith.constant 0 : index
    %c0_12 = arith.constant 0 : index
    %14 = vector.load %arg6[%c0_11, %c0_12] : memref<2x128xf32, #tpu.memory_space<vmem>>, vector<2x128xf32>
    tpu.vector_store %arg6[%c0_11, %c0_12], %13 {strides = array<i32>} : memref<2x128xf32, #tpu.memory_space<vmem>>, vector<2x128xf32>,
    return
  }
  func.func @transform_0(%arg0: i32) -> (i32, i32) {
    %c0_i32 = arith.constant 0 : i32
    %c0_i32_0 = arith.constant 0 : i32
    %c0_i32_1 = arith.constant 0 : i32
    return %c0_i32, %c0_i32_0 : i32, i32
  }
  func.func @transform_1(%arg0: i32) -> (i32, i32) {
    %c0_i32 = arith.constant 0 : i32
    %c0_i32_0 = arith.constant 0 : i32
    %c0_i32_1 = arith.constant 0 : i32
    return %c0_i32, %c0_i32_0 : i32, i32
  }
  func.func @transform_2(%arg0: i32) -> (i32, i32) {
    %c0_i32 = arith.constant 0 : i32
    %c0_i32_0 = arith.constant 0 : i32
    %c0_i32_1 = arith.constant 0 : i32
    return %c0_i32, %c0_i32_0 : i32, i32
  }
  func.func @transform_3(%arg0: i32) -> (i32, i32) {
    %c0_i32 = arith.constant 0 : i32
    %c0_i32_0 = arith.constant 0 : i32
    %c0_i32_1 = arith.constant 0 : i32
    return %c0_i32, %c0_i32_0 : i32, i32
  }
  func.func @transform_4(%arg0: i32) -> (i32, i32) {
    %c0_i32 = arith.constant 0 : i32
    %c0_i32_0 = arith.constant 0 : i32
    %c0_i32_1 = arith.constant 0 : i32
    return %c0_i32, %c0_i32_0 : i32, i32
  }
  func.func @transform_5(%arg0: i32) -> (i32, i32) {
    %c0_i32 = arith.constant 0 : i32
    %c0_i32_0 = arith.constant 0 : i32
    %c0_i32_1 = arith.constant 0 : i32
    return %c0_i32, %c0_i32_0 : i32, i32
  }
}

</mosaic_0001>

<llo_original>
// kernel: baby_c3d_forward.6
$region0: #{baby_c3d_forward.6}
  #allocation0 [shape = 'u32[]', space=smem, size = 0x4, offset = 0x4, fixed_abs, tag = 'smem constant byte address 0x4 - core index']
  #allocation1 [shape = 'u32[144,128]{1,0:T(1,128)}', space=vmem, size = 0x12000, scoped, tag = 'internal scratch']
  %s0 = inlined_call_operand.vmem [shape: bf16[900,256], index: 0, kind: input, shape index: {}]
  %s1 = inlined_call_operand.vmem [shape: bf16[256,32], index: 1, kind: input, shape index: {}]
  %s2 = inlined_call_operand.vmem [shape: f32[3,32], index: 2, kind: input, shape index: {}]
  %s3 = inlined_call_operand.vmem [shape: bf16[900,32], index: 3, kind: output, shape index: {}]
  %s4 = sld [smem:[#allocation0]]
  $region89: #{baby_c3d_forward.6} parent=0
    _
  %s6 = ssub.s32 1, %s4
  %s7 = scalar_select 0, %s6, %s4
  $region1: #{baby_c3d_forward.6} parent=0
    #allocation2 [shape = 'u8[131072]{0}', space=vmem, size = 0x20000, scoped, tag = 'output window, operand 0']
    loop: start=0, step=1, limit=6
    $region2: #{baby_c3d_forward.6} parent=1 // loop_pre_header
      _
    $region3: #{baby_c3d_forward.6} parent=1 // loop_header
      %s9 = sphi 0, %s13
      %p10 = scmp.ge.s32.totalorder %s9, 6
      %s19 = sphi 0, %s21
      %s22 = sphi 0, %s19
      %s23 = sphi 0, %s22
      %s39 = sphi 0, %s23
      %s43 = sphi 0, %s43
      %s45 = sphi 0, %s43
      %s46 = sphi 0, %s45
      %s60 = sphi 0, %s46
      %s64 = sphi 0, %s64
      %s66 = sphi 0, %s64
      %s67 = sphi 0, %s66
      %s81 = sphi 0, %s67
      %s87 = sphi 0, %s89
      %s90 = sphi 0, %s87
      %s91 = sphi 0, %s90
      %s107 = sphi 0, %s91
    $region4: #{baby_c3d_forward.6} parent=1 // loop_header_branch
      %12 = sbr.rel (%p10) target = $region8
    $region5: #{baby_c3d_forward.6} parent=1 // loop_body
      %s14 = ssub.s32 %s9, 1
      %s15 = ssub.s32 %s9, 2
      %s16 = sadd.s32 %s9, 1
      %s17 = ssub.s32 %s9, %s16
      %p18 = scmp.eq.s32.totalorder %s17, 0
      %s20 = sadd.s32 %s19, 1
      %s21 = scalar_select %p18, %s19, %s20
      %p24 = pneg %p18
      %p25 = scmp.eq.s32.totalorder %s9, 3
      %p26 = por %p24, %p25
      %p27 = scmp.ne.s32.totalorder %s19, %s22
      %p28 = scmp.eq.s32.totalorder %s9, 0
      %p29 = por %p27, %p28
      %p30 = scmp.ne.s32.totalorder %s19, %s22
      %p31 = scmp.eq.s32.totalorder %s14, 3
      %p32 = por %p30, %p31
      %p33 = scmp.ne.s32.totalorder %s22, %s23
      %p34 = scmp.eq.s32.totalorder %s14, 0
      %p35 = por %p33, %p34
      %p36 = scmp.ne.s32.totalorder %s22, %s23
      %p37 = scmp.eq.s32.totalorder %s15, 3
      %p38 = por %p36, %p37
      %p40 = scmp.ne.s32.totalorder %s23, %s39
      %p41 = scmp.eq.s32.totalorder %s15, 0
      %p42 = por %p40, %p41
      %s44 = sadd.s32 %s43, 1
      %p47 = scmp.eq.s32.totalorder %s9, 3
      %p48 = scmp.ne.s32.totalorder %s43, %s45
      %p49 = scmp.eq.s32.totalorder %s9, 0
      %p50 = por %p48, %p49
      %p51 = scmp.ne.s32.totalorder %s43, %s45
      %p52 = scmp.eq.s32.totalorder %s14, 3
      %p53 = por %p51, %p52
      %p54 = scmp.ne.s32.totalorder %s45, %s46
      %p55 = scmp.eq.s32.totalorder %s14, 0
      %p56 = por %p54, %p55
      %p57 = scmp.ne.s32.totalorder %s45, %s46
      %p58 = scmp.eq.s32.totalorder %s15, 3
      %p59 = por %p57, %p58
      %p61 = scmp.ne.s32.totalorder %s46, %s60
      %p62 = scmp.eq.s32.totalorder %s15, 0
      %p63 = por %p61, %p62
      %s65 = sadd.s32 %s64, 1
      %p68 = scmp.eq.s32.totalorder %s9, 3
      %p69 = scmp.ne.s32.totalorder %s64, %s66
      %p70 = scmp.eq.s32.totalorder %s9, 0
      %p71 = por %p69, %p70
      %p72 = scmp.ne.s32.totalorder %s64, %s66
      %p73 = scmp.eq.s32.totalorder %s14, 3
      %p74 = por %p72, %p73
      %p75 = scmp.ne.s32.totalorder %s66, %s67
      %p76 = scmp.eq.s32.totalorder %s14, 0
      %p77 = por %p75, %p76
      %p78 = scmp.ne.s32.totalorder %s66, %s67
      %p79 = scmp.eq.s32.totalorder %s15, 3
      %p80 = por %p78, %p79
      %p82 = scmp.ne.s32.totalorder %s67, %s81
      %p83 = scmp.eq.s32.totalorder %s15, 0
      %p84 = por %p82, %p83
      %s85 = ssub.s32 %s9, %s16
      %p86 = scmp.eq.s32.totalorder %s85, 0
      %s88 = sadd.s32 %s87, 1
      %s89 = scalar_select %p86, %s87, %s88
      %p92 = pneg %p86
      %p93 = scmp.eq.s32.totalorder %s9, 3
      %p94 = por %p92, %p93
      %p95 = scmp.ne.s32.totalorder %s87, %s90
      %p96 = scmp.eq.s32.totalorder %s9, 0
      %p97 = por %p95, %p96
      %p98 = scmp.ne.s32.totalorder %s87, %s90
      %p99 = scmp.eq.s32.totalorder %s14, 3
      %p100 = por %p98, %p99
      %p101 = scmp.ne.s32.totalorder %s90, %s91
      %p102 = scmp.eq.s32.totalorder %s14, 0
      %p103 = por %p101, %p102
      %p104 = scmp.ne.s32.totalorder %s90, %s91
      %p105 = scmp.eq.s32.totalorder %s15, 3
      %p106 = por %p104, %p105
      %p108 = scmp.ne.s32.totalorder %s91, %s107
      %p109 = scmp.eq.s32.totalorder %s15, 0
      %p110 = por %p108, %p109
      %p111 = scmp.le.s32.totalorder 1, %s9
      %p112 = scmp.lt.s32.totalorder %s9, 5
      %p113 = pnand %p111, %p112
      %p114 = pneg %p113
      // Predicated region
      $region9: #{baby_c3d_forward.6} parent=5 // pred_check
        _
      $region10: #{baby_c3d_forward.6} parent=5 // pred_check_branch
        %116 = sbr.rel (%p113) target = $region12
      $region11: #{baby_c3d_forward.6} parent=5 // pred_region
        %s117 = ssub.s32 %s9, 1
        // Predicated region
        $region13: #{baby_c3d_forward.6} parent=11 // pred_check
          %p118 = pneg %p56
        $region14: #{baby_c3d_forward.6} parent=11 // pred_check_branch
          %120 = sbr.rel (%p118) target = $region16
        $region15: #{baby_c3d_forward.6} parent=11 // pred_region
          _
        $region16: #{baby_c3d_forward.6} parent=11 // pred_fallthru
          _
        // Predicated region
        $region17: #{baby_c3d_forward.6} parent=11 // pred_check
          %p121 = pneg %p77
        $region18: #{baby_c3d_forward.6} parent=11 // pred_check_branch
          %123 = sbr.rel (%p121) target = $region20
        $region19: #{baby_c3d_forward.6} parent=11 // pred_region
          _
        $region20: #{baby_c3d_forward.6} parent=11 // pred_fallthru
          _
      $region12: #{baby_c3d_forward.6} parent=5 // pred_fallthru
        _
      %p124 = scmp.lt.s32.totalorder %s9, 4
      // Predicated region
      $region21: #{baby_c3d_forward.6} parent=5 // pred_check
        %p125 = pneg %p124
      $region22: #{baby_c3d_forward.6} parent=5 // pred_check_branch
        %127 = sbr.rel (%p125) target = $region24
      $region23: #{baby_c3d_forward.6} parent=5 // pred_region
        // Predicated region
        $region25: #{baby_c3d_forward.6} parent=23 // pred_check
          %p128 = pneg %p29
        $region26: #{baby_c3d_forward.6} parent=23 // pred_check_branch
          %130 = sbr.rel (%p128) target = $region28
        $region27: #{baby_c3d_forward.6} parent=23 // pred_region
          %s131 = smul.u32 32, %s9
          %s132 = ssub.s32 113, %s131
          %p133 = scmp.lt.s32.totalorder %s132, 32
          %s134 = scalar_select %p133, %s132, 32
          %s135 = smul.u32 64, %s134
          %s136 = smul.u32 %s135, 2
          %p137 = scmp.lt.s32.totalorder %s131, 112
          %s138 = scalar_select %p137, %s131, 112
          %s139 = smul.addr %s138, 2
          %s140 = smul.addr %s139, 4
          %s141 = scalar_lea.vmem %s0, %s140
          %s142 = smul.u32 32, %s9
          %s143 = ssub.s32 113, %s142
          %p144 = scmp.lt.s32.totalorder %s143, 32
          %s145 = scalar_select %p144, %s143, 32
          %s146 = smul.u32 64, %s145
          %s147 = smul.u32 %s146, 2
        $region28: #{baby_c3d_forward.6} parent=23 // pred_fallthru
          _
      $region24: #{baby_c3d_forward.6} parent=5 // pred_fallthru
        _
      %p148 = scmp.le.s32.totalorder 1, %s9
      %p149 = scmp.lt.s32.totalorder %s9, 5
      %p150 = pnand %p148, %p149
      %p151 = pneg %p150
      // Predicated region
      $region29: #{baby_c3d_forward.6} parent=5 // pred_check
        _
      $region30: #{baby_c3d_forward.6} parent=5 // pred_check_branch
        %153 = sbr.rel (%p150) target = $region32
      $region31: #{baby_c3d_forward.6} parent=5 // pred_region
        %s154 = ssub.s32 %s9, 1
        %s155 = smul.u32 32, %s14
        %s156 = ssub.s32 113, %s155
        %p157 = scmp.lt.s32.totalorder %s156, 32
        %s158 = scalar_select %p157, %s156, 32
        %s159 = smul.u32 64, %s158
        %s160 = smul.u32 %s159, 2
        %p161 = scmp.lt.s32.totalorder %s155, 112
        %s162 = scalar_select %p161, %s155, 112
        %s163 = smul.addr %s162, 2
        %s164 = smul.addr %s163, 4
        %s165 = scalar_lea.vmem %s0, %s164
        %p166 = pneg %p35
        %p167 = pneg %p32
        %p168 = pneg %p56
        %p169 = pneg %p53
        %p170 = pneg %p77
        %p171 = pneg %p74
        %p172 = pneg %p103
        %p173 = pneg %p100
        %s174 = sand.u32 %s90, 1
        %s175 = sand.u32 %s90, 1
        %s176 = smul.addr %s175, 128
        %s177 = scalar_lea.vmem [#allocation2], %s176
        %s178 = smul.u32 32, %s14
        %s179 = ssub.s32 113, %s178
        %p180 = scmp.lt.s32.totalorder %s179, 32
        %s181 = scalar_select %p180, %s179, 32
        %s182 = smul.u32 64, %s181
        %s183 = smul.u32 %s182, 2
        %p184 = scmp.lt.s32.totalorder %s178, 112
        %s185 = scalar_select %p184, %s178, 112
        %s186 = smul.addr %s185, 2
        %s187 = smul.addr %s186, 4
        %s188 = scalar_lea.vmem %s0, %s187
        %s189 = smul.u32 32, %s14
        %s190 = ssub.s32 113, %s189
        %p191 = scmp.lt.s32.totalorder %s190, 32
        %s192 = scalar_select %p191, %s190, 32
        %s193 = smul.u32 64, %s192
        %s194 = smul.u32 %s193, 2
        %s195 = smul.u32 32, %s14
        %s196 = ssub.s32 113, %s195
        %p197 = scmp.lt.s32.totalorder %s196, 32
        %s198 = scalar_select %p197, %s196, 32
        %s199 = smul.u32 64, %s198
        %v201 = vld [vmem:[%s188] sm:$0xff]
        %v202 = vld [vmem:[%s188 + $0x8] sm:$0xff]
        %v203 = vld [vmem:[%s188 + $0x10] sm:$0xff]
        %v204 = vld [vmem:[%s188 + $0x18] sm:$0xff]
        %v205 = vld [vmem:[%s188 + $0x20] sm:$0xff]
        %v206 = vld [vmem:[%s188 + $0x28] sm:$0xff]
        %v207 = vld [vmem:[%s188 + $0x30] sm:$0xff]
        %v208 = vld [vmem:[%s188 + $0x38] sm:$0xff]
        %v209 = vld [vmem:[%s188 + $0x40] sm:$0xff]
        %v210 = vld [vmem:[%s188 + $0x48] sm:$0xff]
        %v211 = vld [vmem:[%s188 + $0x50] sm:$0xff]
        %v212 = vld [vmem:[%s188 + $0x58] sm:$0xff]
        %v213 = vld [vmem:[%s188 + $0x60] sm:$0xff]
        %v214 = vld [vmem:[%s188 + $0x68] sm:$0xff]
        %v215 = vld [vmem:[%s188 + $0x70] sm:$0xff]
        %v216 = vld [vmem:[%s188 + $0x78] sm:$0xff]
        %v217 = vld [vmem:[%s188 + $0x80] sm:$0xff]
        %v218 = vld [vmem:[%s188 + $0x88] sm:$0xff]
        %v219 = vld [vmem:[%s188 + $0x90] sm:$0xff]
        %v220 = vld [vmem:[%s188 + $0x98] sm:$0xff]
        %v221 = vld [vmem:[%s188 + $0xa0] sm:$0xff]
        %v222 = vld [vmem:[%s188 + $0xa8] sm:$0xff]
        %v223 = vld [vmem:[%s188 + $0xb0] sm:$0xff]
        %v224 = vld [vmem:[%s188 + $0xb8] sm:$0xff]
        %v225 = vld [vmem:[%s188 + $0xc0] sm:$0xff]
        %v226 = vld [vmem:[%s188 + $0xc8] sm:$0xff]
        %v227 = vld [vmem:[%s188 + $0xd0] sm:$0xff]
        %v228 = vld [vmem:[%s188 + $0xd8] sm:$0xff]
        %v229 = vld [vmem:[%s188 + $0xe0] sm:$0xff]
        %v230 = vld [vmem:[%s188 + $0xe8] sm:$0xff]
        %v231 = vld [vmem:[%s188 + $0xf0] sm:$0xff]
        %v232 = vld [vmem:[%s188 + $0xf8] sm:$0xff]
        %v233 = vld [vmem:[%s1] sm:$0xf]
        %v234 = vld [vmem:[%s1 + $0x4] sm:$0xf]
        %v235 = vld [vmem:[%s1 + $0x8] sm:$0xf]
        %v236 = vld [vmem:[%s1 + $0xc] sm:$0xf]
        %v237 = vld [vmem:[%s1 + $0x10] sm:$0xf]
        %v238 = vld [vmem:[%s1 + $0x14] sm:$0xf]
        %v239 = vld [vmem:[%s1 + $0x18] sm:$0xf]
        %v240 = vld [vmem:[%s1 + $0x1c] sm:$0xf]
        %v241 = vld [vmem:[%s1 + $0x20] sm:$0xf]
        %v242 = vld [vmem:[%s1 + $0x24] sm:$0xf]
        %v243 = vld [vmem:[%s1 + $0x28] sm:$0xf]
        %v244 = vld [vmem:[%s1 + $0x2c] sm:$0xf]
        %v245 = vld [vmem:[%s1 + $0x30] sm:$0xf]
        %v246 = vld [vmem:[%s1 + $0x34] sm:$0xf]
        %v247 = vld [vmem:[%s1 + $0x38] sm:$0xf]
        %v248 = vld [vmem:[%s1 + $0x3c] sm:$0xf]
        %v249 = vld [vmem:[%s1 + $0x40] sm:$0xf]
        %v250 = vld [vmem:[%s1 + $0x44] sm:$0xf]
        %v251 = vld [vmem:[%s1 + $0x48] sm:$0xf]
        %v252 = vld [vmem:[%s1 + $0x4c] sm:$0xf]
        %v253 = vld [vmem:[%s1 + $0x50] sm:$0xf]
        %v254 = vld [vmem:[%s1 + $0x54] sm:$0xf]
        %v255 = vld [vmem:[%s1 + $0x58] sm:$0xf]
        %v256 = vld [vmem:[%s1 + $0x5c] sm:$0xf]
        %v257 = vld [vmem:[%s1 + $0x60] sm:$0xf]
        %v258 = vld [vmem:[%s1 + $0x64] sm:$0xf]
        %v259 = vld [vmem:[%s1 + $0x68] sm:$0xf]
        %v260 = vld [vmem:[%s1 + $0x6c] sm:$0xf]
        %v261 = vld [vmem:[%s1 + $0x70] sm:$0xf]
        %v262 = vld [vmem:[%s1 + $0x74] sm:$0xf]
        %v263 = vld [vmem:[%s1 + $0x78] sm:$0xf]
        %v264 = vld [vmem:[%s1 + $0x7c] sm:$0xf]
        %v265 = vld [vmem:[%s2] sm:$0x1]
        %v266 = vlaneseq
        %v267 = vshrl.u32 %v266, 7
        %v268 = vsub.s32 0, %v267
        %v269 = vrot.slane %v265, %v268
        %v302 = vunpack.c.l.b16 %v201
        %v303 = vunpack.c.h.b16 %v201
        %v304 = vunpack.c.l.b16 %v202
        %v305 = vunpack.c.h.b16 %v202
        %v306 = vunpack.c.l.b16 %v203
        %v307 = vunpack.c.h.b16 %v203
        %v308 = vunpack.c.l.b16 %v204
        %v309 = vunpack.c.h.b16 %v204
        %v310 = vunpack.c.l.b16 %v205
        %v311 = vunpack.c.h.b16 %v205
        %v312 = vunpack.c.l.b16 %v206
        %v313 = vunpack.c.h.b16 %v206
        %v314 = vunpack.c.l.b16 %v207
        %v315 = vunpack.c.h.b16 %v207
        %v316 = vunpack.c.l.b16 %v208
        %v317 = vunpack.c.h.b16 %v208
        %v318 = vunpack.c.l.b16 %v209
        %v319 = vunpack.c.h.b16 %v209
        %v320 = vunpack.c.l.b16 %v210
        %v321 = vunpack.c.h.b16 %v210
        %v322 = vunpack.c.l.b16 %v211
        %v323 = vunpack.c.h.b16 %v211
        %v324 = vunpack.c.l.b16 %v212
        %v325 = vunpack.c.h.b16 %v212
        %v326 = vunpack.c.l.b16 %v213
        %v327 = vunpack.c.h.b16 %v213
        %v328 = vunpack.c.l.b16 %v214
        %v329 = vunpack.c.h.b16 %v214
        %v330 = vunpack.c.l.b16 %v215
        %v331 = vunpack.c.h.b16 %v215
        %v332 = vunpack.c.l.b16 %v216
        %v333 = vunpack.c.h.b16 %v216
        %v334 = vunpack.c.l.b16 %v217
        %v335 = vunpack.c.h.b16 %v217
        %v336 = vunpack.c.l.b16 %v218
        %v337 = vunpack.c.h.b16 %v218
        %v338 = vunpack.c.l.b16 %v219
        %v339 = vunpack.c.h.b16 %v219
        %v340 = vunpack.c.l.b16 %v220
        %v341 = vunpack.c.h.b16 %v220
        %v342 = vunpack.c.l.b16 %v221
        %v343 = vunpack.c.h.b16 %v221
        %v344 = vunpack.c.l.b16 %v222
        %v345 = vunpack.c.h.b16 %v222
        %v346 = vunpack.c.l.b16 %v223
        %v347 = vunpack.c.h.b16 %v223
        %v348 = vunpack.c.l.b16 %v224
        %v349 = vunpack.c.h.b16 %v224
        %v350 = vunpack.c.l.b16 %v225
        %v351 = vunpack.c.h.b16 %v225
        %v352 = vunpack.c.l.b16 %v226
        %v353 = vunpack.c.h.b16 %v226
        %v354 = vunpack.c.l.b16 %v227
        %v355 = vunpack.c.h.b16 %v227
        %v356 = vunpack.c.l.b16 %v228
        %v357 = vunpack.c.h.b16 %v228
        %v358 = vunpack.c.l.b16 %v229
        %v359 = vunpack.c.h.b16 %v229
        %v360 = vunpack.c.l.b16 %v230
        %v361 = vunpack.c.h.b16 %v230
        %v362 = vunpack.c.l.b16 %v231
        %v363 = vunpack.c.h.b16 %v231
        %v364 = vunpack.c.l.b16 %v232
        %v365 = vunpack.c.h.b16 %v232
        %v366 = vpack.c.b16 %v304, %v302
        %v367 = vpack.c.b16 %v305, %v303
        %v368 = vpack.c.b16 %v308, %v306
        %v369 = vpack.c.b16 %v309, %v307
        %v370 = vpack.c.b16 %v312, %v310
        %v371 = vpack.c.b16 %v313, %v311
        %v372 = vpack.c.b16 %v316, %v314
        %v373 = vpack.c.b16 %v317, %v315
        %v374 = vpack.c.b16 %v320, %v318
        %v375 = vpack.c.b16 %v321, %v319
        %v376 = vpack.c.b16 %v324, %v322
        %v377 = vpack.c.b16 %v325, %v323
        %v378 = vpack.c.b16 %v328, %v326
        %v379 = vpack.c.b16 %v329, %v327
        %v380 = vpack.c.b16 %v332, %v330
        %v381 = vpack.c.b16 %v333, %v331
        %v382 = vpack.c.b16 %v336, %v334
        %v383 = vpack.c.b16 %v337, %v335
        %v384 = vpack.c.b16 %v340, %v338
        %v385 = vpack.c.b16 %v341, %v339
        %v386 = vpack.c.b16 %v344, %v342
        %v387 = vpack.c.b16 %v345, %v343
        %v388 = vpack.c.b16 %v348, %v346
        %v389 = vpack.c.b16 %v349, %v347
        %v390 = vpack.c.b16 %v352, %v350
        %v391 = vpack.c.b16 %v353, %v351
        %v392 = vpack.c.b16 %v356, %v354
        %v393 = vpack.c.b16 %v357, %v355
        %v394 = vpack.c.b16 %v360, %v358
        %v395 = vpack.c.b16 %v361, %v359
        %v396 = vpack.c.b16 %v364, %v362
        %v397 = vpack.c.b16 %v365, %v363
        %v462 = vunpack.c.l.b16 %v233
        %v463 = vunpack.c.l.b16 %v234
        %v464 = vunpack.c.l.b16 %v235
        %v465 = vunpack.c.l.b16 %v236
        %v466 = vunpack.c.l.b16 %v237
        %v467 = vunpack.c.l.b16 %v238
        %v468 = vunpack.c.l.b16 %v239
        %v469 = vunpack.c.l.b16 %v240
        %v470 = vunpack.c.l.b16 %v241
        %v471 = vunpack.c.l.b16 %v242
        %v472 = vunpack.c.l.b16 %v243
        %v473 = vunpack.c.l.b16 %v244
        %v474 = vunpack.c.l.b16 %v245
        %v475 = vunpack.c.l.b16 %v246
        %v476 = vunpack.c.l.b16 %v247
        %v477 = vunpack.c.l.b16 %v248
        %v478 = vunpack.c.l.b16 %v249
        %v479 = vunpack.c.l.b16 %v250
        %v480 = vunpack.c.l.b16 %v251
        %v481 = vunpack.c.l.b16 %v252
        %v482 = vunpack.c.l.b16 %v253
        %v483 = vunpack.c.l.b16 %v254
        %v484 = vunpack.c.l.b16 %v255
        %v485 = vunpack.c.l.b16 %v256
        %v486 = vunpack.c.l.b16 %v257
        %v487 = vunpack.c.l.b16 %v258
        %v488 = vunpack.c.l.b16 %v259
        %v489 = vunpack.c.l.b16 %v260
        %v490 = vunpack.c.l.b16 %v261
        %v491 = vunpack.c.l.b16 %v262
        %v492 = vunpack.c.l.b16 %v263
        %v493 = vunpack.c.l.b16 %v264
        %v494 = vpack.c.b16 %v463, %v462
        %v495 = vpack.c.b16 %v465, %v464
        %v496 = vpack.c.b16 %v467, %v466
        %v497 = vpack.c.b16 %v469, %v468
        %v498 = vpack.c.b16 %v471, %v470
        %v499 = vpack.c.b16 %v473, %v472
        %v500 = vpack.c.b16 %v475, %v474
        %v501 = vpack.c.b16 %v477, %v476
        %v502 = vpack.c.b16 %v479, %v478
        %v503 = vpack.c.b16 %v481, %v480
        %v504 = vpack.c.b16 %v483, %v482
        %v505 = vpack.c.b16 %v485, %v484
        %v506 = vpack.c.b16 %v487, %v486
        %v507 = vpack.c.b16 %v489, %v488
        %v508 = vpack.c.b16 %v491, %v490
        %v509 = vpack.c.b16 %v493, %v492
        %526 = vmatprep.subr.bf16.mxu0 0
        %527 = vmatpush1.bf16.msra.mxu0 %v501
        %528 = vmatprep.subr.bf16.mxu0 0
        %529 = vmatpush1.bf16.msra.mxu0 %v500
        %530 = vmatprep.subr.bf16.mxu0 0
        %531 = vmatpush1.bf16.msra.mxu0 %v499
        %532 = vmatprep.subr.bf16.mxu0 0
        %533 = vmatpush1.bf16.msra.mxu0 %v498
        %534 = vmatprep.subr.bf16.mxu0 0
        %535 = vmatpush1.bf16.msra.mxu0 %v497
        %536 = vmatprep.subr.bf16.mxu0 0
        %537 = vmatpush1.bf16.msra.mxu0 %v496
        %538 = vmatprep.subr.bf16.mxu0 0
        %539 = vmatpush1.bf16.msra.mxu0 %v495
        %540 = vmatprep.subr.bf16.mxu0 0
        %541 = vmatpush1.bf16.msra.mxu0 %v494
        %542 = vmatprep.subr.bf16.mxu0 0
        %543 = vmatpush2.bf16.msra.mxu0 %v509
        %544 = vmatprep.subr.bf16.mxu0 0
        %545 = vmatpush2.bf16.msra.mxu0 %v508
        %546 = vmatprep.subr.bf16.mxu0 0
        %547 = vmatpush2.bf16.msra.mxu0 %v507
        %548 = vmatprep.subr.bf16.mxu0 0
        %549 = vmatpush2.bf16.msra.mxu0 %v506
        %550 = vmatprep.subr.bf16.mxu0 0
        %551 = vmatpush2.bf16.msra.mxu0 %v505
        %552 = vmatprep.subr.bf16.mxu0 0
        %553 = vmatpush2.bf16.msra.mxu0 %v504
        %554 = vmatprep.subr.bf16.mxu0 0
        %555 = vmatpush2.bf16.msra.mxu0 %v503
        %556 = vmatprep.subr.bf16.mxu0 0
        %557 = vmatpush2.bf16.msra.mxu0 %v502
        %558 = vmatprep.mubr.bf16.mxu0 %v367
        %559 = vmatmul.mubr.bf16.gmra.mxu0 %v366
        %v560 = vpop.f32.mrf.mxu0
        %v561 = vadd.f32 %v269, %v560
        %v562 = vpop.f32.mrf.mxu0
        %v563 = vpop.f32.mrf.mxu0
        %v564 = vadd.f32 %v269, %v563
        %v565 = vpop.f32.mrf.mxu0
        %566 = vmatprep.mubr.bf16.mxu0 %v369
        %567 = vmatmul.mubr.bf16.gmra.mxu0 %v368
        %v568 = vpop.f32.mrf.mxu0
        %v569 = vadd.f32 %v269, %v568
        %v570 = vpop.f32.mrf.mxu0
        %v571 = vpop.f32.mrf.mxu0
        %v572 = vadd.f32 %v269, %v571
        %v573 = vpop.f32.mrf.mxu0
        %574 = vmatprep.mubr.bf16.mxu0 %v371
        %575 = vmatmul.mubr.bf16.gmra.mxu0 %v370
        %v576 = vpop.f32.mrf.mxu0
        %v577 = vadd.f32 %v269, %v576
        %v578 = vpop.f32.mrf.mxu0
        %v579 = vpop.f32.mrf.mxu0
        %v580 = vadd.f32 %v269, %v579
        %v581 = vpop.f32.mrf.mxu0
        %582 = vmatprep.mubr.bf16.mxu0 %v373
        %583 = vmatmul.mubr.bf16.gmra.mxu0 %v372
        %v584 = vpop.f32.mrf.mxu0
        %v585 = vadd.f32 %v269, %v584
        %v586 = vpop.f32.mrf.mxu0
        %v587 = vpop.f32.mrf.mxu0
        %v588 = vadd.f32 %v269, %v587
        %v589 = vpop.f32.mrf.mxu0
        %590 = vmatprep.mubr.bf16.mxu0 %v375
        %591 = vmatmul.mubr.bf16.gmra.mxu0 %v374
        %v592 = vpop.f32.mrf.mxu0
        %v593 = vadd.f32 %v269, %v592
        %v594 = vpop.f32.mrf.mxu0
        %v595 = vpop.f32.mrf.mxu0
        %v596 = vadd.f32 %v269, %v595
        %v597 = vpop.f32.mrf.mxu0
        %598 = vmatprep.mubr.bf16.mxu0 %v377
        %599 = vmatmul.mubr.bf16.gmra.mxu0 %v376
        %v600 = vpop.f32.mrf.mxu0
        %v601 = vadd.f32 %v269, %v600
        %v602 = vpop.f32.mrf.mxu0
        %v603 = vpop.f32.mrf.mxu0
        %v604 = vadd.f32 %v269, %v603
        %v605 = vpop.f32.mrf.mxu0
        %606 = vmatprep.mubr.bf16.mxu0 %v379
        %607 = vmatmul.mubr.bf16.gmra.mxu0 %v378
        %v608 = vpop.f32.mrf.mxu0
        %v609 = vadd.f32 %v269, %v608
        %v610 = vpop.f32.mrf.mxu0
        %v611 = vpop.f32.mrf.mxu0
        %v612 = vadd.f32 %v269, %v611
        %v613 = vpop.f32.mrf.mxu0
        %614 = vmatprep.mubr.bf16.mxu0 %v381
        %615 = vmatmul.mubr.bf16.gmra.mxu0 %v380
        %v616 = vpop.f32.mrf.mxu0
        %v617 = vadd.f32 %v269, %v616
        %v618 = vpop.f32.mrf.mxu0
        %v619 = vpop.f32.mrf.mxu0
        %v620 = vadd.f32 %v269, %v619
        %v621 = vpop.f32.mrf.mxu0
        %622 = vmatprep.mubr.bf16.mxu0 %v383
        %623 = vmatmul.mubr.bf16.gmra.mxu0 %v382
        %v624 = vpop.f32.mrf.mxu0
        %v625 = vadd.f32 %v269, %v624
        %v626 = vpop.f32.mrf.mxu0
        %v627 = vpop.f32.mrf.mxu0
        %v628 = vadd.f32 %v269, %v627
        %v629 = vpop.f32.mrf.mxu0
        %630 = vmatprep.mubr.bf16.mxu0 %v385
        %631 = vmatmul.mubr.bf16.gmra.mxu0 %v384
        %v632 = vpop.f32.mrf.mxu0
        %v633 = vadd.f32 %v269, %v632
        %v634 = vpop.f32.mrf.mxu0
        %v635 = vpop.f32.mrf.mxu0
        %v636 = vadd.f32 %v269, %v635
        %v637 = vpop.f32.mrf.mxu0
        %638 = vmatprep.mubr.bf16.mxu0 %v387
        %639 = vmatmul.mubr.bf16.gmra.mxu0 %v386
        %v640 = vpop.f32.mrf.mxu0
        %v641 = vadd.f32 %v269, %v640
        %v642 = vpop.f32.mrf.mxu0
        %v643 = vpop.f32.mrf.mxu0
        %v644 = vadd.f32 %v269, %v643
        %v645 = vpop.f32.mrf.mxu0
        %646 = vmatprep.mubr.bf16.mxu0 %v389
        %647 = vmatmul.mubr.bf16.gmra.mxu0 %v388
        %v648 = vpop.f32.mrf.mxu0
        %v649 = vadd.f32 %v269, %v648
        %v650 = vpop.f32.mrf.mxu0
        %v651 = vpop.f32.mrf.mxu0
        %v652 = vadd.f32 %v269, %v651
        %v653 = vpop.f32.mrf.mxu0
        %654 = vmatprep.mubr.bf16.mxu0 %v391
        %655 = vmatmul.mubr.bf16.gmra.mxu0 %v390
        %v656 = vpop.f32.mrf.mxu0
        %v657 = vadd.f32 %v269, %v656
        %v658 = vpop.f32.mrf.mxu0
        %v659 = vpop.f32.mrf.mxu0
        %v660 = vadd.f32 %v269, %v659
        %v661 = vpop.f32.mrf.mxu0
        %662 = vmatprep.mubr.bf16.mxu0 %v393
        %663 = vmatmul.mubr.bf16.gmra.mxu0 %v392
        %v664 = vpop.f32.mrf.mxu0
        %v665 = vadd.f32 %v269, %v664
        %v666 = vpop.f32.mrf.mxu0
        %v667 = vpop.f32.mrf.mxu0
        %v668 = vadd.f32 %v269, %v667
        %v669 = vpop.f32.mrf.mxu0
        %670 = vmatprep.mubr.bf16.mxu0 %v395
        %671 = vmatmul.mubr.bf16.gmra.mxu0 %v394
        %v672 = vpop.f32.mrf.mxu0
        %v673 = vadd.f32 %v269, %v672
        %v674 = vpop.f32.mrf.mxu0
        %v675 = vpop.f32.mrf.mxu0
        %v676 = vadd.f32 %v269, %v675
        %v677 = vpop.f32.mrf.mxu0
        %678 = vmatprep.mubr.bf16.mxu0 %v397
        %679 = vmatmul.mubr.bf16.gmra.mxu0 %v396
        %v680 = vpop.f32.mrf.mxu0
        %v681 = vadd.f32 %v269, %v680
        %v682 = vpop.f32.mrf.mxu0
        %v683 = vpop.f32.mrf.mxu0
        %v684 = vadd.f32 %v269, %v683
        %v685 = vpop.f32.mrf.mxu0
        %686 = vdwg.mxu0
        %v687 = vmax.f32 %v561, 0.0
        %v688 = vmax.f32 %v564, 0.0
        %v689 = vmax.f32 %v569, 0.0
        %v690 = vmax.f32 %v572, 0.0
        %v691 = vmax.f32 %v577, 0.0
        %v692 = vmax.f32 %v580, 0.0
        %v693 = vmax.f32 %v585, 0.0
        %v694 = vmax.f32 %v588, 0.0
        %v695 = vmax.f32 %v593, 0.0
        %v696 = vmax.f32 %v596, 0.0
        %v697 = vmax.f32 %v601, 0.0
        %v698 = vmax.f32 %v604, 0.0
        %v699 = vmax.f32 %v609, 0.0
        %v700 = vmax.f32 %v612, 0.0
        %v701 = vmax.f32 %v617, 0.0
        %v702 = vmax.f32 %v620, 0.0
        %v703 = vmax.f32 %v625, 0.0
        %v704 = vmax.f32 %v628, 0.0
        %v705 = vmax.f32 %v633, 0.0
        %v706 = vmax.f32 %v636, 0.0
        %v707 = vmax.f32 %v641, 0.0
        %v708 = vmax.f32 %v644, 0.0
        %v709 = vmax.f32 %v649, 0.0
        %v710 = vmax.f32 %v652, 0.0
        %v711 = vmax.f32 %v657, 0.0
        %v712 = vmax.f32 %v660, 0.0
        %v713 = vmax.f32 %v665, 0.0
        %v714 = vmax.f32 %v668, 0.0
        %v715 = vmax.f32 %v673, 0.0
        %v716 = vmax.f32 %v676, 0.0
        %v717 = vmax.f32 %v681, 0.0
        %v718 = vmax.f32 %v684, 0.0
        %v719 = vld [vmem:[%s2 + $0x1] sm:$0x1]
        %v720 = vlaneseq
        %v721 = vshrl.u32 %v720, 7
        %v722 = vsub.s32 0, %v721
        %v723 = vrot.slane %v719, %v722
        %v724 = vmul.f32 %v687, %v723
        %v725 = vmul.f32 %v688, %v723
        %v726 = vmul.f32 %v689, %v723
        %v727 = vmul.f32 %v690, %v723
        %v728 = vmul.f32 %v691, %v723
        %v729 = vmul.f32 %v692, %v723
        %v730 = vmul.f32 %v693, %v723
        %v731 = vmul.f32 %v694, %v723
        %v732 = vmul.f32 %v695, %v723
        %v733 = vmul.f32 %v696, %v723
        %v734 = vmul.f32 %v697, %v723
        %v735 = vmul.f32 %v698, %v723
        %v736 = vmul.f32 %v699, %v723
        %v737 = vmul.f32 %v700, %v723
        %v738 = vmul.f32 %v701, %v723
        %v739 = vmul.f32 %v702, %v723
        %v740 = vmul.f32 %v703, %v723
        %v741 = vmul.f32 %v704, %v723
        %v742 = vmul.f32 %v705, %v723
        %v743 = vmul.f32 %v706, %v723
        %v744 = vmul.f32 %v707, %v723
        %v745 = vmul.f32 %v708, %v723
        %v746 = vmul.f32 %v709, %v723
        %v747 = vmul.f32 %v710, %v723
        %v748 = vmul.f32 %v711, %v723
        %v749 = vmul.f32 %v712, %v723
        %v750 = vmul.f32 %v713, %v723
        %v751 = vmul.f32 %v714, %v723
        %v752 = vmul.f32 %v715, %v723
        %v753 = vmul.f32 %v716, %v723
        %v754 = vmul.f32 %v717, %v723
        %v755 = vmul.f32 %v718, %v723
        %v756 = vld [vmem:[%s2 + $0x2] sm:$0x1]
        %v757 = vlaneseq
        %v758 = vshrl.u32 %v757, 7
        %v759 = vsub.s32 0, %v758
        %v760 = vrot.slane %v756, %v759
        %v761 = vadd.f32 %v724, %v760
        %v762 = vadd.f32 %v725, %v760
        %v763 = vadd.f32 %v726, %v760
        %v764 = vadd.f32 %v727, %v760
        %v765 = vadd.f32 %v728, %v760
        %v766 = vadd.f32 %v729, %v760
        %v767 = vadd.f32 %v730, %v760
        %v768 = vadd.f32 %v731, %v760
        %v769 = vadd.f32 %v732, %v760
        %v770 = vadd.f32 %v733, %v760
        %v771 = vadd.f32 %v734, %v760
        %v772 = vadd.f32 %v735, %v760
        %v773 = vadd.f32 %v736, %v760
        %v774 = vadd.f32 %v737, %v760
        %v775 = vadd.f32 %v738, %v760
        %v776 = vadd.f32 %v739, %v760
        %v777 = vadd.f32 %v740, %v760
        %v778 = vadd.f32 %v741, %v760
        %v779 = vadd.f32 %v742, %v760
        %v780 = vadd.f32 %v743, %v760
        %v781 = vadd.f32 %v744, %v760
        %v782 = vadd.f32 %v745, %v760
        %v783 = vadd.f32 %v746, %v760
        %v784 = vadd.f32 %v747, %v760
        %v785 = vadd.f32 %v748, %v760
        %v786 = vadd.f32 %v749, %v760
        %v787 = vadd.f32 %v750, %v760
        %v788 = vadd.f32 %v751, %v760
        %v789 = vadd.f32 %v752, %v760
        %v790 = vadd.f32 %v753, %v760
        %v791 = vadd.f32 %v754, %v760
        %v792 = vadd.f32 %v755, %v760
        %v793 = vpack.c.bf16 %v762, %v761
        %v794 = vpack.c.bf16 %v764, %v763
        %v795 = vpack.c.bf16 %v766, %v765
        %v796 = vpack.c.bf16 %v768, %v767
        %v797 = vpack.c.bf16 %v770, %v769
        %v798 = vpack.c.bf16 %v772, %v771
        %v799 = vpack.c.bf16 %v774, %v773
        %v800 = vpack.c.bf16 %v776, %v775
        %v801 = vpack.c.bf16 %v778, %v777
        %v802 = vpack.c.bf16 %v780, %v779
        %v803 = vpack.c.bf16 %v782, %v781
        %v804 = vpack.c.bf16 %v784, %v783
        %v805 = vpack.c.bf16 %v786, %v785
        %v806 = vpack.c.bf16 %v788, %v787
        %v807 = vpack.c.bf16 %v790, %v789
        %v808 = vpack.c.bf16 %v792, %v791
        %v825 = vunpack.c.l.b16 %v793
        %v826 = vunpack.c.h.b16 %v793
        %v827 = vunpack.c.l.b16 %v794
        %v828 = vunpack.c.h.b16 %v794
        %v829 = vunpack.c.l.b16 %v795
        %v830 = vunpack.c.h.b16 %v795
        %v831 = vunpack.c.l.b16 %v796
        %v832 = vunpack.c.h.b16 %v796
        %v833 = vunpack.c.l.b16 %v797
        %v834 = vunpack.c.h.b16 %v797
        %v835 = vunpack.c.l.b16 %v798
        %v836 = vunpack.c.h.b16 %v798
        %v837 = vunpack.c.l.b16 %v799
        %v838 = vunpack.c.h.b16 %v799
        %v839 = vunpack.c.l.b16 %v800
        %v840 = vunpack.c.h.b16 %v800
        %v841 = vunpack.c.l.b16 %v801
        %v842 = vunpack.c.h.b16 %v801
        %v843 = vunpack.c.l.b16 %v802
        %v844 = vunpack.c.h.b16 %v802
        %v845 = vunpack.c.l.b16 %v803
        %v846 = vunpack.c.h.b16 %v803
        %v847 = vunpack.c.l.b16 %v804
        %v848 = vunpack.c.h.b16 %v804
        %v849 = vunpack.c.l.b16 %v805
        %v850 = vunpack.c.h.b16 %v805
        %v851 = vunpack.c.l.b16 %v806
        %v852 = vunpack.c.h.b16 %v806
        %v853 = vunpack.c.l.b16 %v807
        %v854 = vunpack.c.h.b16 %v807
        %v855 = vunpack.c.l.b16 %v808
        %v856 = vunpack.c.h.b16 %v808
        %v857 = vpack.c.b16 %v825, %v825
        %v858 = vpack.c.b16 %v826, %v826
        %v859 = vpack.c.b16 %v827, %v827
        %v860 = vpack.c.b16 %v828, %v828
        %v861 = vpack.c.b16 %v829, %v829
        %v862 = vpack.c.b16 %v830, %v830
        %v863 = vpack.c.b16 %v831, %v831
        %v864 = vpack.c.b16 %v832, %v832
        %v865 = vpack.c.b16 %v833, %v833
        %v866 = vpack.c.b16 %v834, %v834
        %v867 = vpack.c.b16 %v835, %v835
        %v868 = vpack.c.b16 %v836, %v836
        %v869 = vpack.c.b16 %v837, %v837
        %v870 = vpack.c.b16 %v838, %v838
        %v871 = vpack.c.b16 %v839, %v839
        %v872 = vpack.c.b16 %v840, %v840
        %v873 = vpack.c.b16 %v841, %v841
        %v874 = vpack.c.b16 %v842, %v842
        %v875 = vpack.c.b16 %v843, %v843
        %v876 = vpack.c.b16 %v844, %v844
        %v877 = vpack.c.b16 %v845, %v845
        %v878 = vpack.c.b16 %v846, %v846
        %v879 = vpack.c.b16 %v847, %v847
        %v880 = vpack.c.b16 %v848, %v848
        %v881 = vpack.c.b16 %v849, %v849
        %v882 = vpack.c.b16 %v850, %v850
        %v883 = vpack.c.b16 %v851, %v851
        %v884 = vpack.c.b16 %v852, %v852
        %v885 = vpack.c.b16 %v853, %v853
        %v886 = vpack.c.b16 %v854, %v854
        %v887 = vpack.c.b16 %v855, %v855
        %v888 = vpack.c.b16 %v856, %v856
        %vm921 = vcmask 257024
        %922 = vst.msk [vmem:[%s177] sm:$0xf] %vm921, %v857
        %923 = vst.msk [vmem:[%s177 + $0x4] sm:$0xf] %vm921, %v858
        %924 = vst.msk [vmem:[%s177 + $0x8] sm:$0xf] %vm921, %v859
        %925 = vst.msk [vmem:[%s177 + $0xc] sm:$0xf] %vm921, %v860
        %926 = vst.msk [vmem:[%s177 + $0x10] sm:$0xf] %vm921, %v861
        %927 = vst.msk [vmem:[%s177 + $0x14] sm:$0xf] %vm921, %v862
        %928 = vst.msk [vmem:[%s177 + $0x18] sm:$0xf] %vm921, %v863
        %929 = vst.msk [vmem:[%s177 + $0x1c] sm:$0xf] %vm921, %v864
        %930 = vst.msk [vmem:[%s177 + $0x20] sm:$0xf] %vm921, %v865
        %931 = vst.msk [vmem:[%s177 + $0x24] sm:$0xf] %vm921, %v866
        %932 = vst.msk [vmem:[%s177 + $0x28] sm:$0xf] %vm921, %v867
        %933 = vst.msk [vmem:[%s177 + $0x2c] sm:$0xf] %vm921, %v868
        %934 = vst.msk [vmem:[%s177 + $0x30] sm:$0xf] %vm921, %v869
        %935 = vst.msk [vmem:[%s177 + $0x34] sm:$0xf] %vm921, %v870
        %936 = vst.msk [vmem:[%s177 + $0x38] sm:$0xf] %vm921, %v871
        %937 = vst.msk [vmem:[%s177 + $0x3c] sm:$0xf] %vm921, %v872
        %938 = vst.msk [vmem:[%s177 + $0x40] sm:$0xf] %vm921, %v873
        %939 = vst.msk [vmem:[%s177 + $0x44] sm:$0xf] %vm921, %v874
        %940 = vst.msk [vmem:[%s177 + $0x48] sm:$0xf] %vm921, %v875
        %941 = vst.msk [vmem:[%s177 + $0x4c] sm:$0xf] %vm921, %v876
        %942 = vst.msk [vmem:[%s177 + $0x50] sm:$0xf] %vm921, %v877
        %943 = vst.msk [vmem:[%s177 + $0x54] sm:$0xf] %vm921, %v878
        %944 = vst.msk [vmem:[%s177 + $0x58] sm:$0xf] %vm921, %v879
        %945 = vst.msk [vmem:[%s177 + $0x5c] sm:$0xf] %vm921, %v880
        %946 = vst.msk [vmem:[%s177 + $0x60] sm:$0xf] %vm921, %v881
        %947 = vst.msk [vmem:[%s177 + $0x64] sm:$0xf] %vm921, %v882
        %948 = vst.msk [vmem:[%s177 + $0x68] sm:$0xf] %vm921, %v883
        %949 = vst.msk [vmem:[%s177 + $0x6c] sm:$0xf] %vm921, %v884
        %950 = vst.msk [vmem:[%s177 + $0x70] sm:$0xf] %vm921, %v885
        %951 = vst.msk [vmem:[%s177 + $0x74] sm:$0xf] %vm921, %v886
        %952 = vst.msk [vmem:[%s177 + $0x78] sm:$0xf] %vm921, %v887
        %953 = vst.msk [vmem:[%s177 + $0x7c] sm:$0xf] %vm921, %v888
        %s954 = sand.u32 %s90, 1
        %s955 = sand.u32 %s90, 1
        %s956 = smul.addr %s955, 128
        %s957 = scalar_lea.vmem [#allocation2], %s956
        // Predicated region
        $region33: #{baby_c3d_forward.6} parent=31 // pred_check
          %p958 = pneg %p100
        $region34: #{baby_c3d_forward.6} parent=31 // pred_check_branch
          %960 = sbr.rel (%p958) target = $region36
        $region35: #{baby_c3d_forward.6} parent=31 // pred_region
          %s961 = smul.u32 32, %s14
          %s962 = ssub.s32 113, %s961
          %p963 = scmp.lt.s32.totalorder %s962, 32
          %s964 = scalar_select %p963, %s962, 32
          %s965 = smul.u32 64, %s964
          %p966 = scmp.ne.s32.totalorder 0, %s965
          %s967 = smul.addr %s961, 4
          %s968 = scalar_lea.vmem %s3, %s967
          // Predicated region
          $region37: #{baby_c3d_forward.6} parent=35 // pred_check
            %p969 = pneg %p966
          $region38: #{baby_c3d_forward.6} parent=35 // pred_check_branch
            %971 = sbr.rel (%p969) target = $region40
          $region39: #{baby_c3d_forward.6} parent=35 // pred_region
            // Predicated region
            $region41: #{baby_c3d_forward.6} parent=39 // pred_check
              _
            $region42: #{baby_c3d_forward.6} parent=39 // pred_check_branch
              %973 = sbr.rel target = $region44
            $region43: #{baby_c3d_forward.6} parent=39 // pred_region
              // Predicated region
              $region63: #{baby_c3d_forward.6} parent=43 // pred_check
                _
              $region64: #{baby_c3d_forward.6} parent=43 // pred_check_branch
                %1085 = sbr.rel (0) target = $region66
              $region65: #{baby_c3d_forward.6} parent=43 // pred_region
                %s1087 = ssub.s32 16, 1
                %s1088 = sshrl.u32 %s964, 5
                // While loop
                $region67: #{baby_c3d_forward.6} parent=65 // loop_pre_header
                  _
                $region68: #{baby_c3d_forward.6} parent=65 // loop_header
                  %s1090 = sphi 0, %s1092
                  %p1091 = scmp.ge.s32.totalorder %s1090, %s1088
                  %s1095 = sphi 0, %s1164
                  %s1096 = sphi %s957, %s1167
                  %s1097 = sphi %s968, %s1168
                $region69: #{baby_c3d_forward.6} parent=65 // loop_header_branch
                  %1094 = sbr.rel (%p1091) target = $region73
                $region70: #{baby_c3d_forward.6} parent=65 // loop_body
                  %v1098 = vld [vmem:[%s1096] sm:%s1087]
                  %1099 = vst [vmem:[%s1097] sm:%s1087] %v1098
                  %v1100 = vld [vmem:[%s1096 + $0x4] sm:%s1087]
                  %1101 = vst [vmem:[%s1097 + $0x4] sm:%s1087] %v1100
                  %v1102 = vld [vmem:[%s1096 + $0x8] sm:%s1087]
                  %1103 = vst [vmem:[%s1097 + $0x8] sm:%s1087] %v1102
                  %v1104 = vld [vmem:[%s1096 + $0xc] sm:%s1087]
                  %1105 = vst [vmem:[%s1097 + $0xc] sm:%s1087] %v1104
                  %v1106 = vld [vmem:[%s1096 + $0x10] sm:%s1087]
                  %1107 = vst [vmem:[%s1097 + $0x10] sm:%s1087] %v1106
                  %v1108 = vld [vmem:[%s1096 + $0x14] sm:%s1087]
                  %1109 = vst [vmem:[%s1097 + $0x14] sm:%s1087] %v1108
                  %v1110 = vld [vmem:[%s1096 + $0x18] sm:%s1087]
                  %1111 = vst [vmem:[%s1097 + $0x18] sm:%s1087] %v1110
                  %v1112 = vld [vmem:[%s1096 + $0x1c] sm:%s1087]
                  %1113 = vst [vmem:[%s1097 + $0x1c] sm:%s1087] %v1112
                  %v1114 = vld [vmem:[%s1096 + $0x20] sm:%s1087]
                  %1115 = vst [vmem:[%s1097 + $0x20] sm:%s1087] %v1114
                  %v1116 = vld [vmem:[%s1096 + $0x24] sm:%s1087]
                  %1117 = vst [vmem:[%s1097 + $0x24] sm:%s1087] %v1116
                  %v1118 = vld [vmem:[%s1096 + $0x28] sm:%s1087]
                  %1119 = vst [vmem:[%s1097 + $0x28] sm:%s1087] %v1118
                  %v1120 = vld [vmem:[%s1096 + $0x2c] sm:%s1087]
                  %1121 = vst [vmem:[%s1097 + $0x2c] sm:%s1087] %v1120
                  %v1122 = vld [vmem:[%s1096 + $0x30] sm:%s1087]
                  %1123 = vst [vmem:[%s1097 + $0x30] sm:%s1087] %v1122
                  %v1124 = vld [vmem:[%s1096 + $0x34] sm:%s1087]
                  %1125 = vst [vmem:[%s1097 + $0x34] sm:%s1087] %v1124
                  %v1126 = vld [vmem:[%s1096 + $0x38] sm:%s1087]
                  %1127 = vst [vmem:[%s1097 + $0x38] sm:%s1087] %v1126
                  %v1128 = vld [vmem:[%s1096 + $0x3c] sm:%s1087]
                  %1129 = vst [vmem:[%s1097 + $0x3c] sm:%s1087] %v1128
                  %v1130 = vld [vmem:[%s1096 + $0x40] sm:%s1087]
                  %1131 = vst [vmem:[%s1097 + $0x40] sm:%s1087] %v1130
                  %v1132 = vld [vmem:[%s1096 + $0x44] sm:%s1087]
                  %1133 = vst [vmem:[%s1097 + $0x44] sm:%s1087] %v1132
                  %v1134 = vld [vmem:[%s1096 + $0x48] sm:%s1087]
                  %1135 = vst [vmem:[%s1097 + $0x48] sm:%s1087] %v1134
                  %v1136 = vld [vmem:[%s1096 + $0x4c] sm:%s1087]
                  %1137 = vst [vmem:[%s1097 + $0x4c] sm:%s1087] %v1136
                  %v1138 = vld [vmem:[%s1096 + $0x50] sm:%s1087]
                  %1139 = vst [vmem:[%s1097 + $0x50] sm:%s1087] %v1138
                  %v1140 = vld [vmem:[%s1096 + $0x54] sm:%s1087]
                  %1141 = vst [vmem:[%s1097 + $0x54] sm:%s1087] %v1140
                  %v1142 = vld [vmem:[%s1096 + $0x58] sm:%s1087]
                  %1143 = vst [vmem:[%s1097 + $0x58] sm:%s1087] %v1142
                  %v1144 = vld [vmem:[%s1096 + $0x5c] sm:%s1087]
                  %1145 = vst [vmem:[%s1097 + $0x5c] sm:%s1087] %v1144
                  %v1146 = vld [vmem:[%s1096 + $0x60] sm:%s1087]
                  %1147 = vst [vmem:[%s1097 + $0x60] sm:%s1087] %v1146
                  %v1148 = vld [vmem:[%s1096 + $0x64] sm:%s1087]
                  %1149 = vst [vmem:[%s1097 + $0x64] sm:%s1087] %v1148
                  %v1150 = vld [vmem:[%s1096 + $0x68] sm:%s1087]
                  %1151 = vst [vmem:[%s1097 + $0x68] sm:%s1087] %v1150
                  %v1152 = vld [vmem:[%s1096 + $0x6c] sm:%s1087]
                  %1153 = vst [vmem:[%s1097 + $0x6c] sm:%s1087] %v1152
                  %v1154 = vld [vmem:[%s1096 + $0x70] sm:%s1087]
                  %1155 = vst [vmem:[%s1097 + $0x70] sm:%s1087] %v1154
                  %v1156 = vld [vmem:[%s1096 + $0x74] sm:%s1087]
                  %1157 = vst [vmem:[%s1097 + $0x74] sm:%s1087] %v1156
                  %v1158 = vld [vmem:[%s1096 + $0x78] sm:%s1087]
                  %1159 = vst [vmem:[%s1097 + $0x78] sm:%s1087] %v1158
                  %v1160 = vld [vmem:[%s1096 + $0x7c] sm:%s1087]
                  %1161 = vst [vmem:[%s1097 + $0x7c] sm:%s1087] %v1160
                  %s1162 = sadd.s32 1, %s1095
                  %p1163 = scmp.ge.s32.totalorder %s1162, %s1088
                  %s1164 = scalar_select %p1163, 0, %s1162
                  %s1165 = smul.u32 %s1164, 128
                  %s1166 = smul.u32 %s1164, 128
                  %s1167 = scalar_lea.vmem %s957, %s1165 [#allocation2]
                  %s1168 = scalar_lea.vmem %s968, %s1166
                $region71: #{baby_c3d_forward.6} parent=65 // loop_footer
                  %s1092 = sadd.s32 %s1090, 1
                $region72: #{baby_c3d_forward.6} parent=65 // loop_footer_branch
                  %1089 = sbr.rel target = $region68
                $region73: #{baby_c3d_forward.6} parent=65 // loop_exit
                  _
                %s1169 = sshrl.u32 %s964, 5
                %s1170 = sand.u32 %s964, 31
                %s1171 = smul.u32 %s1169, 32
                %s1172 = smul.u32 4, %s1171
                %s1173 = scalar_lea.vmem %s957, %s1172 [#allocation2]
                %s1174 = smul.u32 4, %s1171
                %s1175 = scalar_lea.vmem %s968, %s1174
                // While loop
                $region74: #{baby_c3d_forward.6} parent=65 // loop_pre_header
                  _
                $region75: #{baby_c3d_forward.6} parent=65 // loop_header
                  %s1177 = sphi 0, %s1179
                  %p1178 = scmp.ge.s32.totalorder %s1177, %s1170
                  %s1182 = sphi 0, %s1189
                  %s1183 = sphi %s1173, %s1192
                  %s1184 = sphi %s1175, %s1193
                $region76: #{baby_c3d_forward.6} parent=65 // loop_header_branch
                  %1181 = sbr.rel (%p1178) target = $region80
                $region77: #{baby_c3d_forward.6} parent=65 // loop_body
                  %v1185 = vld [vmem:[%s1183] sm:%s1087]
                  %1186 = vst [vmem:[%s1184] sm:%s1087] %v1185
                  %s1187 = sadd.s32 1, %s1182
                  %p1188 = scmp.ge.s32.totalorder %s1187, %s1170
                  %s1189 = scalar_select %p1188, 0, %s1187
                  %s1190 = smul.u32 %s1189, 4
                  %s1191 = smul.u32 %s1189, 4
                  %s1192 = scalar_lea.vmem %s1173, %s1190 [#allocation2]
                  %s1193 = scalar_lea.vmem %s1175, %s1191
                $region78: #{baby_c3d_forward.6} parent=65 // loop_footer
                  %s1179 = sadd.s32 %s1177, 1
                $region79: #{baby_c3d_forward.6} parent=65 // loop_footer_branch
                  %1176 = sbr.rel target = $region75
                $region80: #{baby_c3d_forward.6} parent=65 // loop_exit
                  _
              $region66: #{baby_c3d_forward.6} parent=43 // pred_fallthru
                _
            $region44: #{baby_c3d_forward.6} parent=39 // pred_fallthru
              _
            // Predicated region
            $region45: #{baby_c3d_forward.6} parent=39 // pred_check
              _
            $region46: #{baby_c3d_forward.6} parent=39 // pred_check_branch
              %975 = sbr.rel (0) target = $region48
            $region47: #{baby_c3d_forward.6} parent=39 // pred_region
              %s977 = ssub.s32 16, 1
              %s978 = sshrl.u32 %s964, 5
              // While loop
              $region49: #{baby_c3d_forward.6} parent=47 // loop_pre_header
                _
              $region50: #{baby_c3d_forward.6} parent=47 // loop_header
                %s980 = sphi 0, %s982
                %p981 = scmp.ge.s32.totalorder %s980, %s978
                %s985 = sphi 0, %s1054
                %s986 = sphi %s957, %s1057
                %s987 = sphi %s968, %s1058
              $region51: #{baby_c3d_forward.6} parent=47 // loop_header_branch
                %984 = sbr.rel (%p981) target = $region55
              $region52: #{baby_c3d_forward.6} parent=47 // loop_body
                %v988 = vld [vmem:[%s986] sm:%s977]
                %989 = vst [vmem:[%s987] sm:%s977] %v988
                %v990 = vld [vmem:[%s986 + $0x4] sm:%s977]
                %991 = vst [vmem:[%s987 + $0x4] sm:%s977] %v990
                %v992 = vld [vmem:[%s986 + $0x8] sm:%s977]
                %993 = vst [vmem:[%s987 + $0x8] sm:%s977] %v992
                %v994 = vld [vmem:[%s986 + $0xc] sm:%s977]
                %995 = vst [vmem:[%s987 + $0xc] sm:%s977] %v994
                %v996 = vld [vmem:[%s986 + $0x10] sm:%s977]
                %997 = vst [vmem:[%s987 + $0x10] sm:%s977] %v996
                %v998 = vld [vmem:[%s986 + $0x14] sm:%s977]
                %999 = vst [vmem:[%s987 + $0x14] sm:%s977] %v998
                %v1000 = vld [vmem:[%s986 + $0x18] sm:%s977]
                %1001 = vst [vmem:[%s987 + $0x18] sm:%s977] %v1000
                %v1002 = vld [vmem:[%s986 + $0x1c] sm:%s977]
                %1003 = vst [vmem:[%s987 + $0x1c] sm:%s977] %v1002
                %v1004 = vld [vmem:[%s986 + $0x20] sm:%s977]
                %1005 = vst [vmem:[%s987 + $0x20] sm:%s977] %v1004
                %v1006 = vld [vmem:[%s986 + $0x24] sm:%s977]
                %1007 = vst [vmem:[%s987 + $0x24] sm:%s977] %v1006
                %v1008 = vld [vmem:[%s986 + $0x28] sm:%s977]
                %1009 = vst [vmem:[%s987 + $0x28] sm:%s977] %v1008
                %v1010 = vld [vmem:[%s986 + $0x2c] sm:%s977]
                %1011 = vst [vmem:[%s987 + $0x2c] sm:%s977] %v1010
                %v1012 = vld [vmem:[%s986 + $0x30] sm:%s977]
                %1013 = vst [vmem:[%s987 + $0x30] sm:%s977] %v1012
                %v1014 = vld [vmem:[%s986 + $0x34] sm:%s977]
                %1015 = vst [vmem:[%s987 + $0x34] sm:%s977] %v1014
                %v1016 = vld [vmem:[%s986 + $0x38] sm:%s977]
                %1017 = vst [vmem:[%s987 + $0x38] sm:%s977] %v1016
                %v1018 = vld [vmem:[%s986 + $0x3c] sm:%s977]
                %1019 = vst [vmem:[%s987 + $0x3c] sm:%s977] %v1018
                %v1020 = vld [vmem:[%s986 + $0x40] sm:%s977]
                %1021 = vst [vmem:[%s987 + $0x40] sm:%s977] %v1020
                %v1022 = vld [vmem:[%s986 + $0x44] sm:%s977]
                %1023 = vst [vmem:[%s987 + $0x44] sm:%s977] %v1022
                %v1024 = vld [vmem:[%s986 + $0x48] sm:%s977]
                %1025 = vst [vmem:[%s987 + $0x48] sm:%s977] %v1024
                %v1026 = vld [vmem:[%s986 + $0x4c] sm:%s977]
                %1027 = vst [vmem:[%s987 + $0x4c] sm:%s977] %v1026
                %v1028 = vld [vmem:[%s986 + $0x50] sm:%s977]
                %1029 = vst [vmem:[%s987 + $0x50] sm:%s977] %v1028
                %v1030 = vld [vmem:[%s986 + $0x54] sm:%s977]
                %1031 = vst [vmem:[%s987 + $0x54] sm:%s977] %v1030
                %v1032 = vld [vmem:[%s986 + $0x58] sm:%s977]
                %1033 = vst [vmem:[%s987 + $0x58] sm:%s977] %v1032
                %v1034 = vld [vmem:[%s986 + $0x5c] sm:%s977]
                %1035 = vst [vmem:[%s987 + $0x5c] sm:%s977] %v1034
                %v1036 = vld [vmem:[%s986 + $0x60] sm:%s977]
                %1037 = vst [vmem:[%s987 + $0x60] sm:%s977] %v1036
                %v1038 = vld [vmem:[%s986 + $0x64] sm:%s977]
                %1039 = vst [vmem:[%s987 + $0x64] sm:%s977] %v1038
                %v1040 = vld [vmem:[%s986 + $0x68] sm:%s977]
                %1041 = vst [vmem:[%s987 + $0x68] sm:%s977] %v1040
                %v1042 = vld [vmem:[%s986 + $0x6c] sm:%s977]
                %1043 = vst [vmem:[%s987 + $0x6c] sm:%s977] %v1042
                %v1044 = vld [vmem:[%s986 + $0x70] sm:%s977]
                %1045 = vst [vmem:[%s987 + $0x70] sm:%s977] %v1044
                %v1046 = vld [vmem:[%s986 + $0x74] sm:%s977]
                %1047 = vst [vmem:[%s987 + $0x74] sm:%s977] %v1046
                %v1048 = vld [vmem:[%s986 + $0x78] sm:%s977]
                %1049 = vst [vmem:[%s987 + $0x78] sm:%s977] %v1048
                %v1050 = vld [vmem:[%s986 + $0x7c] sm:%s977]
                %1051 = vst [vmem:[%s987 + $0x7c] sm:%s977] %v1050
                %s1052 = sadd.s32 1, %s985
                %p1053 = scmp.ge.s32.totalorder %s1052, %s978
                %s1054 = scalar_select %p1053, 0, %s1052
                %s1055 = smul.u32 %s1054, 128
                %s1056 = smul.u32 %s1054, 128
                %s1057 = scalar_lea.vmem %s957, %s1055 [#allocation2]
                %s1058 = scalar_lea.vmem %s968, %s1056
              $region53: #{baby_c3d_forward.6} parent=47 // loop_footer
                %s982 = sadd.s32 %s980, 1
              $region54: #{baby_c3d_forward.6} parent=47 // loop_footer_branch
                %979 = sbr.rel target = $region50
              $region55: #{baby_c3d_forward.6} parent=47 // loop_exit
                _
              %s1059 = sshrl.u32 %s964, 5
              %s1060 = sand.u32 %s964, 31
              %s1061 = smul.u32 %s1059, 32
              %s1062 = smul.u32 4, %s1061
              %s1063 = scalar_lea.vmem %s957, %s1062 [#allocation2]
              %s1064 = smul.u32 4, %s1061
              %s1065 = scalar_lea.vmem %s968, %s1064
              // While loop
              $region56: #{baby_c3d_forward.6} parent=47 // loop_pre_header
                _
              $region57: #{baby_c3d_forward.6} parent=47 // loop_header
                %s1067 = sphi 0, %s1069
                %p1068 = scmp.ge.s32.totalorder %s1067, %s1060
                %s1072 = sphi 0, %s1079
                %s1073 = sphi %s1063, %s1082
                %s1074 = sphi %s1065, %s1083
              $region58: #{baby_c3d_forward.6} parent=47 // loop_header_branch
                %1071 = sbr.rel (%p1068) target = $region62
              $region59: #{baby_c3d_forward.6} parent=47 // loop_body
                %v1075 = vld [vmem:[%s1073] sm:%s977]
                %1076 = vst [vmem:[%s1074] sm:%s977] %v1075
                %s1077 = sadd.s32 1, %s1072
                %p1078 = scmp.ge.s32.totalorder %s1077, %s1060
                %s1079 = scalar_select %p1078, 0, %s1077
                %s1080 = smul.u32 %s1079, 4
                %s1081 = smul.u32 %s1079, 4
                %s1082 = scalar_lea.vmem %s1063, %s1080 [#allocation2]
                %s1083 = scalar_lea.vmem %s1065, %s1081
              $region60: #{baby_c3d_forward.6} parent=47 // loop_footer
                %s1069 = sadd.s32 %s1067, 1
              $region61: #{baby_c3d_forward.6} parent=47 // loop_footer_branch
                %1066 = sbr.rel target = $region57
              $region62: #{baby_c3d_forward.6} parent=47 // loop_exit
                _
            $region48: #{baby_c3d_forward.6} parent=39 // pred_fallthru
              _
          $region40: #{baby_c3d_forward.6} parent=35 // pred_fallthru
            _
          %1194 = vnop
        $region36: #{baby_c3d_forward.6} parent=31 // pred_fallthru
          _
      $region32: #{baby_c3d_forward.6} parent=5 // pred_fallthru
        _
      %p1195 = scmp.le.s32.totalorder 2, %s9
      // Predicated region
      $region81: #{baby_c3d_forward.6} parent=5 // pred_check
        %p1196 = pneg %p1195
      $region82: #{baby_c3d_forward.6} parent=5 // pred_check_branch
        %1198 = sbr.rel (%p1196) target = $region84
      $region83: #{baby_c3d_forward.6} parent=5 // pred_region
        %s1199 = ssub.s32 %s9, 2
        // Predicated region
        $region85: #{baby_c3d_forward.6} parent=83 // pred_check
          %p1200 = pneg %p106
        $region86: #{baby_c3d_forward.6} parent=83 // pred_check_branch
          %1202 = sbr.rel (%p1200) target = $region88
        $region87: #{baby_c3d_forward.6} parent=83 // pred_region
          %s1203 = sand.u32 %s91, 1
          %s1204 = sand.u32 %s91, 1
          %s1205 = smul.addr %s1204, 128
          %s1206 = scalar_lea.vmem [#allocation2], %s1205
        $region88: #{baby_c3d_forward.6} parent=83 // pred_fallthru
          _
      $region84: #{baby_c3d_forward.6} parent=5 // pred_fallthru
        _
    $region6: #{baby_c3d_forward.6} parent=1 // loop_footer
      %s13 = sadd.s32 1, %s9
    $region7: #{baby_c3d_forward.6} parent=1 // loop_footer_branch
      %8 = sbr.rel target = $region3
    $region8: #{baby_c3d_forward.6} parent=1 // loop_exit
      _

// kernel: baby_c3d_forward.7
$region0: #{baby_c3d_forward.7}
  #allocation0 [shape = 'u32[]', space=smem, size = 0x4, offset = 0x4, fixed_abs, tag = 'smem constant byte address 0x4 - core index']
  #allocation1 [shape = 'u32[144,128]{1,0:T(1,128)}', space=vmem, size = 0x12000, scoped, tag = 'internal scratch']
  %s0 = inlined_call_operand.vmem [shape: bf16[72,2048], index: 0, kind: input, shape index: {}]
  %s1 = inlined_call_operand.vmem [shape: bf16[2048,64], index: 1, kind: input, shape index: {}]
  %s2 = inlined_call_operand.vmem [shape: f32[3,64], index: 2, kind: input, shape index: {}]
  %s3 = inlined_call_operand.vmem [shape: bf16[72,64], index: 3, kind: output, shape index: {}]
  %s4 = sld [smem:[#allocation0]]
  $region22: #{baby_c3d_forward.7} parent=0
    _
  %s6 = ssub.s32 1, %s4
  %s7 = scalar_select 0, %s6, %s4
  // Predicated region
  $region2: #{baby_c3d_forward.7} parent=0 // pred_check
    _
  $region3: #{baby_c3d_forward.7} parent=0 // pred_check_branch
    %9 = sbr.rel (0) target = $region5
  $region4: #{baby_c3d_forward.7} parent=0 // pred_region
    _
  $region5: #{baby_c3d_forward.7} parent=0 // pred_fallthru
    _
  // Predicated region
  $region6: #{baby_c3d_forward.7} parent=0 // pred_check
    _
  $region7: #{baby_c3d_forward.7} parent=0 // pred_check_branch
    %11 = sbr.rel (0) target = $region9
  $region8: #{baby_c3d_forward.7} parent=0 // pred_region
    _
  $region9: #{baby_c3d_forward.7} parent=0 // pred_fallthru
    _
  // Predicated region
  $region10: #{baby_c3d_forward.7} parent=0 // pred_check
    _
  $region11: #{baby_c3d_forward.7} parent=0 // pred_check_branch
    %13 = sbr.rel (0) target = $region13
  $region12: #{baby_c3d_forward.7} parent=0 // pred_region
    _
  $region13: #{baby_c3d_forward.7} parent=0 // pred_fallthru
    _
  %v15 = vld [vmem:[%s0] sm:$0xff]
  %v16 = vld [vmem:[%s0 + $0x8] sm:$0xff]
  %v17 = vld [vmem:[%s0 + $0x10] sm:$0xff]
  %v18 = vld [vmem:[%s0 + $0x18] sm:$0xff]
  %v19 = vld [vmem:[%s0 + $0x20] sm:$0xff]
  %v20 = vld [vmem:[%s0 + $0x28] sm:$0xff]
  %v21 = vld [vmem:[%s0 + $0x30] sm:$0xff]
  %v22 = vld [vmem:[%s0 + $0x38] sm:$0xff]
  %v23 = vld [vmem:[%s0 + $0x40] sm:$0xff]
  %v24 = vld [vmem:[%s0 + $0x48] sm:$0xff]
  %v25 = vld [vmem:[%s0 + $0x50] sm:$0xff]
  %v26 = vld [vmem:[%s0 + $0x58] sm:$0xff]
  %v27 = vld [vmem:[%s0 + $0x60] sm:$0xff]
  %v28 = vld [vmem:[%s0 + $0x68] sm:$0xff]
  %v29 = vld [vmem:[%s0 + $0x70] sm:$0xff]
  %v30 = vld [vmem:[%s0 + $0x78] sm:$0xff]
  %v31 = vld [vmem:[%s0 + $0x80] sm:$0xff]
  %v32 = vld [vmem:[%s0 + $0x88] sm:$0xff]
  %v33 = vld [vmem:[%s0 + $0x90] sm:$0xff]
  %v34 = vld [vmem:[%s0 + $0x98] sm:$0xff]
  %v35 = vld [vmem:[%s0 + $0xa0] sm:$0xff]
  %v36 = vld [vmem:[%s0 + $0xa8] sm:$0xff]
  %v37 = vld [vmem:[%s0 + $0xb0] sm:$0xff]
  %v38 = vld [vmem:[%s0 + $0xb8] sm:$0xff]
  %v39 = vld [vmem:[%s0 + $0xc0] sm:$0xff]
  %v40 = vld [vmem:[%s0 + $0xc8] sm:$0xff]
  %v41 = vld [vmem:[%s0 + $0xd0] sm:$0xff]
  %v42 = vld [vmem:[%s0 + $0xd8] sm:$0xff]
  %v43 = vld [vmem:[%s0 + $0xe0] sm:$0xff]
  %v44 = vld [vmem:[%s0 + $0xe8] sm:$0xff]
  %v45 = vld [vmem:[%s0 + $0xf0] sm:$0xff]
  %v46 = vld [vmem:[%s0 + $0xf8] sm:$0xff]
  %v47 = vld [vmem:[%s0 + $0x100] sm:$0xff]
  %v48 = vld [vmem:[%s0 + $0x108] sm:$0xff]
  %v49 = vld [vmem:[%s0 + $0x110] sm:$0xff]
  %v50 = vld [vmem:[%s0 + $0x118] sm:$0xff]
  %v51 = vld [vmem:[%s0 + $0x120] sm:$0xff]
  %v52 = vld [vmem:[%s0 + $0x128] sm:$0xff]
  %v53 = vld [vmem:[%s0 + $0x130] sm:$0xff]
  %v54 = vld [vmem:[%s0 + $0x138] sm:$0xff]
  %v55 = vld [vmem:[%s0 + $0x140] sm:$0xff]
  %v56 = vld [vmem:[%s0 + $0x148] sm:$0xff]
  %v57 = vld [vmem:[%s0 + $0x150] sm:$0xff]
  %v58 = vld [vmem:[%s0 + $0x158] sm:$0xff]
  %v59 = vld [vmem:[%s0 + $0x160] sm:$0xff]
  %v60 = vld [vmem:[%s0 + $0x168] sm:$0xff]
  %v61 = vld [vmem:[%s0 + $0x170] sm:$0xff]
  %v62 = vld [vmem:[%s0 + $0x178] sm:$0xff]
  %v63 = vld [vmem:[%s0 + $0x180] sm:$0xff]
  %v64 = vld [vmem:[%s0 + $0x188] sm:$0xff]
  %v65 = vld [vmem:[%s0 + $0x190] sm:$0xff]
  %v66 = vld [vmem:[%s0 + $0x198] sm:$0xff]
  %v67 = vld [vmem:[%s0 + $0x1a0] sm:$0xff]
  %v68 = vld [vmem:[%s0 + $0x1a8] sm:$0xff]
  %v69 = vld [vmem:[%s0 + $0x1b0] sm:$0xff]
  %v70 = vld [vmem:[%s0 + $0x1b8] sm:$0xff]
  %v71 = vld [vmem:[%s0 + $0x1c0] sm:$0xff]
  %v72 = vld [vmem:[%s0 + $0x1c8] sm:$0xff]
  %v73 = vld [vmem:[%s0 + $0x1d0] sm:$0xff]
  %v74 = vld [vmem:[%s0 + $0x1d8] sm:$0xff]
  %v75 = vld [vmem:[%s0 + $0x1e0] sm:$0xff]
  %v76 = vld [vmem:[%s0 + $0x1e8] sm:$0xff]
  %v77 = vld [vmem:[%s0 + $0x1f0] sm:$0xff]
  %v78 = vld [vmem:[%s0 + $0x1f8] sm:$0xff]
  %v79 = vld [vmem:[%s0 + $0x200] sm:$0xff]
  %v80 = vld [vmem:[%s0 + $0x208] sm:$0xff]
  %v81 = vld [vmem:[%s0 + $0x210] sm:$0xff]
  %v82 = vld [vmem:[%s0 + $0x218] sm:$0xff]
  %v83 = vld [vmem:[%s0 + $0x220] sm:$0xff]
  %v84 = vld [vmem:[%s0 + $0x228] sm:$0xff]
  %v85 = vld [vmem:[%s0 + $0x230] sm:$0xff]
  %v86 = vld [vmem:[%s0 + $0x238] sm:$0xff]
  %v87 = vld [vmem:[%s1] sm:$0xf]
  %v88 = vld [vmem:[%s1 + $0x4] sm:$0xf]
  %v89 = vld [vmem:[%s1 + $0x8] sm:$0xf]
  %v90 = vld [vmem:[%s1 + $0xc] sm:$0xf]
  %v91 = vld [vmem:[%s1 + $0x10] sm:$0xf]
  %v92 = vld [vmem:[%s1 + $0x14] sm:$0xf]
  %v93 = vld [vmem:[%s1 + $0x18] sm:$0xf]
  %v94 = vld [vmem:[%s1 + $0x1c] sm:$0xf]
  %v95 = vld [vmem:[%s1 + $0x20] sm:$0xf]
  %v96 = vld [vmem:[%s1 + $0x24] sm:$0xf]
  %v97 = vld [vmem:[%s1 + $0x28] sm:$0xf]
  %v98 = vld [vmem:[%s1 + $0x2c] sm:$0xf]
  %v99 = vld [vmem:[%s1 + $0x30] sm:$0xf]
  %v100 = vld [vmem:[%s1 + $0x34] sm:$0xf]
  %v101 = vld [vmem:[%s1 + $0x38] sm:$0xf]
  %v102 = vld [vmem:[%s1 + $0x3c] sm:$0xf]
  %v103 = vld [vmem:[%s1 + $0x40] sm:$0xf]
  %v104 = vld [vmem:[%s1 + $0x44] sm:$0xf]
  %v105 = vld [vmem:[%s1 + $0x48] sm:$0xf]
  %v106 = vld [vmem:[%s1 + $0x4c] sm:$0xf]
  %v107 = vld [vmem:[%s1 + $0x50] sm:$0xf]
  %v108 = vld [vmem:[%s1 + $0x54] sm:$0xf]
  %v109 = vld [vmem:[%s1 + $0x58] sm:$0xf]
  %v110 = vld [vmem:[%s1 + $0x5c] sm:$0xf]
  %v111 = vld [vmem:[%s1 + $0x60] sm:$0xf]
  %v112 = vld [vmem:[%s1 + $0x64] sm:$0xf]
  %v113 = vld [vmem:[%s1 + $0x68] sm:$0xf]
  %v114 = vld [vmem:[%s1 + $0x6c] sm:$0xf]
  %v115 = vld [vmem:[%s1 + $0x70] sm:$0xf]
  %v116 = vld [vmem:[%s1 + $0x74] sm:$0xf]
  %v117 = vld [vmem:[%s1 + $0x78] sm:$0xf]
  %v118 = vld [vmem:[%s1 + $0x7c] sm:$0xf]
  %v119 = vld [vmem:[%s1 + $0x80] sm:$0xf]
  %v120 = vld [vmem:[%s1 + $0x84] sm:$0xf]
  %v121 = vld [vmem:[%s1 + $0x88] sm:$0xf]
  %v122 = vld [vmem:[%s1 + $0x8c] sm:$0xf]
  %v123 = vld [vmem:[%s1 + $0x90] sm:$0xf]
  %v124 = vld [vmem:[%s1 + $0x94] sm:$0xf]
  %v125 = vld [vmem:[%s1 + $0x98] sm:$0xf]
  %v126 = vld [vmem:[%s1 + $0x9c] sm:$0xf]
  %v127 = vld [vmem:[%s1 + $0xa0] sm:$0xf]
  %v128 = vld [vmem:[%s1 + $0xa4] sm:$0xf]
  %v129 = vld [vmem:[%s1 + $0xa8] sm:$0xf]
  %v130 = vld [vmem:[%s1 + $0xac] sm:$0xf]
  %v131 = vld [vmem:[%s1 + $0xb0] sm:$0xf]
  %v132 = vld [vmem:[%s1 + $0xb4] sm:$0xf]
  %v133 = vld [vmem:[%s1 + $0xb8] sm:$0xf]
  %v134 = vld [vmem:[%s1 + $0xbc] sm:$0xf]
  %v135 = vld [vmem:[%s1 + $0xc0] sm:$0xf]
  %v136 = vld [vmem:[%s1 + $0xc4] sm:$0xf]
  %v137 = vld [vmem:[%s1 + $0xc8] sm:$0xf]
  %v138 = vld [vmem:[%s1 + $0xcc] sm:$0xf]
  %v139 = vld [vmem:[%s1 + $0xd0] sm:$0xf]
  %v140 = vld [vmem:[%s1 + $0xd4] sm:$0xf]
  %v141 = vld [vmem:[%s1 + $0xd8] sm:$0xf]
  %v142 = vld [vmem:[%s1 + $0xdc] sm:$0xf]
  %v143 = vld [vmem:[%s1 + $0xe0] sm:$0xf]
  %v144 = vld [vmem:[%s1 + $0xe4] sm:$0xf]
  %v145 = vld [vmem:[%s1 + $0xe8] sm:$0xf]
  %v146 = vld [vmem:[%s1 + $0xec] sm:$0xf]
  %v147 = vld [vmem:[%s1 + $0xf0] sm:$0xf]
  %v148 = vld [vmem:[%s1 + $0xf4] sm:$0xf]
  %v149 = vld [vmem:[%s1 + $0xf8] sm:$0xf]
  %v150 = vld [vmem:[%s1 + $0xfc] sm:$0xf]
  %v151 = vld [vmem:[%s1 + $0x100] sm:$0xf]
  %v152 = vld [vmem:[%s1 + $0x104] sm:$0xf]
  %v153 = vld [vmem:[%s1 + $0x108] sm:$0xf]
  %v154 = vld [vmem:[%s1 + $0x10c] sm:$0xf]
  %v155 = vld [vmem:[%s1 + $0x110] sm:$0xf]
  %v156 = vld [vmem:[%s1 + $0x114] sm:$0xf]
  %v157 = vld [vmem:[%s1 + $0x118] sm:$0xf]
  %v158 = vld [vmem:[%s1 + $0x11c] sm:$0xf]
  %v159 = vld [vmem:[%s1 + $0x120] sm:$0xf]
  %v160 = vld [vmem:[%s1 + $0x124] sm:$0xf]
  %v161 = vld [vmem:[%s1 + $0x128] sm:$0xf]
  %v162 = vld [vmem:[%s1 + $0x12c] sm:$0xf]
  %v163 = vld [vmem:[%s1 + $0x130] sm:$0xf]
  %v164 = vld [vmem:[%s1 + $0x134] sm:$0xf]
  %v165 = vld [vmem:[%s1 + $0x138] sm:$0xf]
  %v166 = vld [vmem:[%s1 + $0x13c] sm:$0xf]
  %v167 = vld [vmem:[%s1 + $0x140] sm:$0xf]
  %v168 = vld [vmem:[%s1 + $0x144] sm:$0xf]
  %v169 = vld [vmem:[%s1 + $0x148] sm:$0xf]
  %v170 = vld [vmem:[%s1 + $0x14c] sm:$0xf]
  %v171 = vld [vmem:[%s1 + $0x150] sm:$0xf]
  %v172 = vld [vmem:[%s1 + $0x154] sm:$0xf]
  %v173 = vld [vmem:[%s1 + $0x158] sm:$0xf]
  %v174 = vld [vmem:[%s1 + $0x15c] sm:$0xf]
  %v175 = vld [vmem:[%s1 + $0x160] sm:$0xf]
  %v176 = vld [vmem:[%s1 + $0x164] sm:$0xf]
  %v177 = vld [vmem:[%s1 + $0x168] sm:$0xf]
  %v178 = vld [vmem:[%s1 + $0x16c] sm:$0xf]
  %v179 = vld [vmem:[%s1 + $0x170] sm:$0xf]
  %v180 = vld [vmem:[%s1 + $0x174] sm:$0xf]
  %v181 = vld [vmem:[%s1 + $0x178] sm:$0xf]
  %v182 = vld [vmem:[%s1 + $0x17c] sm:$0xf]
  %v183 = vld [vmem:[%s1 + $0x180] sm:$0xf]
  %v184 = vld [vmem:[%s1 + $0x184] sm:$0xf]
  %v185 = vld [vmem:[%s1 + $0x188] sm:$0xf]
  %v186 = vld [vmem:[%s1 + $0x18c] sm:$0xf]
  %v187 = vld [vmem:[%s1 + $0x190] sm:$0xf]
  %v188 = vld [vmem:[%s1 + $0x194] sm:$0xf]
  %v189 = vld [vmem:[%s1 + $0x198] sm:$0xf]
  %v190 = vld [vmem:[%s1 + $0x19c] sm:$0xf]
  %v191 = vld [vmem:[%s1 + $0x1a0] sm:$0xf]
  %v192 = vld [vmem:[%s1 + $0x1a4] sm:$0xf]
  %v193 = vld [vmem:[%s1 + $0x1a8] sm:$0xf]
  %v194 = vld [vmem:[%s1 + $0x1ac] sm:$0xf]
  %v195 = vld [vmem:[%s1 + $0x1b0] sm:$0xf]
  %v196 = vld [vmem:[%s1 + $0x1b4] sm:$0xf]
  %v197 = vld [vmem:[%s1 + $0x1b8] sm:$0xf]
  %v198 = vld [vmem:[%s1 + $0x1bc] sm:$0xf]
  %v199 = vld [vmem:[%s1 + $0x1c0] sm:$0xf]
  %v200 = vld [vmem:[%s1 + $0x1c4] sm:$0xf]
  %v201 = vld [vmem:[%s1 + $0x1c8] sm:$0xf]
  %v202 = vld [vmem:[%s1 + $0x1cc] sm:$0xf]
  %v203 = vld [vmem:[%s1 + $0x1d0] sm:$0xf]
  %v204 = vld [vmem:[%s1 + $0x1d4] sm:$0xf]
  %v205 = vld [vmem:[%s1 + $0x1d8] sm:$0xf]
  %v206 = vld [vmem:[%s1 + $0x1dc] sm:$0xf]
  %v207 = vld [vmem:[%s1 + $0x1e0] sm:$0xf]
  %v208 = vld [vmem:[%s1 + $0x1e4] sm:$0xf]
  %v209 = vld [vmem:[%s1 + $0x1e8] sm:$0xf]
  %v210 = vld [vmem:[%s1 + $0x1ec] sm:$0xf]
  %v211 = vld [vmem:[%s1 + $0x1f0] sm:$0xf]
  %v212 = vld [vmem:[%s1 + $0x1f4] sm:$0xf]
  %v213 = vld [vmem:[%s1 + $0x1f8] sm:$0xf]
  %v214 = vld [vmem:[%s1 + $0x1fc] sm:$0xf]
  %v215 = vld [vmem:[%s1 + $0x200] sm:$0xf]
  %v216 = vld [vmem:[%s1 + $0x204] sm:$0xf]
  %v217 = vld [vmem:[%s1 + $0x208] sm:$0xf]
  %v218 = vld [vmem:[%s1 + $0x20c] sm:$0xf]
  %v219 = vld [vmem:[%s1 + $0x210] sm:$0xf]
  %v220 = vld [vmem:[%s1 + $0x214] sm:$0xf]
  %v221 = vld [vmem:[%s1 + $0x218] sm:$0xf]
  %v222 = vld [vmem:[%s1 + $0x21c] sm:$0xf]
  %v223 = vld [vmem:[%s1 + $0x220] sm:$0xf]
  %v224 = vld [vmem:[%s1 + $0x224] sm:$0xf]
  %v225 = vld [vmem:[%s1 + $0x228] sm:$0xf]
  %v226 = vld [vmem:[%s1 + $0x22c] sm:$0xf]
  %v227 = vld [vmem:[%s1 + $0x230] sm:$0xf]
  %v228 = vld [vmem:[%s1 + $0x234] sm:$0xf]
  %v229 = vld [vmem:[%s1 + $0x238] sm:$0xf]
  %v230 = vld [vmem:[%s1 + $0x23c] sm:$0xf]
  %v231 = vld [vmem:[%s1 + $0x240] sm:$0xf]
  %v232 = vld [vmem:[%s1 + $0x244] sm:$0xf]
  %v233 = vld [vmem:[%s1 + $0x248] sm:$0xf]
  %v234 = vld [vmem:[%s1 + $0x24c] sm:$0xf]
  %v235 = vld [vmem:[%s1 + $0x250] sm:$0xf]
  %v236 = vld [vmem:[%s1 + $0x254] sm:$0xf]
  %v237 = vld [vmem:[%s1 + $0x258] sm:$0xf]
  %v238 = vld [vmem:[%s1 + $0x25c] sm:$0xf]
  %v239 = vld [vmem:[%s1 + $0x260] sm:$0xf]
  %v240 = vld [vmem:[%s1 + $0x264] sm:$0xf]
  %v241 = vld [vmem:[%s1 + $0x268] sm:$0xf]
  %v242 = vld [vmem:[%s1 + $0x26c] sm:$0xf]
  %v243 = vld [vmem:[%s1 + $0x270] sm:$0xf]
  %v244 = vld [vmem:[%s1 + $0x274] sm:$0xf]
  %v245 = vld [vmem:[%s1 + $0x278] sm:$0xf]
  %v246 = vld [vmem:[%s1 + $0x27c] sm:$0xf]
  %v247 = vld [vmem:[%s1 + $0x280] sm:$0xf]
  %v248 = vld [vmem:[%s1 + $0x284] sm:$0xf]
  %v249 = vld [vmem:[%s1 + $0x288] sm:$0xf]
  %v250 = vld [vmem:[%s1 + $0x28c] sm:$0xf]
  %v251 = vld [vmem:[%s1 + $0x290] sm:$0xf]
  %v252 = vld [vmem:[%s1 + $0x294] sm:$0xf]
  %v253 = vld [vmem:[%s1 + $0x298] sm:$0xf]
  %v254 = vld [vmem:[%s1 + $0x29c] sm:$0xf]
  %v255 = vld [vmem:[%s1 + $0x2a0] sm:$0xf]
  %v256 = vld [vmem:[%s1 + $0x2a4] sm:$0xf]
  %v257 = vld [vmem:[%s1 + $0x2a8] sm:$0xf]
  %v258 = vld [vmem:[%s1 + $0x2ac] sm:$0xf]
  %v259 = vld [vmem:[%s1 + $0x2b0] sm:$0xf]
  %v260 = vld [vmem:[%s1 + $0x2b4] sm:$0xf]
  %v261 = vld [vmem:[%s1 + $0x2b8] sm:$0xf]
  %v262 = vld [vmem:[%s1 + $0x2bc] sm:$0xf]
  %v263 = vld [vmem:[%s1 + $0x2c0] sm:$0xf]
  %v264 = vld [vmem:[%s1 + $0x2c4] sm:$0xf]
  %v265 = vld [vmem:[%s1 + $0x2c8] sm:$0xf]
  %v266 = vld [vmem:[%s1 + $0x2cc] sm:$0xf]
  %v267 = vld [vmem:[%s1 + $0x2d0] sm:$0xf]
  %v268 = vld [vmem:[%s1 + $0x2d4] sm:$0xf]
  %v269 = vld [vmem:[%s1 + $0x2d8] sm:$0xf]
  %v270 = vld [vmem:[%s1 + $0x2dc] sm:$0xf]
  %v271 = vld [vmem:[%s1 + $0x2e0] sm:$0xf]
  %v272 = vld [vmem:[%s1 + $0x2e4] sm:$0xf]
  %v273 = vld [vmem:[%s1 + $0x2e8] sm:$0xf]
  %v274 = vld [vmem:[%s1 + $0x2ec] sm:$0xf]
  %v275 = vld [vmem:[%s1 + $0x2f0] sm:$0xf]
  %v276 = vld [vmem:[%s1 + $0x2f4] sm:$0xf]
  %v277 = vld [vmem:[%s1 + $0x2f8] sm:$0xf]
  %v278 = vld [vmem:[%s1 + $0x2fc] sm:$0xf]
  %v279 = vld [vmem:[%s1 + $0x300] sm:$0xf]
  %v280 = vld [vmem:[%s1 + $0x304] sm:$0xf]
  %v281 = vld [vmem:[%s1 + $0x308] sm:$0xf]
  %v282 = vld [vmem:[%s1 + $0x30c] sm:$0xf]
  %v283 = vld [vmem:[%s1 + $0x310] sm:$0xf]
  %v284 = vld [vmem:[%s1 + $0x314] sm:$0xf]
  %v285 = vld [vmem:[%s1 + $0x318] sm:$0xf]
  %v286 = vld [vmem:[%s1 + $0x31c] sm:$0xf]
  %v287 = vld [vmem:[%s1 + $0x320] sm:$0xf]
  %v288 = vld [vmem:[%s1 + $0x324] sm:$0xf]
  %v289 = vld [vmem:[%s1 + $0x328] sm:$0xf]
  %v290 = vld [vmem:[%s1 + $0x32c] sm:$0xf]
  %v291 = vld [vmem:[%s1 + $0x330] sm:$0xf]
  %v292 = vld [vmem:[%s1 + $0x334] sm:$0xf]
  %v293 = vld [vmem:[%s1 + $0x338] sm:$0xf]
  %v294 = vld [vmem:[%s1 + $0x33c] sm:$0xf]
  %v295 = vld [vmem:[%s1 + $0x340] sm:$0xf]
  %v296 = vld [vmem:[%s1 + $0x344] sm:$0xf]
  %v297 = vld [vmem:[%s1 + $0x348] sm:$0xf]
  %v298 = vld [vmem:[%s1 + $0x34c] sm:$0xf]
  %v299 = vld [vmem:[%s1 + $0x350] sm:$0xf]
  %v300 = vld [vmem:[%s1 + $0x354] sm:$0xf]
  %v301 = vld [vmem:[%s1 + $0x358] sm:$0xf]
  %v302 = vld [vmem:[%s1 + $0x35c] sm:$0xf]
  %v303 = vld [vmem:[%s1 + $0x360] sm:$0xf]
  %v304 = vld [vmem:[%s1 + $0x364] sm:$0xf]
  %v305 = vld [vmem:[%s1 + $0x368] sm:$0xf]
  %v306 = vld [vmem:[%s1 + $0x36c] sm:$0xf]
  %v307 = vld [vmem:[%s1 + $0x370] sm:$0xf]
  %v308 = vld [vmem:[%s1 + $0x374] sm:$0xf]
  %v309 = vld [vmem:[%s1 + $0x378] sm:$0xf]
  %v310 = vld [vmem:[%s1 + $0x37c] sm:$0xf]
  %v311 = vld [vmem:[%s1 + $0x380] sm:$0xf]
  %v312 = vld [vmem:[%s1 + $0x384] sm:$0xf]
  %v313 = vld [vmem:[%s1 + $0x388] sm:$0xf]
  %v314 = vld [vmem:[%s1 + $0x38c] sm:$0xf]
  %v315 = vld [vmem:[%s1 + $0x390] sm:$0xf]
  %v316 = vld [vmem:[%s1 + $0x394] sm:$0xf]
  %v317 = vld [vmem:[%s1 + $0x398] sm:$0xf]
  %v318 = vld [vmem:[%s1 + $0x39c] sm:$0xf]
  %v319 = vld [vmem:[%s1 + $0x3a0] sm:$0xf]
  %v320 = vld [vmem:[%s1 + $0x3a4] sm:$0xf]
  %v321 = vld [vmem:[%s1 + $0x3a8] sm:$0xf]
  %v322 = vld [vmem:[%s1 + $0x3ac] sm:$0xf]
  %v323 = vld [vmem:[%s1 + $0x3b0] sm:$0xf]
  %v324 = vld [vmem:[%s1 + $0x3b4] sm:$0xf]
  %v325 = vld [vmem:[%s1 + $0x3b8] sm:$0xf]
  %v326 = vld [vmem:[%s1 + $0x3bc] sm:$0xf]
  %v327 = vld [vmem:[%s1 + $0x3c0] sm:$0xf]
  %v328 = vld [vmem:[%s1 + $0x3c4] sm:$0xf]
  %v329 = vld [vmem:[%s1 + $0x3c8] sm:$0xf]
  %v330 = vld [vmem:[%s1 + $0x3cc] sm:$0xf]
  %v331 = vld [vmem:[%s1 + $0x3d0] sm:$0xf]
  %v332 = vld [vmem:[%s1 + $0x3d4] sm:$0xf]
  %v333 = vld [vmem:[%s1 + $0x3d8] sm:$0xf]
  %v334 = vld [vmem:[%s1 + $0x3dc] sm:$0xf]
  %v335 = vld [vmem:[%s1 + $0x3e0] sm:$0xf]
  %v336 = vld [vmem:[%s1 + $0x3e4] sm:$0xf]
  %v337 = vld [vmem:[%s1 + $0x3e8] sm:$0xf]
  %v338 = vld [vmem:[%s1 + $0x3ec] sm:$0xf]
  %v339 = vld [vmem:[%s1 + $0x3f0] sm:$0xf]
  %v340 = vld [vmem:[%s1 + $0x3f4] sm:$0xf]
  %v341 = vld [vmem:[%s1 + $0x3f8] sm:$0xf]
  %v342 = vld [vmem:[%s1 + $0x3fc] sm:$0xf]
  %v343 = vld [vmem:[%s2] sm:$0x1]
  %v344 = vlaneseq
  %v345 = vshrl.u32 %v344, 7
  %v346 = vsub.s32 0, %v345
  %v347 = vrot.slane %v343, %v346
  %v420 = vunpack.c.l.b16 %v15
  %v421 = vunpack.c.h.b16 %v15
  %v422 = vunpack.c.l.b16 %v16
  %v423 = vunpack.c.h.b16 %v16
  %v424 = vunpack.c.l.b16 %v17
  %v425 = vunpack.c.h.b16 %v17
  %v426 = vunpack.c.l.b16 %v18
  %v427 = vunpack.c.h.b16 %v18
  %v428 = vunpack.c.l.b16 %v19
  %v429 = vunpack.c.h.b16 %v19
  %v430 = vunpack.c.l.b16 %v20
  %v431 = vunpack.c.h.b16 %v20
  %v432 = vunpack.c.l.b16 %v21
  %v433 = vunpack.c.h.b16 %v21
  %v434 = vunpack.c.l.b16 %v22
  %v435 = vunpack.c.h.b16 %v22
  %v436 = vunpack.c.l.b16 %v23
  %v437 = vunpack.c.h.b16 %v23
  %v438 = vunpack.c.l.b16 %v24
  %v439 = vunpack.c.h.b16 %v24
  %v440 = vunpack.c.l.b16 %v25
  %v441 = vunpack.c.h.b16 %v25
  %v442 = vunpack.c.l.b16 %v26
  %v443 = vunpack.c.h.b16 %v26
  %v444 = vunpack.c.l.b16 %v27
  %v445 = vunpack.c.h.b16 %v27
  %v446 = vunpack.c.l.b16 %v28
  %v447 = vunpack.c.h.b16 %v28
  %v448 = vunpack.c.l.b16 %v29
  %v449 = vunpack.c.h.b16 %v29
  %v450 = vunpack.c.l.b16 %v30
  %v451 = vunpack.c.h.b16 %v30
  %v452 = vunpack.c.l.b16 %v31
  %v453 = vunpack.c.h.b16 %v31
  %v454 = vunpack.c.l.b16 %v32
  %v455 = vunpack.c.h.b16 %v32
  %v456 = vunpack.c.l.b16 %v33
  %v457 = vunpack.c.h.b16 %v33
  %v458 = vunpack.c.l.b16 %v34
  %v459 = vunpack.c.h.b16 %v34
  %v460 = vunpack.c.l.b16 %v35
  %v461 = vunpack.c.h.b16 %v35
  %v462 = vunpack.c.l.b16 %v36
  %v463 = vunpack.c.h.b16 %v36
  %v464 = vunpack.c.l.b16 %v37
  %v465 = vunpack.c.h.b16 %v37
  %v466 = vunpack.c.l.b16 %v38
  %v467 = vunpack.c.h.b16 %v38
  %v468 = vunpack.c.l.b16 %v39
  %v469 = vunpack.c.h.b16 %v39
  %v470 = vunpack.c.l.b16 %v40
  %v471 = vunpack.c.h.b16 %v40
  %v472 = vunpack.c.l.b16 %v41
  %v473 = vunpack.c.h.b16 %v41
  %v474 = vunpack.c.l.b16 %v42
  %v475 = vunpack.c.h.b16 %v42
  %v476 = vunpack.c.l.b16 %v43
  %v477 = vunpack.c.h.b16 %v43
  %v478 = vunpack.c.l.b16 %v44
  %v479 = vunpack.c.h.b16 %v44
  %v480 = vunpack.c.l.b16 %v45
  %v481 = vunpack.c.h.b16 %v45
  %v482 = vunpack.c.l.b16 %v46
  %v483 = vunpack.c.h.b16 %v46
  %v484 = vunpack.c.l.b16 %v47
  %v485 = vunpack.c.h.b16 %v47
  %v486 = vunpack.c.l.b16 %v48
  %v487 = vunpack.c.h.b16 %v48
  %v488 = vunpack.c.l.b16 %v49
  %v489 = vunpack.c.h.b16 %v49
  %v490 = vunpack.c.l.b16 %v50
  %v491 = vunpack.c.h.b16 %v50
  %v492 = vunpack.c.l.b16 %v51
  %v493 = vunpack.c.h.b16 %v51
  %v494 = vunpack.c.l.b16 %v52
  %v495 = vunpack.c.h.b16 %v52
  %v496 = vunpack.c.l.b16 %v53
  %v497 = vunpack.c.h.b16 %v53
  %v498 = vunpack.c.l.b16 %v54
  %v499 = vunpack.c.h.b16 %v54
  %v500 = vunpack.c.l.b16 %v55
  %v501 = vunpack.c.h.b16 %v55
  %v502 = vunpack.c.l.b16 %v56
  %v503 = vunpack.c.h.b16 %v56
  %v504 = vunpack.c.l.b16 %v57
  %v505 = vunpack.c.h.b16 %v57
  %v506 = vunpack.c.l.b16 %v58
  %v507 = vunpack.c.h.b16 %v58
  %v508 = vunpack.c.l.b16 %v59
  %v509 = vunpack.c.h.b16 %v59
  %v510 = vunpack.c.l.b16 %v60
  %v511 = vunpack.c.h.b16 %v60
  %v512 = vunpack.c.l.b16 %v61
  %v513 = vunpack.c.h.b16 %v61
  %v514 = vunpack.c.l.b16 %v62
  %v515 = vunpack.c.h.b16 %v62
  %v516 = vunpack.c.l.b16 %v63
  %v517 = vunpack.c.h.b16 %v63
  %v518 = vunpack.c.l.b16 %v64
  %v519 = vunpack.c.h.b16 %v64
  %v520 = vunpack.c.l.b16 %v65
  %v521 = vunpack.c.h.b16 %v65
  %v522 = vunpack.c.l.b16 %v66
  %v523 = vunpack.c.h.b16 %v66
  %v524 = vunpack.c.l.b16 %v67
  %v525 = vunpack.c.h.b16 %v67
  %v526 = vunpack.c.l.b16 %v68
  %v527 = vunpack.c.h.b16 %v68
  %v528 = vunpack.c.l.b16 %v69
  %v529 = vunpack.c.h.b16 %v69
  %v530 = vunpack.c.l.b16 %v70
  %v531 = vunpack.c.h.b16 %v70
  %v532 = vunpack.c.l.b16 %v71
  %v533 = vunpack.c.h.b16 %v71
  %v534 = vunpack.c.l.b16 %v72
  %v535 = vunpack.c.h.b16 %v72
  %v536 = vunpack.c.l.b16 %v73
  %v537 = vunpack.c.h.b16 %v73
  %v538 = vunpack.c.l.b16 %v74
  %v539 = vunpack.c.h.b16 %v74
  %v540 = vunpack.c.l.b16 %v75
  %v541 = vunpack.c.h.b16 %v75
  %v542 = vunpack.c.l.b16 %v76
  %v543 = vunpack.c.h.b16 %v76
  %v544 = vunpack.c.l.b16 %v77
  %v545 = vunpack.c.h.b16 %v77
  %v546 = vunpack.c.l.b16 %v78
  %v547 = vunpack.c.h.b16 %v78
  %v548 = vunpack.c.l.b16 %v79
  %v549 = vunpack.c.h.b16 %v79
  %v550 = vunpack.c.l.b16 %v80
  %v551 = vunpack.c.h.b16 %v80
  %v552 = vunpack.c.l.b16 %v81
  %v553 = vunpack.c.h.b16 %v81
  %v554 = vunpack.c.l.b16 %v82
  %v555 = vunpack.c.h.b16 %v82
  %v556 = vunpack.c.l.b16 %v83
  %v557 = vunpack.c.h.b16 %v83
  %v558 = vunpack.c.l.b16 %v84
  %v559 = vunpack.c.h.b16 %v84
  %v560 = vunpack.c.l.b16 %v85
  %v561 = vunpack.c.h.b16 %v85
  %v562 = vunpack.c.l.b16 %v86
  %v563 = vunpack.c.h.b16 %v86
  %v564 = vpack.c.b16 %v436, %v420
  %v565 = vpack.c.b16 %v437, %v421
  %v566 = vpack.c.b16 %v438, %v422
  %v567 = vpack.c.b16 %v439, %v423
  %v568 = vpack.c.b16 %v440, %v424
  %v569 = vpack.c.b16 %v441, %v425
  %v570 = vpack.c.b16 %v442, %v426
  %v571 = vpack.c.b16 %v443, %v427
  %v572 = vpack.c.b16 %v444, %v428
  %v573 = vpack.c.b16 %v445, %v429
  %v574 = vpack.c.b16 %v446, %v430
  %v575 = vpack.c.b16 %v447, %v431
  %v576 = vpack.c.b16 %v448, %v432
  %v577 = vpack.c.b16 %v449, %v433
  %v578 = vpack.c.b16 %v450, %v434
  %v579 = vpack.c.b16 %v451, %v435
  %v580 = vpack.c.b16 %v468, %v452
  %v581 = vpack.c.b16 %v469, %v453
  %v582 = vpack.c.b16 %v470, %v454
  %v583 = vpack.c.b16 %v471, %v455
  %v584 = vpack.c.b16 %v472, %v456
  %v585 = vpack.c.b16 %v473, %v457
  %v586 = vpack.c.b16 %v474, %v458
  %v587 = vpack.c.b16 %v475, %v459
  %v588 = vpack.c.b16 %v476, %v460
  %v589 = vpack.c.b16 %v477, %v461
  %v590 = vpack.c.b16 %v478, %v462
  %v591 = vpack.c.b16 %v479, %v463
  %v592 = vpack.c.b16 %v480, %v464
  %v593 = vpack.c.b16 %v481, %v465
  %v594 = vpack.c.b16 %v482, %v466
  %v595 = vpack.c.b16 %v483, %v467
  %v596 = vpack.c.b16 %v500, %v484
  %v597 = vpack.c.b16 %v501, %v485
  %v598 = vpack.c.b16 %v502, %v486
  %v599 = vpack.c.b16 %v503, %v487
  %v600 = vpack.c.b16 %v504, %v488
  %v601 = vpack.c.b16 %v505, %v489
  %v602 = vpack.c.b16 %v506, %v490
  %v603 = vpack.c.b16 %v507, %v491
  %v604 = vpack.c.b16 %v508, %v492
  %v605 = vpack.c.b16 %v509, %v493
  %v606 = vpack.c.b16 %v510, %v494
  %v607 = vpack.c.b16 %v511, %v495
  %v608 = vpack.c.b16 %v512, %v496
  %v609 = vpack.c.b16 %v513, %v497
  %v610 = vpack.c.b16 %v514, %v498
  %v611 = vpack.c.b16 %v515, %v499
  %v612 = vpack.c.b16 %v532, %v516
  %v613 = vpack.c.b16 %v533, %v517
  %v614 = vpack.c.b16 %v534, %v518
  %v615 = vpack.c.b16 %v535, %v519
  %v616 = vpack.c.b16 %v536, %v520
  %v617 = vpack.c.b16 %v537, %v521
  %v618 = vpack.c.b16 %v538, %v522
  %v619 = vpack.c.b16 %v539, %v523
  %v620 = vpack.c.b16 %v540, %v524
  %v621 = vpack.c.b16 %v541, %v525
  %v622 = vpack.c.b16 %v542, %v526
  %v623 = vpack.c.b16 %v543, %v527
  %v624 = vpack.c.b16 %v544, %v528
  %v625 = vpack.c.b16 %v545, %v529
  %v626 = vpack.c.b16 %v546, %v530
  %v627 = vpack.c.b16 %v547, %v531
  %v628 = vpack.c.b16 %v548, %v548
  %v629 = vpack.c.b16 %v549, %v549
  %v630 = vpack.c.b16 %v550, %v550
  %v631 = vpack.c.b16 %v551, %v551
  %v632 = vpack.c.b16 %v552, %v552
  %v633 = vpack.c.b16 %v553, %v553
  %v634 = vpack.c.b16 %v554, %v554
  %v635 = vpack.c.b16 %v555, %v555
  %v636 = vpack.c.b16 %v556, %v556
  %v637 = vpack.c.b16 %v557, %v557
  %v638 = vpack.c.b16 %v558, %v558
  %v639 = vpack.c.b16 %v559, %v559
  %v640 = vpack.c.b16 %v560, %v560
  %v641 = vpack.c.b16 %v561, %v561
  %v642 = vpack.c.b16 %v562, %v562
  %v643 = vpack.c.b16 %v563, %v563
  %v980 = vunpack.c.l.b16 %v87
  %v981 = vunpack.c.l.b16 %v88
  %v982 = vunpack.c.l.b16 %v89
  %v983 = vunpack.c.l.b16 %v90
  %v984 = vunpack.c.l.b16 %v91
  %v985 = vunpack.c.l.b16 %v92
  %v986 = vunpack.c.l.b16 %v93
  %v987 = vunpack.c.l.b16 %v94
  %v988 = vunpack.c.l.b16 %v95
  %v989 = vunpack.c.l.b16 %v96
  %v990 = vunpack.c.l.b16 %v97
  %v991 = vunpack.c.l.b16 %v98
  %v992 = vunpack.c.l.b16 %v99
  %v993 = vunpack.c.l.b16 %v100
  %v994 = vunpack.c.l.b16 %v101
  %v995 = vunpack.c.l.b16 %v102
  %v996 = vunpack.c.l.b16 %v103
  %v997 = vunpack.c.l.b16 %v104
  %v998 = vunpack.c.l.b16 %v105
  %v999 = vunpack.c.l.b16 %v106
  %v1000 = vunpack.c.l.b16 %v107
  %v1001 = vunpack.c.l.b16 %v108
  %v1002 = vunpack.c.l.b16 %v109
  %v1003 = vunpack.c.l.b16 %v110
  %v1004 = vunpack.c.l.b16 %v111
  %v1005 = vunpack.c.l.b16 %v112
  %v1006 = vunpack.c.l.b16 %v113
  %v1007 = vunpack.c.l.b16 %v114
  %v1008 = vunpack.c.l.b16 %v115
  %v1009 = vunpack.c.l.b16 %v116
  %v1010 = vunpack.c.l.b16 %v117
  %v1011 = vunpack.c.l.b16 %v118
  %v1012 = vunpack.c.l.b16 %v119
  %v1013 = vunpack.c.l.b16 %v120
  %v1014 = vunpack.c.l.b16 %v121
  %v1015 = vunpack.c.l.b16 %v122
  %v1016 = vunpack.c.l.b16 %v123
  %v1017 = vunpack.c.l.b16 %v124
  %v1018 = vunpack.c.l.b16 %v125
  %v1019 = vunpack.c.l.b16 %v126
  %v1020 = vunpack.c.l.b16 %v127
  %v1021 = vunpack.c.l.b16 %v128
  %v1022 = vunpack.c.l.b16 %v129
  %v1023 = vunpack.c.l.b16 %v130
  %v1024 = vunpack.c.l.b16 %v131
  %v1025 = vunpack.c.l.b16 %v132
  %v1026 = vunpack.c.l.b16 %v133
  %v1027 = vunpack.c.l.b16 %v134
  %v1028 = vunpack.c.l.b16 %v135
  %v1029 = vunpack.c.l.b16 %v136
  %v1030 = vunpack.c.l.b16 %v137
  %v1031 = vunpack.c.l.b16 %v138
  %v1032 = vunpack.c.l.b16 %v139
  %v1033 = vunpack.c.l.b16 %v140
  %v1034 = vunpack.c.l.b16 %v141
  %v1035 = vunpack.c.l.b16 %v142
  %v1036 = vunpack.c.l.b16 %v143
  %v1037 = vunpack.c.l.b16 %v144
  %v1038 = vunpack.c.l.b16 %v145
  %v1039 = vunpack.c.l.b16 %v146
  %v1040 = vunpack.c.l.b16 %v147
  %v1041 = vunpack.c.l.b16 %v148
  %v1042 = vunpack.c.l.b16 %v149
  %v1043 = vunpack.c.l.b16 %v150
  %v1044 = vunpack.c.l.b16 %v151
  %v1045 = vunpack.c.l.b16 %v152
  %v1046 = vunpack.c.l.b16 %v153
  %v1047 = vunpack.c.l.b16 %v154
  %v1048 = vunpack.c.l.b16 %v155
  %v1049 = vunpack.c.l.b16 %v156
  %v1050 = vunpack.c.l.b16 %v157
  %v1051 = vunpack.c.l.b16 %v158
  %v1052 = vunpack.c.l.b16 %v159
  %v1053 = vunpack.c.l.b16 %v160
  %v1054 = vunpack.c.l.b16 %v161
  %v1055 = vunpack.c.l.b16 %v162
  %v1056 = vunpack.c.l.b16 %v163
  %v1057 = vunpack.c.l.b16 %v164
  %v1058 = vunpack.c.l.b16 %v165
  %v1059 = vunpack.c.l.b16 %v166
  %v1060 = vunpack.c.l.b16 %v167
  %v1061 = vunpack.c.l.b16 %v168
  %v1062 = vunpack.c.l.b16 %v169
  %v1063 = vunpack.c.l.b16 %v170
  %v1064 = vunpack.c.l.b16 %v171
  %v1065 = vunpack.c.l.b16 %v172
  %v1066 = vunpack.c.l.b16 %v173
  %v1067 = vunpack.c.l.b16 %v174
  %v1068 = vunpack.c.l.b16 %v175
  %v1069 = vunpack.c.l.b16 %v176
  %v1070 = vunpack.c.l.b16 %v177
  %v1071 = vunpack.c.l.b16 %v178
  %v1072 = vunpack.c.l.b16 %v179
  %v1073 = vunpack.c.l.b16 %v180
  %v1074 = vunpack.c.l.b16 %v181
  %v1075 = vunpack.c.l.b16 %v182
  %v1076 = vunpack.c.l.b16 %v183
  %v1077 = vunpack.c.l.b16 %v184
  %v1078 = vunpack.c.l.b16 %v185
  %v1079 = vunpack.c.l.b16 %v186
  %v1080 = vunpack.c.l.b16 %v187
  %v1081 = vunpack.c.l.b16 %v188
  %v1082 = vunpack.c.l.b16 %v189
  %v1083 = vunpack.c.l.b16 %v190
  %v1084 = vunpack.c.l.b16 %v191
  %v1085 = vunpack.c.l.b16 %v192
  %v1086 = vunpack.c.l.b16 %v193
  %v1087 = vunpack.c.l.b16 %v194
  %v1088 = vunpack.c.l.b16 %v195
  %v1089 = vunpack.c.l.b16 %v196
  %v1090 = vunpack.c.l.b16 %v197
  %v1091 = vunpack.c.l.b16 %v198
  %v1092 = vunpack.c.l.b16 %v199
  %v1093 = vunpack.c.l.b16 %v200
  %v1094 = vunpack.c.l.b16 %v201
  %v1095 = vunpack.c.l.b16 %v202
  %v1096 = vunpack.c.l.b16 %v203
  %v1097 = vunpack.c.l.b16 %v204
  %v1098 = vunpack.c.l.b16 %v205
  %v1099 = vunpack.c.l.b16 %v206
  %v1100 = vunpack.c.l.b16 %v207
  %v1101 = vunpack.c.l.b16 %v208
  %v1102 = vunpack.c.l.b16 %v209
  %v1103 = vunpack.c.l.b16 %v210
  %v1104 = vunpack.c.l.b16 %v211
  %v1105 = vunpack.c.l.b16 %v212
  %v1106 = vunpack.c.l.b16 %v213
  %v1107 = vunpack.c.l.b16 %v214
  %v1108 = vunpack.c.l.b16 %v215
  %v1109 = vunpack.c.l.b16 %v216
  %v1110 = vunpack.c.l.b16 %v217
  %v1111 = vunpack.c.l.b16 %v218
  %v1112 = vunpack.c.l.b16 %v219
  %v1113 = vunpack.c.l.b16 %v220
  %v1114 = vunpack.c.l.b16 %v221
  %v1115 = vunpack.c.l.b16 %v222
  %v1116 = vunpack.c.l.b16 %v223
  %v1117 = vunpack.c.l.b16 %v224
  %v1118 = vunpack.c.l.b16 %v225
  %v1119 = vunpack.c.l.b16 %v226
  %v1120 = vunpack.c.l.b16 %v227
  %v1121 = vunpack.c.l.b16 %v228
  %v1122 = vunpack.c.l.b16 %v229
  %v1123 = vunpack.c.l.b16 %v230
  %v1124 = vunpack.c.l.b16 %v231
  %v1125 = vunpack.c.l.b16 %v232
  %v1126 = vunpack.c.l.b16 %v233
  %v1127 = vunpack.c.l.b16 %v234
  %v1128 = vunpack.c.l.b16 %v235
  %v1129 = vunpack.c.l.b16 %v236
  %v1130 = vunpack.c.l.b16 %v237
  %v1131 = vunpack.c.l.b16 %v238
  %v1132 = vunpack.c.l.b16 %v239
  %v1133 = vunpack.c.l.b16 %v240
  %v1134 = vunpack.c.l.b16 %v241
  %v1135 = vunpack.c.l.b16 %v242
  %v1136 = vunpack.c.l.b16 %v243
  %v1137 = vunpack.c.l.b16 %v244
  %v1138 = vunpack.c.l.b16 %v245
  %v1139 = vunpack.c.l.b16 %v246
  %v1140 = vunpack.c.l.b16 %v247
  %v1141 = vunpack.c.l.b16 %v248
  %v1142 = vunpack.c.l.b16 %v249
  %v1143 = vunpack.c.l.b16 %v250
  %v1144 = vunpack.c.l.b16 %v251
  %v1145 = vunpack.c.l.b16 %v252
  %v1146 = vunpack.c.l.b16 %v253
  %v1147 = vunpack.c.l.b16 %v254
  %v1148 = vunpack.c.l.b16 %v255
  %v1149 = vunpack.c.l.b16 %v256
  %v1150 = vunpack.c.l.b16 %v257
  %v1151 = vunpack.c.l.b16 %v258
  %v1152 = vunpack.c.l.b16 %v259
  %v1153 = vunpack.c.l.b16 %v260
  %v1154 = vunpack.c.l.b16 %v261
  %v1155 = vunpack.c.l.b16 %v262
  %v1156 = vunpack.c.l.b16 %v263
  %v1157 = vunpack.c.l.b16 %v264
  %v1158 = vunpack.c.l.b16 %v265
  %v1159 = vunpack.c.l.b16 %v266
  %v1160 = vunpack.c.l.b16 %v267
  %v1161 = vunpack.c.l.b16 %v268
  %v1162 = vunpack.c.l.b16 %v269
  %v1163 = vunpack.c.l.b16 %v270
  %v1164 = vunpack.c.l.b16 %v271
  %v1165 = vunpack.c.l.b16 %v272
  %v1166 = vunpack.c.l.b16 %v273
  %v1167 = vunpack.c.l.b16 %v274
  %v1168 = vunpack.c.l.b16 %v275
  %v1169 = vunpack.c.l.b16 %v276
  %v1170 = vunpack.c.l.b16 %v277
  %v1171 = vunpack.c.l.b16 %v278
  %v1172 = vunpack.c.l.b16 %v279
  %v1173 = vunpack.c.l.b16 %v280
  %v1174 = vunpack.c.l.b16 %v281
  %v1175 = vunpack.c.l.b16 %v282
  %v1176 = vunpack.c.l.b16 %v283
  %v1177 = vunpack.c.l.b16 %v284
  %v1178 = vunpack.c.l.b16 %v285
  %v1179 = vunpack.c.l.b16 %v286
  %v1180 = vunpack.c.l.b16 %v287
  %v1181 = vunpack.c.l.b16 %v288
  %v1182 = vunpack.c.l.b16 %v289
  %v1183 = vunpack.c.l.b16 %v290
  %v1184 = vunpack.c.l.b16 %v291
  %v1185 = vunpack.c.l.b16 %v292
  %v1186 = vunpack.c.l.b16 %v293
  %v1187 = vunpack.c.l.b16 %v294
  %v1188 = vunpack.c.l.b16 %v295
  %v1189 = vunpack.c.l.b16 %v296
  %v1190 = vunpack.c.l.b16 %v297
  %v1191 = vunpack.c.l.b16 %v298
  %v1192 = vunpack.c.l.b16 %v299
  %v1193 = vunpack.c.l.b16 %v300
  %v1194 = vunpack.c.l.b16 %v301
  %v1195 = vunpack.c.l.b16 %v302
  %v1196 = vunpack.c.l.b16 %v303
  %v1197 = vunpack.c.l.b16 %v304
  %v1198 = vunpack.c.l.b16 %v305
  %v1199 = vunpack.c.l.b16 %v306
  %v1200 = vunpack.c.l.b16 %v307
  %v1201 = vunpack.c.l.b16 %v308
  %v1202 = vunpack.c.l.b16 %v309
  %v1203 = vunpack.c.l.b16 %v310
  %v1204 = vunpack.c.l.b16 %v311
  %v1205 = vunpack.c.l.b16 %v312
  %v1206 = vunpack.c.l.b16 %v313
  %v1207 = vunpack.c.l.b16 %v314
  %v1208 = vunpack.c.l.b16 %v315
  %v1209 = vunpack.c.l.b16 %v316
  %v1210 = vunpack.c.l.b16 %v317
  %v1211 = vunpack.c.l.b16 %v318
  %v1212 = vunpack.c.l.b16 %v319
  %v1213 = vunpack.c.l.b16 %v320
  %v1214 = vunpack.c.l.b16 %v321
  %v1215 = vunpack.c.l.b16 %v322
  %v1216 = vunpack.c.l.b16 %v323
  %v1217 = vunpack.c.l.b16 %v324
  %v1218 = vunpack.c.l.b16 %v325
  %v1219 = vunpack.c.l.b16 %v326
  %v1220 = vunpack.c.l.b16 %v327
  %v1221 = vunpack.c.l.b16 %v328
  %v1222 = vunpack.c.l.b16 %v329
  %v1223 = vunpack.c.l.b16 %v330
  %v1224 = vunpack.c.l.b16 %v331
  %v1225 = vunpack.c.l.b16 %v332
  %v1226 = vunpack.c.l.b16 %v333
  %v1227 = vunpack.c.l.b16 %v334
  %v1228 = vunpack.c.l.b16 %v335
  %v1229 = vunpack.c.l.b16 %v336
  %v1230 = vunpack.c.l.b16 %v337
  %v1231 = vunpack.c.l.b16 %v338
  %v1232 = vunpack.c.l.b16 %v339
  %v1233 = vunpack.c.l.b16 %v340
  %v1234 = vunpack.c.l.b16 %v341
  %v1235 = vunpack.c.l.b16 %v342
  %v1236 = vpack.c.b16 %v981, %v980
  %v1237 = vpack.c.b16 %v983, %v982
  %v1238 = vpack.c.b16 %v985, %v984
  %v1239 = vpack.c.b16 %v987, %v986
  %v1240 = vpack.c.b16 %v989, %v988
  %v1241 = vpack.c.b16 %v991, %v990
  %v1242 = vpack.c.b16 %v993, %v992
  %v1243 = vpack.c.b16 %v995, %v994
  %v1244 = vpack.c.b16 %v997, %v996
  %v1245 = vpack.c.b16 %v999, %v998
  %v1246 = vpack.c.b16 %v1001, %v1000
  %v1247 = vpack.c.b16 %v1003, %v1002
  %v1248 = vpack.c.b16 %v1005, %v1004
  %v1249 = vpack.c.b16 %v1007, %v1006
  %v1250 = vpack.c.b16 %v1009, %v1008
  %v1251 = vpack.c.b16 %v1011, %v1010
  %v1252 = vpack.c.b16 %v1013, %v1012
  %v1253 = vpack.c.b16 %v1015, %v1014
  %v1254 = vpack.c.b16 %v1017, %v1016
  %v1255 = vpack.c.b16 %v1019, %v1018
  %v1256 = vpack.c.b16 %v1021, %v1020
  %v1257 = vpack.c.b16 %v1023, %v1022
  %v1258 = vpack.c.b16 %v1025, %v1024
  %v1259 = vpack.c.b16 %v1027, %v1026
  %v1260 = vpack.c.b16 %v1029, %v1028
  %v1261 = vpack.c.b16 %v1031, %v1030
  %v1262 = vpack.c.b16 %v1033, %v1032
  %v1263 = vpack.c.b16 %v1035, %v1034
  %v1264 = vpack.c.b16 %v1037, %v1036
  %v1265 = vpack.c.b16 %v1039, %v1038
  %v1266 = vpack.c.b16 %v1041, %v1040
  %v1267 = vpack.c.b16 %v1043, %v1042
  %v1268 = vpack.c.b16 %v1045, %v1044
  %v1269 = vpack.c.b16 %v1047, %v1046
  %v1270 = vpack.c.b16 %v1049, %v1048
  %v1271 = vpack.c.b16 %v1051, %v1050
  %v1272 = vpack.c.b16 %v1053, %v1052
  %v1273 = vpack.c.b16 %v1055, %v1054
  %v1274 = vpack.c.b16 %v1057, %v1056
  %v1275 = vpack.c.b16 %v1059, %v1058
  %v1276 = vpack.c.b16 %v1061, %v1060
  %v1277 = vpack.c.b16 %v1063, %v1062
  %v1278 = vpack.c.b16 %v1065, %v1064
  %v1279 = vpack.c.b16 %v1067, %v1066
  %v1280 = vpack.c.b16 %v1069, %v1068
  %v1281 = vpack.c.b16 %v1071, %v1070
  %v1282 = vpack.c.b16 %v1073, %v1072
  %v1283 = vpack.c.b16 %v1075, %v1074
  %v1284 = vpack.c.b16 %v1077, %v1076
  %v1285 = vpack.c.b16 %v1079, %v1078
  %v1286 = vpack.c.b16 %v1081, %v1080
  %v1287 = vpack.c.b16 %v1083, %v1082
  %v1288 = vpack.c.b16 %v1085, %v1084
  %v1289 = vpack.c.b16 %v1087, %v1086
  %v1290 = vpack.c.b16 %v1089, %v1088
  %v1291 = vpack.c.b16 %v1091, %v1090
  %v1292 = vpack.c.b16 %v1093, %v1092
  %v1293 = vpack.c.b16 %v1095, %v1094
  %v1294 = vpack.c.b16 %v1097, %v1096
  %v1295 = vpack.c.b16 %v1099, %v1098
  %v1296 = vpack.c.b16 %v1101, %v1100
  %v1297 = vpack.c.b16 %v1103, %v1102
  %v1298 = vpack.c.b16 %v1105, %v1104
  %v1299 = vpack.c.b16 %v1107, %v1106
  %v1300 = vpack.c.b16 %v1109, %v1108
  %v1301 = vpack.c.b16 %v1111, %v1110
  %v1302 = vpack.c.b16 %v1113, %v1112
  %v1303 = vpack.c.b16 %v1115, %v1114
  %v1304 = vpack.c.b16 %v1117, %v1116
  %v1305 = vpack.c.b16 %v1119, %v1118
  %v1306 = vpack.c.b16 %v1121, %v1120
  %v1307 = vpack.c.b16 %v1123, %v1122
  %v1308 = vpack.c.b16 %v1125, %v1124
  %v1309 = vpack.c.b16 %v1127, %v1126
  %v1310 = vpack.c.b16 %v1129, %v1128
  %v1311 = vpack.c.b16 %v1131, %v1130
  %v1312 = vpack.c.b16 %v1133, %v1132
  %v1313 = vpack.c.b16 %v1135, %v1134
  %v1314 = vpack.c.b16 %v1137, %v1136
  %v1315 = vpack.c.b16 %v1139, %v1138
  %v1316 = vpack.c.b16 %v1141, %v1140
  %v1317 = vpack.c.b16 %v1143, %v1142
  %v1318 = vpack.c.b16 %v1145, %v1144
  %v1319 = vpack.c.b16 %v1147, %v1146
  %v1320 = vpack.c.b16 %v1149, %v1148
  %v1321 = vpack.c.b16 %v1151, %v1150
  %v1322 = vpack.c.b16 %v1153, %v1152
  %v1323 = vpack.c.b16 %v1155, %v1154
  %v1324 = vpack.c.b16 %v1157, %v1156
  %v1325 = vpack.c.b16 %v1159, %v1158
  %v1326 = vpack.c.b16 %v1161, %v1160
  %v1327 = vpack.c.b16 %v1163, %v1162
  %v1328 = vpack.c.b16 %v1165, %v1164
  %v1329 = vpack.c.b16 %v1167, %v1166
  %v1330 = vpack.c.b16 %v1169, %v1168
  %v1331 = vpack.c.b16 %v1171, %v1170
  %v1332 = vpack.c.b16 %v1173, %v1172
  %v1333 = vpack.c.b16 %v1175, %v1174
  %v1334 = vpack.c.b16 %v1177, %v1176
  %v1335 = vpack.c.b16 %v1179, %v1178
  %v1336 = vpack.c.b16 %v1181, %v1180
  %v1337 = vpack.c.b16 %v1183, %v1182
  %v1338 = vpack.c.b16 %v1185, %v1184
  %v1339 = vpack.c.b16 %v1187, %v1186
  %v1340 = vpack.c.b16 %v1189, %v1188
  %v1341 = vpack.c.b16 %v1191, %v1190
  %v1342 = vpack.c.b16 %v1193, %v1192
  %v1343 = vpack.c.b16 %v1195, %v1194
  %v1344 = vpack.c.b16 %v1197, %v1196
  %v1345 = vpack.c.b16 %v1199, %v1198
  %v1346 = vpack.c.b16 %v1201, %v1200
  %v1347 = vpack.c.b16 %v1203, %v1202
  %v1348 = vpack.c.b16 %v1205, %v1204
  %v1349 = vpack.c.b16 %v1207, %v1206
  %v1350 = vpack.c.b16 %v1209, %v1208
  %v1351 = vpack.c.b16 %v1211, %v1210
  %v1352 = vpack.c.b16 %v1213, %v1212
  %v1353 = vpack.c.b16 %v1215, %v1214
  %v1354 = vpack.c.b16 %v1217, %v1216
  %v1355 = vpack.c.b16 %v1219, %v1218
  %v1356 = vpack.c.b16 %v1221, %v1220
  %v1357 = vpack.c.b16 %v1223, %v1222
  %v1358 = vpack.c.b16 %v1225, %v1224
  %v1359 = vpack.c.b16 %v1227, %v1226
  %v1360 = vpack.c.b16 %v1229, %v1228
  %v1361 = vpack.c.b16 %v1231, %v1230
  %v1362 = vpack.c.b16 %v1233, %v1232
  %v1363 = vpack.c.b16 %v1235, %v1234
  %1492 = vmatprep.subr.bf16.mxu0 0
  %1493 = vmatpush1.bf16.msra.mxu0 %v1243
  %1494 = vmatprep.subr.bf16.mxu0 0
  %1495 = vmatpush1.bf16.msra.mxu0 %v1242
  %1496 = vmatprep.subr.bf16.mxu0 0
  %1497 = vmatpush1.bf16.msra.mxu0 %v1241
  %1498 = vmatprep.subr.bf16.mxu0 0
  %1499 = vmatpush1.bf16.msra.mxu0 %v1240
  %1500 = vmatprep.subr.bf16.mxu0 0
  %1501 = vmatpush1.bf16.msra.mxu0 %v1239
  %1502 = vmatprep.subr.bf16.mxu0 0
  %1503 = vmatpush1.bf16.msra.mxu0 %v1238
  %1504 = vmatprep.subr.bf16.mxu0 0
  %1505 = vmatpush1.bf16.msra.mxu0 %v1237
  %1506 = vmatprep.subr.bf16.mxu0 0
  %1507 = vmatpush1.bf16.msra.mxu0 %v1236
  %1508 = vmatprep.subr.bf16.mxu0 0
  %1509 = vmatpush2.bf16.msra.mxu0 %v1251
  %1510 = vmatprep.subr.bf16.mxu0 0
  %1511 = vmatpush2.bf16.msra.mxu0 %v1250
  %1512 = vmatprep.subr.bf16.mxu0 0
  %1513 = vmatpush2.bf16.msra.mxu0 %v1249
  %1514 = vmatprep.subr.bf16.mxu0 0
  %1515 = vmatpush2.bf16.msra.mxu0 %v1248
  %1516 = vmatprep.subr.bf16.mxu0 0
  %1517 = vmatpush2.bf16.msra.mxu0 %v1247
  %1518 = vmatprep.subr.bf16.mxu0 0
  %1519 = vmatpush2.bf16.msra.mxu0 %v1246
  %1520 = vmatprep.subr.bf16.mxu0 0
  %1521 = vmatpush2.bf16.msra.mxu0 %v1245
  %1522 = vmatprep.subr.bf16.mxu0 0
  %1523 = vmatpush2.bf16.msra.mxu0 %v1244
  %1524 = vmatprep.mubr.bf16.mxu0 %v565
  %1525 = vmatmul.mubr.bf16.gmra.mxu0 %v564
  %v1526 = vpop.f32.mrf.mxu0
  %v1527 = vadd.f32 %v347, %v1526
  %v1528 = vpop.f32.mrf.mxu0
  %v1529 = vpop.f32.mrf.mxu0
  %v1530 = vadd.f32 %v347, %v1529
  %v1531 = vpop.f32.mrf.mxu0
  %1532 = vmatprep.mubr.bf16.mxu0 %v581
  %1533 = vmatmul.mubr.bf16.gmra.mxu0 %v580
  %v1534 = vpop.f32.mrf.mxu0
  %v1535 = vadd.f32 %v347, %v1534
  %v1536 = vpop.f32.mrf.mxu0
  %v1537 = vpop.f32.mrf.mxu0
  %v1538 = vadd.f32 %v347, %v1537
  %v1539 = vpop.f32.mrf.mxu0
  %1540 = vmatprep.mubr.bf16.mxu0 %v597
  %1541 = vmatmul.mubr.bf16.gmra.mxu0 %v596
  %v1542 = vpop.f32.mrf.mxu0
  %v1543 = vadd.f32 %v347, %v1542
  %v1544 = vpop.f32.mrf.mxu0
  %v1545 = vpop.f32.mrf.mxu0
  %v1546 = vadd.f32 %v347, %v1545
  %v1547 = vpop.f32.mrf.mxu0
  %1548 = vmatprep.mubr.bf16.mxu0 %v613
  %1549 = vmatmul.mubr.bf16.gmra.mxu0 %v612
  %v1550 = vpop.f32.mrf.mxu0
  %v1551 = vadd.f32 %v347, %v1550
  %v1552 = vpop.f32.mrf.mxu0
  %v1553 = vpop.f32.mrf.mxu0
  %v1554 = vadd.f32 %v347, %v1553
  %v1555 = vpop.f32.mrf.mxu0
  %1556 = vmatprep.mubr.bf16.mxu0 %v629
  %1557 = vmatmul.mubr.bf16.gmra.mxu0 %v628
  %v1558 = vpop.f32.mrf.mxu0
  %v1559 = vadd.f32 %v347, %v1558
  %v1560 = vpop.f32.mrf.mxu0
  %v1561 = vpop.f32.mrf.mxu0
  %v1562 = vpop.f32.mrf.mxu0
  %1563 = vdwg.mxu0
  %1564 = vmatprep.subr.bf16.mxu0 0
  %1565 = vmatpush1.bf16.msra.mxu0 %v1259
  %1566 = vmatprep.subr.bf16.mxu0 0
  %1567 = vmatpush1.bf16.msra.mxu0 %v1258
  %1568 = vmatprep.subr.bf16.mxu0 0
  %1569 = vmatpush1.bf16.msra.mxu0 %v1257
  %1570 = vmatprep.subr.bf16.mxu0 0
  %1571 = vmatpush1.bf16.msra.mxu0 %v1256
  %1572 = vmatprep.subr.bf16.mxu0 0
  %1573 = vmatpush1.bf16.msra.mxu0 %v1255
  %1574 = vmatprep.subr.bf16.mxu0 0
  %1575 = vmatpush1.bf16.msra.mxu0 %v1254
  %1576 = vmatprep.subr.bf16.mxu0 0
  %1577 = vmatpush1.bf16.msra.mxu0 %v1253
  %1578 = vmatprep.subr.bf16.mxu0 0
  %1579 = vmatpush1.bf16.msra.mxu0 %v1252
  %1580 = vmatprep.subr.bf16.mxu0 0
  %1581 = vmatpush2.bf16.msra.mxu0 %v1267
  %1582 = vmatprep.subr.bf16.mxu0 0
  %1583 = vmatpush2.bf16.msra.mxu0 %v1266
  %1584 = vmatprep.subr.bf16.mxu0 0
  %1585 = vmatpush2.bf16.msra.mxu0 %v1265
  %1586 = vmatprep.subr.bf16.mxu0 0
  %1587 = vmatpush2.bf16.msra.mxu0 %v1264
  %1588 = vmatprep.subr.bf16.mxu0 0
  %1589 = vmatpush2.bf16.msra.mxu0 %v1263
  %1590 = vmatprep.subr.bf16.mxu0 0
  %1591 = vmatpush2.bf16.msra.mxu0 %v1262
  %1592 = vmatprep.subr.bf16.mxu0 0
  %1593 = vmatpush2.bf16.msra.mxu0 %v1261
  %1594 = vmatprep.subr.bf16.mxu0 0
  %1595 = vmatpush2.bf16.msra.mxu0 %v1260
  %1596 = vmatprep.mubr.bf16.mxu0 %v567
  %1597 = vmatmul.mubr.bf16.gmra.mxu0 %v566
  %v1598 = vpop.f32.mrf.mxu0
  %v1599 = vadd.f32 %v1527, %v1598
  %v1600 = vpop.f32.mrf.mxu0
  %v1601 = vpop.f32.mrf.mxu0
  %v1602 = vadd.f32 %v1530, %v1601
  %v1603 = vpop.f32.mrf.mxu0
  %1604 = vmatprep.mubr.bf16.mxu0 %v583
  %1605 = vmatmul.mubr.bf16.gmra.mxu0 %v582
  %v1606 = vpop.f32.mrf.mxu0
  %v1607 = vadd.f32 %v1535, %v1606
  %v1608 = vpop.f32.mrf.mxu0
  %v1609 = vpop.f32.mrf.mxu0
  %v1610 = vadd.f32 %v1538, %v1609
  %v1611 = vpop.f32.mrf.mxu0
  %1612 = vmatprep.mubr.bf16.mxu0 %v599
  %1613 = vmatmul.mubr.bf16.gmra.mxu0 %v598
  %v1614 = vpop.f32.mrf.mxu0
  %v1615 = vadd.f32 %v1543, %v1614
  %v1616 = vpop.f32.mrf.mxu0
  %v1617 = vpop.f32.mrf.mxu0
  %v1618 = vadd.f32 %v1546, %v1617
  %v1619 = vpop.f32.mrf.mxu0
  %1620 = vmatprep.mubr.bf16.mxu0 %v615
  %1621 = vmatmul.mubr.bf16.gmra.mxu0 %v614
  %v1622 = vpop.f32.mrf.mxu0
  %v1623 = vadd.f32 %v1551, %v1622
  %v1624 = vpop.f32.mrf.mxu0
  %v1625 = vpop.f32.mrf.mxu0
  %v1626 = vadd.f32 %v1554, %v1625
  %v1627 = vpop.f32.mrf.mxu0
  %1628 = vmatprep.mubr.bf16.mxu0 %v631
  %1629 = vmatmul.mubr.bf16.gmra.mxu0 %v630
  %v1630 = vpop.f32.mrf.mxu0
  %v1631 = vadd.f32 %v1559, %v1630
  %v1632 = vpop.f32.mrf.mxu0
  %v1633 = vpop.f32.mrf.mxu0
  %v1634 = vpop.f32.mrf.mxu0
  %1635 = vdwg.mxu0
  %1636 = vmatprep.subr.bf16.mxu0 0
  %1637 = vmatpush1.bf16.msra.mxu0 %v1275
  %1638 = vmatprep.subr.bf16.mxu0 0
  %1639 = vmatpush1.bf16.msra.mxu0 %v1274
  %1640 = vmatprep.subr.bf16.mxu0 0
  %1641 = vmatpush1.bf16.msra.mxu0 %v1273
  %1642 = vmatprep.subr.bf16.mxu0 0
  %1643 = vmatpush1.bf16.msra.mxu0 %v1272
  %1644 = vmatprep.subr.bf16.mxu0 0
  %1645 = vmatpush1.bf16.msra.mxu0 %v1271
  %1646 = vmatprep.subr.bf16.mxu0 0
  %1647 = vmatpush1.bf16.msra.mxu0 %v1270
  %1648 = vmatprep.subr.bf16.mxu0 0
  %1649 = vmatpush1.bf16.msra.mxu0 %v1269
  %1650 = vmatprep.subr.bf16.mxu0 0
  %1651 = vmatpush1.bf16.msra.mxu0 %v1268
  %1652 = vmatprep.subr.bf16.mxu0 0
  %1653 = vmatpush2.bf16.msra.mxu0 %v1283
  %1654 = vmatprep.subr.bf16.mxu0 0
  %1655 = vmatpush2.bf16.msra.mxu0 %v1282
  %1656 = vmatprep.subr.bf16.mxu0 0
  %1657 = vmatpush2.bf16.msra.mxu0 %v1281
  %1658 = vmatprep.subr.bf16.mxu0 0
  %1659 = vmatpush2.bf16.msra.mxu0 %v1280
  %1660 = vmatprep.subr.bf16.mxu0 0
  %1661 = vmatpush2.bf16.msra.mxu0 %v1279
  %1662 = vmatprep.subr.bf16.mxu0 0
  %1663 = vmatpush2.bf16.msra.mxu0 %v1278
  %1664 = vmatprep.subr.bf16.mxu0 0
  %1665 = vmatpush2.bf16.msra.mxu0 %v1277
  %1666 = vmatprep.subr.bf16.mxu0 0
  %1667 = vmatpush2.bf16.msra.mxu0 %v1276
  %1668 = vmatprep.mubr.bf16.mxu0 %v569
  %1669 = vmatmul.mubr.bf16.gmra.mxu0 %v568
  %v1670 = vpop.f32.mrf.mxu0
  %v1671 = vadd.f32 %v1599, %v1670
  %v1672 = vpop.f32.mrf.mxu0
  %v1673 = vpop.f32.mrf.mxu0
  %v1674 = vadd.f32 %v1602, %v1673
  %v1675 = vpop.f32.mrf.mxu0
  %1676 = vmatprep.mubr.bf16.mxu0 %v585
  %1677 = vmatmul.mubr.bf16.gmra.mxu0 %v584
  %v1678 = vpop.f32.mrf.mxu0
  %v1679 = vadd.f32 %v1607, %v1678
  %v1680 = vpop.f32.mrf.mxu0
  %v1681 = vpop.f32.mrf.mxu0
  %v1682 = vadd.f32 %v1610, %v1681
  %v1683 = vpop.f32.mrf.mxu0
  %1684 = vmatprep.mubr.bf16.mxu0 %v601
  %1685 = vmatmul.mubr.bf16.gmra.mxu0 %v600
  %v1686 = vpop.f32.mrf.mxu0
  %v1687 = vadd.f32 %v1615, %v1686
  %v1688 = vpop.f32.mrf.mxu0
  %v1689 = vpop.f32.mrf.mxu0
  %v1690 = vadd.f32 %v1618, %v1689
  %v1691 = vpop.f32.mrf.mxu0
  %1692 = vmatprep.mubr.bf16.mxu0 %v617
  %1693 = vmatmul.mubr.bf16.gmra.mxu0 %v616
  %v1694 = vpop.f32.mrf.mxu0
  %v1695 = vadd.f32 %v1623, %v1694
  %v1696 = vpop.f32.mrf.mxu0
  %v1697 = vpop.f32.mrf.mxu0
  %v1698 = vadd.f32 %v1626, %v1697
  %v1699 = vpop.f32.mrf.mxu0
  %1700 = vmatprep.mubr.bf16.mxu0 %v633
  %1701 = vmatmul.mubr.bf16.gmra.mxu0 %v632
  %v1702 = vpop.f32.mrf.mxu0
  %v1703 = vadd.f32 %v1631, %v1702
  %v1704 = vpop.f32.mrf.mxu0
  %v1705 = vpop.f32.mrf.mxu0
  %v1706 = vpop.f32.mrf.mxu0
  %1707 = vdwg.mxu0
  %1708 = vmatprep.subr.bf16.mxu0 0
  %1709 = vmatpush1.bf16.msra.mxu0 %v1291
  %1710 = vmatprep.subr.bf16.mxu0 0
  %1711 = vmatpush1.bf16.msra.mxu0 %v1290
  %1712 = vmatprep.subr.bf16.mxu0 0
  %1713 = vmatpush1.bf16.msra.mxu0 %v1289
  %1714 = vmatprep.subr.bf16.mxu0 0
  %1715 = vmatpush1.bf16.msra.mxu0 %v1288
  %1716 = vmatprep.subr.bf16.mxu0 0
  %1717 = vmatpush1.bf16.msra.mxu0 %v1287
  %1718 = vmatprep.subr.bf16.mxu0 0
  %1719 = vmatpush1.bf16.msra.mxu0 %v1286
  %1720 = vmatprep.subr.bf16.mxu0 0
  %1721 = vmatpush1.bf16.msra.mxu0 %v1285
  %1722 = vmatprep.subr.bf16.mxu0 0
  %1723 = vmatpush1.bf16.msra.mxu0 %v1284
  %1724 = vmatprep.subr.bf16.mxu0 0
  %1725 = vmatpush2.bf16.msra.mxu0 %v1299
  %1726 = vmatprep.subr.bf16.mxu0 0
  %1727 = vmatpush2.bf16.msra.mxu0 %v1298
  %1728 = vmatprep.subr.bf16.mxu0 0
  %1729 = vmatpush2.bf16.msra.mxu0 %v1297
  %1730 = vmatprep.subr.bf16.mxu0 0
  %1731 = vmatpush2.bf16.msra.mxu0 %v1296
  %1732 = vmatprep.subr.bf16.mxu0 0
  %1733 = vmatpush2.bf16.msra.mxu0 %v1295
  %1734 = vmatprep.subr.bf16.mxu0 0
  %1735 = vmatpush2.bf16.msra.mxu0 %v1294
  %1736 = vmatprep.subr.bf16.mxu0 0
  %1737 = vmatpush2.bf16.msra.mxu0 %v1293
  %1738 = vmatprep.subr.bf16.mxu0 0
  %1739 = vmatpush2.bf16.msra.mxu0 %v1292
  %1740 = vmatprep.mubr.bf16.mxu0 %v571
  %1741 = vmatmul.mubr.bf16.gmra.mxu0 %v570
  %v1742 = vpop.f32.mrf.mxu0
  %v1743 = vadd.f32 %v1671, %v1742
  %v1744 = vpop.f32.mrf.mxu0
  %v1745 = vpop.f32.mrf.mxu0
  %v1746 = vadd.f32 %v1674, %v1745
  %v1747 = vpop.f32.mrf.mxu0
  %1748 = vmatprep.mubr.bf16.mxu0 %v587
  %1749 = vmatmul.mubr.bf16.gmra.mxu0 %v586
  %v1750 = vpop.f32.mrf.mxu0
  %v1751 = vadd.f32 %v1679, %v1750
  %v1752 = vpop.f32.mrf.mxu0
  %v1753 = vpop.f32.mrf.mxu0
  %v1754 = vadd.f32 %v1682, %v1753
  %v1755 = vpop.f32.mrf.mxu0
  %1756 = vmatprep.mubr.bf16.mxu0 %v603
  %1757 = vmatmul.mubr.bf16.gmra.mxu0 %v602
  %v1758 = vpop.f32.mrf.mxu0
  %v1759 = vadd.f32 %v1687, %v1758
  %v1760 = vpop.f32.mrf.mxu0
  %v1761 = vpop.f32.mrf.mxu0
  %v1762 = vadd.f32 %v1690, %v1761
  %v1763 = vpop.f32.mrf.mxu0
  %1764 = vmatprep.mubr.bf16.mxu0 %v619
  %1765 = vmatmul.mubr.bf16.gmra.mxu0 %v618
  %v1766 = vpop.f32.mrf.mxu0
  %v1767 = vadd.f32 %v1695, %v1766
  %v1768 = vpop.f32.mrf.mxu0
  %v1769 = vpop.f32.mrf.mxu0
  %v1770 = vadd.f32 %v1698, %v1769
  %v1771 = vpop.f32.mrf.mxu0
  %1772 = vmatprep.mubr.bf16.mxu0 %v635
  %1773 = vmatmul.mubr.bf16.gmra.mxu0 %v634
  %v1774 = vpop.f32.mrf.mxu0
  %v1775 = vadd.f32 %v1703, %v1774
  %v1776 = vpop.f32.mrf.mxu0
  %v1777 = vpop.f32.mrf.mxu0
  %v1778 = vpop.f32.mrf.mxu0
  %1779 = vdwg.mxu0
  %1780 = vmatprep.subr.bf16.mxu0 0
  %1781 = vmatpush1.bf16.msra.mxu0 %v1307
  %1782 = vmatprep.subr.bf16.mxu0 0
  %1783 = vmatpush1.bf16.msra.mxu0 %v1306
  %1784 = vmatprep.subr.bf16.mxu0 0
  %1785 = vmatpush1.bf16.msra.mxu0 %v1305
  %1786 = vmatprep.subr.bf16.mxu0 0
  %1787 = vmatpush1.bf16.msra.mxu0 %v1304
  %1788 = vmatprep.subr.bf16.mxu0 0
  %1789 = vmatpush1.bf16.msra.mxu0 %v1303
  %1790 = vmatprep.subr.bf16.mxu0 0
  %1791 = vmatpush1.bf16.msra.mxu0 %v1302
  %1792 = vmatprep.subr.bf16.mxu0 0
  %1793 = vmatpush1.bf16.msra.mxu0 %v1301
  %1794 = vmatprep.subr.bf16.mxu0 0
  %1795 = vmatpush1.bf16.msra.mxu0 %v1300
  %1796 = vmatprep.subr.bf16.mxu0 0
  %1797 = vmatpush2.bf16.msra.mxu0 %v1315
  %1798 = vmatprep.subr.bf16.mxu0 0
  %1799 = vmatpush2.bf16.msra.mxu0 %v1314
  %1800 = vmatprep.subr.bf16.mxu0 0
  %1801 = vmatpush2.bf16.msra.mxu0 %v1313
  %1802 = vmatprep.subr.bf16.mxu0 0
  %1803 = vmatpush2.bf16.msra.mxu0 %v1312
  %1804 = vmatprep.subr.bf16.mxu0 0
  %1805 = vmatpush2.bf16.msra.mxu0 %v1311
  %1806 = vmatprep.subr.bf16.mxu0 0
  %1807 = vmatpush2.bf16.msra.mxu0 %v1310
  %1808 = vmatprep.subr.bf16.mxu0 0
  %1809 = vmatpush2.bf16.msra.mxu0 %v1309
  %1810 = vmatprep.subr.bf16.mxu0 0
  %1811 = vmatpush2.bf16.msra.mxu0 %v1308
  %1812 = vmatprep.mubr.bf16.mxu0 %v573
  %1813 = vmatmul.mubr.bf16.gmra.mxu0 %v572
  %v1814 = vpop.f32.mrf.mxu0
  %v1815 = vadd.f32 %v1743, %v1814
  %v1816 = vpop.f32.mrf.mxu0
  %v1817 = vpop.f32.mrf.mxu0
  %v1818 = vadd.f32 %v1746, %v1817
  %v1819 = vpop.f32.mrf.mxu0
  %1820 = vmatprep.mubr.bf16.mxu0 %v589
  %1821 = vmatmul.mubr.bf16.gmra.mxu0 %v588
  %v1822 = vpop.f32.mrf.mxu0
  %v1823 = vadd.f32 %v1751, %v1822
  %v1824 = vpop.f32.mrf.mxu0
  %v1825 = vpop.f32.mrf.mxu0
  %v1826 = vadd.f32 %v1754, %v1825
  %v1827 = vpop.f32.mrf.mxu0
  %1828 = vmatprep.mubr.bf16.mxu0 %v605
  %1829 = vmatmul.mubr.bf16.gmra.mxu0 %v604
  %v1830 = vpop.f32.mrf.mxu0
  %v1831 = vadd.f32 %v1759, %v1830
  %v1832 = vpop.f32.mrf.mxu0
  %v1833 = vpop.f32.mrf.mxu0
  %v1834 = vadd.f32 %v1762, %v1833
  %v1835 = vpop.f32.mrf.mxu0
  %1836 = vmatprep.mubr.bf16.mxu0 %v621
  %1837 = vmatmul.mubr.bf16.gmra.mxu0 %v620
  %v1838 = vpop.f32.mrf.mxu0
  %v1839 = vadd.f32 %v1767, %v1838
  %v1840 = vpop.f32.mrf.mxu0
  %v1841 = vpop.f32.mrf.mxu0
  %v1842 = vadd.f32 %v1770, %v1841
  %v1843 = vpop.f32.mrf.mxu0
  %1844 = vmatprep.mubr.bf16.mxu0 %v637
  %1845 = vmatmul.mubr.bf16.gmra.mxu0 %v636
  %v1846 = vpop.f32.mrf.mxu0
  %v1847 = vadd.f32 %v1775, %v1846
  %v1848 = vpop.f32.mrf.mxu0
  %v1849 = vpop.f32.mrf.mxu0
  %v1850 = vpop.f32.mrf.mxu0
  %1851 = vdwg.mxu0
  %1852 = vmatprep.subr.bf16.mxu0 0
  %1853 = vmatpush1.bf16.msra.mxu0 %v1323
  %1854 = vmatprep.subr.bf16.mxu0 0
  %1855 = vmatpush1.bf16.msra.mxu0 %v1322
  %1856 = vmatprep.subr.bf16.mxu0 0
  %1857 = vmatpush1.bf16.msra.mxu0 %v1321
  %1858 = vmatprep.subr.bf16.mxu0 0
  %1859 = vmatpush1.bf16.msra.mxu0 %v1320
  %1860 = vmatprep.subr.bf16.mxu0 0
  %1861 = vmatpush1.bf16.msra.mxu0 %v1319
  %1862 = vmatprep.subr.bf16.mxu0 0
  %1863 = vmatpush1.bf16.msra.mxu0 %v1318
  %1864 = vmatprep.subr.bf16.mxu0 0
  %1865 = vmatpush1.bf16.msra.mxu0 %v1317
  %1866 = vmatprep.subr.bf16.mxu0 0
  %1867 = vmatpush1.bf16.msra.mxu0 %v1316
  %1868 = vmatprep.subr.bf16.mxu0 0
  %1869 = vmatpush2.bf16.msra.mxu0 %v1331
  %1870 = vmatprep.subr.bf16.mxu0 0
  %1871 = vmatpush2.bf16.msra.mxu0 %v1330
  %1872 = vmatprep.subr.bf16.mxu0 0
  %1873 = vmatpush2.bf16.msra.mxu0 %v1329
  %1874 = vmatprep.subr.bf16.mxu0 0
  %1875 = vmatpush2.bf16.msra.mxu0 %v1328
  %1876 = vmatprep.subr.bf16.mxu0 0
  %1877 = vmatpush2.bf16.msra.mxu0 %v1327
  %1878 = vmatprep.subr.bf16.mxu0 0
  %1879 = vmatpush2.bf16.msra.mxu0 %v1326
  %1880 = vmatprep.subr.bf16.mxu0 0
  %1881 = vmatpush2.bf16.msra.mxu0 %v1325
  %1882 = vmatprep.subr.bf16.mxu0 0
  %1883 = vmatpush2.bf16.msra.mxu0 %v1324
  %1884 = vmatprep.mubr.bf16.mxu0 %v575
  %1885 = vmatmul.mubr.bf16.gmra.mxu0 %v574
  %v1886 = vpop.f32.mrf.mxu0
  %v1887 = vadd.f32 %v1815, %v1886
  %v1888 = vpop.f32.mrf.mxu0
  %v1889 = vpop.f32.mrf.mxu0
  %v1890 = vadd.f32 %v1818, %v1889
  %v1891 = vpop.f32.mrf.mxu0
  %1892 = vmatprep.mubr.bf16.mxu0 %v591
  %1893 = vmatmul.mubr.bf16.gmra.mxu0 %v590
  %v1894 = vpop.f32.mrf.mxu0
  %v1895 = vadd.f32 %v1823, %v1894
  %v1896 = vpop.f32.mrf.mxu0
  %v1897 = vpop.f32.mrf.mxu0
  %v1898 = vadd.f32 %v1826, %v1897
  %v1899 = vpop.f32.mrf.mxu0
  %1900 = vmatprep.mubr.bf16.mxu0 %v607
  %1901 = vmatmul.mubr.bf16.gmra.mxu0 %v606
  %v1902 = vpop.f32.mrf.mxu0
  %v1903 = vadd.f32 %v1831, %v1902
  %v1904 = vpop.f32.mrf.mxu0
  %v1905 = vpop.f32.mrf.mxu0
  %v1906 = vadd.f32 %v1834, %v1905
  %v1907 = vpop.f32.mrf.mxu0
  %1908 = vmatprep.mubr.bf16.mxu0 %v623
  %1909 = vmatmul.mubr.bf16.gmra.mxu0 %v622
  %v1910 = vpop.f32.mrf.mxu0
  %v1911 = vadd.f32 %v1839, %v1910
  %v1912 = vpop.f32.mrf.mxu0
  %v1913 = vpop.f32.mrf.mxu0
  %v1914 = vadd.f32 %v1842, %v1913
  %v1915 = vpop.f32.mrf.mxu0
  %1916 = vmatprep.mubr.bf16.mxu0 %v639
  %1917 = vmatmul.mubr.bf16.gmra.mxu0 %v638
  %v1918 = vpop.f32.mrf.mxu0
  %v1919 = vadd.f32 %v1847, %v1918
  %v1920 = vpop.f32.mrf.mxu0
  %v1921 = vpop.f32.mrf.mxu0
  %v1922 = vpop.f32.mrf.mxu0
  %1923 = vdwg.mxu0
  %1924 = vmatprep.subr.bf16.mxu0 0
  %1925 = vmatpush1.bf16.msra.mxu0 %v1339
  %1926 = vmatprep.subr.bf16.mxu0 0
  %1927 = vmatpush1.bf16.msra.mxu0 %v1338
  %1928 = vmatprep.subr.bf16.mxu0 0
  %1929 = vmatpush1.bf16.msra.mxu0 %v1337
  %1930 = vmatprep.subr.bf16.mxu0 0
  %1931 = vmatpush1.bf16.msra.mxu0 %v1336
  %1932 = vmatprep.subr.bf16.mxu0 0
  %1933 = vmatpush1.bf16.msra.mxu0 %v1335
  %1934 = vmatprep.subr.bf16.mxu0 0
  %1935 = vmatpush1.bf16.msra.mxu0 %v1334
  %1936 = vmatprep.subr.bf16.mxu0 0
  %1937 = vmatpush1.bf16.msra.mxu0 %v1333
  %1938 = vmatprep.subr.bf16.mxu0 0
  %1939 = vmatpush1.bf16.msra.mxu0 %v1332
  %1940 = vmatprep.subr.bf16.mxu0 0
  %1941 = vmatpush2.bf16.msra.mxu0 %v1347
  %1942 = vmatprep.subr.bf16.mxu0 0
  %1943 = vmatpush2.bf16.msra.mxu0 %v1346
  %1944 = vmatprep.subr.bf16.mxu0 0
  %1945 = vmatpush2.bf16.msra.mxu0 %v1345
  %1946 = vmatprep.subr.bf16.mxu0 0
  %1947 = vmatpush2.bf16.msra.mxu0 %v1344
  %1948 = vmatprep.subr.bf16.mxu0 0
  %1949 = vmatpush2.bf16.msra.mxu0 %v1343
  %1950 = vmatprep.subr.bf16.mxu0 0
  %1951 = vmatpush2.bf16.msra.mxu0 %v1342
  %1952 = vmatprep.subr.bf16.mxu0 0
  %1953 = vmatpush2.bf16.msra.mxu0 %v1341
  %1954 = vmatprep.subr.bf16.mxu0 0
  %1955 = vmatpush2.bf16.msra.mxu0 %v1340
  %1956 = vmatprep.mubr.bf16.mxu0 %v577
  %1957 = vmatmul.mubr.bf16.gmra.mxu0 %v576
  %v1958 = vpop.f32.mrf.mxu0
  %v1959 = vadd.f32 %v1887, %v1958
  %v1960 = vpop.f32.mrf.mxu0
  %v1961 = vpop.f32.mrf.mxu0
  %v1962 = vadd.f32 %v1890, %v1961
  %v1963 = vpop.f32.mrf.mxu0
  %1964 = vmatprep.mubr.bf16.mxu0 %v593
  %1965 = vmatmul.mubr.bf16.gmra.mxu0 %v592
  %v1966 = vpop.f32.mrf.mxu0
  %v1967 = vadd.f32 %v1895, %v1966
  %v1968 = vpop.f32.mrf.mxu0
  %v1969 = vpop.f32.mrf.mxu0
  %v1970 = vadd.f32 %v1898, %v1969
  %v1971 = vpop.f32.mrf.mxu0
  %1972 = vmatprep.mubr.bf16.mxu0 %v609
  %1973 = vmatmul.mubr.bf16.gmra.mxu0 %v608
  %v1974 = vpop.f32.mrf.mxu0
  %v1975 = vadd.f32 %v1903, %v1974
  %v1976 = vpop.f32.mrf.mxu0
  %v1977 = vpop.f32.mrf.mxu0
  %v1978 = vadd.f32 %v1906, %v1977
  %v1979 = vpop.f32.mrf.mxu0
  %1980 = vmatprep.mubr.bf16.mxu0 %v625
  %1981 = vmatmul.mubr.bf16.gmra.mxu0 %v624
  %v1982 = vpop.f32.mrf.mxu0
  %v1983 = vadd.f32 %v1911, %v1982
  %v1984 = vpop.f32.mrf.mxu0
  %v1985 = vpop.f32.mrf.mxu0
  %v1986 = vadd.f32 %v1914, %v1985
  %v1987 = vpop.f32.mrf.mxu0
  %1988 = vmatprep.mubr.bf16.mxu0 %v641
  %1989 = vmatmul.mubr.bf16.gmra.mxu0 %v640
  %v1990 = vpop.f32.mrf.mxu0
  %v1991 = vadd.f32 %v1919, %v1990
  %v1992 = vpop.f32.mrf.mxu0
  %v1993 = vpop.f32.mrf.mxu0
  %v1994 = vpop.f32.mrf.mxu0
  %1995 = vdwg.mxu0
  %1996 = vmatprep.subr.bf16.mxu0 0
  %1997 = vmatpush1.bf16.msra.mxu0 %v1355
  %1998 = vmatprep.subr.bf16.mxu0 0
  %1999 = vmatpush1.bf16.msra.mxu0 %v1354
  %2000 = vmatprep.subr.bf16.mxu0 0
  %2001 = vmatpush1.bf16.msra.mxu0 %v1353
  %2002 = vmatprep.subr.bf16.mxu0 0
  %2003 = vmatpush1.bf16.msra.mxu0 %v1352
  %2004 = vmatprep.subr.bf16.mxu0 0
  %2005 = vmatpush1.bf16.msra.mxu0 %v1351
  %2006 = vmatprep.subr.bf16.mxu0 0
  %2007 = vmatpush1.bf16.msra.mxu0 %v1350
  %2008 = vmatprep.subr.bf16.mxu0 0
  %2009 = vmatpush1.bf16.msra.mxu0 %v1349
  %2010 = vmatprep.subr.bf16.mxu0 0
  %2011 = vmatpush1.bf16.msra.mxu0 %v1348
  %2012 = vmatprep.subr.bf16.mxu0 0
  %2013 = vmatpush2.bf16.msra.mxu0 %v1363
  %2014 = vmatprep.subr.bf16.mxu0 0
  %2015 = vmatpush2.bf16.msra.mxu0 %v1362
  %2016 = vmatprep.subr.bf16.mxu0 0
  %2017 = vmatpush2.bf16.msra.mxu0 %v1361
  %2018 = vmatprep.subr.bf16.mxu0 0
  %2019 = vmatpush2.bf16.msra.mxu0 %v1360
  %2020 = vmatprep.subr.bf16.mxu0 0
  %2021 = vmatpush2.bf16.msra.mxu0 %v1359
  %2022 = vmatprep.subr.bf16.mxu0 0
  %2023 = vmatpush2.bf16.msra.mxu0 %v1358
  %2024 = vmatprep.subr.bf16.mxu0 0
  %2025 = vmatpush2.bf16.msra.mxu0 %v1357
  %2026 = vmatprep.subr.bf16.mxu0 0
  %2027 = vmatpush2.bf16.msra.mxu0 %v1356
  %2028 = vmatprep.mubr.bf16.mxu0 %v579
  %2029 = vmatmul.mubr.bf16.gmra.mxu0 %v578
  %v2030 = vpop.f32.mrf.mxu0
  %v2031 = vadd.f32 %v1959, %v2030
  %v2032 = vpop.f32.mrf.mxu0
  %v2033 = vpop.f32.mrf.mxu0
  %v2034 = vadd.f32 %v1962, %v2033
  %v2035 = vpop.f32.mrf.mxu0
  %2036 = vmatprep.mubr.bf16.mxu0 %v595
  %2037 = vmatmul.mubr.bf16.gmra.mxu0 %v594
  %v2038 = vpop.f32.mrf.mxu0
  %v2039 = vadd.f32 %v1967, %v2038
  %v2040 = vpop.f32.mrf.mxu0
  %v2041 = vpop.f32.mrf.mxu0
  %v2042 = vadd.f32 %v1970, %v2041
  %v2043 = vpop.f32.mrf.mxu0
  %2044 = vmatprep.mubr.bf16.mxu0 %v611
  %2045 = vmatmul.mubr.bf16.gmra.mxu0 %v610
  %v2046 = vpop.f32.mrf.mxu0
  %v2047 = vadd.f32 %v1975, %v2046
  %v2048 = vpop.f32.mrf.mxu0
  %v2049 = vpop.f32.mrf.mxu0
  %v2050 = vadd.f32 %v1978, %v2049
  %v2051 = vpop.f32.mrf.mxu0
  %2052 = vmatprep.mubr.bf16.mxu0 %v627
  %2053 = vmatmul.mubr.bf16.gmra.mxu0 %v626
  %v2054 = vpop.f32.mrf.mxu0
  %v2055 = vadd.f32 %v1983, %v2054
  %v2056 = vpop.f32.mrf.mxu0
  %v2057 = vpop.f32.mrf.mxu0
  %v2058 = vadd.f32 %v1986, %v2057
  %v2059 = vpop.f32.mrf.mxu0
  %2060 = vmatprep.mubr.bf16.mxu0 %v643
  %2061 = vmatmul.mubr.bf16.gmra.mxu0 %v642
  %v2062 = vpop.f32.mrf.mxu0
  %v2063 = vadd.f32 %v1991, %v2062
  %v2064 = vpop.f32.mrf.mxu0
  %v2065 = vpop.f32.mrf.mxu0
  %v2066 = vpop.f32.mrf.mxu0
  %2067 = vdwg.mxu0
  %v2068 = vmax.f32 %v2031, 0.0
  %v2069 = vmax.f32 %v2034, 0.0
  %v2070 = vmax.f32 %v2039, 0.0
  %v2071 = vmax.f32 %v2042, 0.0
  %v2072 = vmax.f32 %v2047, 0.0
  %v2073 = vmax.f32 %v2050, 0.0
  %v2074 = vmax.f32 %v2055, 0.0
  %v2075 = vmax.f32 %v2058, 0.0
  %v2076 = vmax.f32 %v2063, 0.0
  %v2077 = vld [vmem:[%s2 + $0x1] sm:$0x1]
  %v2078 = vlaneseq
  %v2079 = vshrl.u32 %v2078, 7
  %v2080 = vsub.s32 0, %v2079
  %v2081 = vrot.slane %v2077, %v2080
  %v2082 = vmul.f32 %v2068, %v2081
  %v2083 = vmul.f32 %v2069, %v2081
  %v2084 = vmul.f32 %v2070, %v2081
  %v2085 = vmul.f32 %v2071, %v2081
  %v2086 = vmul.f32 %v2072, %v2081
  %v2087 = vmul.f32 %v2073, %v2081
  %v2088 = vmul.f32 %v2074, %v2081
  %v2089 = vmul.f32 %v2075, %v2081
  %v2090 = vmul.f32 %v2076, %v2081
  %v2091 = vld [vmem:[%s2 + $0x2] sm:$0x1]
  %v2092 = vlaneseq
  %v2093 = vshrl.u32 %v2092, 7
  %v2094 = vsub.s32 0, %v2093
  %v2095 = vrot.slane %v2091, %v2094
  %v2096 = vadd.f32 %v2082, %v2095
  %v2097 = vadd.f32 %v2083, %v2095
  %v2098 = vadd.f32 %v2084, %v2095
  %v2099 = vadd.f32 %v2085, %v2095
  %v2100 = vadd.f32 %v2086, %v2095
  %v2101 = vadd.f32 %v2087, %v2095
  %v2102 = vadd.f32 %v2088, %v2095
  %v2103 = vadd.f32 %v2089, %v2095
  %v2104 = vadd.f32 %v2090, %v2095
  %v2105 = vpack.c.bf16 %v2097, %v2096
  %v2106 = vpack.c.bf16 %v2099, %v2098
  %v2107 = vpack.c.bf16 %v2101, %v2100
  %v2108 = vpack.c.bf16 %v2103, %v2102
  %v2109 = vpack.c.bf16 %v2104, %v2104
  %v2115 = vunpack.c.l.b16 %v2105
  %v2116 = vunpack.c.h.b16 %v2105
  %v2117 = vunpack.c.l.b16 %v2106
  %v2118 = vunpack.c.h.b16 %v2106
  %v2119 = vunpack.c.l.b16 %v2107
  %v2120 = vunpack.c.h.b16 %v2107
  %v2121 = vunpack.c.l.b16 %v2108
  %v2122 = vunpack.c.h.b16 %v2108
  %v2123 = vunpack.c.l.b16 %v2109
  %v2124 = vpack.c.b16 %v2115, %v2115
  %v2125 = vpack.c.b16 %v2116, %v2116
  %v2126 = vpack.c.b16 %v2117, %v2117
  %v2127 = vpack.c.b16 %v2118, %v2118
  %v2128 = vpack.c.b16 %v2119, %v2119
  %v2129 = vpack.c.b16 %v2120, %v2120
  %v2130 = vpack.c.b16 %v2121, %v2121
  %v2131 = vpack.c.b16 %v2122, %v2122
  %v2132 = vpack.c.b16 %v2123, %v2123
  %vm2142 = vcmask 519168
  %2143 = vst.msk [vmem:[%s3] sm:$0xf] %vm2142, %v2124
  %2144 = vst.msk [vmem:[%s3 + $0x4] sm:$0xf] %vm2142, %v2125
  %2145 = vst.msk [vmem:[%s3 + $0x8] sm:$0xf] %vm2142, %v2126
  %2146 = vst.msk [vmem:[%s3 + $0xc] sm:$0xf] %vm2142, %v2127
  %2147 = vst.msk [vmem:[%s3 + $0x10] sm:$0xf] %vm2142, %v2128
  %2148 = vst.msk [vmem:[%s3 + $0x14] sm:$0xf] %vm2142, %v2129
  %2149 = vst.msk [vmem:[%s3 + $0x18] sm:$0xf] %vm2142, %v2130
  %2150 = vst.msk [vmem:[%s3 + $0x1c] sm:$0xf] %vm2142, %v2131
  %2151 = vst.msk [vmem:[%s3 + $0x20] sm:$0xf] %vm2142, %v2132
  // Predicated region
  $region14: #{baby_c3d_forward.7} parent=0 // pred_check
    _
  $region15: #{baby_c3d_forward.7} parent=0 // pred_check_branch
    %2153 = sbr.rel (0) target = $region17
  $region16: #{baby_c3d_forward.7} parent=0 // pred_region
    _
  $region17: #{baby_c3d_forward.7} parent=0 // pred_fallthru
    _
  // Predicated region
  $region18: #{baby_c3d_forward.7} parent=0 // pred_check
    _
  $region19: #{baby_c3d_forward.7} parent=0 // pred_check_branch
    %2155 = sbr.rel (0) target = $region21
  $region20: #{baby_c3d_forward.7} parent=0 // pred_region
    _
  $region21: #{baby_c3d_forward.7} parent=0 // pred_fallthru
    _

// kernel: baby_c3d_forward.8
$region0: #{baby_c3d_forward.8}
  #allocation0 [shape = 'u32[]', space=smem, size = 0x4, offset = 0x4, fixed_abs, tag = 'smem constant byte address 0x4 - core index']
  #allocation1 [shape = 'u32[144,128]{1,0:T(1,128)}', space=vmem, size = 0x12000, scoped, tag = 'internal scratch']
  %s0 = inlined_call_operand.vmem [shape: bf16[10,1728], index: 0, kind: input, shape index: {}]
  %s1 = inlined_call_operand.vmem [shape: bf16[1728,128], index: 1, kind: input, shape index: {}]
  %s2 = inlined_call_operand.vmem [shape: f32[3,128], index: 2, kind: input, shape index: {}]
  %s3 = inlined_call_operand.vmem [shape: bf16[10,128], index: 3, kind: output, shape index: {}]
  %s4 = sld [smem:[#allocation0]]
  $region22: #{baby_c3d_forward.8} parent=0
    _
  %s6 = ssub.s32 1, %s4
  %s7 = scalar_select 0, %s6, %s4
  // Predicated region
  $region2: #{baby_c3d_forward.8} parent=0 // pred_check
    _
  $region3: #{baby_c3d_forward.8} parent=0 // pred_check_branch
    %9 = sbr.rel (0) target = $region5
  $region4: #{baby_c3d_forward.8} parent=0 // pred_region
    _
  $region5: #{baby_c3d_forward.8} parent=0 // pred_fallthru
    _
  // Predicated region
  $region6: #{baby_c3d_forward.8} parent=0 // pred_check
    _
  $region7: #{baby_c3d_forward.8} parent=0 // pred_check_branch
    %11 = sbr.rel (0) target = $region9
  $region8: #{baby_c3d_forward.8} parent=0 // pred_region
    _
  $region9: #{baby_c3d_forward.8} parent=0 // pred_fallthru
    _
  // Predicated region
  $region10: #{baby_c3d_forward.8} parent=0 // pred_check
    _
  $region11: #{baby_c3d_forward.8} parent=0 // pred_check_branch
    %13 = sbr.rel (0) target = $region13
  $region12: #{baby_c3d_forward.8} parent=0 // pred_region
    _
  $region13: #{baby_c3d_forward.8} parent=0 // pred_fallthru
    _
  %v15 = vld [vmem:[%s0] sm:$0xff]
  %v16 = vld [vmem:[%s0 + $0x8] sm:$0xff]
  %v17 = vld [vmem:[%s0 + $0x10] sm:$0xff]
  %v18 = vld [vmem:[%s0 + $0x18] sm:$0xff]
  %v19 = vld [vmem:[%s0 + $0x20] sm:$0xff]
  %v20 = vld [vmem:[%s0 + $0x28] sm:$0xff]
  %v21 = vld [vmem:[%s0 + $0x30] sm:$0xff]
  %v22 = vld [vmem:[%s0 + $0x38] sm:$0x11]
  %v23 = vld [vmem:[%s0 + $0x40] sm:$0x11]
  %v24 = vld [vmem:[%s0 + $0x48] sm:$0x11]
  %v25 = vld [vmem:[%s0 + $0x50] sm:$0x11]
  %v26 = vld [vmem:[%s0 + $0x58] sm:$0x11]
  %v27 = vld [vmem:[%s0 + $0x60] sm:$0x11]
  %v28 = vld [vmem:[%s0 + $0x68] sm:$0x11]
  %v29 = vld [vmem:[%s1] sm:$0xf]
  %v30 = vld [vmem:[%s1 + $0x4] sm:$0xf]
  %v31 = vld [vmem:[%s1 + $0x8] sm:$0xf]
  %v32 = vld [vmem:[%s1 + $0xc] sm:$0xf]
  %v33 = vld [vmem:[%s1 + $0x10] sm:$0xf]
  %v34 = vld [vmem:[%s1 + $0x14] sm:$0xf]
  %v35 = vld [vmem:[%s1 + $0x18] sm:$0xf]
  %v36 = vld [vmem:[%s1 + $0x1c] sm:$0xf]
  %v37 = vld [vmem:[%s1 + $0x20] sm:$0xf]
  %v38 = vld [vmem:[%s1 + $0x24] sm:$0xf]
  %v39 = vld [vmem:[%s1 + $0x28] sm:$0xf]
  %v40 = vld [vmem:[%s1 + $0x2c] sm:$0xf]
  %v41 = vld [vmem:[%s1 + $0x30] sm:$0xf]
  %v42 = vld [vmem:[%s1 + $0x34] sm:$0xf]
  %v43 = vld [vmem:[%s1 + $0x38] sm:$0xf]
  %v44 = vld [vmem:[%s1 + $0x3c] sm:$0xf]
  %v45 = vld [vmem:[%s1 + $0x40] sm:$0xf]
  %v46 = vld [vmem:[%s1 + $0x44] sm:$0xf]
  %v47 = vld [vmem:[%s1 + $0x48] sm:$0xf]
  %v48 = vld [vmem:[%s1 + $0x4c] sm:$0xf]
  %v49 = vld [vmem:[%s1 + $0x50] sm:$0xf]
  %v50 = vld [vmem:[%s1 + $0x54] sm:$0xf]
  %v51 = vld [vmem:[%s1 + $0x58] sm:$0xf]
  %v52 = vld [vmem:[%s1 + $0x5c] sm:$0xf]
  %v53 = vld [vmem:[%s1 + $0x60] sm:$0xf]
  %v54 = vld [vmem:[%s1 + $0x64] sm:$0xf]
  %v55 = vld [vmem:[%s1 + $0x68] sm:$0xf]
  %v56 = vld [vmem:[%s1 + $0x6c] sm:$0xf]
  %v57 = vld [vmem:[%s1 + $0x70] sm:$0xf]
  %v58 = vld [vmem:[%s1 + $0x74] sm:$0xf]
  %v59 = vld [vmem:[%s1 + $0x78] sm:$0xf]
  %v60 = vld [vmem:[%s1 + $0x7c] sm:$0xf]
  %v61 = vld [vmem:[%s1 + $0x80] sm:$0xf]
  %v62 = vld [vmem:[%s1 + $0x84] sm:$0xf]
  %v63 = vld [vmem:[%s1 + $0x88] sm:$0xf]
  %v64 = vld [vmem:[%s1 + $0x8c] sm:$0xf]
  %v65 = vld [vmem:[%s1 + $0x90] sm:$0xf]
  %v66 = vld [vmem:[%s1 + $0x94] sm:$0xf]
  %v67 = vld [vmem:[%s1 + $0x98] sm:$0xf]
  %v68 = vld [vmem:[%s1 + $0x9c] sm:$0xf]
  %v69 = vld [vmem:[%s1 + $0xa0] sm:$0xf]
  %v70 = vld [vmem:[%s1 + $0xa4] sm:$0xf]
  %v71 = vld [vmem:[%s1 + $0xa8] sm:$0xf]
  %v72 = vld [vmem:[%s1 + $0xac] sm:$0xf]
  %v73 = vld [vmem:[%s1 + $0xb0] sm:$0xf]
  %v74 = vld [vmem:[%s1 + $0xb4] sm:$0xf]
  %v75 = vld [vmem:[%s1 + $0xb8] sm:$0xf]
  %v76 = vld [vmem:[%s1 + $0xbc] sm:$0xf]
  %v77 = vld [vmem:[%s1 + $0xc0] sm:$0xf]
  %v78 = vld [vmem:[%s1 + $0xc4] sm:$0xf]
  %v79 = vld [vmem:[%s1 + $0xc8] sm:$0xf]
  %v80 = vld [vmem:[%s1 + $0xcc] sm:$0xf]
  %v81 = vld [vmem:[%s1 + $0xd0] sm:$0xf]
  %v82 = vld [vmem:[%s1 + $0xd4] sm:$0xf]
  %v83 = vld [vmem:[%s1 + $0xd8] sm:$0xf]
  %v84 = vld [vmem:[%s1 + $0xdc] sm:$0xf]
  %v85 = vld [vmem:[%s1 + $0xe0] sm:$0xf]
  %v86 = vld [vmem:[%s1 + $0xe4] sm:$0xf]
  %v87 = vld [vmem:[%s1 + $0xe8] sm:$0xf]
  %v88 = vld [vmem:[%s1 + $0xec] sm:$0xf]
  %v89 = vld [vmem:[%s1 + $0xf0] sm:$0xf]
  %v90 = vld [vmem:[%s1 + $0xf4] sm:$0xf]
  %v91 = vld [vmem:[%s1 + $0xf8] sm:$0xf]
  %v92 = vld [vmem:[%s1 + $0xfc] sm:$0xf]
  %v93 = vld [vmem:[%s1 + $0x100] sm:$0xf]
  %v94 = vld [vmem:[%s1 + $0x104] sm:$0xf]
  %v95 = vld [vmem:[%s1 + $0x108] sm:$0xf]
  %v96 = vld [vmem:[%s1 + $0x10c] sm:$0xf]
  %v97 = vld [vmem:[%s1 + $0x110] sm:$0xf]
  %v98 = vld [vmem:[%s1 + $0x114] sm:$0xf]
  %v99 = vld [vmem:[%s1 + $0x118] sm:$0xf]
  %v100 = vld [vmem:[%s1 + $0x11c] sm:$0xf]
  %v101 = vld [vmem:[%s1 + $0x120] sm:$0xf]
  %v102 = vld [vmem:[%s1 + $0x124] sm:$0xf]
  %v103 = vld [vmem:[%s1 + $0x128] sm:$0xf]
  %v104 = vld [vmem:[%s1 + $0x12c] sm:$0xf]
  %v105 = vld [vmem:[%s1 + $0x130] sm:$0xf]
  %v106 = vld [vmem:[%s1 + $0x134] sm:$0xf]
  %v107 = vld [vmem:[%s1 + $0x138] sm:$0xf]
  %v108 = vld [vmem:[%s1 + $0x13c] sm:$0xf]
  %v109 = vld [vmem:[%s1 + $0x140] sm:$0xf]
  %v110 = vld [vmem:[%s1 + $0x144] sm:$0xf]
  %v111 = vld [vmem:[%s1 + $0x148] sm:$0xf]
  %v112 = vld [vmem:[%s1 + $0x14c] sm:$0xf]
  %v113 = vld [vmem:[%s1 + $0x150] sm:$0xf]
  %v114 = vld [vmem:[%s1 + $0x154] sm:$0xf]
  %v115 = vld [vmem:[%s1 + $0x158] sm:$0xf]
  %v116 = vld [vmem:[%s1 + $0x15c] sm:$0xf]
  %v117 = vld [vmem:[%s1 + $0x160] sm:$0xf]
  %v118 = vld [vmem:[%s1 + $0x164] sm:$0xf]
  %v119 = vld [vmem:[%s1 + $0x168] sm:$0xf]
  %v120 = vld [vmem:[%s1 + $0x16c] sm:$0xf]
  %v121 = vld [vmem:[%s1 + $0x170] sm:$0xf]
  %v122 = vld [vmem:[%s1 + $0x174] sm:$0xf]
  %v123 = vld [vmem:[%s1 + $0x178] sm:$0xf]
  %v124 = vld [vmem:[%s1 + $0x17c] sm:$0xf]
  %v125 = vld [vmem:[%s1 + $0x180] sm:$0xf]
  %v126 = vld [vmem:[%s1 + $0x184] sm:$0xf]
  %v127 = vld [vmem:[%s1 + $0x188] sm:$0xf]
  %v128 = vld [vmem:[%s1 + $0x18c] sm:$0xf]
  %v129 = vld [vmem:[%s1 + $0x190] sm:$0xf]
  %v130 = vld [vmem:[%s1 + $0x194] sm:$0xf]
  %v131 = vld [vmem:[%s1 + $0x198] sm:$0xf]
  %v132 = vld [vmem:[%s1 + $0x19c] sm:$0xf]
  %v133 = vld [vmem:[%s1 + $0x1a0] sm:$0xf]
  %v134 = vld [vmem:[%s1 + $0x1a4] sm:$0xf]
  %v135 = vld [vmem:[%s1 + $0x1a8] sm:$0xf]
  %v136 = vld [vmem:[%s1 + $0x1ac] sm:$0xf]
  %v137 = vld [vmem:[%s1 + $0x1b0] sm:$0xf]
  %v138 = vld [vmem:[%s1 + $0x1b4] sm:$0xf]
  %v139 = vld [vmem:[%s1 + $0x1b8] sm:$0xf]
  %v140 = vld [vmem:[%s1 + $0x1bc] sm:$0xf]
  %v141 = vld [vmem:[%s1 + $0x1c0] sm:$0xf]
  %v142 = vld [vmem:[%s1 + $0x1c4] sm:$0xf]
  %v143 = vld [vmem:[%s1 + $0x1c8] sm:$0xf]
  %v144 = vld [vmem:[%s1 + $0x1cc] sm:$0xf]
  %v145 = vld [vmem:[%s1 + $0x1d0] sm:$0xf]
  %v146 = vld [vmem:[%s1 + $0x1d4] sm:$0xf]
  %v147 = vld [vmem:[%s1 + $0x1d8] sm:$0xf]
  %v148 = vld [vmem:[%s1 + $0x1dc] sm:$0xf]
  %v149 = vld [vmem:[%s1 + $0x1e0] sm:$0xf]
  %v150 = vld [vmem:[%s1 + $0x1e4] sm:$0xf]
  %v151 = vld [vmem:[%s1 + $0x1e8] sm:$0xf]
  %v152 = vld [vmem:[%s1 + $0x1ec] sm:$0xf]
  %v153 = vld [vmem:[%s1 + $0x1f0] sm:$0xf]
  %v154 = vld [vmem:[%s1 + $0x1f4] sm:$0xf]
  %v155 = vld [vmem:[%s1 + $0x1f8] sm:$0xf]
  %v156 = vld [vmem:[%s1 + $0x1fc] sm:$0xf]
  %v157 = vld [vmem:[%s1 + $0x200] sm:$0xf]
  %v158 = vld [vmem:[%s1 + $0x204] sm:$0xf]
  %v159 = vld [vmem:[%s1 + $0x208] sm:$0xf]
  %v160 = vld [vmem:[%s1 + $0x20c] sm:$0xf]
  %v161 = vld [vmem:[%s1 + $0x210] sm:$0xf]
  %v162 = vld [vmem:[%s1 + $0x214] sm:$0xf]
  %v163 = vld [vmem:[%s1 + $0x218] sm:$0xf]
  %v164 = vld [vmem:[%s1 + $0x21c] sm:$0xf]
  %v165 = vld [vmem:[%s1 + $0x220] sm:$0xf]
  %v166 = vld [vmem:[%s1 + $0x224] sm:$0xf]
  %v167 = vld [vmem:[%s1 + $0x228] sm:$0xf]
  %v168 = vld [vmem:[%s1 + $0x22c] sm:$0xf]
  %v169 = vld [vmem:[%s1 + $0x230] sm:$0xf]
  %v170 = vld [vmem:[%s1 + $0x234] sm:$0xf]
  %v171 = vld [vmem:[%s1 + $0x238] sm:$0xf]
  %v172 = vld [vmem:[%s1 + $0x23c] sm:$0xf]
  %v173 = vld [vmem:[%s1 + $0x240] sm:$0xf]
  %v174 = vld [vmem:[%s1 + $0x244] sm:$0xf]
  %v175 = vld [vmem:[%s1 + $0x248] sm:$0xf]
  %v176 = vld [vmem:[%s1 + $0x24c] sm:$0xf]
  %v177 = vld [vmem:[%s1 + $0x250] sm:$0xf]
  %v178 = vld [vmem:[%s1 + $0x254] sm:$0xf]
  %v179 = vld [vmem:[%s1 + $0x258] sm:$0xf]
  %v180 = vld [vmem:[%s1 + $0x25c] sm:$0xf]
  %v181 = vld [vmem:[%s1 + $0x260] sm:$0xf]
  %v182 = vld [vmem:[%s1 + $0x264] sm:$0xf]
  %v183 = vld [vmem:[%s1 + $0x268] sm:$0xf]
  %v184 = vld [vmem:[%s1 + $0x26c] sm:$0xf]
  %v185 = vld [vmem:[%s1 + $0x270] sm:$0xf]
  %v186 = vld [vmem:[%s1 + $0x274] sm:$0xf]
  %v187 = vld [vmem:[%s1 + $0x278] sm:$0xf]
  %v188 = vld [vmem:[%s1 + $0x27c] sm:$0xf]
  %v189 = vld [vmem:[%s1 + $0x280] sm:$0xf]
  %v190 = vld [vmem:[%s1 + $0x284] sm:$0xf]
  %v191 = vld [vmem:[%s1 + $0x288] sm:$0xf]
  %v192 = vld [vmem:[%s1 + $0x28c] sm:$0xf]
  %v193 = vld [vmem:[%s1 + $0x290] sm:$0xf]
  %v194 = vld [vmem:[%s1 + $0x294] sm:$0xf]
  %v195 = vld [vmem:[%s1 + $0x298] sm:$0xf]
  %v196 = vld [vmem:[%s1 + $0x29c] sm:$0xf]
  %v197 = vld [vmem:[%s1 + $0x2a0] sm:$0xf]
  %v198 = vld [vmem:[%s1 + $0x2a4] sm:$0xf]
  %v199 = vld [vmem:[%s1 + $0x2a8] sm:$0xf]
  %v200 = vld [vmem:[%s1 + $0x2ac] sm:$0xf]
  %v201 = vld [vmem:[%s1 + $0x2b0] sm:$0xf]
  %v202 = vld [vmem:[%s1 + $0x2b4] sm:$0xf]
  %v203 = vld [vmem:[%s1 + $0x2b8] sm:$0xf]
  %v204 = vld [vmem:[%s1 + $0x2bc] sm:$0xf]
  %v205 = vld [vmem:[%s1 + $0x2c0] sm:$0xf]
  %v206 = vld [vmem:[%s1 + $0x2c4] sm:$0xf]
  %v207 = vld [vmem:[%s1 + $0x2c8] sm:$0xf]
  %v208 = vld [vmem:[%s1 + $0x2cc] sm:$0xf]
  %v209 = vld [vmem:[%s1 + $0x2d0] sm:$0xf]
  %v210 = vld [vmem:[%s1 + $0x2d4] sm:$0xf]
  %v211 = vld [vmem:[%s1 + $0x2d8] sm:$0xf]
  %v212 = vld [vmem:[%s1 + $0x2dc] sm:$0xf]
  %v213 = vld [vmem:[%s1 + $0x2e0] sm:$0xf]
  %v214 = vld [vmem:[%s1 + $0x2e4] sm:$0xf]
  %v215 = vld [vmem:[%s1 + $0x2e8] sm:$0xf]
  %v216 = vld [vmem:[%s1 + $0x2ec] sm:$0xf]
  %v217 = vld [vmem:[%s1 + $0x2f0] sm:$0xf]
  %v218 = vld [vmem:[%s1 + $0x2f4] sm:$0xf]
  %v219 = vld [vmem:[%s1 + $0x2f8] sm:$0xf]
  %v220 = vld [vmem:[%s1 + $0x2fc] sm:$0xf]
  %v221 = vld [vmem:[%s1 + $0x300] sm:$0xf]
  %v222 = vld [vmem:[%s1 + $0x304] sm:$0xf]
  %v223 = vld [vmem:[%s1 + $0x308] sm:$0xf]
  %v224 = vld [vmem:[%s1 + $0x30c] sm:$0xf]
  %v225 = vld [vmem:[%s1 + $0x310] sm:$0xf]
  %v226 = vld [vmem:[%s1 + $0x314] sm:$0xf]
  %v227 = vld [vmem:[%s1 + $0x318] sm:$0xf]
  %v228 = vld [vmem:[%s1 + $0x31c] sm:$0xf]
  %v229 = vld [vmem:[%s1 + $0x320] sm:$0xf]
  %v230 = vld [vmem:[%s1 + $0x324] sm:$0xf]
  %v231 = vld [vmem:[%s1 + $0x328] sm:$0xf]
  %v232 = vld [vmem:[%s1 + $0x32c] sm:$0xf]
  %v233 = vld [vmem:[%s1 + $0x330] sm:$0xf]
  %v234 = vld [vmem:[%s1 + $0x334] sm:$0xf]
  %v235 = vld [vmem:[%s1 + $0x338] sm:$0xf]
  %v236 = vld [vmem:[%s1 + $0x33c] sm:$0xf]
  %v237 = vld [vmem:[%s1 + $0x340] sm:$0xf]
  %v238 = vld [vmem:[%s1 + $0x344] sm:$0xf]
  %v239 = vld [vmem:[%s1 + $0x348] sm:$0xf]
  %v240 = vld [vmem:[%s1 + $0x34c] sm:$0xf]
  %v241 = vld [vmem:[%s1 + $0x350] sm:$0xf]
  %v242 = vld [vmem:[%s1 + $0x354] sm:$0xf]
  %v243 = vld [vmem:[%s1 + $0x358] sm:$0xf]
  %v244 = vld [vmem:[%s1 + $0x35c] sm:$0xf]
  %v245 = vld [vmem:[%s2] sm:$0x1]
  %v246 = vlaneseq
  %v247 = vshrl.u32 %v246, 7
  %v248 = vsub.s32 0, %v247
  %v249 = vrot.slane %v245, %v248
  %v264 = vunpack.c.l.b16 %v15
  %v265 = vunpack.c.h.b16 %v15
  %v266 = vunpack.c.l.b16 %v16
  %v267 = vunpack.c.h.b16 %v16
  %v268 = vunpack.c.l.b16 %v17
  %v269 = vunpack.c.h.b16 %v17
  %v270 = vunpack.c.l.b16 %v18
  %v271 = vunpack.c.h.b16 %v18
  %v272 = vunpack.c.l.b16 %v19
  %v273 = vunpack.c.h.b16 %v19
  %v274 = vunpack.c.l.b16 %v20
  %v275 = vunpack.c.h.b16 %v20
  %v276 = vunpack.c.l.b16 %v21
  %v277 = vunpack.c.h.b16 %v21
  %v278 = vunpack.c.l.b16 %v22
  %v279 = vunpack.c.h.b16 %v22
  %v280 = vunpack.c.l.b16 %v23
  %v281 = vunpack.c.h.b16 %v23
  %v282 = vunpack.c.l.b16 %v24
  %v283 = vunpack.c.h.b16 %v24
  %v284 = vunpack.c.l.b16 %v25
  %v285 = vunpack.c.h.b16 %v25
  %v286 = vunpack.c.l.b16 %v26
  %v287 = vunpack.c.h.b16 %v26
  %v288 = vunpack.c.l.b16 %v27
  %v289 = vunpack.c.h.b16 %v27
  %v290 = vunpack.c.l.b16 %v28
  %v291 = vunpack.c.h.b16 %v28
  %v292 = vpack.c.b16 %v278, %v264
  %v293 = vpack.c.b16 %v279, %v265
  %v294 = vpack.c.b16 %v280, %v266
  %v295 = vpack.c.b16 %v281, %v267
  %v296 = vpack.c.b16 %v282, %v268
  %v297 = vpack.c.b16 %v283, %v269
  %v298 = vpack.c.b16 %v284, %v270
  %v299 = vpack.c.b16 %v285, %v271
  %v300 = vpack.c.b16 %v286, %v272
  %v301 = vpack.c.b16 %v287, %v273
  %v302 = vpack.c.b16 %v288, %v274
  %v303 = vpack.c.b16 %v289, %v275
  %v304 = vpack.c.b16 %v290, %v276
  %v305 = vpack.c.b16 %v291, %v277
  %v535 = vunpack.c.l.b16 %v29
  %v536 = vunpack.c.l.b16 %v30
  %v537 = vunpack.c.l.b16 %v31
  %v538 = vunpack.c.l.b16 %v32
  %v539 = vunpack.c.l.b16 %v33
  %v540 = vunpack.c.l.b16 %v34
  %v541 = vunpack.c.l.b16 %v35
  %v542 = vunpack.c.l.b16 %v36
  %v543 = vunpack.c.l.b16 %v37
  %v544 = vunpack.c.l.b16 %v38
  %v545 = vunpack.c.l.b16 %v39
  %v546 = vunpack.c.l.b16 %v40
  %v547 = vunpack.c.l.b16 %v41
  %v548 = vunpack.c.l.b16 %v42
  %v549 = vunpack.c.l.b16 %v43
  %v550 = vunpack.c.l.b16 %v44
  %v551 = vunpack.c.l.b16 %v45
  %v552 = vunpack.c.l.b16 %v46
  %v553 = vunpack.c.l.b16 %v47
  %v554 = vunpack.c.l.b16 %v48
  %v555 = vunpack.c.l.b16 %v49
  %v556 = vunpack.c.l.b16 %v50
  %v557 = vunpack.c.l.b16 %v51
  %v558 = vunpack.c.l.b16 %v52
  %v559 = vunpack.c.l.b16 %v53
  %v560 = vunpack.c.l.b16 %v54
  %v561 = vunpack.c.l.b16 %v55
  %v562 = vunpack.c.l.b16 %v56
  %v563 = vunpack.c.l.b16 %v57
  %v564 = vunpack.c.l.b16 %v58
  %v565 = vunpack.c.l.b16 %v59
  %v566 = vunpack.c.l.b16 %v60
  %v567 = vunpack.c.l.b16 %v61
  %v568 = vunpack.c.l.b16 %v62
  %v569 = vunpack.c.l.b16 %v63
  %v570 = vunpack.c.l.b16 %v64
  %v571 = vunpack.c.l.b16 %v65
  %v572 = vunpack.c.l.b16 %v66
  %v573 = vunpack.c.l.b16 %v67
  %v574 = vunpack.c.l.b16 %v68
  %v575 = vunpack.c.l.b16 %v69
  %v576 = vunpack.c.l.b16 %v70
  %v577 = vunpack.c.l.b16 %v71
  %v578 = vunpack.c.l.b16 %v72
  %v579 = vunpack.c.l.b16 %v73
  %v580 = vunpack.c.l.b16 %v74
  %v581 = vunpack.c.l.b16 %v75
  %v582 = vunpack.c.l.b16 %v76
  %v583 = vunpack.c.l.b16 %v77
  %v584 = vunpack.c.l.b16 %v78
  %v585 = vunpack.c.l.b16 %v79
  %v586 = vunpack.c.l.b16 %v80
  %v587 = vunpack.c.l.b16 %v81
  %v588 = vunpack.c.l.b16 %v82
  %v589 = vunpack.c.l.b16 %v83
  %v590 = vunpack.c.l.b16 %v84
  %v591 = vunpack.c.l.b16 %v85
  %v592 = vunpack.c.l.b16 %v86
  %v593 = vunpack.c.l.b16 %v87
  %v594 = vunpack.c.l.b16 %v88
  %v595 = vunpack.c.l.b16 %v89
  %v596 = vunpack.c.l.b16 %v90
  %v597 = vunpack.c.l.b16 %v91
  %v598 = vunpack.c.l.b16 %v92
  %v599 = vunpack.c.l.b16 %v93
  %v600 = vunpack.c.l.b16 %v94
  %v601 = vunpack.c.l.b16 %v95
  %v602 = vunpack.c.l.b16 %v96
  %v603 = vunpack.c.l.b16 %v97
  %v604 = vunpack.c.l.b16 %v98
  %v605 = vunpack.c.l.b16 %v99
  %v606 = vunpack.c.l.b16 %v100
  %v607 = vunpack.c.l.b16 %v101
  %v608 = vunpack.c.l.b16 %v102
  %v609 = vunpack.c.l.b16 %v103
  %v610 = vunpack.c.l.b16 %v104
  %v611 = vunpack.c.l.b16 %v105
  %v612 = vunpack.c.l.b16 %v106
  %v613 = vunpack.c.l.b16 %v107
  %v614 = vunpack.c.l.b16 %v108
  %v615 = vunpack.c.l.b16 %v109
  %v616 = vunpack.c.l.b16 %v110
  %v617 = vunpack.c.l.b16 %v111
  %v618 = vunpack.c.l.b16 %v112
  %v619 = vunpack.c.l.b16 %v113
  %v620 = vunpack.c.l.b16 %v114
  %v621 = vunpack.c.l.b16 %v115
  %v622 = vunpack.c.l.b16 %v116
  %v623 = vunpack.c.l.b16 %v117
  %v624 = vunpack.c.l.b16 %v118
  %v625 = vunpack.c.l.b16 %v119
  %v626 = vunpack.c.l.b16 %v120
  %v627 = vunpack.c.l.b16 %v121
  %v628 = vunpack.c.l.b16 %v122
  %v629 = vunpack.c.l.b16 %v123
  %v630 = vunpack.c.l.b16 %v124
  %v631 = vunpack.c.l.b16 %v125
  %v632 = vunpack.c.l.b16 %v126
  %v633 = vunpack.c.l.b16 %v127
  %v634 = vunpack.c.l.b16 %v128
  %v635 = vunpack.c.l.b16 %v129
  %v636 = vunpack.c.l.b16 %v130
  %v637 = vunpack.c.l.b16 %v131
  %v638 = vunpack.c.l.b16 %v132
  %v639 = vunpack.c.l.b16 %v133
  %v640 = vunpack.c.l.b16 %v134
  %v641 = vunpack.c.l.b16 %v135
  %v642 = vunpack.c.l.b16 %v136
  %v643 = vunpack.c.l.b16 %v137
  %v644 = vunpack.c.l.b16 %v138
  %v645 = vunpack.c.l.b16 %v139
  %v646 = vunpack.c.l.b16 %v140
  %v647 = vunpack.c.l.b16 %v141
  %v648 = vunpack.c.l.b16 %v142
  %v649 = vunpack.c.l.b16 %v143
  %v650 = vunpack.c.l.b16 %v144
  %v651 = vunpack.c.l.b16 %v145
  %v652 = vunpack.c.l.b16 %v146
  %v653 = vunpack.c.l.b16 %v147
  %v654 = vunpack.c.l.b16 %v148
  %v655 = vunpack.c.l.b16 %v149
  %v656 = vunpack.c.l.b16 %v150
  %v657 = vunpack.c.l.b16 %v151
  %v658 = vunpack.c.l.b16 %v152
  %v659 = vunpack.c.l.b16 %v153
  %v660 = vunpack.c.l.b16 %v154
  %v661 = vunpack.c.l.b16 %v155
  %v662 = vunpack.c.l.b16 %v156
  %v663 = vunpack.c.l.b16 %v157
  %v664 = vunpack.c.l.b16 %v158
  %v665 = vunpack.c.l.b16 %v159
  %v666 = vunpack.c.l.b16 %v160
  %v667 = vunpack.c.l.b16 %v161
  %v668 = vunpack.c.l.b16 %v162
  %v669 = vunpack.c.l.b16 %v163
  %v670 = vunpack.c.l.b16 %v164
  %v671 = vunpack.c.l.b16 %v165
  %v672 = vunpack.c.l.b16 %v166
  %v673 = vunpack.c.l.b16 %v167
  %v674 = vunpack.c.l.b16 %v168
  %v675 = vunpack.c.l.b16 %v169
  %v676 = vunpack.c.l.b16 %v170
  %v677 = vunpack.c.l.b16 %v171
  %v678 = vunpack.c.l.b16 %v172
  %v679 = vunpack.c.l.b16 %v173
  %v680 = vunpack.c.l.b16 %v174
  %v681 = vunpack.c.l.b16 %v175
  %v682 = vunpack.c.l.b16 %v176
  %v683 = vunpack.c.l.b16 %v177
  %v684 = vunpack.c.l.b16 %v178
  %v685 = vunpack.c.l.b16 %v179
  %v686 = vunpack.c.l.b16 %v180
  %v687 = vunpack.c.l.b16 %v181
  %v688 = vunpack.c.l.b16 %v182
  %v689 = vunpack.c.l.b16 %v183
  %v690 = vunpack.c.l.b16 %v184
  %v691 = vunpack.c.l.b16 %v185
  %v692 = vunpack.c.l.b16 %v186
  %v693 = vunpack.c.l.b16 %v187
  %v694 = vunpack.c.l.b16 %v188
  %v695 = vunpack.c.l.b16 %v189
  %v696 = vunpack.c.l.b16 %v190
  %v697 = vunpack.c.l.b16 %v191
  %v698 = vunpack.c.l.b16 %v192
  %v699 = vunpack.c.l.b16 %v193
  %v700 = vunpack.c.l.b16 %v194
  %v701 = vunpack.c.l.b16 %v195
  %v702 = vunpack.c.l.b16 %v196
  %v703 = vunpack.c.l.b16 %v197
  %v704 = vunpack.c.l.b16 %v198
  %v705 = vunpack.c.l.b16 %v199
  %v706 = vunpack.c.l.b16 %v200
  %v707 = vunpack.c.l.b16 %v201
  %v708 = vunpack.c.l.b16 %v202
  %v709 = vunpack.c.l.b16 %v203
  %v710 = vunpack.c.l.b16 %v204
  %v711 = vunpack.c.l.b16 %v205
  %v712 = vunpack.c.l.b16 %v206
  %v713 = vunpack.c.l.b16 %v207
  %v714 = vunpack.c.l.b16 %v208
  %v715 = vunpack.c.l.b16 %v209
  %v716 = vunpack.c.l.b16 %v210
  %v717 = vunpack.c.l.b16 %v211
  %v718 = vunpack.c.l.b16 %v212
  %v719 = vunpack.c.l.b16 %v213
  %v720 = vunpack.c.l.b16 %v214
  %v721 = vunpack.c.l.b16 %v215
  %v722 = vunpack.c.l.b16 %v216
  %v723 = vunpack.c.l.b16 %v217
  %v724 = vunpack.c.l.b16 %v218
  %v725 = vunpack.c.l.b16 %v219
  %v726 = vunpack.c.l.b16 %v220
  %v727 = vunpack.c.l.b16 %v221
  %v728 = vunpack.c.l.b16 %v222
  %v729 = vunpack.c.l.b16 %v223
  %v730 = vunpack.c.l.b16 %v224
  %v731 = vunpack.c.l.b16 %v225
  %v732 = vunpack.c.l.b16 %v226
  %v733 = vunpack.c.l.b16 %v227
  %v734 = vunpack.c.l.b16 %v228
  %v735 = vunpack.c.l.b16 %v229
  %v736 = vunpack.c.l.b16 %v230
  %v737 = vunpack.c.l.b16 %v231
  %v738 = vunpack.c.l.b16 %v232
  %v739 = vunpack.c.l.b16 %v233
  %v740 = vunpack.c.l.b16 %v234
  %v741 = vunpack.c.l.b16 %v235
  %v742 = vunpack.c.l.b16 %v236
  %v743 = vunpack.c.l.b16 %v237
  %v744 = vunpack.c.l.b16 %v238
  %v745 = vunpack.c.l.b16 %v239
  %v746 = vunpack.c.l.b16 %v240
  %v747 = vunpack.c.l.b16 %v241
  %v748 = vunpack.c.l.b16 %v242
  %v749 = vunpack.c.l.b16 %v243
  %v750 = vunpack.c.l.b16 %v244
  %v751 = vpack.c.b16 %v536, %v535
  %v752 = vpack.c.b16 %v538, %v537
  %v753 = vpack.c.b16 %v540, %v539
  %v754 = vpack.c.b16 %v542, %v541
  %v755 = vpack.c.b16 %v544, %v543
  %v756 = vpack.c.b16 %v546, %v545
  %v757 = vpack.c.b16 %v548, %v547
  %v758 = vpack.c.b16 %v550, %v549
  %v759 = vpack.c.b16 %v552, %v551
  %v760 = vpack.c.b16 %v554, %v553
  %v761 = vpack.c.b16 %v556, %v555
  %v762 = vpack.c.b16 %v558, %v557
  %v763 = vpack.c.b16 %v560, %v559
  %v764 = vpack.c.b16 %v562, %v561
  %v765 = vpack.c.b16 %v564, %v563
  %v766 = vpack.c.b16 %v566, %v565
  %v767 = vpack.c.b16 %v568, %v567
  %v768 = vpack.c.b16 %v570, %v569
  %v769 = vpack.c.b16 %v572, %v571
  %v770 = vpack.c.b16 %v574, %v573
  %v771 = vpack.c.b16 %v576, %v575
  %v772 = vpack.c.b16 %v578, %v577
  %v773 = vpack.c.b16 %v580, %v579
  %v774 = vpack.c.b16 %v582, %v581
  %v775 = vpack.c.b16 %v584, %v583
  %v776 = vpack.c.b16 %v586, %v585
  %v777 = vpack.c.b16 %v588, %v587
  %v778 = vpack.c.b16 %v590, %v589
  %v779 = vpack.c.b16 %v592, %v591
  %v780 = vpack.c.b16 %v594, %v593
  %v781 = vpack.c.b16 %v596, %v595
  %v782 = vpack.c.b16 %v598, %v597
  %v783 = vpack.c.b16 %v600, %v599
  %v784 = vpack.c.b16 %v602, %v601
  %v785 = vpack.c.b16 %v604, %v603
  %v786 = vpack.c.b16 %v606, %v605
  %v787 = vpack.c.b16 %v608, %v607
  %v788 = vpack.c.b16 %v610, %v609
  %v789 = vpack.c.b16 %v612, %v611
  %v790 = vpack.c.b16 %v614, %v613
  %v791 = vpack.c.b16 %v616, %v615
  %v792 = vpack.c.b16 %v618, %v617
  %v793 = vpack.c.b16 %v620, %v619
  %v794 = vpack.c.b16 %v622, %v621
  %v795 = vpack.c.b16 %v624, %v623
  %v796 = vpack.c.b16 %v626, %v625
  %v797 = vpack.c.b16 %v628, %v627
  %v798 = vpack.c.b16 %v630, %v629
  %v799 = vpack.c.b16 %v632, %v631
  %v800 = vpack.c.b16 %v634, %v633
  %v801 = vpack.c.b16 %v636, %v635
  %v802 = vpack.c.b16 %v638, %v637
  %v803 = vpack.c.b16 %v640, %v639
  %v804 = vpack.c.b16 %v642, %v641
  %v805 = vpack.c.b16 %v644, %v643
  %v806 = vpack.c.b16 %v646, %v645
  %v807 = vpack.c.b16 %v648, %v647
  %v808 = vpack.c.b16 %v650, %v649
  %v809 = vpack.c.b16 %v652, %v651
  %v810 = vpack.c.b16 %v654, %v653
  %v811 = vpack.c.b16 %v656, %v655
  %v812 = vpack.c.b16 %v658, %v657
  %v813 = vpack.c.b16 %v660, %v659
  %v814 = vpack.c.b16 %v662, %v661
  %v815 = vpack.c.b16 %v664, %v663
  %v816 = vpack.c.b16 %v666, %v665
  %v817 = vpack.c.b16 %v668, %v667
  %v818 = vpack.c.b16 %v670, %v669
  %v819 = vpack.c.b16 %v672, %v671
  %v820 = vpack.c.b16 %v674, %v673
  %v821 = vpack.c.b16 %v676, %v675
  %v822 = vpack.c.b16 %v678, %v677
  %v823 = vpack.c.b16 %v680, %v679
  %v824 = vpack.c.b16 %v682, %v681
  %v825 = vpack.c.b16 %v684, %v683
  %v826 = vpack.c.b16 %v686, %v685
  %v827 = vpack.c.b16 %v688, %v687
  %v828 = vpack.c.b16 %v690, %v689
  %v829 = vpack.c.b16 %v692, %v691
  %v830 = vpack.c.b16 %v694, %v693
  %v831 = vpack.c.b16 %v696, %v695
  %v832 = vpack.c.b16 %v698, %v697
  %v833 = vpack.c.b16 %v700, %v699
  %v834 = vpack.c.b16 %v702, %v701
  %v835 = vpack.c.b16 %v704, %v703
  %v836 = vpack.c.b16 %v706, %v705
  %v837 = vpack.c.b16 %v708, %v707
  %v838 = vpack.c.b16 %v710, %v709
  %v839 = vpack.c.b16 %v712, %v711
  %v840 = vpack.c.b16 %v714, %v713
  %v841 = vpack.c.b16 %v716, %v715
  %v842 = vpack.c.b16 %v718, %v717
  %v843 = vpack.c.b16 %v720, %v719
  %v844 = vpack.c.b16 %v722, %v721
  %v845 = vpack.c.b16 %v724, %v723
  %v846 = vpack.c.b16 %v726, %v725
  %v847 = vpack.c.b16 %v728, %v727
  %v848 = vpack.c.b16 %v730, %v729
  %v849 = vpack.c.b16 %v732, %v731
  %v850 = vpack.c.b16 %v734, %v733
  %v851 = vpack.c.b16 %v736, %v735
  %v852 = vpack.c.b16 %v738, %v737
  %v853 = vpack.c.b16 %v740, %v739
  %v854 = vpack.c.b16 %v742, %v741
  %v855 = vpack.c.b16 %v744, %v743
  %v856 = vpack.c.b16 %v746, %v745
  %v857 = vpack.c.b16 %v748, %v747
  %v858 = vpack.c.b16 %v750, %v749
  %vm967 = vcmask 523264
  %v969 = vsel %vm967, %v305, 0
  %971 = vmatprep.subr.bf16.mxu0 0
  %972 = vmatpush1.bf16.msra.mxu0 %v758
  %973 = vmatprep.subr.bf16.mxu0 0
  %974 = vmatpush1.bf16.msra.mxu0 %v757
  %975 = vmatprep.subr.bf16.mxu0 0
  %976 = vmatpush1.bf16.msra.mxu0 %v756
  %977 = vmatprep.subr.bf16.mxu0 0
  %978 = vmatpush1.bf16.msra.mxu0 %v755
  %979 = vmatprep.subr.bf16.mxu0 0
  %980 = vmatpush1.bf16.msra.mxu0 %v754
  %981 = vmatprep.subr.bf16.mxu0 0
  %982 = vmatpush1.bf16.msra.mxu0 %v753
  %983 = vmatprep.subr.bf16.mxu0 0
  %984 = vmatpush1.bf16.msra.mxu0 %v752
  %985 = vmatprep.subr.bf16.mxu0 0
  %986 = vmatpush1.bf16.msra.mxu0 %v751
  %987 = vmatprep.subr.bf16.mxu0 0
  %988 = vmatpush2.bf16.msra.mxu0 %v766
  %989 = vmatprep.subr.bf16.mxu0 0
  %990 = vmatpush2.bf16.msra.mxu0 %v765
  %991 = vmatprep.subr.bf16.mxu0 0
  %992 = vmatpush2.bf16.msra.mxu0 %v764
  %993 = vmatprep.subr.bf16.mxu0 0
  %994 = vmatpush2.bf16.msra.mxu0 %v763
  %995 = vmatprep.subr.bf16.mxu0 0
  %996 = vmatpush2.bf16.msra.mxu0 %v762
  %997 = vmatprep.subr.bf16.mxu0 0
  %998 = vmatpush2.bf16.msra.mxu0 %v761
  %999 = vmatprep.subr.bf16.mxu0 0
  %1000 = vmatpush2.bf16.msra.mxu0 %v760
  %1001 = vmatprep.subr.bf16.mxu0 0
  %1002 = vmatpush2.bf16.msra.mxu0 %v759
  %1003 = vmatprep.mubr.bf16.mxu0 %v293
  %1004 = vmatmul.mubr.bf16.gmra.mxu0 %v292
  %v1005 = vpop.f32.mrf.mxu0
  %v1006 = vadd.f32 %v249, %v1005
  %v1007 = vpop.f32.mrf.mxu0
  %v1008 = vpop.f32.mrf.mxu0
  %v1009 = vadd.f32 %v249, %v1008
  %v1010 = vpop.f32.mrf.mxu0
  %1011 = vdwg.mxu0
  %1012 = vmatprep.subr.bf16.mxu0 0
  %1013 = vmatpush1.bf16.msra.mxu0 %v774
  %1014 = vmatprep.subr.bf16.mxu0 0
  %1015 = vmatpush1.bf16.msra.mxu0 %v773
  %1016 = vmatprep.subr.bf16.mxu0 0
  %1017 = vmatpush1.bf16.msra.mxu0 %v772
  %1018 = vmatprep.subr.bf16.mxu0 0
  %1019 = vmatpush1.bf16.msra.mxu0 %v771
  %1020 = vmatprep.subr.bf16.mxu0 0
  %1021 = vmatpush1.bf16.msra.mxu0 %v770
  %1022 = vmatprep.subr.bf16.mxu0 0
  %1023 = vmatpush1.bf16.msra.mxu0 %v769
  %1024 = vmatprep.subr.bf16.mxu0 0
  %1025 = vmatpush1.bf16.msra.mxu0 %v768
  %1026 = vmatprep.subr.bf16.mxu0 0
  %1027 = vmatpush1.bf16.msra.mxu0 %v767
  %1028 = vmatprep.subr.bf16.mxu0 0
  %1029 = vmatpush2.bf16.msra.mxu0 %v782
  %1030 = vmatprep.subr.bf16.mxu0 0
  %1031 = vmatpush2.bf16.msra.mxu0 %v781
  %1032 = vmatprep.subr.bf16.mxu0 0
  %1033 = vmatpush2.bf16.msra.mxu0 %v780
  %1034 = vmatprep.subr.bf16.mxu0 0
  %1035 = vmatpush2.bf16.msra.mxu0 %v779
  %1036 = vmatprep.subr.bf16.mxu0 0
  %1037 = vmatpush2.bf16.msra.mxu0 %v778
  %1038 = vmatprep.subr.bf16.mxu0 0
  %1039 = vmatpush2.bf16.msra.mxu0 %v777
  %1040 = vmatprep.subr.bf16.mxu0 0
  %1041 = vmatpush2.bf16.msra.mxu0 %v776
  %1042 = vmatprep.subr.bf16.mxu0 0
  %1043 = vmatpush2.bf16.msra.mxu0 %v775
  %1044 = vmatprep.mubr.bf16.mxu0 %v295
  %1045 = vmatmul.mubr.bf16.gmra.mxu0 %v294
  %v1046 = vpop.f32.mrf.mxu0
  %v1047 = vadd.f32 %v1006, %v1046
  %v1048 = vpop.f32.mrf.mxu0
  %v1049 = vpop.f32.mrf.mxu0
  %v1050 = vadd.f32 %v1009, %v1049
  %v1051 = vpop.f32.mrf.mxu0
  %1052 = vdwg.mxu0
  %1053 = vmatprep.subr.bf16.mxu0 0
  %1054 = vmatpush1.bf16.msra.mxu0 %v790
  %1055 = vmatprep.subr.bf16.mxu0 0
  %1056 = vmatpush1.bf16.msra.mxu0 %v789
  %1057 = vmatprep.subr.bf16.mxu0 0
  %1058 = vmatpush1.bf16.msra.mxu0 %v788
  %1059 = vmatprep.subr.bf16.mxu0 0
  %1060 = vmatpush1.bf16.msra.mxu0 %v787
  %1061 = vmatprep.subr.bf16.mxu0 0
  %1062 = vmatpush1.bf16.msra.mxu0 %v786
  %1063 = vmatprep.subr.bf16.mxu0 0
  %1064 = vmatpush1.bf16.msra.mxu0 %v785
  %1065 = vmatprep.subr.bf16.mxu0 0
  %1066 = vmatpush1.bf16.msra.mxu0 %v784
  %1067 = vmatprep.subr.bf16.mxu0 0
  %1068 = vmatpush1.bf16.msra.mxu0 %v783
  %1069 = vmatprep.subr.bf16.mxu0 0
  %1070 = vmatpush2.bf16.msra.mxu0 %v798
  %1071 = vmatprep.subr.bf16.mxu0 0
  %1072 = vmatpush2.bf16.msra.mxu0 %v797
  %1073 = vmatprep.subr.bf16.mxu0 0
  %1074 = vmatpush2.bf16.msra.mxu0 %v796
  %1075 = vmatprep.subr.bf16.mxu0 0
  %1076 = vmatpush2.bf16.msra.mxu0 %v795
  %1077 = vmatprep.subr.bf16.mxu0 0
  %1078 = vmatpush2.bf16.msra.mxu0 %v794
  %1079 = vmatprep.subr.bf16.mxu0 0
  %1080 = vmatpush2.bf16.msra.mxu0 %v793
  %1081 = vmatprep.subr.bf16.mxu0 0
  %1082 = vmatpush2.bf16.msra.mxu0 %v792
  %1083 = vmatprep.subr.bf16.mxu0 0
  %1084 = vmatpush2.bf16.msra.mxu0 %v791
  %1085 = vmatprep.mubr.bf16.mxu0 %v297
  %1086 = vmatmul.mubr.bf16.gmra.mxu0 %v296
  %v1087 = vpop.f32.mrf.mxu0
  %v1088 = vadd.f32 %v1047, %v1087
  %v1089 = vpop.f32.mrf.mxu0
  %v1090 = vpop.f32.mrf.mxu0
  %v1091 = vadd.f32 %v1050, %v1090
  %v1092 = vpop.f32.mrf.mxu0
  %1093 = vdwg.mxu0
  %1094 = vmatprep.subr.bf16.mxu0 0
  %1095 = vmatpush1.bf16.msra.mxu0 %v806
  %1096 = vmatprep.subr.bf16.mxu0 0
  %1097 = vmatpush1.bf16.msra.mxu0 %v805
  %1098 = vmatprep.subr.bf16.mxu0 0
  %1099 = vmatpush1.bf16.msra.mxu0 %v804
  %1100 = vmatprep.subr.bf16.mxu0 0
  %1101 = vmatpush1.bf16.msra.mxu0 %v803
  %1102 = vmatprep.subr.bf16.mxu0 0
  %1103 = vmatpush1.bf16.msra.mxu0 %v802
  %1104 = vmatprep.subr.bf16.mxu0 0
  %1105 = vmatpush1.bf16.msra.mxu0 %v801
  %1106 = vmatprep.subr.bf16.mxu0 0
  %1107 = vmatpush1.bf16.msra.mxu0 %v800
  %1108 = vmatprep.subr.bf16.mxu0 0
  %1109 = vmatpush1.bf16.msra.mxu0 %v799
  %1110 = vmatprep.subr.bf16.mxu0 0
  %1111 = vmatpush2.bf16.msra.mxu0 %v814
  %1112 = vmatprep.subr.bf16.mxu0 0
  %1113 = vmatpush2.bf16.msra.mxu0 %v813
  %1114 = vmatprep.subr.bf16.mxu0 0
  %1115 = vmatpush2.bf16.msra.mxu0 %v812
  %1116 = vmatprep.subr.bf16.mxu0 0
  %1117 = vmatpush2.bf16.msra.mxu0 %v811
  %1118 = vmatprep.subr.bf16.mxu0 0
  %1119 = vmatpush2.bf16.msra.mxu0 %v810
  %1120 = vmatprep.subr.bf16.mxu0 0
  %1121 = vmatpush2.bf16.msra.mxu0 %v809
  %1122 = vmatprep.subr.bf16.mxu0 0
  %1123 = vmatpush2.bf16.msra.mxu0 %v808
  %1124 = vmatprep.subr.bf16.mxu0 0
  %1125 = vmatpush2.bf16.msra.mxu0 %v807
  %1126 = vmatprep.mubr.bf16.mxu0 %v299
  %1127 = vmatmul.mubr.bf16.gmra.mxu0 %v298
  %v1128 = vpop.f32.mrf.mxu0
  %v1129 = vadd.f32 %v1088, %v1128
  %v1130 = vpop.f32.mrf.mxu0
  %v1131 = vpop.f32.mrf.mxu0
  %v1132 = vadd.f32 %v1091, %v1131
  %v1133 = vpop.f32.mrf.mxu0
  %1134 = vdwg.mxu0
  %1135 = vmatprep.subr.bf16.mxu0 0
  %1136 = vmatpush1.bf16.msra.mxu0 %v822
  %1137 = vmatprep.subr.bf16.mxu0 0
  %1138 = vmatpush1.bf16.msra.mxu0 %v821
  %1139 = vmatprep.subr.bf16.mxu0 0
  %1140 = vmatpush1.bf16.msra.mxu0 %v820
  %1141 = vmatprep.subr.bf16.mxu0 0
  %1142 = vmatpush1.bf16.msra.mxu0 %v819
  %1143 = vmatprep.subr.bf16.mxu0 0
  %1144 = vmatpush1.bf16.msra.mxu0 %v818
  %1145 = vmatprep.subr.bf16.mxu0 0
  %1146 = vmatpush1.bf16.msra.mxu0 %v817
  %1147 = vmatprep.subr.bf16.mxu0 0
  %1148 = vmatpush1.bf16.msra.mxu0 %v816
  %1149 = vmatprep.subr.bf16.mxu0 0
  %1150 = vmatpush1.bf16.msra.mxu0 %v815
  %1151 = vmatprep.subr.bf16.mxu0 0
  %1152 = vmatpush2.bf16.msra.mxu0 %v830
  %1153 = vmatprep.subr.bf16.mxu0 0
  %1154 = vmatpush2.bf16.msra.mxu0 %v829
  %1155 = vmatprep.subr.bf16.mxu0 0
  %1156 = vmatpush2.bf16.msra.mxu0 %v828
  %1157 = vmatprep.subr.bf16.mxu0 0
  %1158 = vmatpush2.bf16.msra.mxu0 %v827
  %1159 = vmatprep.subr.bf16.mxu0 0
  %1160 = vmatpush2.bf16.msra.mxu0 %v826
  %1161 = vmatprep.subr.bf16.mxu0 0
  %1162 = vmatpush2.bf16.msra.mxu0 %v825
  %1163 = vmatprep.subr.bf16.mxu0 0
  %1164 = vmatpush2.bf16.msra.mxu0 %v824
  %1165 = vmatprep.subr.bf16.mxu0 0
  %1166 = vmatpush2.bf16.msra.mxu0 %v823
  %1167 = vmatprep.mubr.bf16.mxu0 %v301
  %1168 = vmatmul.mubr.bf16.gmra.mxu0 %v300
  %v1169 = vpop.f32.mrf.mxu0
  %v1170 = vadd.f32 %v1129, %v1169
  %v1171 = vpop.f32.mrf.mxu0
  %v1172 = vpop.f32.mrf.mxu0
  %v1173 = vadd.f32 %v1132, %v1172
  %v1174 = vpop.f32.mrf.mxu0
  %1175 = vdwg.mxu0
  %1176 = vmatprep.subr.bf16.mxu0 0
  %1177 = vmatpush1.bf16.msra.mxu0 %v838
  %1178 = vmatprep.subr.bf16.mxu0 0
  %1179 = vmatpush1.bf16.msra.mxu0 %v837
  %1180 = vmatprep.subr.bf16.mxu0 0
  %1181 = vmatpush1.bf16.msra.mxu0 %v836
  %1182 = vmatprep.subr.bf16.mxu0 0
  %1183 = vmatpush1.bf16.msra.mxu0 %v835
  %1184 = vmatprep.subr.bf16.mxu0 0
  %1185 = vmatpush1.bf16.msra.mxu0 %v834
  %1186 = vmatprep.subr.bf16.mxu0 0
  %1187 = vmatpush1.bf16.msra.mxu0 %v833
  %1188 = vmatprep.subr.bf16.mxu0 0
  %1189 = vmatpush1.bf16.msra.mxu0 %v832
  %1190 = vmatprep.subr.bf16.mxu0 0
  %1191 = vmatpush1.bf16.msra.mxu0 %v831
  %1192 = vmatprep.subr.bf16.mxu0 0
  %1193 = vmatpush2.bf16.msra.mxu0 %v846
  %1194 = vmatprep.subr.bf16.mxu0 0
  %1195 = vmatpush2.bf16.msra.mxu0 %v845
  %1196 = vmatprep.subr.bf16.mxu0 0
  %1197 = vmatpush2.bf16.msra.mxu0 %v844
  %1198 = vmatprep.subr.bf16.mxu0 0
  %1199 = vmatpush2.bf16.msra.mxu0 %v843
  %1200 = vmatprep.subr.bf16.mxu0 0
  %1201 = vmatpush2.bf16.msra.mxu0 %v842
  %1202 = vmatprep.subr.bf16.mxu0 0
  %1203 = vmatpush2.bf16.msra.mxu0 %v841
  %1204 = vmatprep.subr.bf16.mxu0 0
  %1205 = vmatpush2.bf16.msra.mxu0 %v840
  %1206 = vmatprep.subr.bf16.mxu0 0
  %1207 = vmatpush2.bf16.msra.mxu0 %v839
  %1208 = vmatprep.mubr.bf16.mxu0 %v303
  %1209 = vmatmul.mubr.bf16.gmra.mxu0 %v302
  %v1210 = vpop.f32.mrf.mxu0
  %v1211 = vadd.f32 %v1170, %v1210
  %v1212 = vpop.f32.mrf.mxu0
  %v1213 = vpop.f32.mrf.mxu0
  %v1214 = vadd.f32 %v1173, %v1213
  %v1215 = vpop.f32.mrf.mxu0
  %1216 = vdwg.mxu0
  %1217 = vmatprep.subr.bf16.mxu0 0
  %1218 = vmatpush1.bf16.msra.mxu0 %v854
  %1219 = vmatprep.subr.bf16.mxu0 0
  %1220 = vmatpush1.bf16.msra.mxu0 %v853
  %1221 = vmatprep.subr.bf16.mxu0 0
  %1222 = vmatpush1.bf16.msra.mxu0 %v852
  %1223 = vmatprep.subr.bf16.mxu0 0
  %1224 = vmatpush1.bf16.msra.mxu0 %v851
  %1225 = vmatprep.subr.bf16.mxu0 0
  %1226 = vmatpush1.bf16.msra.mxu0 %v850
  %1227 = vmatprep.subr.bf16.mxu0 0
  %1228 = vmatpush1.bf16.msra.mxu0 %v849
  %1229 = vmatprep.subr.bf16.mxu0 0
  %1230 = vmatpush1.bf16.msra.mxu0 %v848
  %1231 = vmatprep.subr.bf16.mxu0 0
  %1232 = vmatpush1.bf16.msra.mxu0 %v847
  %1233 = vmatprep.subr.bf16.mxu0 0
  %1234 = vmatpush2.bf16.msra.mxu0 0
  %1235 = vmatprep.subr.bf16.mxu0 0
  %1236 = vmatpush2.bf16.msra.mxu0 0
  %1237 = vmatprep.subr.bf16.mxu0 0
  %1238 = vmatpush2.bf16.msra.mxu0 0
  %1239 = vmatprep.subr.bf16.mxu0 0
  %1240 = vmatpush2.bf16.msra.mxu0 0
  %1241 = vmatprep.subr.bf16.mxu0 0
  %1242 = vmatpush2.bf16.msra.mxu0 %v858
  %1243 = vmatprep.subr.bf16.mxu0 0
  %1244 = vmatpush2.bf16.msra.mxu0 %v857
  %1245 = vmatprep.subr.bf16.mxu0 0
  %1246 = vmatpush2.bf16.msra.mxu0 %v856
  %1247 = vmatprep.subr.bf16.mxu0 0
  %1248 = vmatpush2.bf16.msra.mxu0 %v855
  %1249 = vmatprep.mubr.bf16.mxu0 %v969
  %1250 = vmatmul.mubr.bf16.gmra.mxu0 %v304
  %v1251 = vpop.f32.mrf.mxu0
  %v1252 = vadd.f32 %v1211, %v1251
  %v1253 = vpop.f32.mrf.mxu0
  %v1254 = vpop.f32.mrf.mxu0
  %v1255 = vadd.f32 %v1214, %v1254
  %v1256 = vpop.f32.mrf.mxu0
  %1257 = vdwg.mxu0
  %v1258 = vmax.f32 %v1252, 0.0
  %v1259 = vmax.f32 %v1255, 0.0
  %v1260 = vld [vmem:[%s2 + $0x1] sm:$0x1]
  %v1261 = vlaneseq
  %v1262 = vshrl.u32 %v1261, 7
  %v1263 = vsub.s32 0, %v1262
  %v1264 = vrot.slane %v1260, %v1263
  %v1265 = vmul.f32 %v1258, %v1264
  %v1266 = vmul.f32 %v1259, %v1264
  %v1267 = vld [vmem:[%s2 + $0x2] sm:$0x1]
  %v1268 = vlaneseq
  %v1269 = vshrl.u32 %v1268, 7
  %v1270 = vsub.s32 0, %v1269
  %v1271 = vrot.slane %v1267, %v1270
  %v1272 = vadd.f32 %v1265, %v1271
  %v1273 = vadd.f32 %v1266, %v1271
  %v1274 = vpack.c.bf16 %v1273, %v1272
  %v1276 = vunpack.c.l.b16 %v1274
  %v1277 = vunpack.c.h.b16 %v1274
  %v1278 = vpack.c.b16 %v1276, %v1276
  %v1279 = vpack.c.b16 %v1277, %v1277
  %1282 = vst [vmem:[%s3] sm:$0xf] %v1278
  %1283 = vst [vmem:[%s3 + $0x4] sm:$0x1] %v1279
  // Predicated region
  $region14: #{baby_c3d_forward.8} parent=0 // pred_check
    _
  $region15: #{baby_c3d_forward.8} parent=0 // pred_check_branch
    %1285 = sbr.rel (0) target = $region17
  $region16: #{baby_c3d_forward.8} parent=0 // pred_region
    _
  $region17: #{baby_c3d_forward.8} parent=0 // pred_fallthru
    _
  // Predicated region
  $region18: #{baby_c3d_forward.8} parent=0 // pred_check
    _
  $region19: #{baby_c3d_forward.8} parent=0 // pred_check_branch
    %1287 = sbr.rel (0) target = $region21
  $region20: #{baby_c3d_forward.8} parent=0 // pred_region
    _
  $region21: #{baby_c3d_forward.8} parent=0 // pred_fallthru
    _

// kernel: baby_c3d_forward.9
$region0: #{baby_c3d_forward.9}
  #allocation0 [shape = 'u32[]', space=smem, size = 0x4, offset = 0x4, fixed_abs, tag = 'smem constant byte address 0x4 - core index']
  #allocation1 [shape = 'u32[144,128]{1,0:T(1,128)}', space=vmem, size = 0x12000, scoped, tag = 'internal scratch']
  %s0 = inlined_call_operand.vmem [shape: bf16[6,3456], index: 0, kind: input, shape index: {}]
  %s1 = inlined_call_operand.vmem [shape: bf16[3456,256], index: 1, kind: input, shape index: {}]
  %s2 = inlined_call_operand.vmem [shape: f32[3,256], index: 2, kind: input, shape index: {}]
  %s3 = inlined_call_operand.vmem [shape: bf16[6,256], index: 3, kind: output, shape index: {}]
  %s4 = sld [smem:[#allocation0]]
  $region22: #{baby_c3d_forward.9} parent=0
    _
  %s6 = ssub.s32 1, %s4
  %s7 = scalar_select 0, %s6, %s4
  // Predicated region
  $region2: #{baby_c3d_forward.9} parent=0 // pred_check
    _
  $region3: #{baby_c3d_forward.9} parent=0 // pred_check_branch
    %9 = sbr.rel (0) target = $region5
  $region4: #{baby_c3d_forward.9} parent=0 // pred_region
    _
  $region5: #{baby_c3d_forward.9} parent=0 // pred_fallthru
    _
  // Predicated region
  $region6: #{baby_c3d_forward.9} parent=0 // pred_check
    _
  $region7: #{baby_c3d_forward.9} parent=0 // pred_check_branch
    %11 = sbr.rel (0) target = $region9
  $region8: #{baby_c3d_forward.9} parent=0 // pred_region
    _
  $region9: #{baby_c3d_forward.9} parent=0 // pred_fallthru
    _
  // Predicated region
  $region10: #{baby_c3d_forward.9} parent=0 // pred_check
    _
  $region11: #{baby_c3d_forward.9} parent=0 // pred_check_branch
    %13 = sbr.rel (0) target = $region13
  $region12: #{baby_c3d_forward.9} parent=0 // pred_region
    _
  $region13: #{baby_c3d_forward.9} parent=0 // pred_fallthru
    _
  %v15 = vld [vmem:[%s0] sm:$0x77]
  %v16 = vld [vmem:[%s0 + $0x8] sm:$0x77]
  %v17 = vld [vmem:[%s0 + $0x10] sm:$0x77]
  %v18 = vld [vmem:[%s0 + $0x18] sm:$0x77]
  %v19 = vld [vmem:[%s0 + $0x20] sm:$0x77]
  %v20 = vld [vmem:[%s0 + $0x28] sm:$0x77]
  %v21 = vld [vmem:[%s0 + $0x30] sm:$0x77]
  %v22 = vld [vmem:[%s0 + $0x38] sm:$0x77]
  %v23 = vld [vmem:[%s0 + $0x40] sm:$0x77]
  %v24 = vld [vmem:[%s0 + $0x48] sm:$0x77]
  %v25 = vld [vmem:[%s0 + $0x50] sm:$0x77]
  %v26 = vld [vmem:[%s0 + $0x58] sm:$0x77]
  %v27 = vld [vmem:[%s0 + $0x60] sm:$0x77]
  %v28 = vld [vmem:[%s0 + $0x68] sm:$0x7]
  %v29 = vld [vmem:[%s1] sm:$0xff]
  %v30 = vld [vmem:[%s1 + $0x8] sm:$0xff]
  %v31 = vld [vmem:[%s1 + $0x10] sm:$0xff]
  %v32 = vld [vmem:[%s1 + $0x18] sm:$0xff]
  %v33 = vld [vmem:[%s1 + $0x20] sm:$0xff]
  %v34 = vld [vmem:[%s1 + $0x28] sm:$0xff]
  %v35 = vld [vmem:[%s1 + $0x30] sm:$0xff]
  %v36 = vld [vmem:[%s1 + $0x38] sm:$0xff]
  %v37 = vld [vmem:[%s1 + $0x40] sm:$0xff]
  %v38 = vld [vmem:[%s1 + $0x48] sm:$0xff]
  %v39 = vld [vmem:[%s1 + $0x50] sm:$0xff]
  %v40 = vld [vmem:[%s1 + $0x58] sm:$0xff]
  %v41 = vld [vmem:[%s1 + $0x60] sm:$0xff]
  %v42 = vld [vmem:[%s1 + $0x68] sm:$0xff]
  %v43 = vld [vmem:[%s1 + $0x70] sm:$0xff]
  %v44 = vld [vmem:[%s1 + $0x78] sm:$0xff]
  %v45 = vld [vmem:[%s1 + $0x80] sm:$0xff]
  %v46 = vld [vmem:[%s1 + $0x88] sm:$0xff]
  %v47 = vld [vmem:[%s1 + $0x90] sm:$0xff]
  %v48 = vld [vmem:[%s1 + $0x98] sm:$0xff]
  %v49 = vld [vmem:[%s1 + $0xa0] sm:$0xff]
  %v50 = vld [vmem:[%s1 + $0xa8] sm:$0xff]
  %v51 = vld [vmem:[%s1 + $0xb0] sm:$0xff]
  %v52 = vld [vmem:[%s1 + $0xb8] sm:$0xff]
  %v53 = vld [vmem:[%s1 + $0xc0] sm:$0xff]
  %v54 = vld [vmem:[%s1 + $0xc8] sm:$0xff]
  %v55 = vld [vmem:[%s1 + $0xd0] sm:$0xff]
  %v56 = vld [vmem:[%s1 + $0xd8] sm:$0xff]
  %v57 = vld [vmem:[%s1 + $0xe0] sm:$0xff]
  %v58 = vld [vmem:[%s1 + $0xe8] sm:$0xff]
  %v59 = vld [vmem:[%s1 + $0xf0] sm:$0xff]
  %v60 = vld [vmem:[%s1 + $0xf8] sm:$0xff]
  %v61 = vld [vmem:[%s1 + $0x100] sm:$0xff]
  %v62 = vld [vmem:[%s1 + $0x108] sm:$0xff]
  %v63 = vld [vmem:[%s1 + $0x110] sm:$0xff]
  %v64 = vld [vmem:[%s1 + $0x118] sm:$0xff]
  %v65 = vld [vmem:[%s1 + $0x120] sm:$0xff]
  %v66 = vld [vmem:[%s1 + $0x128] sm:$0xff]
  %v67 = vld [vmem:[%s1 + $0x130] sm:$0xff]
  %v68 = vld [vmem:[%s1 + $0x138] sm:$0xff]
  %v69 = vld [vmem:[%s1 + $0x140] sm:$0xff]
  %v70 = vld [vmem:[%s1 + $0x148] sm:$0xff]
  %v71 = vld [vmem:[%s1 + $0x150] sm:$0xff]
  %v72 = vld [vmem:[%s1 + $0x158] sm:$0xff]
  %v73 = vld [vmem:[%s1 + $0x160] sm:$0xff]
  %v74 = vld [vmem:[%s1 + $0x168] sm:$0xff]
  %v75 = vld [vmem:[%s1 + $0x170] sm:$0xff]
  %v76 = vld [vmem:[%s1 + $0x178] sm:$0xff]
  %v77 = vld [vmem:[%s1 + $0x180] sm:$0xff]
  %v78 = vld [vmem:[%s1 + $0x188] sm:$0xff]
  %v79 = vld [vmem:[%s1 + $0x190] sm:$0xff]
  %v80 = vld [vmem:[%s1 + $0x198] sm:$0xff]
  %v81 = vld [vmem:[%s1 + $0x1a0] sm:$0xff]
  %v82 = vld [vmem:[%s1 + $0x1a8] sm:$0xff]
  %v83 = vld [vmem:[%s1 + $0x1b0] sm:$0xff]
  %v84 = vld [vmem:[%s1 + $0x1b8] sm:$0xff]
  %v85 = vld [vmem:[%s1 + $0x1c0] sm:$0xff]
  %v86 = vld [vmem:[%s1 + $0x1c8] sm:$0xff]
  %v87 = vld [vmem:[%s1 + $0x1d0] sm:$0xff]
  %v88 = vld [vmem:[%s1 + $0x1d8] sm:$0xff]
  %v89 = vld [vmem:[%s1 + $0x1e0] sm:$0xff]
  %v90 = vld [vmem:[%s1 + $0x1e8] sm:$0xff]
  %v91 = vld [vmem:[%s1 + $0x1f0] sm:$0xff]
  %v92 = vld [vmem:[%s1 + $0x1f8] sm:$0xff]
  %v93 = vld [vmem:[%s1 + $0x200] sm:$0xff]
  %v94 = vld [vmem:[%s1 + $0x208] sm:$0xff]
  %v95 = vld [vmem:[%s1 + $0x210] sm:$0xff]
  %v96 = vld [vmem:[%s1 + $0x218] sm:$0xff]
  %v97 = vld [vmem:[%s1 + $0x220] sm:$0xff]
  %v98 = vld [vmem:[%s1 + $0x228] sm:$0xff]
  %v99 = vld [vmem:[%s1 + $0x230] sm:$0xff]
  %v100 = vld [vmem:[%s1 + $0x238] sm:$0xff]
  %v101 = vld [vmem:[%s1 + $0x240] sm:$0xff]
  %v102 = vld [vmem:[%s1 + $0x248] sm:$0xff]
  %v103 = vld [vmem:[%s1 + $0x250] sm:$0xff]
  %v104 = vld [vmem:[%s1 + $0x258] sm:$0xff]
  %v105 = vld [vmem:[%s1 + $0x260] sm:$0xff]
  %v106 = vld [vmem:[%s1 + $0x268] sm:$0xff]
  %v107 = vld [vmem:[%s1 + $0x270] sm:$0xff]
  %v108 = vld [vmem:[%s1 + $0x278] sm:$0xff]
  %v109 = vld [vmem:[%s1 + $0x280] sm:$0xff]
  %v110 = vld [vmem:[%s1 + $0x288] sm:$0xff]
  %v111 = vld [vmem:[%s1 + $0x290] sm:$0xff]
  %v112 = vld [vmem:[%s1 + $0x298] sm:$0xff]
  %v113 = vld [vmem:[%s1 + $0x2a0] sm:$0xff]
  %v114 = vld [vmem:[%s1 + $0x2a8] sm:$0xff]
  %v115 = vld [vmem:[%s1 + $0x2b0] sm:$0xff]
  %v116 = vld [vmem:[%s1 + $0x2b8] sm:$0xff]
  %v117 = vld [vmem:[%s1 + $0x2c0] sm:$0xff]
  %v118 = vld [vmem:[%s1 + $0x2c8] sm:$0xff]
  %v119 = vld [vmem:[%s1 + $0x2d0] sm:$0xff]
  %v120 = vld [vmem:[%s1 + $0x2d8] sm:$0xff]
  %v121 = vld [vmem:[%s1 + $0x2e0] sm:$0xff]
  %v122 = vld [vmem:[%s1 + $0x2e8] sm:$0xff]
  %v123 = vld [vmem:[%s1 + $0x2f0] sm:$0xff]
  %v124 = vld [vmem:[%s1 + $0x2f8] sm:$0xff]
  %v125 = vld [vmem:[%s1 + $0x300] sm:$0xff]
  %v126 = vld [vmem:[%s1 + $0x308] sm:$0xff]
  %v127 = vld [vmem:[%s1 + $0x310] sm:$0xff]
  %v128 = vld [vmem:[%s1 + $0x318] sm:$0xff]
  %v129 = vld [vmem:[%s1 + $0x320] sm:$0xff]
  %v130 = vld [vmem:[%s1 + $0x328] sm:$0xff]
  %v131 = vld [vmem:[%s1 + $0x330] sm:$0xff]
  %v132 = vld [vmem:[%s1 + $0x338] sm:$0xff]
  %v133 = vld [vmem:[%s1 + $0x340] sm:$0xff]
  %v134 = vld [vmem:[%s1 + $0x348] sm:$0xff]
  %v135 = vld [vmem:[%s1 + $0x350] sm:$0xff]
  %v136 = vld [vmem:[%s1 + $0x358] sm:$0xff]
  %v137 = vld [vmem:[%s1 + $0x360] sm:$0xff]
  %v138 = vld [vmem:[%s1 + $0x368] sm:$0xff]
  %v139 = vld [vmem:[%s1 + $0x370] sm:$0xff]
  %v140 = vld [vmem:[%s1 + $0x378] sm:$0xff]
  %v141 = vld [vmem:[%s1 + $0x380] sm:$0xff]
  %v142 = vld [vmem:[%s1 + $0x388] sm:$0xff]
  %v143 = vld [vmem:[%s1 + $0x390] sm:$0xff]
  %v144 = vld [vmem:[%s1 + $0x398] sm:$0xff]
  %v145 = vld [vmem:[%s1 + $0x3a0] sm:$0xff]
  %v146 = vld [vmem:[%s1 + $0x3a8] sm:$0xff]
  %v147 = vld [vmem:[%s1 + $0x3b0] sm:$0xff]
  %v148 = vld [vmem:[%s1 + $0x3b8] sm:$0xff]
  %v149 = vld [vmem:[%s1 + $0x3c0] sm:$0xff]
  %v150 = vld [vmem:[%s1 + $0x3c8] sm:$0xff]
  %v151 = vld [vmem:[%s1 + $0x3d0] sm:$0xff]
  %v152 = vld [vmem:[%s1 + $0x3d8] sm:$0xff]
  %v153 = vld [vmem:[%s1 + $0x3e0] sm:$0xff]
  %v154 = vld [vmem:[%s1 + $0x3e8] sm:$0xff]
  %v155 = vld [vmem:[%s1 + $0x3f0] sm:$0xff]
  %v156 = vld [vmem:[%s1 + $0x3f8] sm:$0xff]
  %v157 = vld [vmem:[%s1 + $0x400] sm:$0xff]
  %v158 = vld [vmem:[%s1 + $0x408] sm:$0xff]
  %v159 = vld [vmem:[%s1 + $0x410] sm:$0xff]
  %v160 = vld [vmem:[%s1 + $0x418] sm:$0xff]
  %v161 = vld [vmem:[%s1 + $0x420] sm:$0xff]
  %v162 = vld [vmem:[%s1 + $0x428] sm:$0xff]
  %v163 = vld [vmem:[%s1 + $0x430] sm:$0xff]
  %v164 = vld [vmem:[%s1 + $0x438] sm:$0xff]
  %v165 = vld [vmem:[%s1 + $0x440] sm:$0xff]
  %v166 = vld [vmem:[%s1 + $0x448] sm:$0xff]
  %v167 = vld [vmem:[%s1 + $0x450] sm:$0xff]
  %v168 = vld [vmem:[%s1 + $0x458] sm:$0xff]
  %v169 = vld [vmem:[%s1 + $0x460] sm:$0xff]
  %v170 = vld [vmem:[%s1 + $0x468] sm:$0xff]
  %v171 = vld [vmem:[%s1 + $0x470] sm:$0xff]
  %v172 = vld [vmem:[%s1 + $0x478] sm:$0xff]
  %v173 = vld [vmem:[%s1 + $0x480] sm:$0xff]
  %v174 = vld [vmem:[%s1 + $0x488] sm:$0xff]
  %v175 = vld [vmem:[%s1 + $0x490] sm:$0xff]
  %v176 = vld [vmem:[%s1 + $0x498] sm:$0xff]
  %v177 = vld [vmem:[%s1 + $0x4a0] sm:$0xff]
  %v178 = vld [vmem:[%s1 + $0x4a8] sm:$0xff]
  %v179 = vld [vmem:[%s1 + $0x4b0] sm:$0xff]
  %v180 = vld [vmem:[%s1 + $0x4b8] sm:$0xff]
  %v181 = vld [vmem:[%s1 + $0x4c0] sm:$0xff]
  %v182 = vld [vmem:[%s1 + $0x4c8] sm:$0xff]
  %v183 = vld [vmem:[%s1 + $0x4d0] sm:$0xff]
  %v184 = vld [vmem:[%s1 + $0x4d8] sm:$0xff]
  %v185 = vld [vmem:[%s1 + $0x4e0] sm:$0xff]
  %v186 = vld [vmem:[%s1 + $0x4e8] sm:$0xff]
  %v187 = vld [vmem:[%s1 + $0x4f0] sm:$0xff]
  %v188 = vld [vmem:[%s1 + $0x4f8] sm:$0xff]
  %v189 = vld [vmem:[%s1 + $0x500] sm:$0xff]
  %v190 = vld [vmem:[%s1 + $0x508] sm:$0xff]
  %v191 = vld [vmem:[%s1 + $0x510] sm:$0xff]
  %v192 = vld [vmem:[%s1 + $0x518] sm:$0xff]
  %v193 = vld [vmem:[%s1 + $0x520] sm:$0xff]
  %v194 = vld [vmem:[%s1 + $0x528] sm:$0xff]
  %v195 = vld [vmem:[%s1 + $0x530] sm:$0xff]
  %v196 = vld [vmem:[%s1 + $0x538] sm:$0xff]
  %v197 = vld [vmem:[%s1 + $0x540] sm:$0xff]
  %v198 = vld [vmem:[%s1 + $0x548] sm:$0xff]
  %v199 = vld [vmem:[%s1 + $0x550] sm:$0xff]
  %v200 = vld [vmem:[%s1 + $0x558] sm:$0xff]
  %v201 = vld [vmem:[%s1 + $0x560] sm:$0xff]
  %v202 = vld [vmem:[%s1 + $0x568] sm:$0xff]
  %v203 = vld [vmem:[%s1 + $0x570] sm:$0xff]
  %v204 = vld [vmem:[%s1 + $0x578] sm:$0xff]
  %v205 = vld [vmem:[%s1 + $0x580] sm:$0xff]
  %v206 = vld [vmem:[%s1 + $0x588] sm:$0xff]
  %v207 = vld [vmem:[%s1 + $0x590] sm:$0xff]
  %v208 = vld [vmem:[%s1 + $0x598] sm:$0xff]
  %v209 = vld [vmem:[%s1 + $0x5a0] sm:$0xff]
  %v210 = vld [vmem:[%s1 + $0x5a8] sm:$0xff]
  %v211 = vld [vmem:[%s1 + $0x5b0] sm:$0xff]
  %v212 = vld [vmem:[%s1 + $0x5b8] sm:$0xff]
  %v213 = vld [vmem:[%s1 + $0x5c0] sm:$0xff]
  %v214 = vld [vmem:[%s1 + $0x5c8] sm:$0xff]
  %v215 = vld [vmem:[%s1 + $0x5d0] sm:$0xff]
  %v216 = vld [vmem:[%s1 + $0x5d8] sm:$0xff]
  %v217 = vld [vmem:[%s1 + $0x5e0] sm:$0xff]
  %v218 = vld [vmem:[%s1 + $0x5e8] sm:$0xff]
  %v219 = vld [vmem:[%s1 + $0x5f0] sm:$0xff]
  %v220 = vld [vmem:[%s1 + $0x5f8] sm:$0xff]
  %v221 = vld [vmem:[%s1 + $0x600] sm:$0xff]
  %v222 = vld [vmem:[%s1 + $0x608] sm:$0xff]
  %v223 = vld [vmem:[%s1 + $0x610] sm:$0xff]
  %v224 = vld [vmem:[%s1 + $0x618] sm:$0xff]
  %v225 = vld [vmem:[%s1 + $0x620] sm:$0xff]
  %v226 = vld [vmem:[%s1 + $0x628] sm:$0xff]
  %v227 = vld [vmem:[%s1 + $0x630] sm:$0xff]
  %v228 = vld [vmem:[%s1 + $0x638] sm:$0xff]
  %v229 = vld [vmem:[%s1 + $0x640] sm:$0xff]
  %v230 = vld [vmem:[%s1 + $0x648] sm:$0xff]
  %v231 = vld [vmem:[%s1 + $0x650] sm:$0xff]
  %v232 = vld [vmem:[%s1 + $0x658] sm:$0xff]
  %v233 = vld [vmem:[%s1 + $0x660] sm:$0xff]
  %v234 = vld [vmem:[%s1 + $0x668] sm:$0xff]
  %v235 = vld [vmem:[%s1 + $0x670] sm:$0xff]
  %v236 = vld [vmem:[%s1 + $0x678] sm:$0xff]
  %v237 = vld [vmem:[%s1 + $0x680] sm:$0xff]
  %v238 = vld [vmem:[%s1 + $0x688] sm:$0xff]
  %v239 = vld [vmem:[%s1 + $0x690] sm:$0xff]
  %v240 = vld [vmem:[%s1 + $0x698] sm:$0xff]
  %v241 = vld [vmem:[%s1 + $0x6a0] sm:$0xff]
  %v242 = vld [vmem:[%s1 + $0x6a8] sm:$0xff]
  %v243 = vld [vmem:[%s1 + $0x6b0] sm:$0xff]
  %v244 = vld [vmem:[%s1 + $0x6b8] sm:$0xff]
  %v245 = vld [vmem:[%s1 + $0x6c0] sm:$0xff]
  %v246 = vld [vmem:[%s1 + $0x6c8] sm:$0xff]
  %v247 = vld [vmem:[%s1 + $0x6d0] sm:$0xff]
  %v248 = vld [vmem:[%s1 + $0x6d8] sm:$0xff]
  %v249 = vld [vmem:[%s1 + $0x6e0] sm:$0xff]
  %v250 = vld [vmem:[%s1 + $0x6e8] sm:$0xff]
  %v251 = vld [vmem:[%s1 + $0x6f0] sm:$0xff]
  %v252 = vld [vmem:[%s1 + $0x6f8] sm:$0xff]
  %v253 = vld [vmem:[%s1 + $0x700] sm:$0xff]
  %v254 = vld [vmem:[%s1 + $0x708] sm:$0xff]
  %v255 = vld [vmem:[%s1 + $0x710] sm:$0xff]
  %v256 = vld [vmem:[%s1 + $0x718] sm:$0xff]
  %v257 = vld [vmem:[%s1 + $0x720] sm:$0xff]
  %v258 = vld [vmem:[%s1 + $0x728] sm:$0xff]
  %v259 = vld [vmem:[%s1 + $0x730] sm:$0xff]
  %v260 = vld [vmem:[%s1 + $0x738] sm:$0xff]
  %v261 = vld [vmem:[%s1 + $0x740] sm:$0xff]
  %v262 = vld [vmem:[%s1 + $0x748] sm:$0xff]
  %v263 = vld [vmem:[%s1 + $0x750] sm:$0xff]
  %v264 = vld [vmem:[%s1 + $0x758] sm:$0xff]
  %v265 = vld [vmem:[%s1 + $0x760] sm:$0xff]
  %v266 = vld [vmem:[%s1 + $0x768] sm:$0xff]
  %v267 = vld [vmem:[%s1 + $0x770] sm:$0xff]
  %v268 = vld [vmem:[%s1 + $0x778] sm:$0xff]
  %v269 = vld [vmem:[%s1 + $0x780] sm:$0xff]
  %v270 = vld [vmem:[%s1 + $0x788] sm:$0xff]
  %v271 = vld [vmem:[%s1 + $0x790] sm:$0xff]
  %v272 = vld [vmem:[%s1 + $0x798] sm:$0xff]
  %v273 = vld [vmem:[%s1 + $0x7a0] sm:$0xff]
  %v274 = vld [vmem:[%s1 + $0x7a8] sm:$0xff]
  %v275 = vld [vmem:[%s1 + $0x7b0] sm:$0xff]
  %v276 = vld [vmem:[%s1 + $0x7b8] sm:$0xff]
  %v277 = vld [vmem:[%s1 + $0x7c0] sm:$0xff]
  %v278 = vld [vmem:[%s1 + $0x7c8] sm:$0xff]
  %v279 = vld [vmem:[%s1 + $0x7d0] sm:$0xff]
  %v280 = vld [vmem:[%s1 + $0x7d8] sm:$0xff]
  %v281 = vld [vmem:[%s1 + $0x7e0] sm:$0xff]
  %v282 = vld [vmem:[%s1 + $0x7e8] sm:$0xff]
  %v283 = vld [vmem:[%s1 + $0x7f0] sm:$0xff]
  %v284 = vld [vmem:[%s1 + $0x7f8] sm:$0xff]
  %v285 = vld [vmem:[%s1 + $0x800] sm:$0xff]
  %v286 = vld [vmem:[%s1 + $0x808] sm:$0xff]
  %v287 = vld [vmem:[%s1 + $0x810] sm:$0xff]
  %v288 = vld [vmem:[%s1 + $0x818] sm:$0xff]
  %v289 = vld [vmem:[%s1 + $0x820] sm:$0xff]
  %v290 = vld [vmem:[%s1 + $0x828] sm:$0xff]
  %v291 = vld [vmem:[%s1 + $0x830] sm:$0xff]
  %v292 = vld [vmem:[%s1 + $0x838] sm:$0xff]
  %v293 = vld [vmem:[%s1 + $0x840] sm:$0xff]
  %v294 = vld [vmem:[%s1 + $0x848] sm:$0xff]
  %v295 = vld [vmem:[%s1 + $0x850] sm:$0xff]
  %v296 = vld [vmem:[%s1 + $0x858] sm:$0xff]
  %v297 = vld [vmem:[%s1 + $0x860] sm:$0xff]
  %v298 = vld [vmem:[%s1 + $0x868] sm:$0xff]
  %v299 = vld [vmem:[%s1 + $0x870] sm:$0xff]
  %v300 = vld [vmem:[%s1 + $0x878] sm:$0xff]
  %v301 = vld [vmem:[%s1 + $0x880] sm:$0xff]
  %v302 = vld [vmem:[%s1 + $0x888] sm:$0xff]
  %v303 = vld [vmem:[%s1 + $0x890] sm:$0xff]
  %v304 = vld [vmem:[%s1 + $0x898] sm:$0xff]
  %v305 = vld [vmem:[%s1 + $0x8a0] sm:$0xff]
  %v306 = vld [vmem:[%s1 + $0x8a8] sm:$0xff]
  %v307 = vld [vmem:[%s1 + $0x8b0] sm:$0xff]
  %v308 = vld [vmem:[%s1 + $0x8b8] sm:$0xff]
  %v309 = vld [vmem:[%s1 + $0x8c0] sm:$0xff]
  %v310 = vld [vmem:[%s1 + $0x8c8] sm:$0xff]
  %v311 = vld [vmem:[%s1 + $0x8d0] sm:$0xff]
  %v312 = vld [vmem:[%s1 + $0x8d8] sm:$0xff]
  %v313 = vld [vmem:[%s1 + $0x8e0] sm:$0xff]
  %v314 = vld [vmem:[%s1 + $0x8e8] sm:$0xff]
  %v315 = vld [vmem:[%s1 + $0x8f0] sm:$0xff]
  %v316 = vld [vmem:[%s1 + $0x8f8] sm:$0xff]
  %v317 = vld [vmem:[%s1 + $0x900] sm:$0xff]
  %v318 = vld [vmem:[%s1 + $0x908] sm:$0xff]
  %v319 = vld [vmem:[%s1 + $0x910] sm:$0xff]
  %v320 = vld [vmem:[%s1 + $0x918] sm:$0xff]
  %v321 = vld [vmem:[%s1 + $0x920] sm:$0xff]
  %v322 = vld [vmem:[%s1 + $0x928] sm:$0xff]
  %v323 = vld [vmem:[%s1 + $0x930] sm:$0xff]
  %v324 = vld [vmem:[%s1 + $0x938] sm:$0xff]
  %v325 = vld [vmem:[%s1 + $0x940] sm:$0xff]
  %v326 = vld [vmem:[%s1 + $0x948] sm:$0xff]
  %v327 = vld [vmem:[%s1 + $0x950] sm:$0xff]
  %v328 = vld [vmem:[%s1 + $0x958] sm:$0xff]
  %v329 = vld [vmem:[%s1 + $0x960] sm:$0xff]
  %v330 = vld [vmem:[%s1 + $0x968] sm:$0xff]
  %v331 = vld [vmem:[%s1 + $0x970] sm:$0xff]
  %v332 = vld [vmem:[%s1 + $0x978] sm:$0xff]
  %v333 = vld [vmem:[%s1 + $0x980] sm:$0xff]
  %v334 = vld [vmem:[%s1 + $0x988] sm:$0xff]
  %v335 = vld [vmem:[%s1 + $0x990] sm:$0xff]
  %v336 = vld [vmem:[%s1 + $0x998] sm:$0xff]
  %v337 = vld [vmem:[%s1 + $0x9a0] sm:$0xff]
  %v338 = vld [vmem:[%s1 + $0x9a8] sm:$0xff]
  %v339 = vld [vmem:[%s1 + $0x9b0] sm:$0xff]
  %v340 = vld [vmem:[%s1 + $0x9b8] sm:$0xff]
  %v341 = vld [vmem:[%s1 + $0x9c0] sm:$0xff]
  %v342 = vld [vmem:[%s1 + $0x9c8] sm:$0xff]
  %v343 = vld [vmem:[%s1 + $0x9d0] sm:$0xff]
  %v344 = vld [vmem:[%s1 + $0x9d8] sm:$0xff]
  %v345 = vld [vmem:[%s1 + $0x9e0] sm:$0xff]
  %v346 = vld [vmem:[%s1 + $0x9e8] sm:$0xff]
  %v347 = vld [vmem:[%s1 + $0x9f0] sm:$0xff]
  %v348 = vld [vmem:[%s1 + $0x9f8] sm:$0xff]
  %v349 = vld [vmem:[%s1 + $0xa00] sm:$0xff]
  %v350 = vld [vmem:[%s1 + $0xa08] sm:$0xff]
  %v351 = vld [vmem:[%s1 + $0xa10] sm:$0xff]
  %v352 = vld [vmem:[%s1 + $0xa18] sm:$0xff]
  %v353 = vld [vmem:[%s1 + $0xa20] sm:$0xff]
  %v354 = vld [vmem:[%s1 + $0xa28] sm:$0xff]
  %v355 = vld [vmem:[%s1 + $0xa30] sm:$0xff]
  %v356 = vld [vmem:[%s1 + $0xa38] sm:$0xff]
  %v357 = vld [vmem:[%s1 + $0xa40] sm:$0xff]
  %v358 = vld [vmem:[%s1 + $0xa48] sm:$0xff]
  %v359 = vld [vmem:[%s1 + $0xa50] sm:$0xff]
  %v360 = vld [vmem:[%s1 + $0xa58] sm:$0xff]
  %v361 = vld [vmem:[%s1 + $0xa60] sm:$0xff]
  %v362 = vld [vmem:[%s1 + $0xa68] sm:$0xff]
  %v363 = vld [vmem:[%s1 + $0xa70] sm:$0xff]
  %v364 = vld [vmem:[%s1 + $0xa78] sm:$0xff]
  %v365 = vld [vmem:[%s1 + $0xa80] sm:$0xff]
  %v366 = vld [vmem:[%s1 + $0xa88] sm:$0xff]
  %v367 = vld [vmem:[%s1 + $0xa90] sm:$0xff]
  %v368 = vld [vmem:[%s1 + $0xa98] sm:$0xff]
  %v369 = vld [vmem:[%s1 + $0xaa0] sm:$0xff]
  %v370 = vld [vmem:[%s1 + $0xaa8] sm:$0xff]
  %v371 = vld [vmem:[%s1 + $0xab0] sm:$0xff]
  %v372 = vld [vmem:[%s1 + $0xab8] sm:$0xff]
  %v373 = vld [vmem:[%s1 + $0xac0] sm:$0xff]
  %v374 = vld [vmem:[%s1 + $0xac8] sm:$0xff]
  %v375 = vld [vmem:[%s1 + $0xad0] sm:$0xff]
  %v376 = vld [vmem:[%s1 + $0xad8] sm:$0xff]
  %v377 = vld [vmem:[%s1 + $0xae0] sm:$0xff]
  %v378 = vld [vmem:[%s1 + $0xae8] sm:$0xff]
  %v379 = vld [vmem:[%s1 + $0xaf0] sm:$0xff]
  %v380 = vld [vmem:[%s1 + $0xaf8] sm:$0xff]
  %v381 = vld [vmem:[%s1 + $0xb00] sm:$0xff]
  %v382 = vld [vmem:[%s1 + $0xb08] sm:$0xff]
  %v383 = vld [vmem:[%s1 + $0xb10] sm:$0xff]
  %v384 = vld [vmem:[%s1 + $0xb18] sm:$0xff]
  %v385 = vld [vmem:[%s1 + $0xb20] sm:$0xff]
  %v386 = vld [vmem:[%s1 + $0xb28] sm:$0xff]
  %v387 = vld [vmem:[%s1 + $0xb30] sm:$0xff]
  %v388 = vld [vmem:[%s1 + $0xb38] sm:$0xff]
  %v389 = vld [vmem:[%s1 + $0xb40] sm:$0xff]
  %v390 = vld [vmem:[%s1 + $0xb48] sm:$0xff]
  %v391 = vld [vmem:[%s1 + $0xb50] sm:$0xff]
  %v392 = vld [vmem:[%s1 + $0xb58] sm:$0xff]
  %v393 = vld [vmem:[%s1 + $0xb60] sm:$0xff]
  %v394 = vld [vmem:[%s1 + $0xb68] sm:$0xff]
  %v395 = vld [vmem:[%s1 + $0xb70] sm:$0xff]
  %v396 = vld [vmem:[%s1 + $0xb78] sm:$0xff]
  %v397 = vld [vmem:[%s1 + $0xb80] sm:$0xff]
  %v398 = vld [vmem:[%s1 + $0xb88] sm:$0xff]
  %v399 = vld [vmem:[%s1 + $0xb90] sm:$0xff]
  %v400 = vld [vmem:[%s1 + $0xb98] sm:$0xff]
  %v401 = vld [vmem:[%s1 + $0xba0] sm:$0xff]
  %v402 = vld [vmem:[%s1 + $0xba8] sm:$0xff]
  %v403 = vld [vmem:[%s1 + $0xbb0] sm:$0xff]
  %v404 = vld [vmem:[%s1 + $0xbb8] sm:$0xff]
  %v405 = vld [vmem:[%s1 + $0xbc0] sm:$0xff]
  %v406 = vld [vmem:[%s1 + $0xbc8] sm:$0xff]
  %v407 = vld [vmem:[%s1 + $0xbd0] sm:$0xff]
  %v408 = vld [vmem:[%s1 + $0xbd8] sm:$0xff]
  %v409 = vld [vmem:[%s1 + $0xbe0] sm:$0xff]
  %v410 = vld [vmem:[%s1 + $0xbe8] sm:$0xff]
  %v411 = vld [vmem:[%s1 + $0xbf0] sm:$0xff]
  %v412 = vld [vmem:[%s1 + $0xbf8] sm:$0xff]
  %v413 = vld [vmem:[%s1 + $0xc00] sm:$0xff]
  %v414 = vld [vmem:[%s1 + $0xc08] sm:$0xff]
  %v415 = vld [vmem:[%s1 + $0xc10] sm:$0xff]
  %v416 = vld [vmem:[%s1 + $0xc18] sm:$0xff]
  %v417 = vld [vmem:[%s1 + $0xc20] sm:$0xff]
  %v418 = vld [vmem:[%s1 + $0xc28] sm:$0xff]
  %v419 = vld [vmem:[%s1 + $0xc30] sm:$0xff]
  %v420 = vld [vmem:[%s1 + $0xc38] sm:$0xff]
  %v421 = vld [vmem:[%s1 + $0xc40] sm:$0xff]
  %v422 = vld [vmem:[%s1 + $0xc48] sm:$0xff]
  %v423 = vld [vmem:[%s1 + $0xc50] sm:$0xff]
  %v424 = vld [vmem:[%s1 + $0xc58] sm:$0xff]
  %v425 = vld [vmem:[%s1 + $0xc60] sm:$0xff]
  %v426 = vld [vmem:[%s1 + $0xc68] sm:$0xff]
  %v427 = vld [vmem:[%s1 + $0xc70] sm:$0xff]
  %v428 = vld [vmem:[%s1 + $0xc78] sm:$0xff]
  %v429 = vld [vmem:[%s1 + $0xc80] sm:$0xff]
  %v430 = vld [vmem:[%s1 + $0xc88] sm:$0xff]
  %v431 = vld [vmem:[%s1 + $0xc90] sm:$0xff]
  %v432 = vld [vmem:[%s1 + $0xc98] sm:$0xff]
  %v433 = vld [vmem:[%s1 + $0xca0] sm:$0xff]
  %v434 = vld [vmem:[%s1 + $0xca8] sm:$0xff]
  %v435 = vld [vmem:[%s1 + $0xcb0] sm:$0xff]
  %v436 = vld [vmem:[%s1 + $0xcb8] sm:$0xff]
  %v437 = vld [vmem:[%s1 + $0xcc0] sm:$0xff]
  %v438 = vld [vmem:[%s1 + $0xcc8] sm:$0xff]
  %v439 = vld [vmem:[%s1 + $0xcd0] sm:$0xff]
  %v440 = vld [vmem:[%s1 + $0xcd8] sm:$0xff]
  %v441 = vld [vmem:[%s1 + $0xce0] sm:$0xff]
  %v442 = vld [vmem:[%s1 + $0xce8] sm:$0xff]
  %v443 = vld [vmem:[%s1 + $0xcf0] sm:$0xff]
  %v444 = vld [vmem:[%s1 + $0xcf8] sm:$0xff]
  %v445 = vld [vmem:[%s1 + $0xd00] sm:$0xff]
  %v446 = vld [vmem:[%s1 + $0xd08] sm:$0xff]
  %v447 = vld [vmem:[%s1 + $0xd10] sm:$0xff]
  %v448 = vld [vmem:[%s1 + $0xd18] sm:$0xff]
  %v449 = vld [vmem:[%s1 + $0xd20] sm:$0xff]
  %v450 = vld [vmem:[%s1 + $0xd28] sm:$0xff]
  %v451 = vld [vmem:[%s1 + $0xd30] sm:$0xff]
  %v452 = vld [vmem:[%s1 + $0xd38] sm:$0xff]
  %v453 = vld [vmem:[%s1 + $0xd40] sm:$0xff]
  %v454 = vld [vmem:[%s1 + $0xd48] sm:$0xff]
  %v455 = vld [vmem:[%s1 + $0xd50] sm:$0xff]
  %v456 = vld [vmem:[%s1 + $0xd58] sm:$0xff]
  %v457 = vld [vmem:[%s1 + $0xd60] sm:$0xff]
  %v458 = vld [vmem:[%s1 + $0xd68] sm:$0xff]
  %v459 = vld [vmem:[%s1 + $0xd70] sm:$0xff]
  %v460 = vld [vmem:[%s1 + $0xd78] sm:$0xff]
  %v461 = vld [vmem:[%s2] ss:$4 sm:$0x3]
  %v463 = vlaneseq
  %v464 = vshrl.u32 %v463, 7
  %v465 = vsub.s32 0, %v464
  %v466 = vrot.slane %v461, %v465
  %v467 = vlaneseq
  %v468 = vshrl.u32 %v467, 7
  %v469 = vsub.s32 1, %v468
  %v470 = vrot.slane %v461, %v469
  %v487 = vunpack.c.l.b16 %v15
  %v488 = vunpack.c.h.b16 %v15
  %v489 = vunpack.c.l.b16 %v16
  %v490 = vunpack.c.h.b16 %v16
  %v491 = vunpack.c.l.b16 %v17
  %v492 = vunpack.c.h.b16 %v17
  %v493 = vunpack.c.l.b16 %v18
  %v494 = vunpack.c.h.b16 %v18
  %v495 = vunpack.c.l.b16 %v19
  %v496 = vunpack.c.h.b16 %v19
  %v497 = vunpack.c.l.b16 %v20
  %v498 = vunpack.c.h.b16 %v20
  %v499 = vunpack.c.l.b16 %v21
  %v500 = vunpack.c.h.b16 %v21
  %v501 = vunpack.c.l.b16 %v22
  %v502 = vunpack.c.h.b16 %v22
  %v503 = vunpack.c.l.b16 %v23
  %v504 = vunpack.c.h.b16 %v23
  %v505 = vunpack.c.l.b16 %v24
  %v506 = vunpack.c.h.b16 %v24
  %v507 = vunpack.c.l.b16 %v25
  %v508 = vunpack.c.h.b16 %v25
  %v509 = vunpack.c.l.b16 %v26
  %v510 = vunpack.c.h.b16 %v26
  %v511 = vunpack.c.l.b16 %v27
  %v512 = vunpack.c.h.b16 %v27
  %v513 = vunpack.c.l.b16 %v28
  %v514 = vpack.c.b16 %v487, %v487
  %v515 = vpack.c.b16 %v488, %v488
  %v516 = vpack.c.b16 %v489, %v489
  %v517 = vpack.c.b16 %v490, %v490
  %v518 = vpack.c.b16 %v491, %v491
  %v519 = vpack.c.b16 %v492, %v492
  %v520 = vpack.c.b16 %v493, %v493
  %v521 = vpack.c.b16 %v494, %v494
  %v522 = vpack.c.b16 %v495, %v495
  %v523 = vpack.c.b16 %v496, %v496
  %v524 = vpack.c.b16 %v497, %v497
  %v525 = vpack.c.b16 %v498, %v498
  %v526 = vpack.c.b16 %v499, %v499
  %v527 = vpack.c.b16 %v500, %v500
  %v528 = vpack.c.b16 %v501, %v501
  %v529 = vpack.c.b16 %v502, %v502
  %v530 = vpack.c.b16 %v503, %v503
  %v531 = vpack.c.b16 %v504, %v504
  %v532 = vpack.c.b16 %v505, %v505
  %v533 = vpack.c.b16 %v506, %v506
  %v534 = vpack.c.b16 %v507, %v507
  %v535 = vpack.c.b16 %v508, %v508
  %v536 = vpack.c.b16 %v509, %v509
  %v537 = vpack.c.b16 %v510, %v510
  %v538 = vpack.c.b16 %v511, %v511
  %v539 = vpack.c.b16 %v512, %v512
  %v540 = vpack.c.b16 %v513, %v513
  %v1000 = vunpack.c.l.b16 %v29
  %v1001 = vunpack.c.h.b16 %v29
  %v1002 = vunpack.c.l.b16 %v30
  %v1003 = vunpack.c.h.b16 %v30
  %v1004 = vunpack.c.l.b16 %v31
  %v1005 = vunpack.c.h.b16 %v31
  %v1006 = vunpack.c.l.b16 %v32
  %v1007 = vunpack.c.h.b16 %v32
  %v1008 = vunpack.c.l.b16 %v33
  %v1009 = vunpack.c.h.b16 %v33
  %v1010 = vunpack.c.l.b16 %v34
  %v1011 = vunpack.c.h.b16 %v34
  %v1012 = vunpack.c.l.b16 %v35
  %v1013 = vunpack.c.h.b16 %v35
  %v1014 = vunpack.c.l.b16 %v36
  %v1015 = vunpack.c.h.b16 %v36
  %v1016 = vunpack.c.l.b16 %v37
  %v1017 = vunpack.c.h.b16 %v37
  %v1018 = vunpack.c.l.b16 %v38
  %v1019 = vunpack.c.h.b16 %v38
  %v1020 = vunpack.c.l.b16 %v39
  %v1021 = vunpack.c.h.b16 %v39
  %v1022 = vunpack.c.l.b16 %v40
  %v1023 = vunpack.c.h.b16 %v40
  %v1024 = vunpack.c.l.b16 %v41
  %v1025 = vunpack.c.h.b16 %v41
  %v1026 = vunpack.c.l.b16 %v42
  %v1027 = vunpack.c.h.b16 %v42
  %v1028 = vunpack.c.l.b16 %v43
  %v1029 = vunpack.c.h.b16 %v43
  %v1030 = vunpack.c.l.b16 %v44
  %v1031 = vunpack.c.h.b16 %v44
  %v1032 = vunpack.c.l.b16 %v45
  %v1033 = vunpack.c.h.b16 %v45
  %v1034 = vunpack.c.l.b16 %v46
  %v1035 = vunpack.c.h.b16 %v46
  %v1036 = vunpack.c.l.b16 %v47
  %v1037 = vunpack.c.h.b16 %v47
  %v1038 = vunpack.c.l.b16 %v48
  %v1039 = vunpack.c.h.b16 %v48
  %v1040 = vunpack.c.l.b16 %v49
  %v1041 = vunpack.c.h.b16 %v49
  %v1042 = vunpack.c.l.b16 %v50
  %v1043 = vunpack.c.h.b16 %v50
  %v1044 = vunpack.c.l.b16 %v51
  %v1045 = vunpack.c.h.b16 %v51
  %v1046 = vunpack.c.l.b16 %v52
  %v1047 = vunpack.c.h.b16 %v52
  %v1048 = vunpack.c.l.b16 %v53
  %v1049 = vunpack.c.h.b16 %v53
  %v1050 = vunpack.c.l.b16 %v54
  %v1051 = vunpack.c.h.b16 %v54
  %v1052 = vunpack.c.l.b16 %v55
  %v1053 = vunpack.c.h.b16 %v55
  %v1054 = vunpack.c.l.b16 %v56
  %v1055 = vunpack.c.h.b16 %v56
  %v1056 = vunpack.c.l.b16 %v57
  %v1057 = vunpack.c.h.b16 %v57
  %v1058 = vunpack.c.l.b16 %v58
  %v1059 = vunpack.c.h.b16 %v58
  %v1060 = vunpack.c.l.b16 %v59
  %v1061 = vunpack.c.h.b16 %v59
  %v1062 = vunpack.c.l.b16 %v60
  %v1063 = vunpack.c.h.b16 %v60
  %v1064 = vunpack.c.l.b16 %v61
  %v1065 = vunpack.c.h.b16 %v61
  %v1066 = vunpack.c.l.b16 %v62
  %v1067 = vunpack.c.h.b16 %v62
  %v1068 = vunpack.c.l.b16 %v63
  %v1069 = vunpack.c.h.b16 %v63
  %v1070 = vunpack.c.l.b16 %v64
  %v1071 = vunpack.c.h.b16 %v64
  %v1072 = vunpack.c.l.b16 %v65
  %v1073 = vunpack.c.h.b16 %v65
  %v1074 = vunpack.c.l.b16 %v66
  %v1075 = vunpack.c.h.b16 %v66
  %v1076 = vunpack.c.l.b16 %v67
  %v1077 = vunpack.c.h.b16 %v67
  %v1078 = vunpack.c.l.b16 %v68
  %v1079 = vunpack.c.h.b16 %v68
  %v1080 = vunpack.c.l.b16 %v69
  %v1081 = vunpack.c.h.b16 %v69
  %v1082 = vunpack.c.l.b16 %v70
  %v1083 = vunpack.c.h.b16 %v70
  %v1084 = vunpack.c.l.b16 %v71
  %v1085 = vunpack.c.h.b16 %v71
  %v1086 = vunpack.c.l.b16 %v72
  %v1087 = vunpack.c.h.b16 %v72
  %v1088 = vunpack.c.l.b16 %v73
  %v1089 = vunpack.c.h.b16 %v73
  %v1090 = vunpack.c.l.b16 %v74
  %v1091 = vunpack.c.h.b16 %v74
  %v1092 = vunpack.c.l.b16 %v75
  %v1093 = vunpack.c.h.b16 %v75
  %v1094 = vunpack.c.l.b16 %v76
  %v1095 = vunpack.c.h.b16 %v76
  %v1096 = vunpack.c.l.b16 %v77
  %v1097 = vunpack.c.h.b16 %v77
  %v1098 = vunpack.c.l.b16 %v78
  %v1099 = vunpack.c.h.b16 %v78
  %v1100 = vunpack.c.l.b16 %v79
  %v1101 = vunpack.c.h.b16 %v79
  %v1102 = vunpack.c.l.b16 %v80
  %v1103 = vunpack.c.h.b16 %v80
  %v1104 = vunpack.c.l.b16 %v81
  %v1105 = vunpack.c.h.b16 %v81
  %v1106 = vunpack.c.l.b16 %v82
  %v1107 = vunpack.c.h.b16 %v82
  %v1108 = vunpack.c.l.b16 %v83
  %v1109 = vunpack.c.h.b16 %v83
  %v1110 = vunpack.c.l.b16 %v84
  %v1111 = vunpack.c.h.b16 %v84
  %v1112 = vunpack.c.l.b16 %v85
  %v1113 = vunpack.c.h.b16 %v85
  %v1114 = vunpack.c.l.b16 %v86
  %v1115 = vunpack.c.h.b16 %v86
  %v1116 = vunpack.c.l.b16 %v87
  %v1117 = vunpack.c.h.b16 %v87
  %v1118 = vunpack.c.l.b16 %v88
  %v1119 = vunpack.c.h.b16 %v88
  %v1120 = vunpack.c.l.b16 %v89
  %v1121 = vunpack.c.h.b16 %v89
  %v1122 = vunpack.c.l.b16 %v90
  %v1123 = vunpack.c.h.b16 %v90
  %v1124 = vunpack.c.l.b16 %v91
  %v1125 = vunpack.c.h.b16 %v91
  %v1126 = vunpack.c.l.b16 %v92
  %v1127 = vunpack.c.h.b16 %v92
  %v1128 = vunpack.c.l.b16 %v93
  %v1129 = vunpack.c.h.b16 %v93
  %v1130 = vunpack.c.l.b16 %v94
  %v1131 = vunpack.c.h.b16 %v94
  %v1132 = vunpack.c.l.b16 %v95
  %v1133 = vunpack.c.h.b16 %v95
  %v1134 = vunpack.c.l.b16 %v96
  %v1135 = vunpack.c.h.b16 %v96
  %v1136 = vunpack.c.l.b16 %v97
  %v1137 = vunpack.c.h.b16 %v97
  %v1138 = vunpack.c.l.b16 %v98
  %v1139 = vunpack.c.h.b16 %v98
  %v1140 = vunpack.c.l.b16 %v99
  %v1141 = vunpack.c.h.b16 %v99
  %v1142 = vunpack.c.l.b16 %v100
  %v1143 = vunpack.c.h.b16 %v100
  %v1144 = vunpack.c.l.b16 %v101
  %v1145 = vunpack.c.h.b16 %v101
  %v1146 = vunpack.c.l.b16 %v102
  %v1147 = vunpack.c.h.b16 %v102
  %v1148 = vunpack.c.l.b16 %v103
  %v1149 = vunpack.c.h.b16 %v103
  %v1150 = vunpack.c.l.b16 %v104
  %v1151 = vunpack.c.h.b16 %v104
  %v1152 = vunpack.c.l.b16 %v105
  %v1153 = vunpack.c.h.b16 %v105
  %v1154 = vunpack.c.l.b16 %v106
  %v1155 = vunpack.c.h.b16 %v106
  %v1156 = vunpack.c.l.b16 %v107
  %v1157 = vunpack.c.h.b16 %v107
  %v1158 = vunpack.c.l.b16 %v108
  %v1159 = vunpack.c.h.b16 %v108
  %v1160 = vunpack.c.l.b16 %v109
  %v1161 = vunpack.c.h.b16 %v109
  %v1162 = vunpack.c.l.b16 %v110
  %v1163 = vunpack.c.h.b16 %v110
  %v1164 = vunpack.c.l.b16 %v111
  %v1165 = vunpack.c.h.b16 %v111
  %v1166 = vunpack.c.l.b16 %v112
  %v1167 = vunpack.c.h.b16 %v112
  %v1168 = vunpack.c.l.b16 %v113
  %v1169 = vunpack.c.h.b16 %v113
  %v1170 = vunpack.c.l.b16 %v114
  %v1171 = vunpack.c.h.b16 %v114
  %v1172 = vunpack.c.l.b16 %v115
  %v1173 = vunpack.c.h.b16 %v115
  %v1174 = vunpack.c.l.b16 %v116
  %v1175 = vunpack.c.h.b16 %v116
  %v1176 = vunpack.c.l.b16 %v117
  %v1177 = vunpack.c.h.b16 %v117
  %v1178 = vunpack.c.l.b16 %v118
  %v1179 = vunpack.c.h.b16 %v118
  %v1180 = vunpack.c.l.b16 %v119
  %v1181 = vunpack.c.h.b16 %v119
  %v1182 = vunpack.c.l.b16 %v120
  %v1183 = vunpack.c.h.b16 %v120
  %v1184 = vunpack.c.l.b16 %v121
  %v1185 = vunpack.c.h.b16 %v121
  %v1186 = vunpack.c.l.b16 %v122
  %v1187 = vunpack.c.h.b16 %v122
  %v1188 = vunpack.c.l.b16 %v123
  %v1189 = vunpack.c.h.b16 %v123
  %v1190 = vunpack.c.l.b16 %v124
  %v1191 = vunpack.c.h.b16 %v124
  %v1192 = vunpack.c.l.b16 %v125
  %v1193 = vunpack.c.h.b16 %v125
  %v1194 = vunpack.c.l.b16 %v126
  %v1195 = vunpack.c.h.b16 %v126
  %v1196 = vunpack.c.l.b16 %v127
  %v1197 = vunpack.c.h.b16 %v127
  %v1198 = vunpack.c.l.b16 %v128
  %v1199 = vunpack.c.h.b16 %v128
  %v1200 = vunpack.c.l.b16 %v129
  %v1201 = vunpack.c.h.b16 %v129
  %v1202 = vunpack.c.l.b16 %v130
  %v1203 = vunpack.c.h.b16 %v130
  %v1204 = vunpack.c.l.b16 %v131
  %v1205 = vunpack.c.h.b16 %v131
  %v1206 = vunpack.c.l.b16 %v132
  %v1207 = vunpack.c.h.b16 %v132
  %v1208 = vunpack.c.l.b16 %v133
  %v1209 = vunpack.c.h.b16 %v133
  %v1210 = vunpack.c.l.b16 %v134
  %v1211 = vunpack.c.h.b16 %v134
  %v1212 = vunpack.c.l.b16 %v135
  %v1213 = vunpack.c.h.b16 %v135
  %v1214 = vunpack.c.l.b16 %v136
  %v1215 = vunpack.c.h.b16 %v136
  %v1216 = vunpack.c.l.b16 %v137
  %v1217 = vunpack.c.h.b16 %v137
  %v1218 = vunpack.c.l.b16 %v138
  %v1219 = vunpack.c.h.b16 %v138
  %v1220 = vunpack.c.l.b16 %v139
  %v1221 = vunpack.c.h.b16 %v139
  %v1222 = vunpack.c.l.b16 %v140
  %v1223 = vunpack.c.h.b16 %v140
  %v1224 = vunpack.c.l.b16 %v141
  %v1225 = vunpack.c.h.b16 %v141
  %v1226 = vunpack.c.l.b16 %v142
  %v1227 = vunpack.c.h.b16 %v142
  %v1228 = vunpack.c.l.b16 %v143
  %v1229 = vunpack.c.h.b16 %v143
  %v1230 = vunpack.c.l.b16 %v144
  %v1231 = vunpack.c.h.b16 %v144
  %v1232 = vunpack.c.l.b16 %v145
  %v1233 = vunpack.c.h.b16 %v145
  %v1234 = vunpack.c.l.b16 %v146
  %v1235 = vunpack.c.h.b16 %v146
  %v1236 = vunpack.c.l.b16 %v147
  %v1237 = vunpack.c.h.b16 %v147
  %v1238 = vunpack.c.l.b16 %v148
  %v1239 = vunpack.c.h.b16 %v148
  %v1240 = vunpack.c.l.b16 %v149
  %v1241 = vunpack.c.h.b16 %v149
  %v1242 = vunpack.c.l.b16 %v150
  %v1243 = vunpack.c.h.b16 %v150
  %v1244 = vunpack.c.l.b16 %v151
  %v1245 = vunpack.c.h.b16 %v151
  %v1246 = vunpack.c.l.b16 %v152
  %v1247 = vunpack.c.h.b16 %v152
  %v1248 = vunpack.c.l.b16 %v153
  %v1249 = vunpack.c.h.b16 %v153
  %v1250 = vunpack.c.l.b16 %v154
  %v1251 = vunpack.c.h.b16 %v154
  %v1252 = vunpack.c.l.b16 %v155
  %v1253 = vunpack.c.h.b16 %v155
  %v1254 = vunpack.c.l.b16 %v156
  %v1255 = vunpack.c.h.b16 %v156
  %v1256 = vunpack.c.l.b16 %v157
  %v1257 = vunpack.c.h.b16 %v157
  %v1258 = vunpack.c.l.b16 %v158
  %v1259 = vunpack.c.h.b16 %v158
  %v1260 = vunpack.c.l.b16 %v159
  %v1261 = vunpack.c.h.b16 %v159
  %v1262 = vunpack.c.l.b16 %v160
  %v1263 = vunpack.c.h.b16 %v160
  %v1264 = vunpack.c.l.b16 %v161
  %v1265 = vunpack.c.h.b16 %v161
  %v1266 = vunpack.c.l.b16 %v162
  %v1267 = vunpack.c.h.b16 %v162
  %v1268 = vunpack.c.l.b16 %v163
  %v1269 = vunpack.c.h.b16 %v163
  %v1270 = vunpack.c.l.b16 %v164
  %v1271 = vunpack.c.h.b16 %v164
  %v1272 = vunpack.c.l.b16 %v165
  %v1273 = vunpack.c.h.b16 %v165
  %v1274 = vunpack.c.l.b16 %v166
  %v1275 = vunpack.c.h.b16 %v166
  %v1276 = vunpack.c.l.b16 %v167
  %v1277 = vunpack.c.h.b16 %v167
  %v1278 = vunpack.c.l.b16 %v168
  %v1279 = vunpack.c.h.b16 %v168
  %v1280 = vunpack.c.l.b16 %v169
  %v1281 = vunpack.c.h.b16 %v169
  %v1282 = vunpack.c.l.b16 %v170
  %v1283 = vunpack.c.h.b16 %v170
  %v1284 = vunpack.c.l.b16 %v171
  %v1285 = vunpack.c.h.b16 %v171
  %v1286 = vunpack.c.l.b16 %v172
  %v1287 = vunpack.c.h.b16 %v172
  %v1288 = vunpack.c.l.b16 %v173
  %v1289 = vunpack.c.h.b16 %v173
  %v1290 = vunpack.c.l.b16 %v174
  %v1291 = vunpack.c.h.b16 %v174
  %v1292 = vunpack.c.l.b16 %v175
  %v1293 = vunpack.c.h.b16 %v175
  %v1294 = vunpack.c.l.b16 %v176
  %v1295 = vunpack.c.h.b16 %v176
  %v1296 = vunpack.c.l.b16 %v177
  %v1297 = vunpack.c.h.b16 %v177
  %v1298 = vunpack.c.l.b16 %v178
  %v1299 = vunpack.c.h.b16 %v178
  %v1300 = vunpack.c.l.b16 %v179
  %v1301 = vunpack.c.h.b16 %v179
  %v1302 = vunpack.c.l.b16 %v180
  %v1303 = vunpack.c.h.b16 %v180
  %v1304 = vunpack.c.l.b16 %v181
  %v1305 = vunpack.c.h.b16 %v181
  %v1306 = vunpack.c.l.b16 %v182
  %v1307 = vunpack.c.h.b16 %v182
  %v1308 = vunpack.c.l.b16 %v183
  %v1309 = vunpack.c.h.b16 %v183
  %v1310 = vunpack.c.l.b16 %v184
  %v1311 = vunpack.c.h.b16 %v184
  %v1312 = vunpack.c.l.b16 %v185
  %v1313 = vunpack.c.h.b16 %v185
  %v1314 = vunpack.c.l.b16 %v186
  %v1315 = vunpack.c.h.b16 %v186
  %v1316 = vunpack.c.l.b16 %v187
  %v1317 = vunpack.c.h.b16 %v187
  %v1318 = vunpack.c.l.b16 %v188
  %v1319 = vunpack.c.h.b16 %v188
  %v1320 = vunpack.c.l.b16 %v189
  %v1321 = vunpack.c.h.b16 %v189
  %v1322 = vunpack.c.l.b16 %v190
  %v1323 = vunpack.c.h.b16 %v190
  %v1324 = vunpack.c.l.b16 %v191
  %v1325 = vunpack.c.h.b16 %v191
  %v1326 = vunpack.c.l.b16 %v192
  %v1327 = vunpack.c.h.b16 %v192
  %v1328 = vunpack.c.l.b16 %v193
  %v1329 = vunpack.c.h.b16 %v193
  %v1330 = vunpack.c.l.b16 %v194
  %v1331 = vunpack.c.h.b16 %v194
  %v1332 = vunpack.c.l.b16 %v195
  %v1333 = vunpack.c.h.b16 %v195
  %v1334 = vunpack.c.l.b16 %v196
  %v1335 = vunpack.c.h.b16 %v196
  %v1336 = vunpack.c.l.b16 %v197
  %v1337 = vunpack.c.h.b16 %v197
  %v1338 = vunpack.c.l.b16 %v198
  %v1339 = vunpack.c.h.b16 %v198
  %v1340 = vunpack.c.l.b16 %v199
  %v1341 = vunpack.c.h.b16 %v199
  %v1342 = vunpack.c.l.b16 %v200
  %v1343 = vunpack.c.h.b16 %v200
  %v1344 = vunpack.c.l.b16 %v201
  %v1345 = vunpack.c.h.b16 %v201
  %v1346 = vunpack.c.l.b16 %v202
  %v1347 = vunpack.c.h.b16 %v202
  %v1348 = vunpack.c.l.b16 %v203
  %v1349 = vunpack.c.h.b16 %v203
  %v1350 = vunpack.c.l.b16 %v204
  %v1351 = vunpack.c.h.b16 %v204
  %v1352 = vunpack.c.l.b16 %v205
  %v1353 = vunpack.c.h.b16 %v205
  %v1354 = vunpack.c.l.b16 %v206
  %v1355 = vunpack.c.h.b16 %v206
  %v1356 = vunpack.c.l.b16 %v207
  %v1357 = vunpack.c.h.b16 %v207
  %v1358 = vunpack.c.l.b16 %v208
  %v1359 = vunpack.c.h.b16 %v208
  %v1360 = vunpack.c.l.b16 %v209
  %v1361 = vunpack.c.h.b16 %v209
  %v1362 = vunpack.c.l.b16 %v210
  %v1363 = vunpack.c.h.b16 %v210
  %v1364 = vunpack.c.l.b16 %v211
  %v1365 = vunpack.c.h.b16 %v211
  %v1366 = vunpack.c.l.b16 %v212
  %v1367 = vunpack.c.h.b16 %v212
  %v1368 = vunpack.c.l.b16 %v213
  %v1369 = vunpack.c.h.b16 %v213
  %v1370 = vunpack.c.l.b16 %v214
  %v1371 = vunpack.c.h.b16 %v214
  %v1372 = vunpack.c.l.b16 %v215
  %v1373 = vunpack.c.h.b16 %v215
  %v1374 = vunpack.c.l.b16 %v216
  %v1375 = vunpack.c.h.b16 %v216
  %v1376 = vunpack.c.l.b16 %v217
  %v1377 = vunpack.c.h.b16 %v217
  %v1378 = vunpack.c.l.b16 %v218
  %v1379 = vunpack.c.h.b16 %v218
  %v1380 = vunpack.c.l.b16 %v219
  %v1381 = vunpack.c.h.b16 %v219
  %v1382 = vunpack.c.l.b16 %v220
  %v1383 = vunpack.c.h.b16 %v220
  %v1384 = vunpack.c.l.b16 %v221
  %v1385 = vunpack.c.h.b16 %v221
  %v1386 = vunpack.c.l.b16 %v222
  %v1387 = vunpack.c.h.b16 %v222
  %v1388 = vunpack.c.l.b16 %v223
  %v1389 = vunpack.c.h.b16 %v223
  %v1390 = vunpack.c.l.b16 %v224
  %v1391 = vunpack.c.h.b16 %v224
  %v1392 = vunpack.c.l.b16 %v225
  %v1393 = vunpack.c.h.b16 %v225
  %v1394 = vunpack.c.l.b16 %v226
  %v1395 = vunpack.c.h.b16 %v226
  %v1396 = vunpack.c.l.b16 %v227
  %v1397 = vunpack.c.h.b16 %v227
  %v1398 = vunpack.c.l.b16 %v228
  %v1399 = vunpack.c.h.b16 %v228
  %v1400 = vunpack.c.l.b16 %v229
  %v1401 = vunpack.c.h.b16 %v229
  %v1402 = vunpack.c.l.b16 %v230
  %v1403 = vunpack.c.h.b16 %v230
  %v1404 = vunpack.c.l.b16 %v231
  %v1405 = vunpack.c.h.b16 %v231
  %v1406 = vunpack.c.l.b16 %v232
  %v1407 = vunpack.c.h.b16 %v232
  %v1408 = vunpack.c.l.b16 %v233
  %v1409 = vunpack.c.h.b16 %v233
  %v1410 = vunpack.c.l.b16 %v234
  %v1411 = vunpack.c.h.b16 %v234
  %v1412 = vunpack.c.l.b16 %v235
  %v1413 = vunpack.c.h.b16 %v235
  %v1414 = vunpack.c.l.b16 %v236
  %v1415 = vunpack.c.h.b16 %v236
  %v1416 = vunpack.c.l.b16 %v237
  %v1417 = vunpack.c.h.b16 %v237
  %v1418 = vunpack.c.l.b16 %v238
  %v1419 = vunpack.c.h.b16 %v238
  %v1420 = vunpack.c.l.b16 %v239
  %v1421 = vunpack.c.h.b16 %v239
  %v1422 = vunpack.c.l.b16 %v240
  %v1423 = vunpack.c.h.b16 %v240
  %v1424 = vunpack.c.l.b16 %v241
  %v1425 = vunpack.c.h.b16 %v241
  %v1426 = vunpack.c.l.b16 %v242
  %v1427 = vunpack.c.h.b16 %v242
  %v1428 = vunpack.c.l.b16 %v243
  %v1429 = vunpack.c.h.b16 %v243
  %v1430 = vunpack.c.l.b16 %v244
  %v1431 = vunpack.c.h.b16 %v244
  %v1432 = vunpack.c.l.b16 %v245
  %v1433 = vunpack.c.h.b16 %v245
  %v1434 = vunpack.c.l.b16 %v246
  %v1435 = vunpack.c.h.b16 %v246
  %v1436 = vunpack.c.l.b16 %v247
  %v1437 = vunpack.c.h.b16 %v247
  %v1438 = vunpack.c.l.b16 %v248
  %v1439 = vunpack.c.h.b16 %v248
  %v1440 = vunpack.c.l.b16 %v249
  %v1441 = vunpack.c.h.b16 %v249
  %v1442 = vunpack.c.l.b16 %v250
  %v1443 = vunpack.c.h.b16 %v250
  %v1444 = vunpack.c.l.b16 %v251
  %v1445 = vunpack.c.h.b16 %v251
  %v1446 = vunpack.c.l.b16 %v252
  %v1447 = vunpack.c.h.b16 %v252
  %v1448 = vunpack.c.l.b16 %v253
  %v1449 = vunpack.c.h.b16 %v253
  %v1450 = vunpack.c.l.b16 %v254
  %v1451 = vunpack.c.h.b16 %v254
  %v1452 = vunpack.c.l.b16 %v255
  %v1453 = vunpack.c.h.b16 %v255
  %v1454 = vunpack.c.l.b16 %v256
  %v1455 = vunpack.c.h.b16 %v256
  %v1456 = vunpack.c.l.b16 %v257
  %v1457 = vunpack.c.h.b16 %v257
  %v1458 = vunpack.c.l.b16 %v258
  %v1459 = vunpack.c.h.b16 %v258
  %v1460 = vunpack.c.l.b16 %v259
  %v1461 = vunpack.c.h.b16 %v259
  %v1462 = vunpack.c.l.b16 %v260
  %v1463 = vunpack.c.h.b16 %v260
  %v1464 = vunpack.c.l.b16 %v261
  %v1465 = vunpack.c.h.b16 %v261
  %v1466 = vunpack.c.l.b16 %v262
  %v1467 = vunpack.c.h.b16 %v262
  %v1468 = vunpack.c.l.b16 %v263
  %v1469 = vunpack.c.h.b16 %v263
  %v1470 = vunpack.c.l.b16 %v264
  %v1471 = vunpack.c.h.b16 %v264
  %v1472 = vunpack.c.l.b16 %v265
  %v1473 = vunpack.c.h.b16 %v265
  %v1474 = vunpack.c.l.b16 %v266
  %v1475 = vunpack.c.h.b16 %v266
  %v1476 = vunpack.c.l.b16 %v267
  %v1477 = vunpack.c.h.b16 %v267
  %v1478 = vunpack.c.l.b16 %v268
  %v1479 = vunpack.c.h.b16 %v268
  %v1480 = vunpack.c.l.b16 %v269
  %v1481 = vunpack.c.h.b16 %v269
  %v1482 = vunpack.c.l.b16 %v270
  %v1483 = vunpack.c.h.b16 %v270
  %v1484 = vunpack.c.l.b16 %v271
  %v1485 = vunpack.c.h.b16 %v271
  %v1486 = vunpack.c.l.b16 %v272
  %v1487 = vunpack.c.h.b16 %v272
  %v1488 = vunpack.c.l.b16 %v273
  %v1489 = vunpack.c.h.b16 %v273
  %v1490 = vunpack.c.l.b16 %v274
  %v1491 = vunpack.c.h.b16 %v274
  %v1492 = vunpack.c.l.b16 %v275
  %v1493 = vunpack.c.h.b16 %v275
  %v1494 = vunpack.c.l.b16 %v276
  %v1495 = vunpack.c.h.b16 %v276
  %v1496 = vunpack.c.l.b16 %v277
  %v1497 = vunpack.c.h.b16 %v277
  %v1498 = vunpack.c.l.b16 %v278
  %v1499 = vunpack.c.h.b16 %v278
  %v1500 = vunpack.c.l.b16 %v279
  %v1501 = vunpack.c.h.b16 %v279
  %v1502 = vunpack.c.l.b16 %v280
  %v1503 = vunpack.c.h.b16 %v280
  %v1504 = vunpack.c.l.b16 %v281
  %v1505 = vunpack.c.h.b16 %v281
  %v1506 = vunpack.c.l.b16 %v282
  %v1507 = vunpack.c.h.b16 %v282
  %v1508 = vunpack.c.l.b16 %v283
  %v1509 = vunpack.c.h.b16 %v283
  %v1510 = vunpack.c.l.b16 %v284
  %v1511 = vunpack.c.h.b16 %v284
  %v1512 = vunpack.c.l.b16 %v285
  %v1513 = vunpack.c.h.b16 %v285
  %v1514 = vunpack.c.l.b16 %v286
  %v1515 = vunpack.c.h.b16 %v286
  %v1516 = vunpack.c.l.b16 %v287
  %v1517 = vunpack.c.h.b16 %v287
  %v1518 = vunpack.c.l.b16 %v288
  %v1519 = vunpack.c.h.b16 %v288
  %v1520 = vunpack.c.l.b16 %v289
  %v1521 = vunpack.c.h.b16 %v289
  %v1522 = vunpack.c.l.b16 %v290
  %v1523 = vunpack.c.h.b16 %v290
  %v1524 = vunpack.c.l.b16 %v291
  %v1525 = vunpack.c.h.b16 %v291
  %v1526 = vunpack.c.l.b16 %v292
  %v1527 = vunpack.c.h.b16 %v292
  %v1528 = vunpack.c.l.b16 %v293
  %v1529 = vunpack.c.h.b16 %v293
  %v1530 = vunpack.c.l.b16 %v294
  %v1531 = vunpack.c.h.b16 %v294
  %v1532 = vunpack.c.l.b16 %v295
  %v1533 = vunpack.c.h.b16 %v295
  %v1534 = vunpack.c.l.b16 %v296
  %v1535 = vunpack.c.h.b16 %v296
  %v1536 = vunpack.c.l.b16 %v297
  %v1537 = vunpack.c.h.b16 %v297
  %v1538 = vunpack.c.l.b16 %v298
  %v1539 = vunpack.c.h.b16 %v298
  %v1540 = vunpack.c.l.b16 %v299
  %v1541 = vunpack.c.h.b16 %v299
  %v1542 = vunpack.c.l.b16 %v300
  %v1543 = vunpack.c.h.b16 %v300
  %v1544 = vunpack.c.l.b16 %v301
  %v1545 = vunpack.c.h.b16 %v301
  %v1546 = vunpack.c.l.b16 %v302
  %v1547 = vunpack.c.h.b16 %v302
  %v1548 = vunpack.c.l.b16 %v303
  %v1549 = vunpack.c.h.b16 %v303
  %v1550 = vunpack.c.l.b16 %v304
  %v1551 = vunpack.c.h.b16 %v304
  %v1552 = vunpack.c.l.b16 %v305
  %v1553 = vunpack.c.h.b16 %v305
  %v1554 = vunpack.c.l.b16 %v306
  %v1555 = vunpack.c.h.b16 %v306
  %v1556 = vunpack.c.l.b16 %v307
  %v1557 = vunpack.c.h.b16 %v307
  %v1558 = vunpack.c.l.b16 %v308
  %v1559 = vunpack.c.h.b16 %v308
  %v1560 = vunpack.c.l.b16 %v309
  %v1561 = vunpack.c.h.b16 %v309
  %v1562 = vunpack.c.l.b16 %v310
  %v1563 = vunpack.c.h.b16 %v310
  %v1564 = vunpack.c.l.b16 %v311
  %v1565 = vunpack.c.h.b16 %v311
  %v1566 = vunpack.c.l.b16 %v312
  %v1567 = vunpack.c.h.b16 %v312
  %v1568 = vunpack.c.l.b16 %v313
  %v1569 = vunpack.c.h.b16 %v313
  %v1570 = vunpack.c.l.b16 %v314
  %v1571 = vunpack.c.h.b16 %v314
  %v1572 = vunpack.c.l.b16 %v315
  %v1573 = vunpack.c.h.b16 %v315
  %v1574 = vunpack.c.l.b16 %v316
  %v1575 = vunpack.c.h.b16 %v316
  %v1576 = vunpack.c.l.b16 %v317
  %v1577 = vunpack.c.h.b16 %v317
  %v1578 = vunpack.c.l.b16 %v318
  %v1579 = vunpack.c.h.b16 %v318
  %v1580 = vunpack.c.l.b16 %v319
  %v1581 = vunpack.c.h.b16 %v319
  %v1582 = vunpack.c.l.b16 %v320
  %v1583 = vunpack.c.h.b16 %v320
  %v1584 = vunpack.c.l.b16 %v321
  %v1585 = vunpack.c.h.b16 %v321
  %v1586 = vunpack.c.l.b16 %v322
  %v1587 = vunpack.c.h.b16 %v322
  %v1588 = vunpack.c.l.b16 %v323
  %v1589 = vunpack.c.h.b16 %v323
  %v1590 = vunpack.c.l.b16 %v324
  %v1591 = vunpack.c.h.b16 %v324
  %v1592 = vunpack.c.l.b16 %v325
  %v1593 = vunpack.c.h.b16 %v325
  %v1594 = vunpack.c.l.b16 %v326
  %v1595 = vunpack.c.h.b16 %v326
  %v1596 = vunpack.c.l.b16 %v327
  %v1597 = vunpack.c.h.b16 %v327
  %v1598 = vunpack.c.l.b16 %v328
  %v1599 = vunpack.c.h.b16 %v328
  %v1600 = vunpack.c.l.b16 %v329
  %v1601 = vunpack.c.h.b16 %v329
  %v1602 = vunpack.c.l.b16 %v330
  %v1603 = vunpack.c.h.b16 %v330
  %v1604 = vunpack.c.l.b16 %v331
  %v1605 = vunpack.c.h.b16 %v331
  %v1606 = vunpack.c.l.b16 %v332
  %v1607 = vunpack.c.h.b16 %v332
  %v1608 = vunpack.c.l.b16 %v333
  %v1609 = vunpack.c.h.b16 %v333
  %v1610 = vunpack.c.l.b16 %v334
  %v1611 = vunpack.c.h.b16 %v334
  %v1612 = vunpack.c.l.b16 %v335
  %v1613 = vunpack.c.h.b16 %v335
  %v1614 = vunpack.c.l.b16 %v336
  %v1615 = vunpack.c.h.b16 %v336
  %v1616 = vunpack.c.l.b16 %v337
  %v1617 = vunpack.c.h.b16 %v337
  %v1618 = vunpack.c.l.b16 %v338
  %v1619 = vunpack.c.h.b16 %v338
  %v1620 = vunpack.c.l.b16 %v339
  %v1621 = vunpack.c.h.b16 %v339
  %v1622 = vunpack.c.l.b16 %v340
  %v1623 = vunpack.c.h.b16 %v340
  %v1624 = vunpack.c.l.b16 %v341
  %v1625 = vunpack.c.h.b16 %v341
  %v1626 = vunpack.c.l.b16 %v342
  %v1627 = vunpack.c.h.b16 %v342
  %v1628 = vunpack.c.l.b16 %v343
  %v1629 = vunpack.c.h.b16 %v343
  %v1630 = vunpack.c.l.b16 %v344
  %v1631 = vunpack.c.h.b16 %v344
  %v1632 = vunpack.c.l.b16 %v345
  %v1633 = vunpack.c.h.b16 %v345
  %v1634 = vunpack.c.l.b16 %v346
  %v1635 = vunpack.c.h.b16 %v346
  %v1636 = vunpack.c.l.b16 %v347
  %v1637 = vunpack.c.h.b16 %v347
  %v1638 = vunpack.c.l.b16 %v348
  %v1639 = vunpack.c.h.b16 %v348
  %v1640 = vunpack.c.l.b16 %v349
  %v1641 = vunpack.c.h.b16 %v349
  %v1642 = vunpack.c.l.b16 %v350
  %v1643 = vunpack.c.h.b16 %v350
  %v1644 = vunpack.c.l.b16 %v351
  %v1645 = vunpack.c.h.b16 %v351
  %v1646 = vunpack.c.l.b16 %v352
  %v1647 = vunpack.c.h.b16 %v352
  %v1648 = vunpack.c.l.b16 %v353
  %v1649 = vunpack.c.h.b16 %v353
  %v1650 = vunpack.c.l.b16 %v354
  %v1651 = vunpack.c.h.b16 %v354
  %v1652 = vunpack.c.l.b16 %v355
  %v1653 = vunpack.c.h.b16 %v355
  %v1654 = vunpack.c.l.b16 %v356
  %v1655 = vunpack.c.h.b16 %v356
  %v1656 = vunpack.c.l.b16 %v357
  %v1657 = vunpack.c.h.b16 %v357
  %v1658 = vunpack.c.l.b16 %v358
  %v1659 = vunpack.c.h.b16 %v358
  %v1660 = vunpack.c.l.b16 %v359
  %v1661 = vunpack.c.h.b16 %v359
  %v1662 = vunpack.c.l.b16 %v360
  %v1663 = vunpack.c.h.b16 %v360
  %v1664 = vunpack.c.l.b16 %v361
  %v1665 = vunpack.c.h.b16 %v361
  %v1666 = vunpack.c.l.b16 %v362
  %v1667 = vunpack.c.h.b16 %v362
  %v1668 = vunpack.c.l.b16 %v363
  %v1669 = vunpack.c.h.b16 %v363
  %v1670 = vunpack.c.l.b16 %v364
  %v1671 = vunpack.c.h.b16 %v364
  %v1672 = vunpack.c.l.b16 %v365
  %v1673 = vunpack.c.h.b16 %v365
  %v1674 = vunpack.c.l.b16 %v366
  %v1675 = vunpack.c.h.b16 %v366
  %v1676 = vunpack.c.l.b16 %v367
  %v1677 = vunpack.c.h.b16 %v367
  %v1678 = vunpack.c.l.b16 %v368
  %v1679 = vunpack.c.h.b16 %v368
  %v1680 = vunpack.c.l.b16 %v369
  %v1681 = vunpack.c.h.b16 %v369
  %v1682 = vunpack.c.l.b16 %v370
  %v1683 = vunpack.c.h.b16 %v370
  %v1684 = vunpack.c.l.b16 %v371
  %v1685 = vunpack.c.h.b16 %v371
  %v1686 = vunpack.c.l.b16 %v372
  %v1687 = vunpack.c.h.b16 %v372
  %v1688 = vunpack.c.l.b16 %v373
  %v1689 = vunpack.c.h.b16 %v373
  %v1690 = vunpack.c.l.b16 %v374
  %v1691 = vunpack.c.h.b16 %v374
  %v1692 = vunpack.c.l.b16 %v375
  %v1693 = vunpack.c.h.b16 %v375
  %v1694 = vunpack.c.l.b16 %v376
  %v1695 = vunpack.c.h.b16 %v376
  %v1696 = vunpack.c.l.b16 %v377
  %v1697 = vunpack.c.h.b16 %v377
  %v1698 = vunpack.c.l.b16 %v378
  %v1699 = vunpack.c.h.b16 %v378
  %v1700 = vunpack.c.l.b16 %v379
  %v1701 = vunpack.c.h.b16 %v379
  %v1702 = vunpack.c.l.b16 %v380
  %v1703 = vunpack.c.h.b16 %v380
  %v1704 = vunpack.c.l.b16 %v381
  %v1705 = vunpack.c.h.b16 %v381
  %v1706 = vunpack.c.l.b16 %v382
  %v1707 = vunpack.c.h.b16 %v382
  %v1708 = vunpack.c.l.b16 %v383
  %v1709 = vunpack.c.h.b16 %v383
  %v1710 = vunpack.c.l.b16 %v384
  %v1711 = vunpack.c.h.b16 %v384
  %v1712 = vunpack.c.l.b16 %v385
  %v1713 = vunpack.c.h.b16 %v385
  %v1714 = vunpack.c.l.b16 %v386
  %v1715 = vunpack.c.h.b16 %v386
  %v1716 = vunpack.c.l.b16 %v387
  %v1717 = vunpack.c.h.b16 %v387
  %v1718 = vunpack.c.l.b16 %v388
  %v1719 = vunpack.c.h.b16 %v388
  %v1720 = vunpack.c.l.b16 %v389
  %v1721 = vunpack.c.h.b16 %v389
  %v1722 = vunpack.c.l.b16 %v390
  %v1723 = vunpack.c.h.b16 %v390
  %v1724 = vunpack.c.l.b16 %v391
  %v1725 = vunpack.c.h.b16 %v391
  %v1726 = vunpack.c.l.b16 %v392
  %v1727 = vunpack.c.h.b16 %v392
  %v1728 = vunpack.c.l.b16 %v393
  %v1729 = vunpack.c.h.b16 %v393
  %v1730 = vunpack.c.l.b16 %v394
  %v1731 = vunpack.c.h.b16 %v394
  %v1732 = vunpack.c.l.b16 %v395
  %v1733 = vunpack.c.h.b16 %v395
  %v1734 = vunpack.c.l.b16 %v396
  %v1735 = vunpack.c.h.b16 %v396
  %v1736 = vunpack.c.l.b16 %v397
  %v1737 = vunpack.c.h.b16 %v397
  %v1738 = vunpack.c.l.b16 %v398
  %v1739 = vunpack.c.h.b16 %v398
  %v1740 = vunpack.c.l.b16 %v399
  %v1741 = vunpack.c.h.b16 %v399
  %v1742 = vunpack.c.l.b16 %v400
  %v1743 = vunpack.c.h.b16 %v400
  %v1744 = vunpack.c.l.b16 %v401
  %v1745 = vunpack.c.h.b16 %v401
  %v1746 = vunpack.c.l.b16 %v402
  %v1747 = vunpack.c.h.b16 %v402
  %v1748 = vunpack.c.l.b16 %v403
  %v1749 = vunpack.c.h.b16 %v403
  %v1750 = vunpack.c.l.b16 %v404
  %v1751 = vunpack.c.h.b16 %v404
  %v1752 = vunpack.c.l.b16 %v405
  %v1753 = vunpack.c.h.b16 %v405
  %v1754 = vunpack.c.l.b16 %v406
  %v1755 = vunpack.c.h.b16 %v406
  %v1756 = vunpack.c.l.b16 %v407
  %v1757 = vunpack.c.h.b16 %v407
  %v1758 = vunpack.c.l.b16 %v408
  %v1759 = vunpack.c.h.b16 %v408
  %v1760 = vunpack.c.l.b16 %v409
  %v1761 = vunpack.c.h.b16 %v409
  %v1762 = vunpack.c.l.b16 %v410
  %v1763 = vunpack.c.h.b16 %v410
  %v1764 = vunpack.c.l.b16 %v411
  %v1765 = vunpack.c.h.b16 %v411
  %v1766 = vunpack.c.l.b16 %v412
  %v1767 = vunpack.c.h.b16 %v412
  %v1768 = vunpack.c.l.b16 %v413
  %v1769 = vunpack.c.h.b16 %v413
  %v1770 = vunpack.c.l.b16 %v414
  %v1771 = vunpack.c.h.b16 %v414
  %v1772 = vunpack.c.l.b16 %v415
  %v1773 = vunpack.c.h.b16 %v415
  %v1774 = vunpack.c.l.b16 %v416
  %v1775 = vunpack.c.h.b16 %v416
  %v1776 = vunpack.c.l.b16 %v417
  %v1777 = vunpack.c.h.b16 %v417
  %v1778 = vunpack.c.l.b16 %v418
  %v1779 = vunpack.c.h.b16 %v418
  %v1780 = vunpack.c.l.b16 %v419
  %v1781 = vunpack.c.h.b16 %v419
  %v1782 = vunpack.c.l.b16 %v420
  %v1783 = vunpack.c.h.b16 %v420
  %v1784 = vunpack.c.l.b16 %v421
  %v1785 = vunpack.c.h.b16 %v421
  %v1786 = vunpack.c.l.b16 %v422
  %v1787 = vunpack.c.h.b16 %v422
  %v1788 = vunpack.c.l.b16 %v423
  %v1789 = vunpack.c.h.b16 %v423
  %v1790 = vunpack.c.l.b16 %v424
  %v1791 = vunpack.c.h.b16 %v424
  %v1792 = vunpack.c.l.b16 %v425
  %v1793 = vunpack.c.h.b16 %v425
  %v1794 = vunpack.c.l.b16 %v426
  %v1795 = vunpack.c.h.b16 %v426
  %v1796 = vunpack.c.l.b16 %v427
  %v1797 = vunpack.c.h.b16 %v427
  %v1798 = vunpack.c.l.b16 %v428
  %v1799 = vunpack.c.h.b16 %v428
  %v1800 = vunpack.c.l.b16 %v429
  %v1801 = vunpack.c.h.b16 %v429
  %v1802 = vunpack.c.l.b16 %v430
  %v1803 = vunpack.c.h.b16 %v430
  %v1804 = vunpack.c.l.b16 %v431
  %v1805 = vunpack.c.h.b16 %v431
  %v1806 = vunpack.c.l.b16 %v432
  %v1807 = vunpack.c.h.b16 %v432
  %v1808 = vunpack.c.l.b16 %v433
  %v1809 = vunpack.c.h.b16 %v433
  %v1810 = vunpack.c.l.b16 %v434
  %v1811 = vunpack.c.h.b16 %v434
  %v1812 = vunpack.c.l.b16 %v435
  %v1813 = vunpack.c.h.b16 %v435
  %v1814 = vunpack.c.l.b16 %v436
  %v1815 = vunpack.c.h.b16 %v436
  %v1816 = vunpack.c.l.b16 %v437
  %v1817 = vunpack.c.h.b16 %v437
  %v1818 = vunpack.c.l.b16 %v438
  %v1819 = vunpack.c.h.b16 %v438
  %v1820 = vunpack.c.l.b16 %v439
  %v1821 = vunpack.c.h.b16 %v439
  %v1822 = vunpack.c.l.b16 %v440
  %v1823 = vunpack.c.h.b16 %v440
  %v1824 = vunpack.c.l.b16 %v441
  %v1825 = vunpack.c.h.b16 %v441
  %v1826 = vunpack.c.l.b16 %v442
  %v1827 = vunpack.c.h.b16 %v442
  %v1828 = vunpack.c.l.b16 %v443
  %v1829 = vunpack.c.h.b16 %v443
  %v1830 = vunpack.c.l.b16 %v444
  %v1831 = vunpack.c.h.b16 %v444
  %v1832 = vunpack.c.l.b16 %v445
  %v1833 = vunpack.c.h.b16 %v445
  %v1834 = vunpack.c.l.b16 %v446
  %v1835 = vunpack.c.h.b16 %v446
  %v1836 = vunpack.c.l.b16 %v447
  %v1837 = vunpack.c.h.b16 %v447
  %v1838 = vunpack.c.l.b16 %v448
  %v1839 = vunpack.c.h.b16 %v448
  %v1840 = vunpack.c.l.b16 %v449
  %v1841 = vunpack.c.h.b16 %v449
  %v1842 = vunpack.c.l.b16 %v450
  %v1843 = vunpack.c.h.b16 %v450
  %v1844 = vunpack.c.l.b16 %v451
  %v1845 = vunpack.c.h.b16 %v451
  %v1846 = vunpack.c.l.b16 %v452
  %v1847 = vunpack.c.h.b16 %v452
  %v1848 = vunpack.c.l.b16 %v453
  %v1849 = vunpack.c.h.b16 %v453
  %v1850 = vunpack.c.l.b16 %v454
  %v1851 = vunpack.c.h.b16 %v454
  %v1852 = vunpack.c.l.b16 %v455
  %v1853 = vunpack.c.h.b16 %v455
  %v1854 = vunpack.c.l.b16 %v456
  %v1855 = vunpack.c.h.b16 %v456
  %v1856 = vunpack.c.l.b16 %v457
  %v1857 = vunpack.c.h.b16 %v457
  %v1858 = vunpack.c.l.b16 %v458
  %v1859 = vunpack.c.h.b16 %v458
  %v1860 = vunpack.c.l.b16 %v459
  %v1861 = vunpack.c.h.b16 %v459
  %v1862 = vunpack.c.l.b16 %v460
  %v1863 = vunpack.c.h.b16 %v460
  %v1864 = vpack.c.b16 %v1002, %v1000
  %v1865 = vpack.c.b16 %v1003, %v1001
  %v1866 = vpack.c.b16 %v1006, %v1004
  %v1867 = vpack.c.b16 %v1007, %v1005
  %v1868 = vpack.c.b16 %v1010, %v1008
  %v1869 = vpack.c.b16 %v1011, %v1009
  %v1870 = vpack.c.b16 %v1014, %v1012
  %v1871 = vpack.c.b16 %v1015, %v1013
  %v1872 = vpack.c.b16 %v1018, %v1016
  %v1873 = vpack.c.b16 %v1019, %v1017
  %v1874 = vpack.c.b16 %v1022, %v1020
  %v1875 = vpack.c.b16 %v1023, %v1021
  %v1876 = vpack.c.b16 %v1026, %v1024
  %v1877 = vpack.c.b16 %v1027, %v1025
  %v1878 = vpack.c.b16 %v1030, %v1028
  %v1879 = vpack.c.b16 %v1031, %v1029
  %v1880 = vpack.c.b16 %v1034, %v1032
  %v1881 = vpack.c.b16 %v1035, %v1033
  %v1882 = vpack.c.b16 %v1038, %v1036
  %v1883 = vpack.c.b16 %v1039, %v1037
  %v1884 = vpack.c.b16 %v1042, %v1040
  %v1885 = vpack.c.b16 %v1043, %v1041
  %v1886 = vpack.c.b16 %v1046, %v1044
  %v1887 = vpack.c.b16 %v1047, %v1045
  %v1888 = vpack.c.b16 %v1050, %v1048
  %v1889 = vpack.c.b16 %v1051, %v1049
  %v1890 = vpack.c.b16 %v1054, %v1052
  %v1891 = vpack.c.b16 %v1055, %v1053
  %v1892 = vpack.c.b16 %v1058, %v1056
  %v1893 = vpack.c.b16 %v1059, %v1057
  %v1894 = vpack.c.b16 %v1062, %v1060
  %v1895 = vpack.c.b16 %v1063, %v1061
  %v1896 = vpack.c.b16 %v1066, %v1064
  %v1897 = vpack.c.b16 %v1067, %v1065
  %v1898 = vpack.c.b16 %v1070, %v1068
  %v1899 = vpack.c.b16 %v1071, %v1069
  %v1900 = vpack.c.b16 %v1074, %v1072
  %v1901 = vpack.c.b16 %v1075, %v1073
  %v1902 = vpack.c.b16 %v1078, %v1076
  %v1903 = vpack.c.b16 %v1079, %v1077
  %v1904 = vpack.c.b16 %v1082, %v1080
  %v1905 = vpack.c.b16 %v1083, %v1081
  %v1906 = vpack.c.b16 %v1086, %v1084
  %v1907 = vpack.c.b16 %v1087, %v1085
  %v1908 = vpack.c.b16 %v1090, %v1088
  %v1909 = vpack.c.b16 %v1091, %v1089
  %v1910 = vpack.c.b16 %v1094, %v1092
  %v1911 = vpack.c.b16 %v1095, %v1093
  %v1912 = vpack.c.b16 %v1098, %v1096
  %v1913 = vpack.c.b16 %v1099, %v1097
  %v1914 = vpack.c.b16 %v1102, %v1100
  %v1915 = vpack.c.b16 %v1103, %v1101
  %v1916 = vpack.c.b16 %v1106, %v1104
  %v1917 = vpack.c.b16 %v1107, %v1105
  %v1918 = vpack.c.b16 %v1110, %v1108
  %v1919 = vpack.c.b16 %v1111, %v1109
  %v1920 = vpack.c.b16 %v1114, %v1112
  %v1921 = vpack.c.b16 %v1115, %v1113
  %v1922 = vpack.c.b16 %v1118, %v1116
  %v1923 = vpack.c.b16 %v1119, %v1117
  %v1924 = vpack.c.b16 %v1122, %v1120
  %v1925 = vpack.c.b16 %v1123, %v1121
  %v1926 = vpack.c.b16 %v1126, %v1124
  %v1927 = vpack.c.b16 %v1127, %v1125
  %v1928 = vpack.c.b16 %v1130, %v1128
  %v1929 = vpack.c.b16 %v1131, %v1129
  %v1930 = vpack.c.b16 %v1134, %v1132
  %v1931 = vpack.c.b16 %v1135, %v1133
  %v1932 = vpack.c.b16 %v1138, %v1136
  %v1933 = vpack.c.b16 %v1139, %v1137
  %v1934 = vpack.c.b16 %v1142, %v1140
  %v1935 = vpack.c.b16 %v1143, %v1141
  %v1936 = vpack.c.b16 %v1146, %v1144
  %v1937 = vpack.c.b16 %v1147, %v1145
  %v1938 = vpack.c.b16 %v1150, %v1148
  %v1939 = vpack.c.b16 %v1151, %v1149
  %v1940 = vpack.c.b16 %v1154, %v1152
  %v1941 = vpack.c.b16 %v1155, %v1153
  %v1942 = vpack.c.b16 %v1158, %v1156
  %v1943 = vpack.c.b16 %v1159, %v1157
  %v1944 = vpack.c.b16 %v1162, %v1160
  %v1945 = vpack.c.b16 %v1163, %v1161
  %v1946 = vpack.c.b16 %v1166, %v1164
  %v1947 = vpack.c.b16 %v1167, %v1165
  %v1948 = vpack.c.b16 %v1170, %v1168
  %v1949 = vpack.c.b16 %v1171, %v1169
  %v1950 = vpack.c.b16 %v1174, %v1172
  %v1951 = vpack.c.b16 %v1175, %v1173
  %v1952 = vpack.c.b16 %v1178, %v1176
  %v1953 = vpack.c.b16 %v1179, %v1177
  %v1954 = vpack.c.b16 %v1182, %v1180
  %v1955 = vpack.c.b16 %v1183, %v1181
  %v1956 = vpack.c.b16 %v1186, %v1184
  %v1957 = vpack.c.b16 %v1187, %v1185
  %v1958 = vpack.c.b16 %v1190, %v1188
  %v1959 = vpack.c.b16 %v1191, %v1189
  %v1960 = vpack.c.b16 %v1194, %v1192
  %v1961 = vpack.c.b16 %v1195, %v1193
  %v1962 = vpack.c.b16 %v1198, %v1196
  %v1963 = vpack.c.b16 %v1199, %v1197
  %v1964 = vpack.c.b16 %v1202, %v1200
  %v1965 = vpack.c.b16 %v1203, %v1201
  %v1966 = vpack.c.b16 %v1206, %v1204
  %v1967 = vpack.c.b16 %v1207, %v1205
  %v1968 = vpack.c.b16 %v1210, %v1208
  %v1969 = vpack.c.b16 %v1211, %v1209
  %v1970 = vpack.c.b16 %v1214, %v1212
  %v1971 = vpack.c.b16 %v1215, %v1213
  %v1972 = vpack.c.b16 %v1218, %v1216
  %v1973 = vpack.c.b16 %v1219, %v1217
  %v1974 = vpack.c.b16 %v1222, %v1220
  %v1975 = vpack.c.b16 %v1223, %v1221
  %v1976 = vpack.c.b16 %v1226, %v1224
  %v1977 = vpack.c.b16 %v1227, %v1225
  %v1978 = vpack.c.b16 %v1230, %v1228
  %v1979 = vpack.c.b16 %v1231, %v1229
  %v1980 = vpack.c.b16 %v1234, %v1232
  %v1981 = vpack.c.b16 %v1235, %v1233
  %v1982 = vpack.c.b16 %v1238, %v1236
  %v1983 = vpack.c.b16 %v1239, %v1237
  %v1984 = vpack.c.b16 %v1242, %v1240
  %v1985 = vpack.c.b16 %v1243, %v1241
  %v1986 = vpack.c.b16 %v1246, %v1244
  %v1987 = vpack.c.b16 %v1247, %v1245
  %v1988 = vpack.c.b16 %v1250, %v1248
  %v1989 = vpack.c.b16 %v1251, %v1249
  %v1990 = vpack.c.b16 %v1254, %v1252
  %v1991 = vpack.c.b16 %v1255, %v1253
  %v1992 = vpack.c.b16 %v1258, %v1256
  %v1993 = vpack.c.b16 %v1259, %v1257
  %v1994 = vpack.c.b16 %v1262, %v1260
  %v1995 = vpack.c.b16 %v1263, %v1261
  %v1996 = vpack.c.b16 %v1266, %v1264
  %v1997 = vpack.c.b16 %v1267, %v1265
  %v1998 = vpack.c.b16 %v1270, %v1268
  %v1999 = vpack.c.b16 %v1271, %v1269
  %v2000 = vpack.c.b16 %v1274, %v1272
  %v2001 = vpack.c.b16 %v1275, %v1273
  %v2002 = vpack.c.b16 %v1278, %v1276
  %v2003 = vpack.c.b16 %v1279, %v1277
  %v2004 = vpack.c.b16 %v1282, %v1280
  %v2005 = vpack.c.b16 %v1283, %v1281
  %v2006 = vpack.c.b16 %v1286, %v1284
  %v2007 = vpack.c.b16 %v1287, %v1285
  %v2008 = vpack.c.b16 %v1290, %v1288
  %v2009 = vpack.c.b16 %v1291, %v1289
  %v2010 = vpack.c.b16 %v1294, %v1292
  %v2011 = vpack.c.b16 %v1295, %v1293
  %v2012 = vpack.c.b16 %v1298, %v1296
  %v2013 = vpack.c.b16 %v1299, %v1297
  %v2014 = vpack.c.b16 %v1302, %v1300
  %v2015 = vpack.c.b16 %v1303, %v1301
  %v2016 = vpack.c.b16 %v1306, %v1304
  %v2017 = vpack.c.b16 %v1307, %v1305
  %v2018 = vpack.c.b16 %v1310, %v1308
  %v2019 = vpack.c.b16 %v1311, %v1309
  %v2020 = vpack.c.b16 %v1314, %v1312
  %v2021 = vpack.c.b16 %v1315, %v1313
  %v2022 = vpack.c.b16 %v1318, %v1316
  %v2023 = vpack.c.b16 %v1319, %v1317
  %v2024 = vpack.c.b16 %v1322, %v1320
  %v2025 = vpack.c.b16 %v1323, %v1321
  %v2026 = vpack.c.b16 %v1326, %v1324
  %v2027 = vpack.c.b16 %v1327, %v1325
  %v2028 = vpack.c.b16 %v1330, %v1328
  %v2029 = vpack.c.b16 %v1331, %v1329
  %v2030 = vpack.c.b16 %v1334, %v1332
  %v2031 = vpack.c.b16 %v1335, %v1333
  %v2032 = vpack.c.b16 %v1338, %v1336
  %v2033 = vpack.c.b16 %v1339, %v1337
  %v2034 = vpack.c.b16 %v1342, %v1340
  %v2035 = vpack.c.b16 %v1343, %v1341
  %v2036 = vpack.c.b16 %v1346, %v1344
  %v2037 = vpack.c.b16 %v1347, %v1345
  %v2038 = vpack.c.b16 %v1350, %v1348
  %v2039 = vpack.c.b16 %v1351, %v1349
  %v2040 = vpack.c.b16 %v1354, %v1352
  %v2041 = vpack.c.b16 %v1355, %v1353
  %v2042 = vpack.c.b16 %v1358, %v1356
  %v2043 = vpack.c.b16 %v1359, %v1357
  %v2044 = vpack.c.b16 %v1362, %v1360
  %v2045 = vpack.c.b16 %v1363, %v1361
  %v2046 = vpack.c.b16 %v1366, %v1364
  %v2047 = vpack.c.b16 %v1367, %v1365
  %v2048 = vpack.c.b16 %v1370, %v1368
  %v2049 = vpack.c.b16 %v1371, %v1369
  %v2050 = vpack.c.b16 %v1374, %v1372
  %v2051 = vpack.c.b16 %v1375, %v1373
  %v2052 = vpack.c.b16 %v1378, %v1376
  %v2053 = vpack.c.b16 %v1379, %v1377
  %v2054 = vpack.c.b16 %v1382, %v1380
  %v2055 = vpack.c.b16 %v1383, %v1381
  %v2056 = vpack.c.b16 %v1386, %v1384
  %v2057 = vpack.c.b16 %v1387, %v1385
  %v2058 = vpack.c.b16 %v1390, %v1388
  %v2059 = vpack.c.b16 %v1391, %v1389
  %v2060 = vpack.c.b16 %v1394, %v1392
  %v2061 = vpack.c.b16 %v1395, %v1393
  %v2062 = vpack.c.b16 %v1398, %v1396
  %v2063 = vpack.c.b16 %v1399, %v1397
  %v2064 = vpack.c.b16 %v1402, %v1400
  %v2065 = vpack.c.b16 %v1403, %v1401
  %v2066 = vpack.c.b16 %v1406, %v1404
  %v2067 = vpack.c.b16 %v1407, %v1405
  %v2068 = vpack.c.b16 %v1410, %v1408
  %v2069 = vpack.c.b16 %v1411, %v1409
  %v2070 = vpack.c.b16 %v1414, %v1412
  %v2071 = vpack.c.b16 %v1415, %v1413
  %v2072 = vpack.c.b16 %v1418, %v1416
  %v2073 = vpack.c.b16 %v1419, %v1417
  %v2074 = vpack.c.b16 %v1422, %v1420
  %v2075 = vpack.c.b16 %v1423, %v1421
  %v2076 = vpack.c.b16 %v1426, %v1424
  %v2077 = vpack.c.b16 %v1427, %v1425
  %v2078 = vpack.c.b16 %v1430, %v1428
  %v2079 = vpack.c.b16 %v1431, %v1429
  %v2080 = vpack.c.b16 %v1434, %v1432
  %v2081 = vpack.c.b16 %v1435, %v1433
  %v2082 = vpack.c.b16 %v1438, %v1436
  %v2083 = vpack.c.b16 %v1439, %v1437
  %v2084 = vpack.c.b16 %v1442, %v1440
  %v2085 = vpack.c.b16 %v1443, %v1441
  %v2086 = vpack.c.b16 %v1446, %v1444
  %v2087 = vpack.c.b16 %v1447, %v1445
  %v2088 = vpack.c.b16 %v1450, %v1448
  %v2089 = vpack.c.b16 %v1451, %v1449
  %v2090 = vpack.c.b16 %v1454, %v1452
  %v2091 = vpack.c.b16 %v1455, %v1453
  %v2092 = vpack.c.b16 %v1458, %v1456
  %v2093 = vpack.c.b16 %v1459, %v1457
  %v2094 = vpack.c.b16 %v1462, %v1460
  %v2095 = vpack.c.b16 %v1463, %v1461
  %v2096 = vpack.c.b16 %v1466, %v1464
  %v2097 = vpack.c.b16 %v1467, %v1465
  %v2098 = vpack.c.b16 %v1470, %v1468
  %v2099 = vpack.c.b16 %v1471, %v1469
  %v2100 = vpack.c.b16 %v1474, %v1472
  %v2101 = vpack.c.b16 %v1475, %v1473
  %v2102 = vpack.c.b16 %v1478, %v1476
  %v2103 = vpack.c.b16 %v1479, %v1477
  %v2104 = vpack.c.b16 %v1482, %v1480
  %v2105 = vpack.c.b16 %v1483, %v1481
  %v2106 = vpack.c.b16 %v1486, %v1484
  %v2107 = vpack.c.b16 %v1487, %v1485
  %v2108 = vpack.c.b16 %v1490, %v1488
  %v2109 = vpack.c.b16 %v1491, %v1489
  %v2110 = vpack.c.b16 %v1494, %v1492
  %v2111 = vpack.c.b16 %v1495, %v1493
  %v2112 = vpack.c.b16 %v1498, %v1496
  %v2113 = vpack.c.b16 %v1499, %v1497
  %v2114 = vpack.c.b16 %v1502, %v1500
  %v2115 = vpack.c.b16 %v1503, %v1501
  %v2116 = vpack.c.b16 %v1506, %v1504
  %v2117 = vpack.c.b16 %v1507, %v1505
  %v2118 = vpack.c.b16 %v1510, %v1508
  %v2119 = vpack.c.b16 %v1511, %v1509
  %v2120 = vpack.c.b16 %v1514, %v1512
  %v2121 = vpack.c.b16 %v1515, %v1513
  %v2122 = vpack.c.b16 %v1518, %v1516
  %v2123 = vpack.c.b16 %v1519, %v1517
  %v2124 = vpack.c.b16 %v1522, %v1520
  %v2125 = vpack.c.b16 %v1523, %v1521
  %v2126 = vpack.c.b16 %v1526, %v1524
  %v2127 = vpack.c.b16 %v1527, %v1525
  %v2128 = vpack.c.b16 %v1530, %v1528
  %v2129 = vpack.c.b16 %v1531, %v1529
  %v2130 = vpack.c.b16 %v1534, %v1532
  %v2131 = vpack.c.b16 %v1535, %v1533
  %v2132 = vpack.c.b16 %v1538, %v1536
  %v2133 = vpack.c.b16 %v1539, %v1537
  %v2134 = vpack.c.b16 %v1542, %v1540
  %v2135 = vpack.c.b16 %v1543, %v1541
  %v2136 = vpack.c.b16 %v1546, %v1544
  %v2137 = vpack.c.b16 %v1547, %v1545
  %v2138 = vpack.c.b16 %v1550, %v1548
  %v2139 = vpack.c.b16 %v1551, %v1549
  %v2140 = vpack.c.b16 %v1554, %v1552
  %v2141 = vpack.c.b16 %v1555, %v1553
  %v2142 = vpack.c.b16 %v1558, %v1556
  %v2143 = vpack.c.b16 %v1559, %v1557
  %v2144 = vpack.c.b16 %v1562, %v1560
  %v2145 = vpack.c.b16 %v1563, %v1561
  %v2146 = vpack.c.b16 %v1566, %v1564
  %v2147 = vpack.c.b16 %v1567, %v1565
  %v2148 = vpack.c.b16 %v1570, %v1568
  %v2149 = vpack.c.b16 %v1571, %v1569
  %v2150 = vpack.c.b16 %v1574, %v1572
  %v2151 = vpack.c.b16 %v1575, %v1573
  %v2152 = vpack.c.b16 %v1578, %v1576
  %v2153 = vpack.c.b16 %v1579, %v1577
  %v2154 = vpack.c.b16 %v1582, %v1580
  %v2155 = vpack.c.b16 %v1583, %v1581
  %v2156 = vpack.c.b16 %v1586, %v1584
  %v2157 = vpack.c.b16 %v1587, %v1585
  %v2158 = vpack.c.b16 %v1590, %v1588
  %v2159 = vpack.c.b16 %v1591, %v1589
  %v2160 = vpack.c.b16 %v1594, %v1592
  %v2161 = vpack.c.b16 %v1595, %v1593
  %v2162 = vpack.c.b16 %v1598, %v1596
  %v2163 = vpack.c.b16 %v1599, %v1597
  %v2164 = vpack.c.b16 %v1602, %v1600
  %v2165 = vpack.c.b16 %v1603, %v1601
  %v2166 = vpack.c.b16 %v1606, %v1604
  %v2167 = vpack.c.b16 %v1607, %v1605
  %v2168 = vpack.c.b16 %v1610, %v1608
  %v2169 = vpack.c.b16 %v1611, %v1609
  %v2170 = vpack.c.b16 %v1614, %v1612
  %v2171 = vpack.c.b16 %v1615, %v1613
  %v2172 = vpack.c.b16 %v1618, %v1616
  %v2173 = vpack.c.b16 %v1619, %v1617
  %v2174 = vpack.c.b16 %v1622, %v1620
  %v2175 = vpack.c.b16 %v1623, %v1621
  %v2176 = vpack.c.b16 %v1626, %v1624
  %v2177 = vpack.c.b16 %v1627, %v1625
  %v2178 = vpack.c.b16 %v1630, %v1628
  %v2179 = vpack.c.b16 %v1631, %v1629
  %v2180 = vpack.c.b16 %v1634, %v1632
  %v2181 = vpack.c.b16 %v1635, %v1633
  %v2182 = vpack.c.b16 %v1638, %v1636
  %v2183 = vpack.c.b16 %v1639, %v1637
  %v2184 = vpack.c.b16 %v1642, %v1640
  %v2185 = vpack.c.b16 %v1643, %v1641
  %v2186 = vpack.c.b16 %v1646, %v1644
  %v2187 = vpack.c.b16 %v1647, %v1645
  %v2188 = vpack.c.b16 %v1650, %v1648
  %v2189 = vpack.c.b16 %v1651, %v1649
  %v2190 = vpack.c.b16 %v1654, %v1652
  %v2191 = vpack.c.b16 %v1655, %v1653
  %v2192 = vpack.c.b16 %v1658, %v1656
  %v2193 = vpack.c.b16 %v1659, %v1657
  %v2194 = vpack.c.b16 %v1662, %v1660
  %v2195 = vpack.c.b16 %v1663, %v1661
  %v2196 = vpack.c.b16 %v1666, %v1664
  %v2197 = vpack.c.b16 %v1667, %v1665
  %v2198 = vpack.c.b16 %v1670, %v1668
  %v2199 = vpack.c.b16 %v1671, %v1669
  %v2200 = vpack.c.b16 %v1674, %v1672
  %v2201 = vpack.c.b16 %v1675, %v1673
  %v2202 = vpack.c.b16 %v1678, %v1676
  %v2203 = vpack.c.b16 %v1679, %v1677
  %v2204 = vpack.c.b16 %v1682, %v1680
  %v2205 = vpack.c.b16 %v1683, %v1681
  %v2206 = vpack.c.b16 %v1686, %v1684
  %v2207 = vpack.c.b16 %v1687, %v1685
  %v2208 = vpack.c.b16 %v1690, %v1688
  %v2209 = vpack.c.b16 %v1691, %v1689
  %v2210 = vpack.c.b16 %v1694, %v1692
  %v2211 = vpack.c.b16 %v1695, %v1693
  %v2212 = vpack.c.b16 %v1698, %v1696
  %v2213 = vpack.c.b16 %v1699, %v1697
  %v2214 = vpack.c.b16 %v1702, %v1700
  %v2215 = vpack.c.b16 %v1703, %v1701
  %v2216 = vpack.c.b16 %v1706, %v1704
  %v2217 = vpack.c.b16 %v1707, %v1705
  %v2218 = vpack.c.b16 %v1710, %v1708
  %v2219 = vpack.c.b16 %v1711, %v1709
  %v2220 = vpack.c.b16 %v1714, %v1712
  %v2221 = vpack.c.b16 %v1715, %v1713
  %v2222 = vpack.c.b16 %v1718, %v1716
  %v2223 = vpack.c.b16 %v1719, %v1717
  %v2224 = vpack.c.b16 %v1722, %v1720
  %v2225 = vpack.c.b16 %v1723, %v1721
  %v2226 = vpack.c.b16 %v1726, %v1724
  %v2227 = vpack.c.b16 %v1727, %v1725
  %v2228 = vpack.c.b16 %v1730, %v1728
  %v2229 = vpack.c.b16 %v1731, %v1729
  %v2230 = vpack.c.b16 %v1734, %v1732
  %v2231 = vpack.c.b16 %v1735, %v1733
  %v2232 = vpack.c.b16 %v1738, %v1736
  %v2233 = vpack.c.b16 %v1739, %v1737
  %v2234 = vpack.c.b16 %v1742, %v1740
  %v2235 = vpack.c.b16 %v1743, %v1741
  %v2236 = vpack.c.b16 %v1746, %v1744
  %v2237 = vpack.c.b16 %v1747, %v1745
  %v2238 = vpack.c.b16 %v1750, %v1748
  %v2239 = vpack.c.b16 %v1751, %v1749
  %v2240 = vpack.c.b16 %v1754, %v1752
  %v2241 = vpack.c.b16 %v1755, %v1753
  %v2242 = vpack.c.b16 %v1758, %v1756
  %v2243 = vpack.c.b16 %v1759, %v1757
  %v2244 = vpack.c.b16 %v1762, %v1760
  %v2245 = vpack.c.b16 %v1763, %v1761
  %v2246 = vpack.c.b16 %v1766, %v1764
  %v2247 = vpack.c.b16 %v1767, %v1765
  %v2248 = vpack.c.b16 %v1770, %v1768
  %v2249 = vpack.c.b16 %v1771, %v1769
  %v2250 = vpack.c.b16 %v1774, %v1772
  %v2251 = vpack.c.b16 %v1775, %v1773
  %v2252 = vpack.c.b16 %v1778, %v1776
  %v2253 = vpack.c.b16 %v1779, %v1777
  %v2254 = vpack.c.b16 %v1782, %v1780
  %v2255 = vpack.c.b16 %v1783, %v1781
  %v2256 = vpack.c.b16 %v1786, %v1784
  %v2257 = vpack.c.b16 %v1787, %v1785
  %v2258 = vpack.c.b16 %v1790, %v1788
  %v2259 = vpack.c.b16 %v1791, %v1789
  %v2260 = vpack.c.b16 %v1794, %v1792
  %v2261 = vpack.c.b16 %v1795, %v1793
  %v2262 = vpack.c.b16 %v1798, %v1796
  %v2263 = vpack.c.b16 %v1799, %v1797
  %v2264 = vpack.c.b16 %v1802, %v1800
  %v2265 = vpack.c.b16 %v1803, %v1801
  %v2266 = vpack.c.b16 %v1806, %v1804
  %v2267 = vpack.c.b16 %v1807, %v1805
  %v2268 = vpack.c.b16 %v1810, %v1808
  %v2269 = vpack.c.b16 %v1811, %v1809
  %v2270 = vpack.c.b16 %v1814, %v1812
  %v2271 = vpack.c.b16 %v1815, %v1813
  %v2272 = vpack.c.b16 %v1818, %v1816
  %v2273 = vpack.c.b16 %v1819, %v1817
  %v2274 = vpack.c.b16 %v1822, %v1820
  %v2275 = vpack.c.b16 %v1823, %v1821
  %v2276 = vpack.c.b16 %v1826, %v1824
  %v2277 = vpack.c.b16 %v1827, %v1825
  %v2278 = vpack.c.b16 %v1830, %v1828
  %v2279 = vpack.c.b16 %v1831, %v1829
  %v2280 = vpack.c.b16 %v1834, %v1832
  %v2281 = vpack.c.b16 %v1835, %v1833
  %v2282 = vpack.c.b16 %v1838, %v1836
  %v2283 = vpack.c.b16 %v1839, %v1837
  %v2284 = vpack.c.b16 %v1842, %v1840
  %v2285 = vpack.c.b16 %v1843, %v1841
  %v2286 = vpack.c.b16 %v1846, %v1844
  %v2287 = vpack.c.b16 %v1847, %v1845
  %v2288 = vpack.c.b16 %v1850, %v1848
  %v2289 = vpack.c.b16 %v1851, %v1849
  %v2290 = vpack.c.b16 %v1854, %v1852
  %v2291 = vpack.c.b16 %v1855, %v1853
  %v2292 = vpack.c.b16 %v1858, %v1856
  %v2293 = vpack.c.b16 %v1859, %v1857
  %v2294 = vpack.c.b16 %v1862, %v1860
  %v2295 = vpack.c.b16 %v1863, %v1861
  %2728 = vmatprep.subr.bf16.mxu0 %v1879
  %2729 = vmatpush1.bf16.msra.mxu0 %v1878
  %2730 = vmatprep.subr.bf16.mxu0 %v1877
  %2731 = vmatpush1.bf16.msra.mxu0 %v1876
  %2732 = vmatprep.subr.bf16.mxu0 %v1875
  %2733 = vmatpush1.bf16.msra.mxu0 %v1874
  %2734 = vmatprep.subr.bf16.mxu0 %v1873
  %2735 = vmatpush1.bf16.msra.mxu0 %v1872
  %2736 = vmatprep.subr.bf16.mxu0 %v1871
  %2737 = vmatpush1.bf16.msra.mxu0 %v1870
  %2738 = vmatprep.subr.bf16.mxu0 %v1869
  %2739 = vmatpush1.bf16.msra.mxu0 %v1868
  %2740 = vmatprep.subr.bf16.mxu0 %v1867
  %2741 = vmatpush1.bf16.msra.mxu0 %v1866
  %2742 = vmatprep.subr.bf16.mxu0 %v1865
  %2743 = vmatpush1.bf16.msra.mxu0 %v1864
  %2744 = vmatprep.subr.bf16.mxu0 %v1895
  %2745 = vmatpush2.bf16.msra.mxu0 %v1894
  %2746 = vmatprep.subr.bf16.mxu0 %v1893
  %2747 = vmatpush2.bf16.msra.mxu0 %v1892
  %2748 = vmatprep.subr.bf16.mxu0 %v1891
  %2749 = vmatpush2.bf16.msra.mxu0 %v1890
  %2750 = vmatprep.subr.bf16.mxu0 %v1889
  %2751 = vmatpush2.bf16.msra.mxu0 %v1888
  %2752 = vmatprep.subr.bf16.mxu0 %v1887
  %2753 = vmatpush2.bf16.msra.mxu0 %v1886
  %2754 = vmatprep.subr.bf16.mxu0 %v1885
  %2755 = vmatpush2.bf16.msra.mxu0 %v1884
  %2756 = vmatprep.subr.bf16.mxu0 %v1883
  %2757 = vmatpush2.bf16.msra.mxu0 %v1882
  %2758 = vmatprep.subr.bf16.mxu0 %v1881
  %2759 = vmatpush2.bf16.msra.mxu0 %v1880
  %2760 = vmatprep.mubr.bf16.mxu0 %v515
  %2761 = vmatmul.mubr.bf16.gmra.mxu0 %v514
  %v2762 = vpop.f32.mrf.mxu0
  %v2763 = vadd.f32 %v466, %v2762
  %v2764 = vpop.f32.mrf.mxu0
  %v2765 = vadd.f32 %v470, %v2764
  %v2766 = vpop.f32.mrf.mxu0
  %v2767 = vpop.f32.mrf.mxu0
  %2768 = vdwg.mxu0
  %2769 = vmatprep.subr.bf16.mxu0 %v1911
  %2770 = vmatpush1.bf16.msra.mxu0 %v1910
  %2771 = vmatprep.subr.bf16.mxu0 %v1909
  %2772 = vmatpush1.bf16.msra.mxu0 %v1908
  %2773 = vmatprep.subr.bf16.mxu0 %v1907
  %2774 = vmatpush1.bf16.msra.mxu0 %v1906
  %2775 = vmatprep.subr.bf16.mxu0 %v1905
  %2776 = vmatpush1.bf16.msra.mxu0 %v1904
  %2777 = vmatprep.subr.bf16.mxu0 %v1903
  %2778 = vmatpush1.bf16.msra.mxu0 %v1902
  %2779 = vmatprep.subr.bf16.mxu0 %v1901
  %2780 = vmatpush1.bf16.msra.mxu0 %v1900
  %2781 = vmatprep.subr.bf16.mxu0 %v1899
  %2782 = vmatpush1.bf16.msra.mxu0 %v1898
  %2783 = vmatprep.subr.bf16.mxu0 %v1897
  %2784 = vmatpush1.bf16.msra.mxu0 %v1896
  %2785 = vmatprep.subr.bf16.mxu0 %v1927
  %2786 = vmatpush2.bf16.msra.mxu0 %v1926
  %2787 = vmatprep.subr.bf16.mxu0 %v1925
  %2788 = vmatpush2.bf16.msra.mxu0 %v1924
  %2789 = vmatprep.subr.bf16.mxu0 %v1923
  %2790 = vmatpush2.bf16.msra.mxu0 %v1922
  %2791 = vmatprep.subr.bf16.mxu0 %v1921
  %2792 = vmatpush2.bf16.msra.mxu0 %v1920
  %2793 = vmatprep.subr.bf16.mxu0 %v1919
  %2794 = vmatpush2.bf16.msra.mxu0 %v1918
  %2795 = vmatprep.subr.bf16.mxu0 %v1917
  %2796 = vmatpush2.bf16.msra.mxu0 %v1916
  %2797 = vmatprep.subr.bf16.mxu0 %v1915
  %2798 = vmatpush2.bf16.msra.mxu0 %v1914
  %2799 = vmatprep.subr.bf16.mxu0 %v1913
  %2800 = vmatpush2.bf16.msra.mxu0 %v1912
  %2801 = vmatprep.mubr.bf16.mxu0 %v517
  %2802 = vmatmul.mubr.bf16.gmra.mxu0 %v516
  %v2803 = vpop.f32.mrf.mxu0
  %v2804 = vadd.f32 %v2763, %v2803
  %v2805 = vpop.f32.mrf.mxu0
  %v2806 = vadd.f32 %v2765, %v2805
  %v2807 = vpop.f32.mrf.mxu0
  %v2808 = vpop.f32.mrf.mxu0
  %2809 = vdwg.mxu0
  %2810 = vmatprep.subr.bf16.mxu0 %v1943
  %2811 = vmatpush1.bf16.msra.mxu0 %v1942
  %2812 = vmatprep.subr.bf16.mxu0 %v1941
  %2813 = vmatpush1.bf16.msra.mxu0 %v1940
  %2814 = vmatprep.subr.bf16.mxu0 %v1939
  %2815 = vmatpush1.bf16.msra.mxu0 %v1938
  %2816 = vmatprep.subr.bf16.mxu0 %v1937
  %2817 = vmatpush1.bf16.msra.mxu0 %v1936
  %2818 = vmatprep.subr.bf16.mxu0 %v1935
  %2819 = vmatpush1.bf16.msra.mxu0 %v1934
  %2820 = vmatprep.subr.bf16.mxu0 %v1933
  %2821 = vmatpush1.bf16.msra.mxu0 %v1932
  %2822 = vmatprep.subr.bf16.mxu0 %v1931
  %2823 = vmatpush1.bf16.msra.mxu0 %v1930
  %2824 = vmatprep.subr.bf16.mxu0 %v1929
  %2825 = vmatpush1.bf16.msra.mxu0 %v1928
  %2826 = vmatprep.subr.bf16.mxu0 %v1959
  %2827 = vmatpush2.bf16.msra.mxu0 %v1958
  %2828 = vmatprep.subr.bf16.mxu0 %v1957
  %2829 = vmatpush2.bf16.msra.mxu0 %v1956
  %2830 = vmatprep.subr.bf16.mxu0 %v1955
  %2831 = vmatpush2.bf16.msra.mxu0 %v1954
  %2832 = vmatprep.subr.bf16.mxu0 %v1953
  %2833 = vmatpush2.bf16.msra.mxu0 %v1952
  %2834 = vmatprep.subr.bf16.mxu0 %v1951
  %2835 = vmatpush2.bf16.msra.mxu0 %v1950
  %2836 = vmatprep.subr.bf16.mxu0 %v1949
  %2837 = vmatpush2.bf16.msra.mxu0 %v1948
  %2838 = vmatprep.subr.bf16.mxu0 %v1947
  %2839 = vmatpush2.bf16.msra.mxu0 %v1946
  %2840 = vmatprep.subr.bf16.mxu0 %v1945
  %2841 = vmatpush2.bf16.msra.mxu0 %v1944
  %2842 = vmatprep.mubr.bf16.mxu0 %v519
  %2843 = vmatmul.mubr.bf16.gmra.mxu0 %v518
  %v2844 = vpop.f32.mrf.mxu0
  %v2845 = vadd.f32 %v2804, %v2844
  %v2846 = vpop.f32.mrf.mxu0
  %v2847 = vadd.f32 %v2806, %v2846
  %v2848 = vpop.f32.mrf.mxu0
  %v2849 = vpop.f32.mrf.mxu0
  %2850 = vdwg.mxu0
  %2851 = vmatprep.subr.bf16.mxu0 %v1975
  %2852 = vmatpush1.bf16.msra.mxu0 %v1974
  %2853 = vmatprep.subr.bf16.mxu0 %v1973
  %2854 = vmatpush1.bf16.msra.mxu0 %v1972
  %2855 = vmatprep.subr.bf16.mxu0 %v1971
  %2856 = vmatpush1.bf16.msra.mxu0 %v1970
  %2857 = vmatprep.subr.bf16.mxu0 %v1969
  %2858 = vmatpush1.bf16.msra.mxu0 %v1968
  %2859 = vmatprep.subr.bf16.mxu0 %v1967
  %2860 = vmatpush1.bf16.msra.mxu0 %v1966
  %2861 = vmatprep.subr.bf16.mxu0 %v1965
  %2862 = vmatpush1.bf16.msra.mxu0 %v1964
  %2863 = vmatprep.subr.bf16.mxu0 %v1963
  %2864 = vmatpush1.bf16.msra.mxu0 %v1962
  %2865 = vmatprep.subr.bf16.mxu0 %v1961
  %2866 = vmatpush1.bf16.msra.mxu0 %v1960
  %2867 = vmatprep.subr.bf16.mxu0 %v1991
  %2868 = vmatpush2.bf16.msra.mxu0 %v1990
  %2869 = vmatprep.subr.bf16.mxu0 %v1989
  %2870 = vmatpush2.bf16.msra.mxu0 %v1988
  %2871 = vmatprep.subr.bf16.mxu0 %v1987
  %2872 = vmatpush2.bf16.msra.mxu0 %v1986
  %2873 = vmatprep.subr.bf16.mxu0 %v1985
  %2874 = vmatpush2.bf16.msra.mxu0 %v1984
  %2875 = vmatprep.subr.bf16.mxu0 %v1983
  %2876 = vmatpush2.bf16.msra.mxu0 %v1982
  %2877 = vmatprep.subr.bf16.mxu0 %v1981
  %2878 = vmatpush2.bf16.msra.mxu0 %v1980
  %2879 = vmatprep.subr.bf16.mxu0 %v1979
  %2880 = vmatpush2.bf16.msra.mxu0 %v1978
  %2881 = vmatprep.subr.bf16.mxu0 %v1977
  %2882 = vmatpush2.bf16.msra.mxu0 %v1976
  %2883 = vmatprep.mubr.bf16.mxu0 %v521
  %2884 = vmatmul.mubr.bf16.gmra.mxu0 %v520
  %v2885 = vpop.f32.mrf.mxu0
  %v2886 = vadd.f32 %v2845, %v2885
  %v2887 = vpop.f32.mrf.mxu0
  %v2888 = vadd.f32 %v2847, %v2887
  %v2889 = vpop.f32.mrf.mxu0
  %v2890 = vpop.f32.mrf.mxu0
  %2891 = vdwg.mxu0
  %2892 = vmatprep.subr.bf16.mxu0 %v2007
  %2893 = vmatpush1.bf16.msra.mxu0 %v2006
  %2894 = vmatprep.subr.bf16.mxu0 %v2005
  %2895 = vmatpush1.bf16.msra.mxu0 %v2004
  %2896 = vmatprep.subr.bf16.mxu0 %v2003
  %2897 = vmatpush1.bf16.msra.mxu0 %v2002
  %2898 = vmatprep.subr.bf16.mxu0 %v2001
  %2899 = vmatpush1.bf16.msra.mxu0 %v2000
  %2900 = vmatprep.subr.bf16.mxu0 %v1999
  %2901 = vmatpush1.bf16.msra.mxu0 %v1998
  %2902 = vmatprep.subr.bf16.mxu0 %v1997
  %2903 = vmatpush1.bf16.msra.mxu0 %v1996
  %2904 = vmatprep.subr.bf16.mxu0 %v1995
  %2905 = vmatpush1.bf16.msra.mxu0 %v1994
  %2906 = vmatprep.subr.bf16.mxu0 %v1993
  %2907 = vmatpush1.bf16.msra.mxu0 %v1992
  %2908 = vmatprep.subr.bf16.mxu0 %v2023
  %2909 = vmatpush2.bf16.msra.mxu0 %v2022
  %2910 = vmatprep.subr.bf16.mxu0 %v2021
  %2911 = vmatpush2.bf16.msra.mxu0 %v2020
  %2912 = vmatprep.subr.bf16.mxu0 %v2019
  %2913 = vmatpush2.bf16.msra.mxu0 %v2018
  %2914 = vmatprep.subr.bf16.mxu0 %v2017
  %2915 = vmatpush2.bf16.msra.mxu0 %v2016
  %2916 = vmatprep.subr.bf16.mxu0 %v2015
  %2917 = vmatpush2.bf16.msra.mxu0 %v2014
  %2918 = vmatprep.subr.bf16.mxu0 %v2013
  %2919 = vmatpush2.bf16.msra.mxu0 %v2012
  %2920 = vmatprep.subr.bf16.mxu0 %v2011
  %2921 = vmatpush2.bf16.msra.mxu0 %v2010
  %2922 = vmatprep.subr.bf16.mxu0 %v2009
  %2923 = vmatpush2.bf16.msra.mxu0 %v2008
  %2924 = vmatprep.mubr.bf16.mxu0 %v523
  %2925 = vmatmul.mubr.bf16.gmra.mxu0 %v522
  %v2926 = vpop.f32.mrf.mxu0
  %v2927 = vadd.f32 %v2886, %v2926
  %v2928 = vpop.f32.mrf.mxu0
  %v2929 = vadd.f32 %v2888, %v2928
  %v2930 = vpop.f32.mrf.mxu0
  %v2931 = vpop.f32.mrf.mxu0
  %2932 = vdwg.mxu0
  %2933 = vmatprep.subr.bf16.mxu0 %v2039
  %2934 = vmatpush1.bf16.msra.mxu0 %v2038
  %2935 = vmatprep.subr.bf16.mxu0 %v2037
  %2936 = vmatpush1.bf16.msra.mxu0 %v2036
  %2937 = vmatprep.subr.bf16.mxu0 %v2035
  %2938 = vmatpush1.bf16.msra.mxu0 %v2034
  %2939 = vmatprep.subr.bf16.mxu0 %v2033
  %2940 = vmatpush1.bf16.msra.mxu0 %v2032
  %2941 = vmatprep.subr.bf16.mxu0 %v2031
  %2942 = vmatpush1.bf16.msra.mxu0 %v2030
  %2943 = vmatprep.subr.bf16.mxu0 %v2029
  %2944 = vmatpush1.bf16.msra.mxu0 %v2028
  %2945 = vmatprep.subr.bf16.mxu0 %v2027
  %2946 = vmatpush1.bf16.msra.mxu0 %v2026
  %2947 = vmatprep.subr.bf16.mxu0 %v2025
  %2948 = vmatpush1.bf16.msra.mxu0 %v2024
  %2949 = vmatprep.subr.bf16.mxu0 %v2055
  %2950 = vmatpush2.bf16.msra.mxu0 %v2054
  %2951 = vmatprep.subr.bf16.mxu0 %v2053
  %2952 = vmatpush2.bf16.msra.mxu0 %v2052
  %2953 = vmatprep.subr.bf16.mxu0 %v2051
  %2954 = vmatpush2.bf16.msra.mxu0 %v2050
  %2955 = vmatprep.subr.bf16.mxu0 %v2049
  %2956 = vmatpush2.bf16.msra.mxu0 %v2048
  %2957 = vmatprep.subr.bf16.mxu0 %v2047
  %2958 = vmatpush2.bf16.msra.mxu0 %v2046
  %2959 = vmatprep.subr.bf16.mxu0 %v2045
  %2960 = vmatpush2.bf16.msra.mxu0 %v2044
  %2961 = vmatprep.subr.bf16.mxu0 %v2043
  %2962 = vmatpush2.bf16.msra.mxu0 %v2042
  %2963 = vmatprep.subr.bf16.mxu0 %v2041
  %2964 = vmatpush2.bf16.msra.mxu0 %v2040
  %2965 = vmatprep.mubr.bf16.mxu0 %v525
  %2966 = vmatmul.mubr.bf16.gmra.mxu0 %v524
  %v2967 = vpop.f32.mrf.mxu0
  %v2968 = vadd.f32 %v2927, %v2967
  %v2969 = vpop.f32.mrf.mxu0
  %v2970 = vadd.f32 %v2929, %v2969
  %v2971 = vpop.f32.mrf.mxu0
  %v2972 = vpop.f32.mrf.mxu0
  %2973 = vdwg.mxu0
  %2974 = vmatprep.subr.bf16.mxu0 %v2071
  %2975 = vmatpush1.bf16.msra.mxu0 %v2070
  %2976 = vmatprep.subr.bf16.mxu0 %v2069
  %2977 = vmatpush1.bf16.msra.mxu0 %v2068
  %2978 = vmatprep.subr.bf16.mxu0 %v2067
  %2979 = vmatpush1.bf16.msra.mxu0 %v2066
  %2980 = vmatprep.subr.bf16.mxu0 %v2065
  %2981 = vmatpush1.bf16.msra.mxu0 %v2064
  %2982 = vmatprep.subr.bf16.mxu0 %v2063
  %2983 = vmatpush1.bf16.msra.mxu0 %v2062
  %2984 = vmatprep.subr.bf16.mxu0 %v2061
  %2985 = vmatpush1.bf16.msra.mxu0 %v2060
  %2986 = vmatprep.subr.bf16.mxu0 %v2059
  %2987 = vmatpush1.bf16.msra.mxu0 %v2058
  %2988 = vmatprep.subr.bf16.mxu0 %v2057
  %2989 = vmatpush1.bf16.msra.mxu0 %v2056
  %2990 = vmatprep.subr.bf16.mxu0 %v2087
  %2991 = vmatpush2.bf16.msra.mxu0 %v2086
  %2992 = vmatprep.subr.bf16.mxu0 %v2085
  %2993 = vmatpush2.bf16.msra.mxu0 %v2084
  %2994 = vmatprep.subr.bf16.mxu0 %v2083
  %2995 = vmatpush2.bf16.msra.mxu0 %v2082
  %2996 = vmatprep.subr.bf16.mxu0 %v2081
  %2997 = vmatpush2.bf16.msra.mxu0 %v2080
  %2998 = vmatprep.subr.bf16.mxu0 %v2079
  %2999 = vmatpush2.bf16.msra.mxu0 %v2078
  %3000 = vmatprep.subr.bf16.mxu0 %v2077
  %3001 = vmatpush2.bf16.msra.mxu0 %v2076
  %3002 = vmatprep.subr.bf16.mxu0 %v2075
  %3003 = vmatpush2.bf16.msra.mxu0 %v2074
  %3004 = vmatprep.subr.bf16.mxu0 %v2073
  %3005 = vmatpush2.bf16.msra.mxu0 %v2072
  %3006 = vmatprep.mubr.bf16.mxu0 %v527
  %3007 = vmatmul.mubr.bf16.gmra.mxu0 %v526
  %v3008 = vpop.f32.mrf.mxu0
  %v3009 = vadd.f32 %v2968, %v3008
  %v3010 = vpop.f32.mrf.mxu0
  %v3011 = vadd.f32 %v2970, %v3010
  %v3012 = vpop.f32.mrf.mxu0
  %v3013 = vpop.f32.mrf.mxu0
  %3014 = vdwg.mxu0
  %3015 = vmatprep.subr.bf16.mxu0 %v2103
  %3016 = vmatpush1.bf16.msra.mxu0 %v2102
  %3017 = vmatprep.subr.bf16.mxu0 %v2101
  %3018 = vmatpush1.bf16.msra.mxu0 %v2100
  %3019 = vmatprep.subr.bf16.mxu0 %v2099
  %3020 = vmatpush1.bf16.msra.mxu0 %v2098
  %3021 = vmatprep.subr.bf16.mxu0 %v2097
  %3022 = vmatpush1.bf16.msra.mxu0 %v2096
  %3023 = vmatprep.subr.bf16.mxu0 %v2095
  %3024 = vmatpush1.bf16.msra.mxu0 %v2094
  %3025 = vmatprep.subr.bf16.mxu0 %v2093
  %3026 = vmatpush1.bf16.msra.mxu0 %v2092
  %3027 = vmatprep.subr.bf16.mxu0 %v2091
  %3028 = vmatpush1.bf16.msra.mxu0 %v2090
  %3029 = vmatprep.subr.bf16.mxu0 %v2089
  %3030 = vmatpush1.bf16.msra.mxu0 %v2088
  %3031 = vmatprep.subr.bf16.mxu0 %v2119
  %3032 = vmatpush2.bf16.msra.mxu0 %v2118
  %3033 = vmatprep.subr.bf16.mxu0 %v2117
  %3034 = vmatpush2.bf16.msra.mxu0 %v2116
  %3035 = vmatprep.subr.bf16.mxu0 %v2115
  %3036 = vmatpush2.bf16.msra.mxu0 %v2114
  %3037 = vmatprep.subr.bf16.mxu0 %v2113
  %3038 = vmatpush2.bf16.msra.mxu0 %v2112
  %3039 = vmatprep.subr.bf16.mxu0 %v2111
  %3040 = vmatpush2.bf16.msra.mxu0 %v2110
  %3041 = vmatprep.subr.bf16.mxu0 %v2109
  %3042 = vmatpush2.bf16.msra.mxu0 %v2108
  %3043 = vmatprep.subr.bf16.mxu0 %v2107
  %3044 = vmatpush2.bf16.msra.mxu0 %v2106
  %3045 = vmatprep.subr.bf16.mxu0 %v2105
  %3046 = vmatpush2.bf16.msra.mxu0 %v2104
  %3047 = vmatprep.mubr.bf16.mxu0 %v529
  %3048 = vmatmul.mubr.bf16.gmra.mxu0 %v528
  %v3049 = vpop.f32.mrf.mxu0
  %v3050 = vadd.f32 %v3009, %v3049
  %v3051 = vpop.f32.mrf.mxu0
  %v3052 = vadd.f32 %v3011, %v3051
  %v3053 = vpop.f32.mrf.mxu0
  %v3054 = vpop.f32.mrf.mxu0
  %3055 = vdwg.mxu0
  %3056 = vmatprep.subr.bf16.mxu0 %v2135
  %3057 = vmatpush1.bf16.msra.mxu0 %v2134
  %3058 = vmatprep.subr.bf16.mxu0 %v2133
  %3059 = vmatpush1.bf16.msra.mxu0 %v2132
  %3060 = vmatprep.subr.bf16.mxu0 %v2131
  %3061 = vmatpush1.bf16.msra.mxu0 %v2130
  %3062 = vmatprep.subr.bf16.mxu0 %v2129
  %3063 = vmatpush1.bf16.msra.mxu0 %v2128
  %3064 = vmatprep.subr.bf16.mxu0 %v2127
  %3065 = vmatpush1.bf16.msra.mxu0 %v2126
  %3066 = vmatprep.subr.bf16.mxu0 %v2125
  %3067 = vmatpush1.bf16.msra.mxu0 %v2124
  %3068 = vmatprep.subr.bf16.mxu0 %v2123
  %3069 = vmatpush1.bf16.msra.mxu0 %v2122
  %3070 = vmatprep.subr.bf16.mxu0 %v2121
  %3071 = vmatpush1.bf16.msra.mxu0 %v2120
  %3072 = vmatprep.subr.bf16.mxu0 %v2151
  %3073 = vmatpush2.bf16.msra.mxu0 %v2150
  %3074 = vmatprep.subr.bf16.mxu0 %v2149
  %3075 = vmatpush2.bf16.msra.mxu0 %v2148
  %3076 = vmatprep.subr.bf16.mxu0 %v2147
  %3077 = vmatpush2.bf16.msra.mxu0 %v2146
  %3078 = vmatprep.subr.bf16.mxu0 %v2145
  %3079 = vmatpush2.bf16.msra.mxu0 %v2144
  %3080 = vmatprep.subr.bf16.mxu0 %v2143
  %3081 = vmatpush2.bf16.msra.mxu0 %v2142
  %3082 = vmatprep.subr.bf16.mxu0 %v2141
  %3083 = vmatpush2.bf16.msra.mxu0 %v2140
  %3084 = vmatprep.subr.bf16.mxu0 %v2139
  %3085 = vmatpush2.bf16.msra.mxu0 %v2138
  %3086 = vmatprep.subr.bf16.mxu0 %v2137
  %3087 = vmatpush2.bf16.msra.mxu0 %v2136
  %3088 = vmatprep.mubr.bf16.mxu0 %v531
  %3089 = vmatmul.mubr.bf16.gmra.mxu0 %v530
  %v3090 = vpop.f32.mrf.mxu0
  %v3091 = vadd.f32 %v3050, %v3090
  %v3092 = vpop.f32.mrf.mxu0
  %v3093 = vadd.f32 %v3052, %v3092
  %v3094 = vpop.f32.mrf.mxu0
  %v3095 = vpop.f32.mrf.mxu0
  %3096 = vdwg.mxu0
  %3097 = vmatprep.subr.bf16.mxu0 %v2167
  %3098 = vmatpush1.bf16.msra.mxu0 %v2166
  %3099 = vmatprep.subr.bf16.mxu0 %v2165
  %3100 = vmatpush1.bf16.msra.mxu0 %v2164
  %3101 = vmatprep.subr.bf16.mxu0 %v2163
  %3102 = vmatpush1.bf16.msra.mxu0 %v2162
  %3103 = vmatprep.subr.bf16.mxu0 %v2161
  %3104 = vmatpush1.bf16.msra.mxu0 %v2160
  %3105 = vmatprep.subr.bf16.mxu0 %v2159
  %3106 = vmatpush1.bf16.msra.mxu0 %v2158
  %3107 = vmatprep.subr.bf16.mxu0 %v2157
  %3108 = vmatpush1.bf16.msra.mxu0 %v2156
  %3109 = vmatprep.subr.bf16.mxu0 %v2155
  %3110 = vmatpush1.bf16.msra.mxu0 %v2154
  %3111 = vmatprep.subr.bf16.mxu0 %v2153
  %3112 = vmatpush1.bf16.msra.mxu0 %v2152
  %3113 = vmatprep.subr.bf16.mxu0 %v2183
  %3114 = vmatpush2.bf16.msra.mxu0 %v2182
  %3115 = vmatprep.subr.bf16.mxu0 %v2181
  %3116 = vmatpush2.bf16.msra.mxu0 %v2180
  %3117 = vmatprep.subr.bf16.mxu0 %v2179
  %3118 = vmatpush2.bf16.msra.mxu0 %v2178
  %3119 = vmatprep.subr.bf16.mxu0 %v2177
  %3120 = vmatpush2.bf16.msra.mxu0 %v2176
  %3121 = vmatprep.subr.bf16.mxu0 %v2175
  %3122 = vmatpush2.bf16.msra.mxu0 %v2174
  %3123 = vmatprep.subr.bf16.mxu0 %v2173
  %3124 = vmatpush2.bf16.msra.mxu0 %v2172
  %3125 = vmatprep.subr.bf16.mxu0 %v2171
  %3126 = vmatpush2.bf16.msra.mxu0 %v2170
  %3127 = vmatprep.subr.bf16.mxu0 %v2169
  %3128 = vmatpush2.bf16.msra.mxu0 %v2168
  %3129 = vmatprep.mubr.bf16.mxu0 %v533
  %3130 = vmatmul.mubr.bf16.gmra.mxu0 %v532
  %v3131 = vpop.f32.mrf.mxu0
  %v3132 = vadd.f32 %v3091, %v3131
  %v3133 = vpop.f32.mrf.mxu0
  %v3134 = vadd.f32 %v3093, %v3133
  %v3135 = vpop.f32.mrf.mxu0
  %v3136 = vpop.f32.mrf.mxu0
  %3137 = vdwg.mxu0
  %3138 = vmatprep.subr.bf16.mxu0 %v2199
  %3139 = vmatpush1.bf16.msra.mxu0 %v2198
  %3140 = vmatprep.subr.bf16.mxu0 %v2197
  %3141 = vmatpush1.bf16.msra.mxu0 %v2196
  %3142 = vmatprep.subr.bf16.mxu0 %v2195
  %3143 = vmatpush1.bf16.msra.mxu0 %v2194
  %3144 = vmatprep.subr.bf16.mxu0 %v2193
  %3145 = vmatpush1.bf16.msra.mxu0 %v2192
  %3146 = vmatprep.subr.bf16.mxu0 %v2191
  %3147 = vmatpush1.bf16.msra.mxu0 %v2190
  %3148 = vmatprep.subr.bf16.mxu0 %v2189
  %3149 = vmatpush1.bf16.msra.mxu0 %v2188
  %3150 = vmatprep.subr.bf16.mxu0 %v2187
  %3151 = vmatpush1.bf16.msra.mxu0 %v2186
  %3152 = vmatprep.subr.bf16.mxu0 %v2185
  %3153 = vmatpush1.bf16.msra.mxu0 %v2184
  %3154 = vmatprep.subr.bf16.mxu0 %v2215
  %3155 = vmatpush2.bf16.msra.mxu0 %v2214
  %3156 = vmatprep.subr.bf16.mxu0 %v2213
  %3157 = vmatpush2.bf16.msra.mxu0 %v2212
  %3158 = vmatprep.subr.bf16.mxu0 %v2211
  %3159 = vmatpush2.bf16.msra.mxu0 %v2210
  %3160 = vmatprep.subr.bf16.mxu0 %v2209
  %3161 = vmatpush2.bf16.msra.mxu0 %v2208
  %3162 = vmatprep.subr.bf16.mxu0 %v2207
  %3163 = vmatpush2.bf16.msra.mxu0 %v2206
  %3164 = vmatprep.subr.bf16.mxu0 %v2205
  %3165 = vmatpush2.bf16.msra.mxu0 %v2204
  %3166 = vmatprep.subr.bf16.mxu0 %v2203
  %3167 = vmatpush2.bf16.msra.mxu0 %v2202
  %3168 = vmatprep.subr.bf16.mxu0 %v2201
  %3169 = vmatpush2.bf16.msra.mxu0 %v2200
  %3170 = vmatprep.mubr.bf16.mxu0 %v535
  %3171 = vmatmul.mubr.bf16.gmra.mxu0 %v534
  %v3172 = vpop.f32.mrf.mxu0
  %v3173 = vadd.f32 %v3132, %v3172
  %v3174 = vpop.f32.mrf.mxu0
  %v3175 = vadd.f32 %v3134, %v3174
  %v3176 = vpop.f32.mrf.mxu0
  %v3177 = vpop.f32.mrf.mxu0
  %3178 = vdwg.mxu0
  %3179 = vmatprep.subr.bf16.mxu0 %v2231
  %3180 = vmatpush1.bf16.msra.mxu0 %v2230
  %3181 = vmatprep.subr.bf16.mxu0 %v2229
  %3182 = vmatpush1.bf16.msra.mxu0 %v2228
  %3183 = vmatprep.subr.bf16.mxu0 %v2227
  %3184 = vmatpush1.bf16.msra.mxu0 %v2226
  %3185 = vmatprep.subr.bf16.mxu0 %v2225
  %3186 = vmatpush1.bf16.msra.mxu0 %v2224
  %3187 = vmatprep.subr.bf16.mxu0 %v2223
  %3188 = vmatpush1.bf16.msra.mxu0 %v2222
  %3189 = vmatprep.subr.bf16.mxu0 %v2221
  %3190 = vmatpush1.bf16.msra.mxu0 %v2220
  %3191 = vmatprep.subr.bf16.mxu0 %v2219
  %3192 = vmatpush1.bf16.msra.mxu0 %v2218
  %3193 = vmatprep.subr.bf16.mxu0 %v2217
  %3194 = vmatpush1.bf16.msra.mxu0 %v2216
  %3195 = vmatprep.subr.bf16.mxu0 %v2247
  %3196 = vmatpush2.bf16.msra.mxu0 %v2246
  %3197 = vmatprep.subr.bf16.mxu0 %v2245
  %3198 = vmatpush2.bf16.msra.mxu0 %v2244
  %3199 = vmatprep.subr.bf16.mxu0 %v2243
  %3200 = vmatpush2.bf16.msra.mxu0 %v2242
  %3201 = vmatprep.subr.bf16.mxu0 %v2241
  %3202 = vmatpush2.bf16.msra.mxu0 %v2240
  %3203 = vmatprep.subr.bf16.mxu0 %v2239
  %3204 = vmatpush2.bf16.msra.mxu0 %v2238
  %3205 = vmatprep.subr.bf16.mxu0 %v2237
  %3206 = vmatpush2.bf16.msra.mxu0 %v2236
  %3207 = vmatprep.subr.bf16.mxu0 %v2235
  %3208 = vmatpush2.bf16.msra.mxu0 %v2234
  %3209 = vmatprep.subr.bf16.mxu0 %v2233
  %3210 = vmatpush2.bf16.msra.mxu0 %v2232
  %3211 = vmatprep.mubr.bf16.mxu0 %v537
  %3212 = vmatmul.mubr.bf16.gmra.mxu0 %v536
  %v3213 = vpop.f32.mrf.mxu0
  %v3214 = vadd.f32 %v3173, %v3213
  %v3215 = vpop.f32.mrf.mxu0
  %v3216 = vadd.f32 %v3175, %v3215
  %v3217 = vpop.f32.mrf.mxu0
  %v3218 = vpop.f32.mrf.mxu0
  %3219 = vdwg.mxu0
  %3220 = vmatprep.subr.bf16.mxu0 %v2263
  %3221 = vmatpush1.bf16.msra.mxu0 %v2262
  %3222 = vmatprep.subr.bf16.mxu0 %v2261
  %3223 = vmatpush1.bf16.msra.mxu0 %v2260
  %3224 = vmatprep.subr.bf16.mxu0 %v2259
  %3225 = vmatpush1.bf16.msra.mxu0 %v2258
  %3226 = vmatprep.subr.bf16.mxu0 %v2257
  %3227 = vmatpush1.bf16.msra.mxu0 %v2256
  %3228 = vmatprep.subr.bf16.mxu0 %v2255
  %3229 = vmatpush1.bf16.msra.mxu0 %v2254
  %3230 = vmatprep.subr.bf16.mxu0 %v2253
  %3231 = vmatpush1.bf16.msra.mxu0 %v2252
  %3232 = vmatprep.subr.bf16.mxu0 %v2251
  %3233 = vmatpush1.bf16.msra.mxu0 %v2250
  %3234 = vmatprep.subr.bf16.mxu0 %v2249
  %3235 = vmatpush1.bf16.msra.mxu0 %v2248
  %3236 = vmatprep.subr.bf16.mxu0 %v2279
  %3237 = vmatpush2.bf16.msra.mxu0 %v2278
  %3238 = vmatprep.subr.bf16.mxu0 %v2277
  %3239 = vmatpush2.bf16.msra.mxu0 %v2276
  %3240 = vmatprep.subr.bf16.mxu0 %v2275
  %3241 = vmatpush2.bf16.msra.mxu0 %v2274
  %3242 = vmatprep.subr.bf16.mxu0 %v2273
  %3243 = vmatpush2.bf16.msra.mxu0 %v2272
  %3244 = vmatprep.subr.bf16.mxu0 %v2271
  %3245 = vmatpush2.bf16.msra.mxu0 %v2270
  %3246 = vmatprep.subr.bf16.mxu0 %v2269
  %3247 = vmatpush2.bf16.msra.mxu0 %v2268
  %3248 = vmatprep.subr.bf16.mxu0 %v2267
  %3249 = vmatpush2.bf16.msra.mxu0 %v2266
  %3250 = vmatprep.subr.bf16.mxu0 %v2265
  %3251 = vmatpush2.bf16.msra.mxu0 %v2264
  %3252 = vmatprep.mubr.bf16.mxu0 %v539
  %3253 = vmatmul.mubr.bf16.gmra.mxu0 %v538
  %v3254 = vpop.f32.mrf.mxu0
  %v3255 = vadd.f32 %v3214, %v3254
  %v3256 = vpop.f32.mrf.mxu0
  %v3257 = vadd.f32 %v3216, %v3256
  %v3258 = vpop.f32.mrf.mxu0
  %v3259 = vpop.f32.mrf.mxu0
  %3260 = vdwg.mxu0
  %3261 = vmatprep.subr.bf16.mxu0 %v2295
  %3262 = vmatpush1.bf16.msra.mxu0 %v2294
  %3263 = vmatprep.subr.bf16.mxu0 %v2293
  %3264 = vmatpush1.bf16.msra.mxu0 %v2292
  %3265 = vmatprep.subr.bf16.mxu0 %v2291
  %3266 = vmatpush1.bf16.msra.mxu0 %v2290
  %3267 = vmatprep.subr.bf16.mxu0 %v2289
  %3268 = vmatpush1.bf16.msra.mxu0 %v2288
  %3269 = vmatprep.subr.bf16.mxu0 %v2287
  %3270 = vmatpush1.bf16.msra.mxu0 %v2286
  %3271 = vmatprep.subr.bf16.mxu0 %v2285
  %3272 = vmatpush1.bf16.msra.mxu0 %v2284
  %3273 = vmatprep.subr.bf16.mxu0 %v2283
  %3274 = vmatpush1.bf16.msra.mxu0 %v2282
  %3275 = vmatprep.subr.bf16.mxu0 %v2281
  %3276 = vmatpush1.bf16.msra.mxu0 %v2280
  %3277 = vmatprep.subr.bf16.mxu0 0
  %3278 = vmatpush2.bf16.msra.mxu0 0
  %3279 = vmatprep.subr.bf16.mxu0 0
  %3280 = vmatpush2.bf16.msra.mxu0 0
  %3281 = vmatprep.subr.bf16.mxu0 0
  %3282 = vmatpush2.bf16.msra.mxu0 0
  %3283 = vmatprep.subr.bf16.mxu0 0
  %3284 = vmatpush2.bf16.msra.mxu0 0
  %3285 = vmatprep.subr.bf16.mxu0 0
  %3286 = vmatpush2.bf16.msra.mxu0 0
  %3287 = vmatprep.subr.bf16.mxu0 0
  %3288 = vmatpush2.bf16.msra.mxu0 0
  %3289 = vmatprep.subr.bf16.mxu0 0
  %3290 = vmatpush2.bf16.msra.mxu0 0
  %3291 = vmatprep.subr.bf16.mxu0 0
  %3292 = vmatpush2.bf16.msra.mxu0 0
  %3293 = vmatprep.mubr.bf16.mxu0 0
  %3294 = vmatmul.mubr.bf16.gmra.mxu0 %v540
  %v3295 = vpop.f32.mrf.mxu0
  %v3296 = vadd.f32 %v3255, %v3295
  %v3297 = vpop.f32.mrf.mxu0
  %v3298 = vadd.f32 %v3257, %v3297
  %v3299 = vpop.f32.mrf.mxu0
  %v3300 = vpop.f32.mrf.mxu0
  %3301 = vdwg.mxu0
  %v3302 = vmax.f32 %v3296, 0.0
  %v3303 = vmax.f32 %v3298, 0.0
  %s3304 = scalar_lea.vmem %s2, 1
  %v3305 = vld [vmem:[%s3304] ss:$4 sm:$0x3]
  %v3307 = vlaneseq
  %v3308 = vshrl.u32 %v3307, 7
  %v3309 = vsub.s32 0, %v3308
  %v3310 = vrot.slane %v3305, %v3309
  %v3311 = vlaneseq
  %v3312 = vshrl.u32 %v3311, 7
  %v3313 = vsub.s32 1, %v3312
  %v3314 = vrot.slane %v3305, %v3313
  %v3317 = vmul.f32 %v3302, %v3310
  %v3318 = vmul.f32 %v3303, %v3314
  %s3319 = scalar_lea.vmem %s2, 2
  %v3320 = vld [vmem:[%s3319] ss:$4 sm:$0x3]
  %v3322 = vlaneseq
  %v3323 = vshrl.u32 %v3322, 7
  %v3324 = vsub.s32 0, %v3323
  %v3325 = vrot.slane %v3320, %v3324
  %v3326 = vlaneseq
  %v3327 = vshrl.u32 %v3326, 7
  %v3328 = vsub.s32 1, %v3327
  %v3329 = vrot.slane %v3320, %v3328
  %v3332 = vadd.f32 %v3317, %v3325
  %v3333 = vadd.f32 %v3318, %v3329
  %v3334 = vpack.c.bf16 %v3332, %v3332
  %v3335 = vpack.c.bf16 %v3333, %v3333
  %v3338 = vunpack.c.l.b16 %v3334
  %v3339 = vunpack.c.l.b16 %v3335
  %v3340 = vpack.c.b16 %v3339, %v3338
  %3342 = vst [vmem:[%s3] sm:$0x77] %v3340
  // Predicated region
  $region14: #{baby_c3d_forward.9} parent=0 // pred_check
    _
  $region15: #{baby_c3d_forward.9} parent=0 // pred_check_branch
    %3344 = sbr.rel (0) target = $region17
  $region16: #{baby_c3d_forward.9} parent=0 // pred_region
    _
  $region17: #{baby_c3d_forward.9} parent=0 // pred_fallthru
    _
  // Predicated region
  $region18: #{baby_c3d_forward.9} parent=0 // pred_check
    _
  $region19: #{baby_c3d_forward.9} parent=0 // pred_check_branch
    %3346 = sbr.rel (0) target = $region21
  $region20: #{baby_c3d_forward.9} parent=0 // pred_region
    _
  $region21: #{baby_c3d_forward.9} parent=0 // pred_fallthru
    _

// kernel: baby_c3d_forward.11
$region0: #{baby_c3d_forward.11}
  #allocation0 [shape = 'u32[]', space=smem, size = 0x4, offset = 0x4, fixed_abs, tag = 'smem constant byte address 0x4 - core index']
  #allocation1 [shape = 'u32[144,128]{1,0:T(1,128)}', space=vmem, size = 0x12000, scoped, tag = 'internal scratch']
  %s0 = inlined_call_operand.vmem [shape: bf16[2,512], index: 0, kind: input, shape index: {}]
  %s1 = inlined_call_operand.vmem [shape: bf16[512,256], index: 1, kind: input, shape index: {}]
  %s2 = inlined_call_operand.vmem [shape: f32[1,256], index: 2, kind: input, shape index: {}]
  %s3 = inlined_call_operand.vmem [shape: bf16[256,128], index: 3, kind: input, shape index: {}]
  %s4 = inlined_call_operand.vmem [shape: f32[1,128], index: 4, kind: input, shape index: {}]
  %s5 = inlined_call_operand.hbm [shape: f32[2,128], index: 5, kind: output, shape index: {}]
  %s6 = sld [smem:[#allocation0]]
  $region30: #{baby_c3d_forward.11} parent=0
    _
  %s8 = ssub.s32 1, %s6
  %s9 = scalar_select 0, %s8, %s6
  $region1: #{baby_c3d_forward.11} parent=0
    #allocation2 [shape = 'u8[1024]{0}', space=vmem, size = 0x400, scoped, tag = 'output window, operand 0, single buffered']
    #allocation3 [shape = 's32[1]{0}', space=sflag, size = 0x4, scoped, tag = 'scoped memory for baby_c3d_forward.11']
    %10 = vsyncpa [#allocation3], 0
    // Predicated region
    $region2: #{baby_c3d_forward.11} parent=1 // pred_check
      _
    $region3: #{baby_c3d_forward.11} parent=1 // pred_check_branch
      %12 = sbr.rel (0) target = $region5
    $region4: #{baby_c3d_forward.11} parent=1 // pred_region
      _
    $region5: #{baby_c3d_forward.11} parent=1 // pred_fallthru
      _
    // Predicated region
    $region6: #{baby_c3d_forward.11} parent=1 // pred_check
      _
    $region7: #{baby_c3d_forward.11} parent=1 // pred_check_branch
      %14 = sbr.rel (0) target = $region9
    $region8: #{baby_c3d_forward.11} parent=1 // pred_region
      _
    $region9: #{baby_c3d_forward.11} parent=1 // pred_fallthru
      _
    // Predicated region
    $region10: #{baby_c3d_forward.11} parent=1 // pred_check
      _
    $region11: #{baby_c3d_forward.11} parent=1 // pred_check_branch
      %16 = sbr.rel (0) target = $region13
    $region12: #{baby_c3d_forward.11} parent=1 // pred_region
      _
    $region13: #{baby_c3d_forward.11} parent=1 // pred_fallthru
      _
    // Predicated region
    $region14: #{baby_c3d_forward.11} parent=1 // pred_check
      _
    $region15: #{baby_c3d_forward.11} parent=1 // pred_check_branch
      %18 = sbr.rel (0) target = $region17
    $region16: #{baby_c3d_forward.11} parent=1 // pred_region
      _
    $region17: #{baby_c3d_forward.11} parent=1 // pred_fallthru
      _
    // Predicated region
    $region18: #{baby_c3d_forward.11} parent=1 // pred_check
      _
    $region19: #{baby_c3d_forward.11} parent=1 // pred_check_branch
      %20 = sbr.rel (0) target = $region21
    $region20: #{baby_c3d_forward.11} parent=1 // pred_region
      _
    $region21: #{baby_c3d_forward.11} parent=1 // pred_fallthru
      _
    %v22 = vld [vmem:[%s0] sm:$0xf]
    %v23 = vld [vmem:[%s1] sm:$0xff]
    %v24 = vld [vmem:[%s1 + $0x8] sm:$0xff]
    %v25 = vld [vmem:[%s1 + $0x10] sm:$0xff]
    %v26 = vld [vmem:[%s1 + $0x18] sm:$0xff]
    %v27 = vld [vmem:[%s1 + $0x20] sm:$0xff]
    %v28 = vld [vmem:[%s1 + $0x28] sm:$0xff]
    %v29 = vld [vmem:[%s1 + $0x30] sm:$0xff]
    %v30 = vld [vmem:[%s1 + $0x38] sm:$0xff]
    %v31 = vld [vmem:[%s1 + $0x40] sm:$0xff]
    %v32 = vld [vmem:[%s1 + $0x48] sm:$0xff]
    %v33 = vld [vmem:[%s1 + $0x50] sm:$0xff]
    %v34 = vld [vmem:[%s1 + $0x58] sm:$0xff]
    %v35 = vld [vmem:[%s1 + $0x60] sm:$0xff]
    %v36 = vld [vmem:[%s1 + $0x68] sm:$0xff]
    %v37 = vld [vmem:[%s1 + $0x70] sm:$0xff]
    %v38 = vld [vmem:[%s1 + $0x78] sm:$0xff]
    %v39 = vld [vmem:[%s1 + $0x80] sm:$0xff]
    %v40 = vld [vmem:[%s1 + $0x88] sm:$0xff]
    %v41 = vld [vmem:[%s1 + $0x90] sm:$0xff]
    %v42 = vld [vmem:[%s1 + $0x98] sm:$0xff]
    %v43 = vld [vmem:[%s1 + $0xa0] sm:$0xff]
    %v44 = vld [vmem:[%s1 + $0xa8] sm:$0xff]
    %v45 = vld [vmem:[%s1 + $0xb0] sm:$0xff]
    %v46 = vld [vmem:[%s1 + $0xb8] sm:$0xff]
    %v47 = vld [vmem:[%s1 + $0xc0] sm:$0xff]
    %v48 = vld [vmem:[%s1 + $0xc8] sm:$0xff]
    %v49 = vld [vmem:[%s1 + $0xd0] sm:$0xff]
    %v50 = vld [vmem:[%s1 + $0xd8] sm:$0xff]
    %v51 = vld [vmem:[%s1 + $0xe0] sm:$0xff]
    %v52 = vld [vmem:[%s1 + $0xe8] sm:$0xff]
    %v53 = vld [vmem:[%s1 + $0xf0] sm:$0xff]
    %v54 = vld [vmem:[%s1 + $0xf8] sm:$0xff]
    %v55 = vld [vmem:[%s1 + $0x100] sm:$0xff]
    %v56 = vld [vmem:[%s1 + $0x108] sm:$0xff]
    %v57 = vld [vmem:[%s1 + $0x110] sm:$0xff]
    %v58 = vld [vmem:[%s1 + $0x118] sm:$0xff]
    %v59 = vld [vmem:[%s1 + $0x120] sm:$0xff]
    %v60 = vld [vmem:[%s1 + $0x128] sm:$0xff]
    %v61 = vld [vmem:[%s1 + $0x130] sm:$0xff]
    %v62 = vld [vmem:[%s1 + $0x138] sm:$0xff]
    %v63 = vld [vmem:[%s1 + $0x140] sm:$0xff]
    %v64 = vld [vmem:[%s1 + $0x148] sm:$0xff]
    %v65 = vld [vmem:[%s1 + $0x150] sm:$0xff]
    %v66 = vld [vmem:[%s1 + $0x158] sm:$0xff]
    %v67 = vld [vmem:[%s1 + $0x160] sm:$0xff]
    %v68 = vld [vmem:[%s1 + $0x168] sm:$0xff]
    %v69 = vld [vmem:[%s1 + $0x170] sm:$0xff]
    %v70 = vld [vmem:[%s1 + $0x178] sm:$0xff]
    %v71 = vld [vmem:[%s1 + $0x180] sm:$0xff]
    %v72 = vld [vmem:[%s1 + $0x188] sm:$0xff]
    %v73 = vld [vmem:[%s1 + $0x190] sm:$0xff]
    %v74 = vld [vmem:[%s1 + $0x198] sm:$0xff]
    %v75 = vld [vmem:[%s1 + $0x1a0] sm:$0xff]
    %v76 = vld [vmem:[%s1 + $0x1a8] sm:$0xff]
    %v77 = vld [vmem:[%s1 + $0x1b0] sm:$0xff]
    %v78 = vld [vmem:[%s1 + $0x1b8] sm:$0xff]
    %v79 = vld [vmem:[%s1 + $0x1c0] sm:$0xff]
    %v80 = vld [vmem:[%s1 + $0x1c8] sm:$0xff]
    %v81 = vld [vmem:[%s1 + $0x1d0] sm:$0xff]
    %v82 = vld [vmem:[%s1 + $0x1d8] sm:$0xff]
    %v83 = vld [vmem:[%s1 + $0x1e0] sm:$0xff]
    %v84 = vld [vmem:[%s1 + $0x1e8] sm:$0xff]
    %v85 = vld [vmem:[%s1 + $0x1f0] sm:$0xff]
    %v86 = vld [vmem:[%s1 + $0x1f8] sm:$0xff]
    %v87 = vld [vmem:[%s2] sm:$0x3]
    %v89 = vlaneseq
    %v90 = vshrl.u32 %v89, 7
    %v91 = vsub.s32 0, %v90
    %v92 = vrot.slane %v87, %v91
    %v93 = vlaneseq
    %v94 = vshrl.u32 %v93, 7
    %v95 = vsub.s32 1, %v94
    %v96 = vrot.slane %v87, %v95
    %v101 = vunpack.c.l.s4 1966171168
    %v102 = vunpack.c.0.s8 %v101
    %v103 = vlaneseq
    %v104 = vshrl.u32 %v103, 7
    %v105 = vsub.s32 %v102, %v104
    %v106 = vrot.slane %v22, %v105
    %v107 = vcombine.high %v106, %v106
    %v109 = vunpack.c.l.s4 1966171168
    %v110 = vunpack.c.0.s8 %v109
    %v111 = vlaneseq
    %v112 = vshrl.u32 %v111, 7
    %v113 = vsub.s32 %v110, %v112
    %v114 = vrot.slane %v106, %v113
    %v116 = vunpack.c.l.s4 1966171168
    %v117 = vunpack.c.0.s8 %v116
    %v118 = vlaneseq
    %v119 = vshrl.u32 %v118, 7
    %v120 = vsub.s32 %v117, %v119
    %v121 = vrot.slane %v107, %v120
    %v122 = vcombine.high %v114, %v114
    %v123 = vcombine.high %v121, %v121
    %v192 = vunpack.c.l.b16 %v23
    %v193 = vunpack.c.h.b16 %v23
    %v194 = vunpack.c.l.b16 %v24
    %v195 = vunpack.c.h.b16 %v24
    %v196 = vunpack.c.l.b16 %v25
    %v197 = vunpack.c.h.b16 %v25
    %v198 = vunpack.c.l.b16 %v26
    %v199 = vunpack.c.h.b16 %v26
    %v200 = vunpack.c.l.b16 %v27
    %v201 = vunpack.c.h.b16 %v27
    %v202 = vunpack.c.l.b16 %v28
    %v203 = vunpack.c.h.b16 %v28
    %v204 = vunpack.c.l.b16 %v29
    %v205 = vunpack.c.h.b16 %v29
    %v206 = vunpack.c.l.b16 %v30
    %v207 = vunpack.c.h.b16 %v30
    %v208 = vunpack.c.l.b16 %v31
    %v209 = vunpack.c.h.b16 %v31
    %v210 = vunpack.c.l.b16 %v32
    %v211 = vunpack.c.h.b16 %v32
    %v212 = vunpack.c.l.b16 %v33
    %v213 = vunpack.c.h.b16 %v33
    %v214 = vunpack.c.l.b16 %v34
    %v215 = vunpack.c.h.b16 %v34
    %v216 = vunpack.c.l.b16 %v35
    %v217 = vunpack.c.h.b16 %v35
    %v218 = vunpack.c.l.b16 %v36
    %v219 = vunpack.c.h.b16 %v36
    %v220 = vunpack.c.l.b16 %v37
    %v221 = vunpack.c.h.b16 %v37
    %v222 = vunpack.c.l.b16 %v38
    %v223 = vunpack.c.h.b16 %v38
    %v224 = vunpack.c.l.b16 %v39
    %v225 = vunpack.c.h.b16 %v39
    %v226 = vunpack.c.l.b16 %v40
    %v227 = vunpack.c.h.b16 %v40
    %v228 = vunpack.c.l.b16 %v41
    %v229 = vunpack.c.h.b16 %v41
    %v230 = vunpack.c.l.b16 %v42
    %v231 = vunpack.c.h.b16 %v42
    %v232 = vunpack.c.l.b16 %v43
    %v233 = vunpack.c.h.b16 %v43
    %v234 = vunpack.c.l.b16 %v44
    %v235 = vunpack.c.h.b16 %v44
    %v236 = vunpack.c.l.b16 %v45
    %v237 = vunpack.c.h.b16 %v45
    %v238 = vunpack.c.l.b16 %v46
    %v239 = vunpack.c.h.b16 %v46
    %v240 = vunpack.c.l.b16 %v47
    %v241 = vunpack.c.h.b16 %v47
    %v242 = vunpack.c.l.b16 %v48
    %v243 = vunpack.c.h.b16 %v48
    %v244 = vunpack.c.l.b16 %v49
    %v245 = vunpack.c.h.b16 %v49
    %v246 = vunpack.c.l.b16 %v50
    %v247 = vunpack.c.h.b16 %v50
    %v248 = vunpack.c.l.b16 %v51
    %v249 = vunpack.c.h.b16 %v51
    %v250 = vunpack.c.l.b16 %v52
    %v251 = vunpack.c.h.b16 %v52
    %v252 = vunpack.c.l.b16 %v53
    %v253 = vunpack.c.h.b16 %v53
    %v254 = vunpack.c.l.b16 %v54
    %v255 = vunpack.c.h.b16 %v54
    %v256 = vunpack.c.l.b16 %v55
    %v257 = vunpack.c.h.b16 %v55
    %v258 = vunpack.c.l.b16 %v56
    %v259 = vunpack.c.h.b16 %v56
    %v260 = vunpack.c.l.b16 %v57
    %v261 = vunpack.c.h.b16 %v57
    %v262 = vunpack.c.l.b16 %v58
    %v263 = vunpack.c.h.b16 %v58
    %v264 = vunpack.c.l.b16 %v59
    %v265 = vunpack.c.h.b16 %v59
    %v266 = vunpack.c.l.b16 %v60
    %v267 = vunpack.c.h.b16 %v60
    %v268 = vunpack.c.l.b16 %v61
    %v269 = vunpack.c.h.b16 %v61
    %v270 = vunpack.c.l.b16 %v62
    %v271 = vunpack.c.h.b16 %v62
    %v272 = vunpack.c.l.b16 %v63
    %v273 = vunpack.c.h.b16 %v63
    %v274 = vunpack.c.l.b16 %v64
    %v275 = vunpack.c.h.b16 %v64
    %v276 = vunpack.c.l.b16 %v65
    %v277 = vunpack.c.h.b16 %v65
    %v278 = vunpack.c.l.b16 %v66
    %v279 = vunpack.c.h.b16 %v66
    %v280 = vunpack.c.l.b16 %v67
    %v281 = vunpack.c.h.b16 %v67
    %v282 = vunpack.c.l.b16 %v68
    %v283 = vunpack.c.h.b16 %v68
    %v284 = vunpack.c.l.b16 %v69
    %v285 = vunpack.c.h.b16 %v69
    %v286 = vunpack.c.l.b16 %v70
    %v287 = vunpack.c.h.b16 %v70
    %v288 = vunpack.c.l.b16 %v71
    %v289 = vunpack.c.h.b16 %v71
    %v290 = vunpack.c.l.b16 %v72
    %v291 = vunpack.c.h.b16 %v72
    %v292 = vunpack.c.l.b16 %v73
    %v293 = vunpack.c.h.b16 %v73
    %v294 = vunpack.c.l.b16 %v74
    %v295 = vunpack.c.h.b16 %v74
    %v296 = vunpack.c.l.b16 %v75
    %v297 = vunpack.c.h.b16 %v75
    %v298 = vunpack.c.l.b16 %v76
    %v299 = vunpack.c.h.b16 %v76
    %v300 = vunpack.c.l.b16 %v77
    %v301 = vunpack.c.h.b16 %v77
    %v302 = vunpack.c.l.b16 %v78
    %v303 = vunpack.c.h.b16 %v78
    %v304 = vunpack.c.l.b16 %v79
    %v305 = vunpack.c.h.b16 %v79
    %v306 = vunpack.c.l.b16 %v80
    %v307 = vunpack.c.h.b16 %v80
    %v308 = vunpack.c.l.b16 %v81
    %v309 = vunpack.c.h.b16 %v81
    %v310 = vunpack.c.l.b16 %v82
    %v311 = vunpack.c.h.b16 %v82
    %v312 = vunpack.c.l.b16 %v83
    %v313 = vunpack.c.h.b16 %v83
    %v314 = vunpack.c.l.b16 %v84
    %v315 = vunpack.c.h.b16 %v84
    %v316 = vunpack.c.l.b16 %v85
    %v317 = vunpack.c.h.b16 %v85
    %v318 = vunpack.c.l.b16 %v86
    %v319 = vunpack.c.h.b16 %v86
    %v320 = vpack.c.b16 %v194, %v192
    %v321 = vpack.c.b16 %v195, %v193
    %v322 = vpack.c.b16 %v198, %v196
    %v323 = vpack.c.b16 %v199, %v197
    %v324 = vpack.c.b16 %v202, %v200
    %v325 = vpack.c.b16 %v203, %v201
    %v326 = vpack.c.b16 %v206, %v204
    %v327 = vpack.c.b16 %v207, %v205
    %v328 = vpack.c.b16 %v210, %v208
    %v329 = vpack.c.b16 %v211, %v209
    %v330 = vpack.c.b16 %v214, %v212
    %v331 = vpack.c.b16 %v215, %v213
    %v332 = vpack.c.b16 %v218, %v216
    %v333 = vpack.c.b16 %v219, %v217
    %v334 = vpack.c.b16 %v222, %v220
    %v335 = vpack.c.b16 %v223, %v221
    %v336 = vpack.c.b16 %v226, %v224
    %v337 = vpack.c.b16 %v227, %v225
    %v338 = vpack.c.b16 %v230, %v228
    %v339 = vpack.c.b16 %v231, %v229
    %v340 = vpack.c.b16 %v234, %v232
    %v341 = vpack.c.b16 %v235, %v233
    %v342 = vpack.c.b16 %v238, %v236
    %v343 = vpack.c.b16 %v239, %v237
    %v344 = vpack.c.b16 %v242, %v240
    %v345 = vpack.c.b16 %v243, %v241
    %v346 = vpack.c.b16 %v246, %v244
    %v347 = vpack.c.b16 %v247, %v245
    %v348 = vpack.c.b16 %v250, %v248
    %v349 = vpack.c.b16 %v251, %v249
    %v350 = vpack.c.b16 %v254, %v252
    %v351 = vpack.c.b16 %v255, %v253
    %v352 = vpack.c.b16 %v258, %v256
    %v353 = vpack.c.b16 %v259, %v257
    %v354 = vpack.c.b16 %v262, %v260
    %v355 = vpack.c.b16 %v263, %v261
    %v356 = vpack.c.b16 %v266, %v264
    %v357 = vpack.c.b16 %v267, %v265
    %v358 = vpack.c.b16 %v270, %v268
    %v359 = vpack.c.b16 %v271, %v269
    %v360 = vpack.c.b16 %v274, %v272
    %v361 = vpack.c.b16 %v275, %v273
    %v362 = vpack.c.b16 %v278, %v276
    %v363 = vpack.c.b16 %v279, %v277
    %v364 = vpack.c.b16 %v282, %v280
    %v365 = vpack.c.b16 %v283, %v281
    %v366 = vpack.c.b16 %v286, %v284
    %v367 = vpack.c.b16 %v287, %v285
    %v368 = vpack.c.b16 %v290, %v288
    %v369 = vpack.c.b16 %v291, %v289
    %v370 = vpack.c.b16 %v294, %v292
    %v371 = vpack.c.b16 %v295, %v293
    %v372 = vpack.c.b16 %v298, %v296
    %v373 = vpack.c.b16 %v299, %v297
    %v374 = vpack.c.b16 %v302, %v300
    %v375 = vpack.c.b16 %v303, %v301
    %v376 = vpack.c.b16 %v306, %v304
    %v377 = vpack.c.b16 %v307, %v305
    %v378 = vpack.c.b16 %v310, %v308
    %v379 = vpack.c.b16 %v311, %v309
    %v380 = vpack.c.b16 %v314, %v312
    %v381 = vpack.c.b16 %v315, %v313
    %v382 = vpack.c.b16 %v318, %v316
    %v383 = vpack.c.b16 %v319, %v317
    %448 = vmatprep.subr.bf16.mxu0 %v335
    %449 = vmatpush1.bf16.msra.mxu0 %v334
    %450 = vmatprep.subr.bf16.mxu0 %v333
    %451 = vmatpush1.bf16.msra.mxu0 %v332
    %452 = vmatprep.subr.bf16.mxu0 %v331
    %453 = vmatpush1.bf16.msra.mxu0 %v330
    %454 = vmatprep.subr.bf16.mxu0 %v329
    %455 = vmatpush1.bf16.msra.mxu0 %v328
    %456 = vmatprep.subr.bf16.mxu0 %v327
    %457 = vmatpush1.bf16.msra.mxu0 %v326
    %458 = vmatprep.subr.bf16.mxu0 %v325
    %459 = vmatpush1.bf16.msra.mxu0 %v324
    %460 = vmatprep.subr.bf16.mxu0 %v323
    %461 = vmatpush1.bf16.msra.mxu0 %v322
    %462 = vmatprep.subr.bf16.mxu0 %v321
    %463 = vmatpush1.bf16.msra.mxu0 %v320
    %464 = vmatprep.subr.bf16.mxu0 %v351
    %465 = vmatpush2.bf16.msra.mxu0 %v350
    %466 = vmatprep.subr.bf16.mxu0 %v349
    %467 = vmatpush2.bf16.msra.mxu0 %v348
    %468 = vmatprep.subr.bf16.mxu0 %v347
    %469 = vmatpush2.bf16.msra.mxu0 %v346
    %470 = vmatprep.subr.bf16.mxu0 %v345
    %471 = vmatpush2.bf16.msra.mxu0 %v344
    %472 = vmatprep.subr.bf16.mxu0 %v343
    %473 = vmatpush2.bf16.msra.mxu0 %v342
    %474 = vmatprep.subr.bf16.mxu0 %v341
    %475 = vmatpush2.bf16.msra.mxu0 %v340
    %476 = vmatprep.subr.bf16.mxu0 %v339
    %477 = vmatpush2.bf16.msra.mxu0 %v338
    %478 = vmatprep.subr.bf16.mxu0 %v337
    %479 = vmatpush2.bf16.msra.mxu0 %v336
    %480 = vmatprep.mubr.bf16.mxu0 %v121
    %481 = vmatmul.mubr.bf16.gmra.mxu0 %v114
    %v482 = vpop.f32.mrf.mxu0
    %v483 = vadd.f32 %v92, %v482
    %v484 = vpop.f32.mrf.mxu0
    %v485 = vadd.f32 %v96, %v484
    %v486 = vpop.f32.mrf.mxu0
    %v487 = vpop.f32.mrf.mxu0
    %488 = vdwg.mxu0
    %489 = vmatprep.subr.bf16.mxu0 %v367
    %490 = vmatpush1.bf16.msra.mxu0 %v366
    %491 = vmatprep.subr.bf16.mxu0 %v365
    %492 = vmatpush1.bf16.msra.mxu0 %v364
    %493 = vmatprep.subr.bf16.mxu0 %v363
    %494 = vmatpush1.bf16.msra.mxu0 %v362
    %495 = vmatprep.subr.bf16.mxu0 %v361
    %496 = vmatpush1.bf16.msra.mxu0 %v360
    %497 = vmatprep.subr.bf16.mxu0 %v359
    %498 = vmatpush1.bf16.msra.mxu0 %v358
    %499 = vmatprep.subr.bf16.mxu0 %v357
    %500 = vmatpush1.bf16.msra.mxu0 %v356
    %501 = vmatprep.subr.bf16.mxu0 %v355
    %502 = vmatpush1.bf16.msra.mxu0 %v354
    %503 = vmatprep.subr.bf16.mxu0 %v353
    %504 = vmatpush1.bf16.msra.mxu0 %v352
    %505 = vmatprep.subr.bf16.mxu0 %v383
    %506 = vmatpush2.bf16.msra.mxu0 %v382
    %507 = vmatprep.subr.bf16.mxu0 %v381
    %508 = vmatpush2.bf16.msra.mxu0 %v380
    %509 = vmatprep.subr.bf16.mxu0 %v379
    %510 = vmatpush2.bf16.msra.mxu0 %v378
    %511 = vmatprep.subr.bf16.mxu0 %v377
    %512 = vmatpush2.bf16.msra.mxu0 %v376
    %513 = vmatprep.subr.bf16.mxu0 %v375
    %514 = vmatpush2.bf16.msra.mxu0 %v374
    %515 = vmatprep.subr.bf16.mxu0 %v373
    %516 = vmatpush2.bf16.msra.mxu0 %v372
    %517 = vmatprep.subr.bf16.mxu0 %v371
    %518 = vmatpush2.bf16.msra.mxu0 %v370
    %519 = vmatprep.subr.bf16.mxu0 %v369
    %520 = vmatpush2.bf16.msra.mxu0 %v368
    %521 = vmatprep.mubr.bf16.mxu0 %v123
    %522 = vmatmul.mubr.bf16.gmra.mxu0 %v122
    %v523 = vpop.f32.mrf.mxu0
    %v524 = vadd.f32 %v483, %v523
    %v525 = vpop.f32.mrf.mxu0
    %v526 = vadd.f32 %v485, %v525
    %v527 = vpop.f32.mrf.mxu0
    %v528 = vpop.f32.mrf.mxu0
    %529 = vdwg.mxu0
    %v530 = vmax.f32 %v524, 0.0
    %v531 = vmax.f32 %v526, 0.0
    %v532 = vpack.c.bf16 %v530, %v530
    %v533 = vpack.c.bf16 %v531, %v531
    %v534 = vld [vmem:[%s3] sm:$0xf]
    %v535 = vld [vmem:[%s3 + $0x4] sm:$0xf]
    %v536 = vld [vmem:[%s3 + $0x8] sm:$0xf]
    %v537 = vld [vmem:[%s3 + $0xc] sm:$0xf]
    %v538 = vld [vmem:[%s3 + $0x10] sm:$0xf]
    %v539 = vld [vmem:[%s3 + $0x14] sm:$0xf]
    %v540 = vld [vmem:[%s3 + $0x18] sm:$0xf]
    %v541 = vld [vmem:[%s3 + $0x1c] sm:$0xf]
    %v542 = vld [vmem:[%s3 + $0x20] sm:$0xf]
    %v543 = vld [vmem:[%s3 + $0x24] sm:$0xf]
    %v544 = vld [vmem:[%s3 + $0x28] sm:$0xf]
    %v545 = vld [vmem:[%s3 + $0x2c] sm:$0xf]
    %v546 = vld [vmem:[%s3 + $0x30] sm:$0xf]
    %v547 = vld [vmem:[%s3 + $0x34] sm:$0xf]
    %v548 = vld [vmem:[%s3 + $0x38] sm:$0xf]
    %v549 = vld [vmem:[%s3 + $0x3c] sm:$0xf]
    %v550 = vld [vmem:[%s3 + $0x40] sm:$0xf]
    %v551 = vld [vmem:[%s3 + $0x44] sm:$0xf]
    %v552 = vld [vmem:[%s3 + $0x48] sm:$0xf]
    %v553 = vld [vmem:[%s3 + $0x4c] sm:$0xf]
    %v554 = vld [vmem:[%s3 + $0x50] sm:$0xf]
    %v555 = vld [vmem:[%s3 + $0x54] sm:$0xf]
    %v556 = vld [vmem:[%s3 + $0x58] sm:$0xf]
    %v557 = vld [vmem:[%s3 + $0x5c] sm:$0xf]
    %v558 = vld [vmem:[%s3 + $0x60] sm:$0xf]
    %v559 = vld [vmem:[%s3 + $0x64] sm:$0xf]
    %v560 = vld [vmem:[%s3 + $0x68] sm:$0xf]
    %v561 = vld [vmem:[%s3 + $0x6c] sm:$0xf]
    %v562 = vld [vmem:[%s3 + $0x70] sm:$0xf]
    %v563 = vld [vmem:[%s3 + $0x74] sm:$0xf]
    %v564 = vld [vmem:[%s3 + $0x78] sm:$0xf]
    %v565 = vld [vmem:[%s3 + $0x7c] sm:$0xf]
    %v566 = vld [vmem:[%s4] sm:$0x1]
    %v568 = vlaneseq
    %v569 = vshrl.u32 %v568, 7
    %v570 = vsub.s32 0, %v569
    %v571 = vrot.slane %v566, %v570
    %v605 = vunpack.c.l.b16 %v534
    %v606 = vunpack.c.l.b16 %v535
    %v607 = vunpack.c.l.b16 %v536
    %v608 = vunpack.c.l.b16 %v537
    %v609 = vunpack.c.l.b16 %v538
    %v610 = vunpack.c.l.b16 %v539
    %v611 = vunpack.c.l.b16 %v540
    %v612 = vunpack.c.l.b16 %v541
    %v613 = vunpack.c.l.b16 %v542
    %v614 = vunpack.c.l.b16 %v543
    %v615 = vunpack.c.l.b16 %v544
    %v616 = vunpack.c.l.b16 %v545
    %v617 = vunpack.c.l.b16 %v546
    %v618 = vunpack.c.l.b16 %v547
    %v619 = vunpack.c.l.b16 %v548
    %v620 = vunpack.c.l.b16 %v549
    %v621 = vunpack.c.l.b16 %v550
    %v622 = vunpack.c.l.b16 %v551
    %v623 = vunpack.c.l.b16 %v552
    %v624 = vunpack.c.l.b16 %v553
    %v625 = vunpack.c.l.b16 %v554
    %v626 = vunpack.c.l.b16 %v555
    %v627 = vunpack.c.l.b16 %v556
    %v628 = vunpack.c.l.b16 %v557
    %v629 = vunpack.c.l.b16 %v558
    %v630 = vunpack.c.l.b16 %v559
    %v631 = vunpack.c.l.b16 %v560
    %v632 = vunpack.c.l.b16 %v561
    %v633 = vunpack.c.l.b16 %v562
    %v634 = vunpack.c.l.b16 %v563
    %v635 = vunpack.c.l.b16 %v564
    %v636 = vunpack.c.l.b16 %v565
    %v637 = vpack.c.b16 %v606, %v605
    %v638 = vpack.c.b16 %v608, %v607
    %v639 = vpack.c.b16 %v610, %v609
    %v640 = vpack.c.b16 %v612, %v611
    %v641 = vpack.c.b16 %v614, %v613
    %v642 = vpack.c.b16 %v616, %v615
    %v643 = vpack.c.b16 %v618, %v617
    %v644 = vpack.c.b16 %v620, %v619
    %v645 = vpack.c.b16 %v622, %v621
    %v646 = vpack.c.b16 %v624, %v623
    %v647 = vpack.c.b16 %v626, %v625
    %v648 = vpack.c.b16 %v628, %v627
    %v649 = vpack.c.b16 %v630, %v629
    %v650 = vpack.c.b16 %v632, %v631
    %v651 = vpack.c.b16 %v634, %v633
    %v652 = vpack.c.b16 %v636, %v635
    %669 = vmatprep.subr.bf16.mxu0 0
    %670 = vmatpush1.bf16.msra.mxu0 %v644
    %671 = vmatprep.subr.bf16.mxu0 0
    %672 = vmatpush1.bf16.msra.mxu0 %v643
    %673 = vmatprep.subr.bf16.mxu0 0
    %674 = vmatpush1.bf16.msra.mxu0 %v642
    %675 = vmatprep.subr.bf16.mxu0 0
    %676 = vmatpush1.bf16.msra.mxu0 %v641
    %677 = vmatprep.subr.bf16.mxu0 0
    %678 = vmatpush1.bf16.msra.mxu0 %v640
    %679 = vmatprep.subr.bf16.mxu0 0
    %680 = vmatpush1.bf16.msra.mxu0 %v639
    %681 = vmatprep.subr.bf16.mxu0 0
    %682 = vmatpush1.bf16.msra.mxu0 %v638
    %683 = vmatprep.subr.bf16.mxu0 0
    %684 = vmatpush1.bf16.msra.mxu0 %v637
    %685 = vmatprep.subr.bf16.mxu0 0
    %686 = vmatpush2.bf16.msra.mxu0 %v652
    %687 = vmatprep.subr.bf16.mxu0 0
    %688 = vmatpush2.bf16.msra.mxu0 %v651
    %689 = vmatprep.subr.bf16.mxu0 0
    %690 = vmatpush2.bf16.msra.mxu0 %v650
    %691 = vmatprep.subr.bf16.mxu0 0
    %692 = vmatpush2.bf16.msra.mxu0 %v649
    %693 = vmatprep.subr.bf16.mxu0 0
    %694 = vmatpush2.bf16.msra.mxu0 %v648
    %695 = vmatprep.subr.bf16.mxu0 0
    %696 = vmatpush2.bf16.msra.mxu0 %v647
    %697 = vmatprep.subr.bf16.mxu0 0
    %698 = vmatpush2.bf16.msra.mxu0 %v646
    %699 = vmatprep.subr.bf16.mxu0 0
    %700 = vmatpush2.bf16.msra.mxu0 %v645
    %701 = vmatprep.mubr.bf16.mxu0 %v533
    %702 = vmatmul.mubr.bf16.gmra.mxu0 %v532
    %v703 = vpop.f32.mrf.mxu0
    %v704 = vadd.f32 %v571, %v703
    %v705 = vpop.f32.mrf.mxu0
    %v706 = vpop.f32.mrf.mxu0
    %v707 = vpop.f32.mrf.mxu0
    %708 = vdwg.mxu0
    %709 = vst [vmem:[#allocation2] sm:$0x3] %v704
    // Predicated region
    $region22: #{baby_c3d_forward.11} parent=1 // pred_check
      _
    $region23: #{baby_c3d_forward.11} parent=1 // pred_check_branch
      %711 = sbr.rel (0) target = $region25
    $region24: #{baby_c3d_forward.11} parent=1 // pred_region
      %s713 = ssub.s32 32, 32
      %714 = vsyncadd [#allocation3], %s713
      %s716 = sshll.u32 [#allocation2], 4
      %s717 = int_to_ptr.vmem [resolvable:$true] %s716
      %719 = dma.vmem_to_hbm [thread:$0]  %s717, 32, %s5, [#allocation3]
    $region25: #{baby_c3d_forward.11} parent=1 // pred_fallthru
      _
    // Predicated region
    $region26: #{baby_c3d_forward.11} parent=1 // pred_check
      _
    $region27: #{baby_c3d_forward.11} parent=1 // pred_check_branch
      %721 = sbr.rel (0) target = $region29
    $region28: #{baby_c3d_forward.11} parent=1 // pred_region
      %722 = dma.done [#allocation3], 32
    $region29: #{baby_c3d_forward.11} parent=1 // pred_fallthru
      _
    %723 = vsyncpa [#allocation3], 1

// kernel: baby_c3d_forward.10
$region0: #{baby_c3d_forward.10}
  #allocation0 [shape = 'u32[]', space=smem, size = 0x4, offset = 0x4, fixed_abs, tag = 'smem constant byte address 0x4 - core index']
  #allocation1 [shape = 'u32[144,128]{1,0:T(1,128)}', space=vmem, size = 0x12000, scoped, tag = 'internal scratch']
  %s0 = inlined_call_operand.vmem [shape: bf16[4,6912], index: 0, kind: input, shape index: {}]
  %s1 = inlined_call_operand.vmem [shape: bf16[6912,256], index: 1, kind: input, shape index: {}]
  %s2 = inlined_call_operand.vmem [shape: f32[3,256], index: 2, kind: input, shape index: {}]
  %s3 = inlined_call_operand.vmem [shape: bf16[4,256], index: 3, kind: output, shape index: {}]
  %s4 = sld [smem:[#allocation0]]
  $region22: #{baby_c3d_forward.10} parent=0
    _
  %s6 = ssub.s32 1, %s4
  %s7 = scalar_select 0, %s6, %s4
  // Predicated region
  $region2: #{baby_c3d_forward.10} parent=0 // pred_check
    _
  $region3: #{baby_c3d_forward.10} parent=0 // pred_check_branch
    %9 = sbr.rel (0) target = $region5
  $region4: #{baby_c3d_forward.10} parent=0 // pred_region
    _
  $region5: #{baby_c3d_forward.10} parent=0 // pred_fallthru
    _
  // Predicated region
  $region6: #{baby_c3d_forward.10} parent=0 // pred_check
    _
  $region7: #{baby_c3d_forward.10} parent=0 // pred_check_branch
    %11 = sbr.rel (0) target = $region9
  $region8: #{baby_c3d_forward.10} parent=0 // pred_region
    _
  $region9: #{baby_c3d_forward.10} parent=0 // pred_fallthru
    _
  // Predicated region
  $region10: #{baby_c3d_forward.10} parent=0 // pred_check
    _
  $region11: #{baby_c3d_forward.10} parent=0 // pred_check_branch
    %13 = sbr.rel (0) target = $region13
  $region12: #{baby_c3d_forward.10} parent=0 // pred_region
    _
  $region13: #{baby_c3d_forward.10} parent=0 // pred_fallthru
    _
  %v14 = vld [vmem:[%s0] sm:$0xff]
  %v15 = vld [vmem:[%s0 + $0x8] sm:$0xff]
  %v16 = vld [vmem:[%s0 + $0x10] sm:$0xff]
  %v17 = vld [vmem:[%s0 + $0x18] sm:$0xff]
  %v18 = vld [vmem:[%s0 + $0x20] sm:$0xff]
  %v19 = vld [vmem:[%s0 + $0x28] sm:$0xff]
  %v20 = vld [vmem:[%s0 + $0x30] sm:$0xff]
  %v21 = vld [vmem:[%s0 + $0x38] sm:$0xff]
  %v22 = vld [vmem:[%s0 + $0x40] sm:$0xff]
  %v23 = vld [vmem:[%s0 + $0x48] sm:$0xff]
  %v24 = vld [vmem:[%s0 + $0x50] sm:$0xff]
  %v25 = vld [vmem:[%s0 + $0x58] sm:$0xff]
  %v26 = vld [vmem:[%s0 + $0x60] sm:$0xff]
  %v27 = vld [vmem:[%s0 + $0x68] sm:$0xf]
  %v28 = vld [vmem:[%s1] sm:$0xff]
  %v29 = vld [vmem:[%s1 + $0x8] sm:$0xff]
  %v30 = vld [vmem:[%s1 + $0x10] sm:$0xff]
  %v31 = vld [vmem:[%s1 + $0x18] sm:$0xff]
  %v32 = vld [vmem:[%s1 + $0x20] sm:$0xff]
  %v33 = vld [vmem:[%s1 + $0x28] sm:$0xff]
  %v34 = vld [vmem:[%s1 + $0x30] sm:$0xff]
  %v35 = vld [vmem:[%s1 + $0x38] sm:$0xff]
  %v36 = vld [vmem:[%s1 + $0x40] sm:$0xff]
  %v37 = vld [vmem:[%s1 + $0x48] sm:$0xff]
  %v38 = vld [vmem:[%s1 + $0x50] sm:$0xff]
  %v39 = vld [vmem:[%s1 + $0x58] sm:$0xff]
  %v40 = vld [vmem:[%s1 + $0x60] sm:$0xff]
  %v41 = vld [vmem:[%s1 + $0x68] sm:$0xff]
  %v42 = vld [vmem:[%s1 + $0x70] sm:$0xff]
  %v43 = vld [vmem:[%s1 + $0x78] sm:$0xff]
  %v44 = vld [vmem:[%s1 + $0x80] sm:$0xff]
  %v45 = vld [vmem:[%s1 + $0x88] sm:$0xff]
  %v46 = vld [vmem:[%s1 + $0x90] sm:$0xff]
  %v47 = vld [vmem:[%s1 + $0x98] sm:$0xff]
  %v48 = vld [vmem:[%s1 + $0xa0] sm:$0xff]
  %v49 = vld [vmem:[%s1 + $0xa8] sm:$0xff]
  %v50 = vld [vmem:[%s1 + $0xb0] sm:$0xff]
  %v51 = vld [vmem:[%s1 + $0xb8] sm:$0xff]
  %v52 = vld [vmem:[%s1 + $0xc0] sm:$0xff]
  %v53 = vld [vmem:[%s1 + $0xc8] sm:$0xff]
  %v54 = vld [vmem:[%s1 + $0xd0] sm:$0xff]
  %v55 = vld [vmem:[%s1 + $0xd8] sm:$0xff]
  %v56 = vld [vmem:[%s1 + $0xe0] sm:$0xff]
  %v57 = vld [vmem:[%s1 + $0xe8] sm:$0xff]
  %v58 = vld [vmem:[%s1 + $0xf0] sm:$0xff]
  %v59 = vld [vmem:[%s1 + $0xf8] sm:$0xff]
  %v60 = vld [vmem:[%s1 + $0x100] sm:$0xff]
  %v61 = vld [vmem:[%s1 + $0x108] sm:$0xff]
  %v62 = vld [vmem:[%s1 + $0x110] sm:$0xff]
  %v63 = vld [vmem:[%s1 + $0x118] sm:$0xff]
  %v64 = vld [vmem:[%s1 + $0x120] sm:$0xff]
  %v65 = vld [vmem:[%s1 + $0x128] sm:$0xff]
  %v66 = vld [vmem:[%s1 + $0x130] sm:$0xff]
  %v67 = vld [vmem:[%s1 + $0x138] sm:$0xff]
  %v68 = vld [vmem:[%s1 + $0x140] sm:$0xff]
  %v69 = vld [vmem:[%s1 + $0x148] sm:$0xff]
  %v70 = vld [vmem:[%s1 + $0x150] sm:$0xff]
  %v71 = vld [vmem:[%s1 + $0x158] sm:$0xff]
  %v72 = vld [vmem:[%s1 + $0x160] sm:$0xff]
  %v73 = vld [vmem:[%s1 + $0x168] sm:$0xff]
  %v74 = vld [vmem:[%s1 + $0x170] sm:$0xff]
  %v75 = vld [vmem:[%s1 + $0x178] sm:$0xff]
  %v76 = vld [vmem:[%s1 + $0x180] sm:$0xff]
  %v77 = vld [vmem:[%s1 + $0x188] sm:$0xff]
  %v78 = vld [vmem:[%s1 + $0x190] sm:$0xff]
  %v79 = vld [vmem:[%s1 + $0x198] sm:$0xff]
  %v80 = vld [vmem:[%s1 + $0x1a0] sm:$0xff]
  %v81 = vld [vmem:[%s1 + $0x1a8] sm:$0xff]
  %v82 = vld [vmem:[%s1 + $0x1b0] sm:$0xff]
  %v83 = vld [vmem:[%s1 + $0x1b8] sm:$0xff]
  %v84 = vld [vmem:[%s1 + $0x1c0] sm:$0xff]
  %v85 = vld [vmem:[%s1 + $0x1c8] sm:$0xff]
  %v86 = vld [vmem:[%s1 + $0x1d0] sm:$0xff]
  %v87 = vld [vmem:[%s1 + $0x1d8] sm:$0xff]
  %v88 = vld [vmem:[%s1 + $0x1e0] sm:$0xff]
  %v89 = vld [vmem:[%s1 + $0x1e8] sm:$0xff]
  %v90 = vld [vmem:[%s1 + $0x1f0] sm:$0xff]
  %v91 = vld [vmem:[%s1 + $0x1f8] sm:$0xff]
  %v92 = vld [vmem:[%s1 + $0x200] sm:$0xff]
  %v93 = vld [vmem:[%s1 + $0x208] sm:$0xff]
  %v94 = vld [vmem:[%s1 + $0x210] sm:$0xff]
  %v95 = vld [vmem:[%s1 + $0x218] sm:$0xff]
  %v96 = vld [vmem:[%s1 + $0x220] sm:$0xff]
  %v97 = vld [vmem:[%s1 + $0x228] sm:$0xff]
  %v98 = vld [vmem:[%s1 + $0x230] sm:$0xff]
  %v99 = vld [vmem:[%s1 + $0x238] sm:$0xff]
  %v100 = vld [vmem:[%s1 + $0x240] sm:$0xff]
  %v101 = vld [vmem:[%s1 + $0x248] sm:$0xff]
  %v102 = vld [vmem:[%s1 + $0x250] sm:$0xff]
  %v103 = vld [vmem:[%s1 + $0x258] sm:$0xff]
  %v104 = vld [vmem:[%s1 + $0x260] sm:$0xff]
  %v105 = vld [vmem:[%s1 + $0x268] sm:$0xff]
  %v106 = vld [vmem:[%s1 + $0x270] sm:$0xff]
  %v107 = vld [vmem:[%s1 + $0x278] sm:$0xff]
  %v108 = vld [vmem:[%s1 + $0x280] sm:$0xff]
  %v109 = vld [vmem:[%s1 + $0x288] sm:$0xff]
  %v110 = vld [vmem:[%s1 + $0x290] sm:$0xff]
  %v111 = vld [vmem:[%s1 + $0x298] sm:$0xff]
  %v112 = vld [vmem:[%s1 + $0x2a0] sm:$0xff]
  %v113 = vld [vmem:[%s1 + $0x2a8] sm:$0xff]
  %v114 = vld [vmem:[%s1 + $0x2b0] sm:$0xff]
  %v115 = vld [vmem:[%s1 + $0x2b8] sm:$0xff]
  %v116 = vld [vmem:[%s1 + $0x2c0] sm:$0xff]
  %v117 = vld [vmem:[%s1 + $0x2c8] sm:$0xff]
  %v118 = vld [vmem:[%s1 + $0x2d0] sm:$0xff]
  %v119 = vld [vmem:[%s1 + $0x2d8] sm:$0xff]
  %v120 = vld [vmem:[%s1 + $0x2e0] sm:$0xff]
  %v121 = vld [vmem:[%s1 + $0x2e8] sm:$0xff]
  %v122 = vld [vmem:[%s1 + $0x2f0] sm:$0xff]
  %v123 = vld [vmem:[%s1 + $0x2f8] sm:$0xff]
  %v124 = vld [vmem:[%s1 + $0x300] sm:$0xff]
  %v125 = vld [vmem:[%s1 + $0x308] sm:$0xff]
  %v126 = vld [vmem:[%s1 + $0x310] sm:$0xff]
  %v127 = vld [vmem:[%s1 + $0x318] sm:$0xff]
  %v128 = vld [vmem:[%s1 + $0x320] sm:$0xff]
  %v129 = vld [vmem:[%s1 + $0x328] sm:$0xff]
  %v130 = vld [vmem:[%s1 + $0x330] sm:$0xff]
  %v131 = vld [vmem:[%s1 + $0x338] sm:$0xff]
  %v132 = vld [vmem:[%s1 + $0x340] sm:$0xff]
  %v133 = vld [vmem:[%s1 + $0x348] sm:$0xff]
  %v134 = vld [vmem:[%s1 + $0x350] sm:$0xff]
  %v135 = vld [vmem:[%s1 + $0x358] sm:$0xff]
  %v136 = vld [vmem:[%s1 + $0x360] sm:$0xff]
  %v137 = vld [vmem:[%s1 + $0x368] sm:$0xff]
  %v138 = vld [vmem:[%s1 + $0x370] sm:$0xff]
  %v139 = vld [vmem:[%s1 + $0x378] sm:$0xff]
  %v140 = vld [vmem:[%s1 + $0x380] sm:$0xff]
  %v141 = vld [vmem:[%s1 + $0x388] sm:$0xff]
  %v142 = vld [vmem:[%s1 + $0x390] sm:$0xff]
  %v143 = vld [vmem:[%s1 + $0x398] sm:$0xff]
  %v144 = vld [vmem:[%s1 + $0x3a0] sm:$0xff]
  %v145 = vld [vmem:[%s1 + $0x3a8] sm:$0xff]
  %v146 = vld [vmem:[%s1 + $0x3b0] sm:$0xff]
  %v147 = vld [vmem:[%s1 + $0x3b8] sm:$0xff]
  %v148 = vld [vmem:[%s1 + $0x3c0] sm:$0xff]
  %v149 = vld [vmem:[%s1 + $0x3c8] sm:$0xff]
  %v150 = vld [vmem:[%s1 + $0x3d0] sm:$0xff]
  %v151 = vld [vmem:[%s1 + $0x3d8] sm:$0xff]
  %v152 = vld [vmem:[%s1 + $0x3e0] sm:$0xff]
  %v153 = vld [vmem:[%s1 + $0x3e8] sm:$0xff]
  %v154 = vld [vmem:[%s1 + $0x3f0] sm:$0xff]
  %v155 = vld [vmem:[%s1 + $0x3f8] sm:$0xff]
  %v156 = vld [vmem:[%s1 + $0x400] sm:$0xff]
  %v157 = vld [vmem:[%s1 + $0x408] sm:$0xff]
  %v158 = vld [vmem:[%s1 + $0x410] sm:$0xff]
  %v159 = vld [vmem:[%s1 + $0x418] sm:$0xff]
  %v160 = vld [vmem:[%s1 + $0x420] sm:$0xff]
  %v161 = vld [vmem:[%s1 + $0x428] sm:$0xff]
  %v162 = vld [vmem:[%s1 + $0x430] sm:$0xff]
  %v163 = vld [vmem:[%s1 + $0x438] sm:$0xff]
  %v164 = vld [vmem:[%s1 + $0x440] sm:$0xff]
  %v165 = vld [vmem:[%s1 + $0x448] sm:$0xff]
  %v166 = vld [vmem:[%s1 + $0x450] sm:$0xff]
  %v167 = vld [vmem:[%s1 + $0x458] sm:$0xff]
  %v168 = vld [vmem:[%s1 + $0x460] sm:$0xff]
  %v169 = vld [vmem:[%s1 + $0x468] sm:$0xff]
  %v170 = vld [vmem:[%s1 + $0x470] sm:$0xff]
  %v171 = vld [vmem:[%s1 + $0x478] sm:$0xff]
  %v172 = vld [vmem:[%s1 + $0x480] sm:$0xff]
  %v173 = vld [vmem:[%s1 + $0x488] sm:$0xff]
  %v174 = vld [vmem:[%s1 + $0x490] sm:$0xff]
  %v175 = vld [vmem:[%s1 + $0x498] sm:$0xff]
  %v176 = vld [vmem:[%s1 + $0x4a0] sm:$0xff]
  %v177 = vld [vmem:[%s1 + $0x4a8] sm:$0xff]
  %v178 = vld [vmem:[%s1 + $0x4b0] sm:$0xff]
  %v179 = vld [vmem:[%s1 + $0x4b8] sm:$0xff]
  %v180 = vld [vmem:[%s1 + $0x4c0] sm:$0xff]
  %v181 = vld [vmem:[%s1 + $0x4c8] sm:$0xff]
  %v182 = vld [vmem:[%s1 + $0x4d0] sm:$0xff]
  %v183 = vld [vmem:[%s1 + $0x4d8] sm:$0xff]
  %v184 = vld [vmem:[%s1 + $0x4e0] sm:$0xff]
  %v185 = vld [vmem:[%s1 + $0x4e8] sm:$0xff]
  %v186 = vld [vmem:[%s1 + $0x4f0] sm:$0xff]
  %v187 = vld [vmem:[%s1 + $0x4f8] sm:$0xff]
  %v188 = vld [vmem:[%s1 + $0x500] sm:$0xff]
  %v189 = vld [vmem:[%s1 + $0x508] sm:$0xff]
  %v190 = vld [vmem:[%s1 + $0x510] sm:$0xff]
  %v191 = vld [vmem:[%s1 + $0x518] sm:$0xff]
  %v192 = vld [vmem:[%s1 + $0x520] sm:$0xff]
  %v193 = vld [vmem:[%s1 + $0x528] sm:$0xff]
  %v194 = vld [vmem:[%s1 + $0x530] sm:$0xff]
  %v195 = vld [vmem:[%s1 + $0x538] sm:$0xff]
  %v196 = vld [vmem:[%s1 + $0x540] sm:$0xff]
  %v197 = vld [vmem:[%s1 + $0x548] sm:$0xff]
  %v198 = vld [vmem:[%s1 + $0x550] sm:$0xff]
  %v199 = vld [vmem:[%s1 + $0x558] sm:$0xff]
  %v200 = vld [vmem:[%s1 + $0x560] sm:$0xff]
  %v201 = vld [vmem:[%s1 + $0x568] sm:$0xff]
  %v202 = vld [vmem:[%s1 + $0x570] sm:$0xff]
  %v203 = vld [vmem:[%s1 + $0x578] sm:$0xff]
  %v204 = vld [vmem:[%s1 + $0x580] sm:$0xff]
  %v205 = vld [vmem:[%s1 + $0x588] sm:$0xff]
  %v206 = vld [vmem:[%s1 + $0x590] sm:$0xff]
  %v207 = vld [vmem:[%s1 + $0x598] sm:$0xff]
  %v208 = vld [vmem:[%s1 + $0x5a0] sm:$0xff]
  %v209 = vld [vmem:[%s1 + $0x5a8] sm:$0xff]
  %v210 = vld [vmem:[%s1 + $0x5b0] sm:$0xff]
  %v211 = vld [vmem:[%s1 + $0x5b8] sm:$0xff]
  %v212 = vld [vmem:[%s1 + $0x5c0] sm:$0xff]
  %v213 = vld [vmem:[%s1 + $0x5c8] sm:$0xff]
  %v214 = vld [vmem:[%s1 + $0x5d0] sm:$0xff]
  %v215 = vld [vmem:[%s1 + $0x5d8] sm:$0xff]
  %v216 = vld [vmem:[%s1 + $0x5e0] sm:$0xff]
  %v217 = vld [vmem:[%s1 + $0x5e8] sm:$0xff]
  %v218 = vld [vmem:[%s1 + $0x5f0] sm:$0xff]
  %v219 = vld [vmem:[%s1 + $0x5f8] sm:$0xff]
  %v220 = vld [vmem:[%s1 + $0x600] sm:$0xff]
  %v221 = vld [vmem:[%s1 + $0x608] sm:$0xff]
  %v222 = vld [vmem:[%s1 + $0x610] sm:$0xff]
  %v223 = vld [vmem:[%s1 + $0x618] sm:$0xff]
  %v224 = vld [vmem:[%s1 + $0x620] sm:$0xff]
  %v225 = vld [vmem:[%s1 + $0x628] sm:$0xff]
  %v226 = vld [vmem:[%s1 + $0x630] sm:$0xff]
  %v227 = vld [vmem:[%s1 + $0x638] sm:$0xff]
  %v228 = vld [vmem:[%s1 + $0x640] sm:$0xff]
  %v229 = vld [vmem:[%s1 + $0x648] sm:$0xff]
  %v230 = vld [vmem:[%s1 + $0x650] sm:$0xff]
  %v231 = vld [vmem:[%s1 + $0x658] sm:$0xff]
  %v232 = vld [vmem:[%s1 + $0x660] sm:$0xff]
  %v233 = vld [vmem:[%s1 + $0x668] sm:$0xff]
  %v234 = vld [vmem:[%s1 + $0x670] sm:$0xff]
  %v235 = vld [vmem:[%s1 + $0x678] sm:$0xff]
  %v236 = vld [vmem:[%s1 + $0x680] sm:$0xff]
  %v237 = vld [vmem:[%s1 + $0x688] sm:$0xff]
  %v238 = vld [vmem:[%s1 + $0x690] sm:$0xff]
  %v239 = vld [vmem:[%s1 + $0x698] sm:$0xff]
  %v240 = vld [vmem:[%s1 + $0x6a0] sm:$0xff]
  %v241 = vld [vmem:[%s1 + $0x6a8] sm:$0xff]
  %v242 = vld [vmem:[%s1 + $0x6b0] sm:$0xff]
  %v243 = vld [vmem:[%s1 + $0x6b8] sm:$0xff]
  %v244 = vld [vmem:[%s1 + $0x6c0] sm:$0xff]
  %v245 = vld [vmem:[%s1 + $0x6c8] sm:$0xff]
  %v246 = vld [vmem:[%s1 + $0x6d0] sm:$0xff]
  %v247 = vld [vmem:[%s1 + $0x6d8] sm:$0xff]
  %v248 = vld [vmem:[%s1 + $0x6e0] sm:$0xff]
  %v249 = vld [vmem:[%s1 + $0x6e8] sm:$0xff]
  %v250 = vld [vmem:[%s1 + $0x6f0] sm:$0xff]
  %v251 = vld [vmem:[%s1 + $0x6f8] sm:$0xff]
  %v252 = vld [vmem:[%s1 + $0x700] sm:$0xff]
  %v253 = vld [vmem:[%s1 + $0x708] sm:$0xff]
  %v254 = vld [vmem:[%s1 + $0x710] sm:$0xff]
  %v255 = vld [vmem:[%s1 + $0x718] sm:$0xff]
  %v256 = vld [vmem:[%s1 + $0x720] sm:$0xff]
  %v257 = vld [vmem:[%s1 + $0x728] sm:$0xff]
  %v258 = vld [vmem:[%s1 + $0x730] sm:$0xff]
  %v259 = vld [vmem:[%s1 + $0x738] sm:$0xff]
  %v260 = vld [vmem:[%s1 + $0x740] sm:$0xff]
  %v261 = vld [vmem:[%s1 + $0x748] sm:$0xff]
  %v262 = vld [vmem:[%s1 + $0x750] sm:$0xff]
  %v263 = vld [vmem:[%s1 + $0x758] sm:$0xff]
  %v264 = vld [vmem:[%s1 + $0x760] sm:$0xff]
  %v265 = vld [vmem:[%s1 + $0x768] sm:$0xff]
  %v266 = vld [vmem:[%s1 + $0x770] sm:$0xff]
  %v267 = vld [vmem:[%s1 + $0x778] sm:$0xff]
  %v268 = vld [vmem:[%s1 + $0x780] sm:$0xff]
  %v269 = vld [vmem:[%s1 + $0x788] sm:$0xff]
  %v270 = vld [vmem:[%s1 + $0x790] sm:$0xff]
  %v271 = vld [vmem:[%s1 + $0x798] sm:$0xff]
  %v272 = vld [vmem:[%s1 + $0x7a0] sm:$0xff]
  %v273 = vld [vmem:[%s1 + $0x7a8] sm:$0xff]
  %v274 = vld [vmem:[%s1 + $0x7b0] sm:$0xff]
  %v275 = vld [vmem:[%s1 + $0x7b8] sm:$0xff]
  %v276 = vld [vmem:[%s1 + $0x7c0] sm:$0xff]
  %v277 = vld [vmem:[%s1 + $0x7c8] sm:$0xff]
  %v278 = vld [vmem:[%s1 + $0x7d0] sm:$0xff]
  %v279 = vld [vmem:[%s1 + $0x7d8] sm:$0xff]
  %v280 = vld [vmem:[%s1 + $0x7e0] sm:$0xff]
  %v281 = vld [vmem:[%s1 + $0x7e8] sm:$0xff]
  %v282 = vld [vmem:[%s1 + $0x7f0] sm:$0xff]
  %v283 = vld [vmem:[%s1 + $0x7f8] sm:$0xff]
  %v284 = vld [vmem:[%s1 + $0x800] sm:$0xff]
  %v285 = vld [vmem:[%s1 + $0x808] sm:$0xff]
  %v286 = vld [vmem:[%s1 + $0x810] sm:$0xff]
  %v287 = vld [vmem:[%s1 + $0x818] sm:$0xff]
  %v288 = vld [vmem:[%s1 + $0x820] sm:$0xff]
  %v289 = vld [vmem:[%s1 + $0x828] sm:$0xff]
  %v290 = vld [vmem:[%s1 + $0x830] sm:$0xff]
  %v291 = vld [vmem:[%s1 + $0x838] sm:$0xff]
  %v292 = vld [vmem:[%s1 + $0x840] sm:$0xff]
  %v293 = vld [vmem:[%s1 + $0x848] sm:$0xff]
  %v294 = vld [vmem:[%s1 + $0x850] sm:$0xff]
  %v295 = vld [vmem:[%s1 + $0x858] sm:$0xff]
  %v296 = vld [vmem:[%s1 + $0x860] sm:$0xff]
  %v297 = vld [vmem:[%s1 + $0x868] sm:$0xff]
  %v298 = vld [vmem:[%s1 + $0x870] sm:$0xff]
  %v299 = vld [vmem:[%s1 + $0x878] sm:$0xff]
  %v300 = vld [vmem:[%s1 + $0x880] sm:$0xff]
  %v301 = vld [vmem:[%s1 + $0x888] sm:$0xff]
  %v302 = vld [vmem:[%s1 + $0x890] sm:$0xff]
  %v303 = vld [vmem:[%s1 + $0x898] sm:$0xff]
  %v304 = vld [vmem:[%s1 + $0x8a0] sm:$0xff]
  %v305 = vld [vmem:[%s1 + $0x8a8] sm:$0xff]
  %v306 = vld [vmem:[%s1 + $0x8b0] sm:$0xff]
  %v307 = vld [vmem:[%s1 + $0x8b8] sm:$0xff]
  %v308 = vld [vmem:[%s1 + $0x8c0] sm:$0xff]
  %v309 = vld [vmem:[%s1 + $0x8c8] sm:$0xff]
  %v310 = vld [vmem:[%s1 + $0x8d0] sm:$0xff]
  %v311 = vld [vmem:[%s1 + $0x8d8] sm:$0xff]
  %v312 = vld [vmem:[%s1 + $0x8e0] sm:$0xff]
  %v313 = vld [vmem:[%s1 + $0x8e8] sm:$0xff]
  %v314 = vld [vmem:[%s1 + $0x8f0] sm:$0xff]
  %v315 = vld [vmem:[%s1 + $0x8f8] sm:$0xff]
  %v316 = vld [vmem:[%s1 + $0x900] sm:$0xff]
  %v317 = vld [vmem:[%s1 + $0x908] sm:$0xff]
  %v318 = vld [vmem:[%s1 + $0x910] sm:$0xff]
  %v319 = vld [vmem:[%s1 + $0x918] sm:$0xff]
  %v320 = vld [vmem:[%s1 + $0x920] sm:$0xff]
  %v321 = vld [vmem:[%s1 + $0x928] sm:$0xff]
  %v322 = vld [vmem:[%s1 + $0x930] sm:$0xff]
  %v323 = vld [vmem:[%s1 + $0x938] sm:$0xff]
  %v324 = vld [vmem:[%s1 + $0x940] sm:$0xff]
  %v325 = vld [vmem:[%s1 + $0x948] sm:$0xff]
  %v326 = vld [vmem:[%s1 + $0x950] sm:$0xff]
  %v327 = vld [vmem:[%s1 + $0x958] sm:$0xff]
  %v328 = vld [vmem:[%s1 + $0x960] sm:$0xff]
  %v329 = vld [vmem:[%s1 + $0x968] sm:$0xff]
  %v330 = vld [vmem:[%s1 + $0x970] sm:$0xff]
  %v331 = vld [vmem:[%s1 + $0x978] sm:$0xff]
  %v332 = vld [vmem:[%s1 + $0x980] sm:$0xff]
  %v333 = vld [vmem:[%s1 + $0x988] sm:$0xff]
  %v334 = vld [vmem:[%s1 + $0x990] sm:$0xff]
  %v335 = vld [vmem:[%s1 + $0x998] sm:$0xff]
  %v336 = vld [vmem:[%s1 + $0x9a0] sm:$0xff]
  %v337 = vld [vmem:[%s1 + $0x9a8] sm:$0xff]
  %v338 = vld [vmem:[%s1 + $0x9b0] sm:$0xff]
  %v339 = vld [vmem:[%s1 + $0x9b8] sm:$0xff]
  %v340 = vld [vmem:[%s1 + $0x9c0] sm:$0xff]
  %v341 = vld [vmem:[%s1 + $0x9c8] sm:$0xff]
  %v342 = vld [vmem:[%s1 + $0x9d0] sm:$0xff]
  %v343 = vld [vmem:[%s1 + $0x9d8] sm:$0xff]
  %v344 = vld [vmem:[%s1 + $0x9e0] sm:$0xff]
  %v345 = vld [vmem:[%s1 + $0x9e8] sm:$0xff]
  %v346 = vld [vmem:[%s1 + $0x9f0] sm:$0xff]
  %v347 = vld [vmem:[%s1 + $0x9f8] sm:$0xff]
  %v348 = vld [vmem:[%s1 + $0xa00] sm:$0xff]
  %v349 = vld [vmem:[%s1 + $0xa08] sm:$0xff]
  %v350 = vld [vmem:[%s1 + $0xa10] sm:$0xff]
  %v351 = vld [vmem:[%s1 + $0xa18] sm:$0xff]
  %v352 = vld [vmem:[%s1 + $0xa20] sm:$0xff]
  %v353 = vld [vmem:[%s1 + $0xa28] sm:$0xff]
  %v354 = vld [vmem:[%s1 + $0xa30] sm:$0xff]
  %v355 = vld [vmem:[%s1 + $0xa38] sm:$0xff]
  %v356 = vld [vmem:[%s1 + $0xa40] sm:$0xff]
  %v357 = vld [vmem:[%s1 + $0xa48] sm:$0xff]
  %v358 = vld [vmem:[%s1 + $0xa50] sm:$0xff]
  %v359 = vld [vmem:[%s1 + $0xa58] sm:$0xff]
  %v360 = vld [vmem:[%s1 + $0xa60] sm:$0xff]
  %v361 = vld [vmem:[%s1 + $0xa68] sm:$0xff]
  %v362 = vld [vmem:[%s1 + $0xa70] sm:$0xff]
  %v363 = vld [vmem:[%s1 + $0xa78] sm:$0xff]
  %v364 = vld [vmem:[%s1 + $0xa80] sm:$0xff]
  %v365 = vld [vmem:[%s1 + $0xa88] sm:$0xff]
  %v366 = vld [vmem:[%s1 + $0xa90] sm:$0xff]
  %v367 = vld [vmem:[%s1 + $0xa98] sm:$0xff]
  %v368 = vld [vmem:[%s1 + $0xaa0] sm:$0xff]
  %v369 = vld [vmem:[%s1 + $0xaa8] sm:$0xff]
  %v370 = vld [vmem:[%s1 + $0xab0] sm:$0xff]
  %v371 = vld [vmem:[%s1 + $0xab8] sm:$0xff]
  %v372 = vld [vmem:[%s1 + $0xac0] sm:$0xff]
  %v373 = vld [vmem:[%s1 + $0xac8] sm:$0xff]
  %v374 = vld [vmem:[%s1 + $0xad0] sm:$0xff]
  %v375 = vld [vmem:[%s1 + $0xad8] sm:$0xff]
  %v376 = vld [vmem:[%s1 + $0xae0] sm:$0xff]
  %v377 = vld [vmem:[%s1 + $0xae8] sm:$0xff]
  %v378 = vld [vmem:[%s1 + $0xaf0] sm:$0xff]
  %v379 = vld [vmem:[%s1 + $0xaf8] sm:$0xff]
  %v380 = vld [vmem:[%s1 + $0xb00] sm:$0xff]
  %v381 = vld [vmem:[%s1 + $0xb08] sm:$0xff]
  %v382 = vld [vmem:[%s1 + $0xb10] sm:$0xff]
  %v383 = vld [vmem:[%s1 + $0xb18] sm:$0xff]
  %v384 = vld [vmem:[%s1 + $0xb20] sm:$0xff]
  %v385 = vld [vmem:[%s1 + $0xb28] sm:$0xff]
  %v386 = vld [vmem:[%s1 + $0xb30] sm:$0xff]
  %v387 = vld [vmem:[%s1 + $0xb38] sm:$0xff]
  %v388 = vld [vmem:[%s1 + $0xb40] sm:$0xff]
  %v389 = vld [vmem:[%s1 + $0xb48] sm:$0xff]
  %v390 = vld [vmem:[%s1 + $0xb50] sm:$0xff]
  %v391 = vld [vmem:[%s1 + $0xb58] sm:$0xff]
  %v392 = vld [vmem:[%s1 + $0xb60] sm:$0xff]
  %v393 = vld [vmem:[%s1 + $0xb68] sm:$0xff]
  %v394 = vld [vmem:[%s1 + $0xb70] sm:$0xff]
  %v395 = vld [vmem:[%s1 + $0xb78] sm:$0xff]
  %v396 = vld [vmem:[%s1 + $0xb80] sm:$0xff]
  %v397 = vld [vmem:[%s1 + $0xb88] sm:$0xff]
  %v398 = vld [vmem:[%s1 + $0xb90] sm:$0xff]
  %v399 = vld [vmem:[%s1 + $0xb98] sm:$0xff]
  %v400 = vld [vmem:[%s1 + $0xba0] sm:$0xff]
  %v401 = vld [vmem:[%s1 + $0xba8] sm:$0xff]
  %v402 = vld [vmem:[%s1 + $0xbb0] sm:$0xff]
  %v403 = vld [vmem:[%s1 + $0xbb8] sm:$0xff]
  %v404 = vld [vmem:[%s1 + $0xbc0] sm:$0xff]
  %v405 = vld [vmem:[%s1 + $0xbc8] sm:$0xff]
  %v406 = vld [vmem:[%s1 + $0xbd0] sm:$0xff]
  %v407 = vld [vmem:[%s1 + $0xbd8] sm:$0xff]
  %v408 = vld [vmem:[%s1 + $0xbe0] sm:$0xff]
  %v409 = vld [vmem:[%s1 + $0xbe8] sm:$0xff]
  %v410 = vld [vmem:[%s1 + $0xbf0] sm:$0xff]
  %v411 = vld [vmem:[%s1 + $0xbf8] sm:$0xff]
  %v412 = vld [vmem:[%s1 + $0xc00] sm:$0xff]
  %v413 = vld [vmem:[%s1 + $0xc08] sm:$0xff]
  %v414 = vld [vmem:[%s1 + $0xc10] sm:$0xff]
  %v415 = vld [vmem:[%s1 + $0xc18] sm:$0xff]
  %v416 = vld [vmem:[%s1 + $0xc20] sm:$0xff]
  %v417 = vld [vmem:[%s1 + $0xc28] sm:$0xff]
  %v418 = vld [vmem:[%s1 + $0xc30] sm:$0xff]
  %v419 = vld [vmem:[%s1 + $0xc38] sm:$0xff]
  %v420 = vld [vmem:[%s1 + $0xc40] sm:$0xff]
  %v421 = vld [vmem:[%s1 + $0xc48] sm:$0xff]
  %v422 = vld [vmem:[%s1 + $0xc50] sm:$0xff]
  %v423 = vld [vmem:[%s1 + $0xc58] sm:$0xff]
  %v424 = vld [vmem:[%s1 + $0xc60] sm:$0xff]
  %v425 = vld [vmem:[%s1 + $0xc68] sm:$0xff]
  %v426 = vld [vmem:[%s1 + $0xc70] sm:$0xff]
  %v427 = vld [vmem:[%s1 + $0xc78] sm:$0xff]
  %v428 = vld [vmem:[%s1 + $0xc80] sm:$0xff]
  %v429 = vld [vmem:[%s1 + $0xc88] sm:$0xff]
  %v430 = vld [vmem:[%s1 + $0xc90] sm:$0xff]
  %v431 = vld [vmem:[%s1 + $0xc98] sm:$0xff]
  %v432 = vld [vmem:[%s1 + $0xca0] sm:$0xff]
  %v433 = vld [vmem:[%s1 + $0xca8] sm:$0xff]
  %v434 = vld [vmem:[%s1 + $0xcb0] sm:$0xff]
  %v435 = vld [vmem:[%s1 + $0xcb8] sm:$0xff]
  %v436 = vld [vmem:[%s1 + $0xcc0] sm:$0xff]
  %v437 = vld [vmem:[%s1 + $0xcc8] sm:$0xff]
  %v438 = vld [vmem:[%s1 + $0xcd0] sm:$0xff]
  %v439 = vld [vmem:[%s1 + $0xcd8] sm:$0xff]
  %v440 = vld [vmem:[%s1 + $0xce0] sm:$0xff]
  %v441 = vld [vmem:[%s1 + $0xce8] sm:$0xff]
  %v442 = vld [vmem:[%s1 + $0xcf0] sm:$0xff]
  %v443 = vld [vmem:[%s1 + $0xcf8] sm:$0xff]
  %v444 = vld [vmem:[%s1 + $0xd00] sm:$0xff]
  %v445 = vld [vmem:[%s1 + $0xd08] sm:$0xff]
  %v446 = vld [vmem:[%s1 + $0xd10] sm:$0xff]
  %v447 = vld [vmem:[%s1 + $0xd18] sm:$0xff]
  %v448 = vld [vmem:[%s1 + $0xd20] sm:$0xff]
  %v449 = vld [vmem:[%s1 + $0xd28] sm:$0xff]
  %v450 = vld [vmem:[%s1 + $0xd30] sm:$0xff]
  %v451 = vld [vmem:[%s1 + $0xd38] sm:$0xff]
  %v452 = vld [vmem:[%s1 + $0xd40] sm:$0xff]
  %v453 = vld [vmem:[%s1 + $0xd48] sm:$0xff]
  %v454 = vld [vmem:[%s1 + $0xd50] sm:$0xff]
  %v455 = vld [vmem:[%s1 + $0xd58] sm:$0xff]
  %v456 = vld [vmem:[%s1 + $0xd60] sm:$0xff]
  %v457 = vld [vmem:[%s1 + $0xd68] sm:$0xff]
  %v458 = vld [vmem:[%s1 + $0xd70] sm:$0xff]
  %v459 = vld [vmem:[%s1 + $0xd78] sm:$0xff]
  %v460 = vld [vmem:[%s1 + $0xd80] sm:$0xff]
  %v461 = vld [vmem:[%s1 + $0xd88] sm:$0xff]
  %v462 = vld [vmem:[%s1 + $0xd90] sm:$0xff]
  %v463 = vld [vmem:[%s1 + $0xd98] sm:$0xff]
  %v464 = vld [vmem:[%s1 + $0xda0] sm:$0xff]
  %v465 = vld [vmem:[%s1 + $0xda8] sm:$0xff]
  %v466 = vld [vmem:[%s1 + $0xdb0] sm:$0xff]
  %v467 = vld [vmem:[%s1 + $0xdb8] sm:$0xff]
  %v468 = vld [vmem:[%s1 + $0xdc0] sm:$0xff]
  %v469 = vld [vmem:[%s1 + $0xdc8] sm:$0xff]
  %v470 = vld [vmem:[%s1 + $0xdd0] sm:$0xff]
  %v471 = vld [vmem:[%s1 + $0xdd8] sm:$0xff]
  %v472 = vld [vmem:[%s1 + $0xde0] sm:$0xff]
  %v473 = vld [vmem:[%s1 + $0xde8] sm:$0xff]
  %v474 = vld [vmem:[%s1 + $0xdf0] sm:$0xff]
  %v475 = vld [vmem:[%s1 + $0xdf8] sm:$0xff]
  %v476 = vld [vmem:[%s1 + $0xe00] sm:$0xff]
  %v477 = vld [vmem:[%s1 + $0xe08] sm:$0xff]
  %v478 = vld [vmem:[%s1 + $0xe10] sm:$0xff]
  %v479 = vld [vmem:[%s1 + $0xe18] sm:$0xff]
  %v480 = vld [vmem:[%s1 + $0xe20] sm:$0xff]
  %v481 = vld [vmem:[%s1 + $0xe28] sm:$0xff]
  %v482 = vld [vmem:[%s1 + $0xe30] sm:$0xff]
  %v483 = vld [vmem:[%s1 + $0xe38] sm:$0xff]
  %v484 = vld [vmem:[%s1 + $0xe40] sm:$0xff]
  %v485 = vld [vmem:[%s1 + $0xe48] sm:$0xff]
  %v486 = vld [vmem:[%s1 + $0xe50] sm:$0xff]
  %v487 = vld [vmem:[%s1 + $0xe58] sm:$0xff]
  %v488 = vld [vmem:[%s1 + $0xe60] sm:$0xff]
  %v489 = vld [vmem:[%s1 + $0xe68] sm:$0xff]
  %v490 = vld [vmem:[%s1 + $0xe70] sm:$0xff]
  %v491 = vld [vmem:[%s1 + $0xe78] sm:$0xff]
  %v492 = vld [vmem:[%s1 + $0xe80] sm:$0xff]
  %v493 = vld [vmem:[%s1 + $0xe88] sm:$0xff]
  %v494 = vld [vmem:[%s1 + $0xe90] sm:$0xff]
  %v495 = vld [vmem:[%s1 + $0xe98] sm:$0xff]
  %v496 = vld [vmem:[%s1 + $0xea0] sm:$0xff]
  %v497 = vld [vmem:[%s1 + $0xea8] sm:$0xff]
  %v498 = vld [vmem:[%s1 + $0xeb0] sm:$0xff]
  %v499 = vld [vmem:[%s1 + $0xeb8] sm:$0xff]
  %v500 = vld [vmem:[%s1 + $0xec0] sm:$0xff]
  %v501 = vld [vmem:[%s1 + $0xec8] sm:$0xff]
  %v502 = vld [vmem:[%s1 + $0xed0] sm:$0xff]
  %v503 = vld [vmem:[%s1 + $0xed8] sm:$0xff]
  %v504 = vld [vmem:[%s1 + $0xee0] sm:$0xff]
  %v505 = vld [vmem:[%s1 + $0xee8] sm:$0xff]
  %v506 = vld [vmem:[%s1 + $0xef0] sm:$0xff]
  %v507 = vld [vmem:[%s1 + $0xef8] sm:$0xff]
  %v508 = vld [vmem:[%s1 + $0xf00] sm:$0xff]
  %v509 = vld [vmem:[%s1 + $0xf08] sm:$0xff]
  %v510 = vld [vmem:[%s1 + $0xf10] sm:$0xff]
  %v511 = vld [vmem:[%s1 + $0xf18] sm:$0xff]
  %v512 = vld [vmem:[%s1 + $0xf20] sm:$0xff]
  %v513 = vld [vmem:[%s1 + $0xf28] sm:$0xff]
  %v514 = vld [vmem:[%s1 + $0xf30] sm:$0xff]
  %v515 = vld [vmem:[%s1 + $0xf38] sm:$0xff]
  %v516 = vld [vmem:[%s1 + $0xf40] sm:$0xff]
  %v517 = vld [vmem:[%s1 + $0xf48] sm:$0xff]
  %v518 = vld [vmem:[%s1 + $0xf50] sm:$0xff]
  %v519 = vld [vmem:[%s1 + $0xf58] sm:$0xff]
  %v520 = vld [vmem:[%s1 + $0xf60] sm:$0xff]
  %v521 = vld [vmem:[%s1 + $0xf68] sm:$0xff]
  %v522 = vld [vmem:[%s1 + $0xf70] sm:$0xff]
  %v523 = vld [vmem:[%s1 + $0xf78] sm:$0xff]
  %v524 = vld [vmem:[%s1 + $0xf80] sm:$0xff]
  %v525 = vld [vmem:[%s1 + $0xf88] sm:$0xff]
  %v526 = vld [vmem:[%s1 + $0xf90] sm:$0xff]
  %v527 = vld [vmem:[%s1 + $0xf98] sm:$0xff]
  %v528 = vld [vmem:[%s1 + $0xfa0] sm:$0xff]
  %v529 = vld [vmem:[%s1 + $0xfa8] sm:$0xff]
  %v530 = vld [vmem:[%s1 + $0xfb0] sm:$0xff]
  %v531 = vld [vmem:[%s1 + $0xfb8] sm:$0xff]
  %v532 = vld [vmem:[%s1 + $0xfc0] sm:$0xff]
  %v533 = vld [vmem:[%s1 + $0xfc8] sm:$0xff]
  %v534 = vld [vmem:[%s1 + $0xfd0] sm:$0xff]
  %v535 = vld [vmem:[%s1 + $0xfd8] sm:$0xff]
  %v536 = vld [vmem:[%s1 + $0xfe0] sm:$0xff]
  %v537 = vld [vmem:[%s1 + $0xfe8] sm:$0xff]
  %v538 = vld [vmem:[%s1 + $0xff0] sm:$0xff]
  %v539 = vld [vmem:[%s1 + $0xff8] sm:$0xff]
  %v540 = vld [vmem:[%s1 + $0x1000] sm:$0xff]
  %v541 = vld [vmem:[%s1 + $0x1008] sm:$0xff]
  %v542 = vld [vmem:[%s1 + $0x1010] sm:$0xff]
  %v543 = vld [vmem:[%s1 + $0x1018] sm:$0xff]
  %v544 = vld [vmem:[%s1 + $0x1020] sm:$0xff]
  %v545 = vld [vmem:[%s1 + $0x1028] sm:$0xff]
  %v546 = vld [vmem:[%s1 + $0x1030] sm:$0xff]
  %v547 = vld [vmem:[%s1 + $0x1038] sm:$0xff]
  %v548 = vld [vmem:[%s1 + $0x1040] sm:$0xff]
  %v549 = vld [vmem:[%s1 + $0x1048] sm:$0xff]
  %v550 = vld [vmem:[%s1 + $0x1050] sm:$0xff]
  %v551 = vld [vmem:[%s1 + $0x1058] sm:$0xff]
  %v552 = vld [vmem:[%s1 + $0x1060] sm:$0xff]
  %v553 = vld [vmem:[%s1 + $0x1068] sm:$0xff]
  %v554 = vld [vmem:[%s1 + $0x1070] sm:$0xff]
  %v555 = vld [vmem:[%s1 + $0x1078] sm:$0xff]
  %v556 = vld [vmem:[%s1 + $0x1080] sm:$0xff]
  %v557 = vld [vmem:[%s1 + $0x1088] sm:$0xff]
  %v558 = vld [vmem:[%s1 + $0x1090] sm:$0xff]
  %v559 = vld [vmem:[%s1 + $0x1098] sm:$0xff]
  %v560 = vld [vmem:[%s1 + $0x10a0] sm:$0xff]
  %v561 = vld [vmem:[%s1 + $0x10a8] sm:$0xff]
  %v562 = vld [vmem:[%s1 + $0x10b0] sm:$0xff]
  %v563 = vld [vmem:[%s1 + $0x10b8] sm:$0xff]
  %v564 = vld [vmem:[%s1 + $0x10c0] sm:$0xff]
  %v565 = vld [vmem:[%s1 + $0x10c8] sm:$0xff]
  %v566 = vld [vmem:[%s1 + $0x10d0] sm:$0xff]
  %v567 = vld [vmem:[%s1 + $0x10d8] sm:$0xff]
  %v568 = vld [vmem:[%s1 + $0x10e0] sm:$0xff]
  %v569 = vld [vmem:[%s1 + $0x10e8] sm:$0xff]
  %v570 = vld [vmem:[%s1 + $0x10f0] sm:$0xff]
  %v571 = vld [vmem:[%s1 + $0x10f8] sm:$0xff]
  %v572 = vld [vmem:[%s1 + $0x1100] sm:$0xff]
  %v573 = vld [vmem:[%s1 + $0x1108] sm:$0xff]
  %v574 = vld [vmem:[%s1 + $0x1110] sm:$0xff]
  %v575 = vld [vmem:[%s1 + $0x1118] sm:$0xff]
  %v576 = vld [vmem:[%s1 + $0x1120] sm:$0xff]
  %v577 = vld [vmem:[%s1 + $0x1128] sm:$0xff]
  %v578 = vld [vmem:[%s1 + $0x1130] sm:$0xff]
  %v579 = vld [vmem:[%s1 + $0x1138] sm:$0xff]
  %v580 = vld [vmem:[%s1 + $0x1140] sm:$0xff]
  %v581 = vld [vmem:[%s1 + $0x1148] sm:$0xff]
  %v582 = vld [vmem:[%s1 + $0x1150] sm:$0xff]
  %v583 = vld [vmem:[%s1 + $0x1158] sm:$0xff]
  %v584 = vld [vmem:[%s1 + $0x1160] sm:$0xff]
  %v585 = vld [vmem:[%s1 + $0x1168] sm:$0xff]
  %v586 = vld [vmem:[%s1 + $0x1170] sm:$0xff]
  %v587 = vld [vmem:[%s1 + $0x1178] sm:$0xff]
  %v588 = vld [vmem:[%s1 + $0x1180] sm:$0xff]
  %v589 = vld [vmem:[%s1 + $0x1188] sm:$0xff]
  %v590 = vld [vmem:[%s1 + $0x1190] sm:$0xff]
  %v591 = vld [vmem:[%s1 + $0x1198] sm:$0xff]
  %v592 = vld [vmem:[%s1 + $0x11a0] sm:$0xff]
  %v593 = vld [vmem:[%s1 + $0x11a8] sm:$0xff]
  %v594 = vld [vmem:[%s1 + $0x11b0] sm:$0xff]
  %v595 = vld [vmem:[%s1 + $0x11b8] sm:$0xff]
  %v596 = vld [vmem:[%s1 + $0x11c0] sm:$0xff]
  %v597 = vld [vmem:[%s1 + $0x11c8] sm:$0xff]
  %v598 = vld [vmem:[%s1 + $0x11d0] sm:$0xff]
  %v599 = vld [vmem:[%s1 + $0x11d8] sm:$0xff]
  %v600 = vld [vmem:[%s1 + $0x11e0] sm:$0xff]
  %v601 = vld [vmem:[%s1 + $0x11e8] sm:$0xff]
  %v602 = vld [vmem:[%s1 + $0x11f0] sm:$0xff]
  %v603 = vld [vmem:[%s1 + $0x11f8] sm:$0xff]
  %v604 = vld [vmem:[%s1 + $0x1200] sm:$0xff]
  %v605 = vld [vmem:[%s1 + $0x1208] sm:$0xff]
  %v606 = vld [vmem:[%s1 + $0x1210] sm:$0xff]
  %v607 = vld [vmem:[%s1 + $0x1218] sm:$0xff]
  %v608 = vld [vmem:[%s1 + $0x1220] sm:$0xff]
  %v609 = vld [vmem:[%s1 + $0x1228] sm:$0xff]
  %v610 = vld [vmem:[%s1 + $0x1230] sm:$0xff]
  %v611 = vld [vmem:[%s1 + $0x1238] sm:$0xff]
  %v612 = vld [vmem:[%s1 + $0x1240] sm:$0xff]
  %v613 = vld [vmem:[%s1 + $0x1248] sm:$0xff]
  %v614 = vld [vmem:[%s1 + $0x1250] sm:$0xff]
  %v615 = vld [vmem:[%s1 + $0x1258] sm:$0xff]
  %v616 = vld [vmem:[%s1 + $0x1260] sm:$0xff]
  %v617 = vld [vmem:[%s1 + $0x1268] sm:$0xff]
  %v618 = vld [vmem:[%s1 + $0x1270] sm:$0xff]
  %v619 = vld [vmem:[%s1 + $0x1278] sm:$0xff]
  %v620 = vld [vmem:[%s1 + $0x1280] sm:$0xff]
  %v621 = vld [vmem:[%s1 + $0x1288] sm:$0xff]
  %v622 = vld [vmem:[%s1 + $0x1290] sm:$0xff]
  %v623 = vld [vmem:[%s1 + $0x1298] sm:$0xff]
  %v624 = vld [vmem:[%s1 + $0x12a0] sm:$0xff]
  %v625 = vld [vmem:[%s1 + $0x12a8] sm:$0xff]
  %v626 = vld [vmem:[%s1 + $0x12b0] sm:$0xff]
  %v627 = vld [vmem:[%s1 + $0x12b8] sm:$0xff]
  %v628 = vld [vmem:[%s1 + $0x12c0] sm:$0xff]
  %v629 = vld [vmem:[%s1 + $0x12c8] sm:$0xff]
  %v630 = vld [vmem:[%s1 + $0x12d0] sm:$0xff]
  %v631 = vld [vmem:[%s1 + $0x12d8] sm:$0xff]
  %v632 = vld [vmem:[%s1 + $0x12e0] sm:$0xff]
  %v633 = vld [vmem:[%s1 + $0x12e8] sm:$0xff]
  %v634 = vld [vmem:[%s1 + $0x12f0] sm:$0xff]
  %v635 = vld [vmem:[%s1 + $0x12f8] sm:$0xff]
  %v636 = vld [vmem:[%s1 + $0x1300] sm:$0xff]
  %v637 = vld [vmem:[%s1 + $0x1308] sm:$0xff]
  %v638 = vld [vmem:[%s1 + $0x1310] sm:$0xff]
  %v639 = vld [vmem:[%s1 + $0x1318] sm:$0xff]
  %v640 = vld [vmem:[%s1 + $0x1320] sm:$0xff]
  %v641 = vld [vmem:[%s1 + $0x1328] sm:$0xff]
  %v642 = vld [vmem:[%s1 + $0x1330] sm:$0xff]
  %v643 = vld [vmem:[%s1 + $0x1338] sm:$0xff]
  %v644 = vld [vmem:[%s1 + $0x1340] sm:$0xff]
  %v645 = vld [vmem:[%s1 + $0x1348] sm:$0xff]
  %v646 = vld [vmem:[%s1 + $0x1350] sm:$0xff]
  %v647 = vld [vmem:[%s1 + $0x1358] sm:$0xff]
  %v648 = vld [vmem:[%s1 + $0x1360] sm:$0xff]
  %v649 = vld [vmem:[%s1 + $0x1368] sm:$0xff]
  %v650 = vld [vmem:[%s1 + $0x1370] sm:$0xff]
  %v651 = vld [vmem:[%s1 + $0x1378] sm:$0xff]
  %v652 = vld [vmem:[%s1 + $0x1380] sm:$0xff]
  %v653 = vld [vmem:[%s1 + $0x1388] sm:$0xff]
  %v654 = vld [vmem:[%s1 + $0x1390] sm:$0xff]
  %v655 = vld [vmem:[%s1 + $0x1398] sm:$0xff]
  %v656 = vld [vmem:[%s1 + $0x13a0] sm:$0xff]
  %v657 = vld [vmem:[%s1 + $0x13a8] sm:$0xff]
  %v658 = vld [vmem:[%s1 + $0x13b0] sm:$0xff]
  %v659 = vld [vmem:[%s1 + $0x13b8] sm:$0xff]
  %v660 = vld [vmem:[%s1 + $0x13c0] sm:$0xff]
  %v661 = vld [vmem:[%s1 + $0x13c8] sm:$0xff]
  %v662 = vld [vmem:[%s1 + $0x13d0] sm:$0xff]
  %v663 = vld [vmem:[%s1 + $0x13d8] sm:$0xff]
  %v664 = vld [vmem:[%s1 + $0x13e0] sm:$0xff]
  %v665 = vld [vmem:[%s1 + $0x13e8] sm:$0xff]
  %v666 = vld [vmem:[%s1 + $0x13f0] sm:$0xff]
  %v667 = vld [vmem:[%s1 + $0x13f8] sm:$0xff]
  %v668 = vld [vmem:[%s1 + $0x1400] sm:$0xff]
  %v669 = vld [vmem:[%s1 + $0x1408] sm:$0xff]
  %v670 = vld [vmem:[%s1 + $0x1410] sm:$0xff]
  %v671 = vld [vmem:[%s1 + $0x1418] sm:$0xff]
  %v672 = vld [vmem:[%s1 + $0x1420] sm:$0xff]
  %v673 = vld [vmem:[%s1 + $0x1428] sm:$0xff]
  %v674 = vld [vmem:[%s1 + $0x1430] sm:$0xff]
  %v675 = vld [vmem:[%s1 + $0x1438] sm:$0xff]
  %v676 = vld [vmem:[%s1 + $0x1440] sm:$0xff]
  %v677 = vld [vmem:[%s1 + $0x1448] sm:$0xff]
  %v678 = vld [vmem:[%s1 + $0x1450] sm:$0xff]
  %v679 = vld [vmem:[%s1 + $0x1458] sm:$0xff]
  %v680 = vld [vmem:[%s1 + $0x1460] sm:$0xff]
  %v681 = vld [vmem:[%s1 + $0x1468] sm:$0xff]
  %v682 = vld [vmem:[%s1 + $0x1470] sm:$0xff]
  %v683 = vld [vmem:[%s1 + $0x1478] sm:$0xff]
  %v684 = vld [vmem:[%s1 + $0x1480] sm:$0xff]
  %v685 = vld [vmem:[%s1 + $0x1488] sm:$0xff]
  %v686 = vld [vmem:[%s1 + $0x1490] sm:$0xff]
  %v687 = vld [vmem:[%s1 + $0x1498] sm:$0xff]
  %v688 = vld [vmem:[%s1 + $0x14a0] sm:$0xff]
  %v689 = vld [vmem:[%s1 + $0x14a8] sm:$0xff]
  %v690 = vld [vmem:[%s1 + $0x14b0] sm:$0xff]
  %v691 = vld [vmem:[%s1 + $0x14b8] sm:$0xff]
  %v692 = vld [vmem:[%s1 + $0x14c0] sm:$0xff]
  %v693 = vld [vmem:[%s1 + $0x14c8] sm:$0xff]
  %v694 = vld [vmem:[%s1 + $0x14d0] sm:$0xff]
  %v695 = vld [vmem:[%s1 + $0x14d8] sm:$0xff]
  %v696 = vld [vmem:[%s1 + $0x14e0] sm:$0xff]
  %v697 = vld [vmem:[%s1 + $0x14e8] sm:$0xff]
  %v698 = vld [vmem:[%s1 + $0x14f0] sm:$0xff]
  %v699 = vld [vmem:[%s1 + $0x14f8] sm:$0xff]
  %v700 = vld [vmem:[%s1 + $0x1500] sm:$0xff]
  %v701 = vld [vmem:[%s1 + $0x1508] sm:$0xff]
  %v702 = vld [vmem:[%s1 + $0x1510] sm:$0xff]
  %v703 = vld [vmem:[%s1 + $0x1518] sm:$0xff]
  %v704 = vld [vmem:[%s1 + $0x1520] sm:$0xff]
  %v705 = vld [vmem:[%s1 + $0x1528] sm:$0xff]
  %v706 = vld [vmem:[%s1 + $0x1530] sm:$0xff]
  %v707 = vld [vmem:[%s1 + $0x1538] sm:$0xff]
  %v708 = vld [vmem:[%s1 + $0x1540] sm:$0xff]
  %v709 = vld [vmem:[%s1 + $0x1548] sm:$0xff]
  %v710 = vld [vmem:[%s1 + $0x1550] sm:$0xff]
  %v711 = vld [vmem:[%s1 + $0x1558] sm:$0xff]
  %v712 = vld [vmem:[%s1 + $0x1560] sm:$0xff]
  %v713 = vld [vmem:[%s1 + $0x1568] sm:$0xff]
  %v714 = vld [vmem:[%s1 + $0x1570] sm:$0xff]
  %v715 = vld [vmem:[%s1 + $0x1578] sm:$0xff]
  %v716 = vld [vmem:[%s1 + $0x1580] sm:$0xff]
  %v717 = vld [vmem:[%s1 + $0x1588] sm:$0xff]
  %v718 = vld [vmem:[%s1 + $0x1590] sm:$0xff]
  %v719 = vld [vmem:[%s1 + $0x1598] sm:$0xff]
  %v720 = vld [vmem:[%s1 + $0x15a0] sm:$0xff]
  %v721 = vld [vmem:[%s1 + $0x15a8] sm:$0xff]
  %v722 = vld [vmem:[%s1 + $0x15b0] sm:$0xff]
  %v723 = vld [vmem:[%s1 + $0x15b8] sm:$0xff]
  %v724 = vld [vmem:[%s1 + $0x15c0] sm:$0xff]
  %v725 = vld [vmem:[%s1 + $0x15c8] sm:$0xff]
  %v726 = vld [vmem:[%s1 + $0x15d0] sm:$0xff]
  %v727 = vld [vmem:[%s1 + $0x15d8] sm:$0xff]
  %v728 = vld [vmem:[%s1 + $0x15e0] sm:$0xff]
  %v729 = vld [vmem:[%s1 + $0x15e8] sm:$0xff]
  %v730 = vld [vmem:[%s1 + $0x15f0] sm:$0xff]
  %v731 = vld [vmem:[%s1 + $0x15f8] sm:$0xff]
  %v732 = vld [vmem:[%s1 + $0x1600] sm:$0xff]
  %v733 = vld [vmem:[%s1 + $0x1608] sm:$0xff]
  %v734 = vld [vmem:[%s1 + $0x1610] sm:$0xff]
  %v735 = vld [vmem:[%s1 + $0x1618] sm:$0xff]
  %v736 = vld [vmem:[%s1 + $0x1620] sm:$0xff]
  %v737 = vld [vmem:[%s1 + $0x1628] sm:$0xff]
  %v738 = vld [vmem:[%s1 + $0x1630] sm:$0xff]
  %v739 = vld [vmem:[%s1 + $0x1638] sm:$0xff]
  %v740 = vld [vmem:[%s1 + $0x1640] sm:$0xff]
  %v741 = vld [vmem:[%s1 + $0x1648] sm:$0xff]
  %v742 = vld [vmem:[%s1 + $0x1650] sm:$0xff]
  %v743 = vld [vmem:[%s1 + $0x1658] sm:$0xff]
  %v744 = vld [vmem:[%s1 + $0x1660] sm:$0xff]
  %v745 = vld [vmem:[%s1 + $0x1668] sm:$0xff]
  %v746 = vld [vmem:[%s1 + $0x1670] sm:$0xff]
  %v747 = vld [vmem:[%s1 + $0x1678] sm:$0xff]
  %v748 = vld [vmem:[%s1 + $0x1680] sm:$0xff]
  %v749 = vld [vmem:[%s1 + $0x1688] sm:$0xff]
  %v750 = vld [vmem:[%s1 + $0x1690] sm:$0xff]
  %v751 = vld [vmem:[%s1 + $0x1698] sm:$0xff]
  %v752 = vld [vmem:[%s1 + $0x16a0] sm:$0xff]
  %v753 = vld [vmem:[%s1 + $0x16a8] sm:$0xff]
  %v754 = vld [vmem:[%s1 + $0x16b0] sm:$0xff]
  %v755 = vld [vmem:[%s1 + $0x16b8] sm:$0xff]
  %v756 = vld [vmem:[%s1 + $0x16c0] sm:$0xff]
  %v757 = vld [vmem:[%s1 + $0x16c8] sm:$0xff]
  %v758 = vld [vmem:[%s1 + $0x16d0] sm:$0xff]
  %v759 = vld [vmem:[%s1 + $0x16d8] sm:$0xff]
  %v760 = vld [vmem:[%s1 + $0x16e0] sm:$0xff]
  %v761 = vld [vmem:[%s1 + $0x16e8] sm:$0xff]
  %v762 = vld [vmem:[%s1 + $0x16f0] sm:$0xff]
  %v763 = vld [vmem:[%s1 + $0x16f8] sm:$0xff]
  %v764 = vld [vmem:[%s1 + $0x1700] sm:$0xff]
  %v765 = vld [vmem:[%s1 + $0x1708] sm:$0xff]
  %v766 = vld [vmem:[%s1 + $0x1710] sm:$0xff]
  %v767 = vld [vmem:[%s1 + $0x1718] sm:$0xff]
  %v768 = vld [vmem:[%s1 + $0x1720] sm:$0xff]
  %v769 = vld [vmem:[%s1 + $0x1728] sm:$0xff]
  %v770 = vld [vmem:[%s1 + $0x1730] sm:$0xff]
  %v771 = vld [vmem:[%s1 + $0x1738] sm:$0xff]
  %v772 = vld [vmem:[%s1 + $0x1740] sm:$0xff]
  %v773 = vld [vmem:[%s1 + $0x1748] sm:$0xff]
  %v774 = vld [vmem:[%s1 + $0x1750] sm:$0xff]
  %v775 = vld [vmem:[%s1 + $0x1758] sm:$0xff]
  %v776 = vld [vmem:[%s1 + $0x1760] sm:$0xff]
  %v777 = vld [vmem:[%s1 + $0x1768] sm:$0xff]
  %v778 = vld [vmem:[%s1 + $0x1770] sm:$0xff]
  %v779 = vld [vmem:[%s1 + $0x1778] sm:$0xff]
  %v780 = vld [vmem:[%s1 + $0x1780] sm:$0xff]
  %v781 = vld [vmem:[%s1 + $0x1788] sm:$0xff]
  %v782 = vld [vmem:[%s1 + $0x1790] sm:$0xff]
  %v783 = vld [vmem:[%s1 + $0x1798] sm:$0xff]
  %v784 = vld [vmem:[%s1 + $0x17a0] sm:$0xff]
  %v785 = vld [vmem:[%s1 + $0x17a8] sm:$0xff]
  %v786 = vld [vmem:[%s1 + $0x17b0] sm:$0xff]
  %v787 = vld [vmem:[%s1 + $0x17b8] sm:$0xff]
  %v788 = vld [vmem:[%s1 + $0x17c0] sm:$0xff]
  %v789 = vld [vmem:[%s1 + $0x17c8] sm:$0xff]
  %v790 = vld [vmem:[%s1 + $0x17d0] sm:$0xff]
  %v791 = vld [vmem:[%s1 + $0x17d8] sm:$0xff]
  %v792 = vld [vmem:[%s1 + $0x17e0] sm:$0xff]
  %v793 = vld [vmem:[%s1 + $0x17e8] sm:$0xff]
  %v794 = vld [vmem:[%s1 + $0x17f0] sm:$0xff]
  %v795 = vld [vmem:[%s1 + $0x17f8] sm:$0xff]
  %v796 = vld [vmem:[%s1 + $0x1800] sm:$0xff]
  %v797 = vld [vmem:[%s1 + $0x1808] sm:$0xff]
  %v798 = vld [vmem:[%s1 + $0x1810] sm:$0xff]
  %v799 = vld [vmem:[%s1 + $0x1818] sm:$0xff]
  %v800 = vld [vmem:[%s1 + $0x1820] sm:$0xff]
  %v801 = vld [vmem:[%s1 + $0x1828] sm:$0xff]
  %v802 = vld [vmem:[%s1 + $0x1830] sm:$0xff]
  %v803 = vld [vmem:[%s1 + $0x1838] sm:$0xff]
  %v804 = vld [vmem:[%s1 + $0x1840] sm:$0xff]
  %v805 = vld [vmem:[%s1 + $0x1848] sm:$0xff]
  %v806 = vld [vmem:[%s1 + $0x1850] sm:$0xff]
  %v807 = vld [vmem:[%s1 + $0x1858] sm:$0xff]
  %v808 = vld [vmem:[%s1 + $0x1860] sm:$0xff]
  %v809 = vld [vmem:[%s1 + $0x1868] sm:$0xff]
  %v810 = vld [vmem:[%s1 + $0x1870] sm:$0xff]
  %v811 = vld [vmem:[%s1 + $0x1878] sm:$0xff]
  %v812 = vld [vmem:[%s1 + $0x1880] sm:$0xff]
  %v813 = vld [vmem:[%s1 + $0x1888] sm:$0xff]
  %v814 = vld [vmem:[%s1 + $0x1890] sm:$0xff]
  %v815 = vld [vmem:[%s1 + $0x1898] sm:$0xff]
  %v816 = vld [vmem:[%s1 + $0x18a0] sm:$0xff]
  %v817 = vld [vmem:[%s1 + $0x18a8] sm:$0xff]
  %v818 = vld [vmem:[%s1 + $0x18b0] sm:$0xff]
  %v819 = vld [vmem:[%s1 + $0x18b8] sm:$0xff]
  %v820 = vld [vmem:[%s1 + $0x18c0] sm:$0xff]
  %v821 = vld [vmem:[%s1 + $0x18c8] sm:$0xff]
  %v822 = vld [vmem:[%s1 + $0x18d0] sm:$0xff]
  %v823 = vld [vmem:[%s1 + $0x18d8] sm:$0xff]
  %v824 = vld [vmem:[%s1 + $0x18e0] sm:$0xff]
  %v825 = vld [vmem:[%s1 + $0x18e8] sm:$0xff]
  %v826 = vld [vmem:[%s1 + $0x18f0] sm:$0xff]
  %v827 = vld [vmem:[%s1 + $0x18f8] sm:$0xff]
  %v828 = vld [vmem:[%s1 + $0x1900] sm:$0xff]
  %v829 = vld [vmem:[%s1 + $0x1908] sm:$0xff]
  %v830 = vld [vmem:[%s1 + $0x1910] sm:$0xff]
  %v831 = vld [vmem:[%s1 + $0x1918] sm:$0xff]
  %v832 = vld [vmem:[%s1 + $0x1920] sm:$0xff]
  %v833 = vld [vmem:[%s1 + $0x1928] sm:$0xff]
  %v834 = vld [vmem:[%s1 + $0x1930] sm:$0xff]
  %v835 = vld [vmem:[%s1 + $0x1938] sm:$0xff]
  %v836 = vld [vmem:[%s1 + $0x1940] sm:$0xff]
  %v837 = vld [vmem:[%s1 + $0x1948] sm:$0xff]
  %v838 = vld [vmem:[%s1 + $0x1950] sm:$0xff]
  %v839 = vld [vmem:[%s1 + $0x1958] sm:$0xff]
  %v840 = vld [vmem:[%s1 + $0x1960] sm:$0xff]
  %v841 = vld [vmem:[%s1 + $0x1968] sm:$0xff]
  %v842 = vld [vmem:[%s1 + $0x1970] sm:$0xff]
  %v843 = vld [vmem:[%s1 + $0x1978] sm:$0xff]
  %v844 = vld [vmem:[%s1 + $0x1980] sm:$0xff]
  %v845 = vld [vmem:[%s1 + $0x1988] sm:$0xff]
  %v846 = vld [vmem:[%s1 + $0x1990] sm:$0xff]
  %v847 = vld [vmem:[%s1 + $0x1998] sm:$0xff]
  %v848 = vld [vmem:[%s1 + $0x19a0] sm:$0xff]
  %v849 = vld [vmem:[%s1 + $0x19a8] sm:$0xff]
  %v850 = vld [vmem:[%s1 + $0x19b0] sm:$0xff]
  %v851 = vld [vmem:[%s1 + $0x19b8] sm:$0xff]
  %v852 = vld [vmem:[%s1 + $0x19c0] sm:$0xff]
  %v853 = vld [vmem:[%s1 + $0x19c8] sm:$0xff]
  %v854 = vld [vmem:[%s1 + $0x19d0] sm:$0xff]
  %v855 = vld [vmem:[%s1 + $0x19d8] sm:$0xff]
  %v856 = vld [vmem:[%s1 + $0x19e0] sm:$0xff]
  %v857 = vld [vmem:[%s1 + $0x19e8] sm:$0xff]
  %v858 = vld [vmem:[%s1 + $0x19f0] sm:$0xff]
  %v859 = vld [vmem:[%s1 + $0x19f8] sm:$0xff]
  %v860 = vld [vmem:[%s1 + $0x1a00] sm:$0xff]
  %v861 = vld [vmem:[%s1 + $0x1a08] sm:$0xff]
  %v862 = vld [vmem:[%s1 + $0x1a10] sm:$0xff]
  %v863 = vld [vmem:[%s1 + $0x1a18] sm:$0xff]
  %v864 = vld [vmem:[%s1 + $0x1a20] sm:$0xff]
  %v865 = vld [vmem:[%s1 + $0x1a28] sm:$0xff]
  %v866 = vld [vmem:[%s1 + $0x1a30] sm:$0xff]
  %v867 = vld [vmem:[%s1 + $0x1a38] sm:$0xff]
  %v868 = vld [vmem:[%s1 + $0x1a40] sm:$0xff]
  %v869 = vld [vmem:[%s1 + $0x1a48] sm:$0xff]
  %v870 = vld [vmem:[%s1 + $0x1a50] sm:$0xff]
  %v871 = vld [vmem:[%s1 + $0x1a58] sm:$0xff]
  %v872 = vld [vmem:[%s1 + $0x1a60] sm:$0xff]
  %v873 = vld [vmem:[%s1 + $0x1a68] sm:$0xff]
  %v874 = vld [vmem:[%s1 + $0x1a70] sm:$0xff]
  %v875 = vld [vmem:[%s1 + $0x1a78] sm:$0xff]
  %v876 = vld [vmem:[%s1 + $0x1a80] sm:$0xff]
  %v877 = vld [vmem:[%s1 + $0x1a88] sm:$0xff]
  %v878 = vld [vmem:[%s1 + $0x1a90] sm:$0xff]
  %v879 = vld [vmem:[%s1 + $0x1a98] sm:$0xff]
  %v880 = vld [vmem:[%s1 + $0x1aa0] sm:$0xff]
  %v881 = vld [vmem:[%s1 + $0x1aa8] sm:$0xff]
  %v882 = vld [vmem:[%s1 + $0x1ab0] sm:$0xff]
  %v883 = vld [vmem:[%s1 + $0x1ab8] sm:$0xff]
  %v884 = vld [vmem:[%s1 + $0x1ac0] sm:$0xff]
  %v885 = vld [vmem:[%s1 + $0x1ac8] sm:$0xff]
  %v886 = vld [vmem:[%s1 + $0x1ad0] sm:$0xff]
  %v887 = vld [vmem:[%s1 + $0x1ad8] sm:$0xff]
  %v888 = vld [vmem:[%s1 + $0x1ae0] sm:$0xff]
  %v889 = vld [vmem:[%s1 + $0x1ae8] sm:$0xff]
  %v890 = vld [vmem:[%s1 + $0x1af0] sm:$0xff]
  %v891 = vld [vmem:[%s1 + $0x1af8] sm:$0xff]
  %v892 = vld [vmem:[%s2] ss:$4 sm:$0x3]
  %v894 = vlaneseq
  %v895 = vshrl.u32 %v894, 7
  %v896 = vsub.s32 0, %v895
  %v897 = vrot.slane %v892, %v896
  %v898 = vlaneseq
  %v899 = vshrl.u32 %v898, 7
  %v900 = vsub.s32 1, %v899
  %v901 = vrot.slane %v892, %v900
  %v918 = vcombine.high %v14, %v14
  %v920 = vunpack.c.l.s4 1983009808
  %v921 = vunpack.c.0.s8 %v920
  %v922 = vlaneseq
  %v923 = vshrl.u32 %v922, 7
  %v924 = vsub.s32 %v921, %v923
  %v925 = vrot.slane %v14, %v924
  %v927 = vunpack.c.l.s4 1983009808
  %v928 = vunpack.c.0.s8 %v927
  %v929 = vlaneseq
  %v930 = vshrl.u32 %v929, 7
  %v931 = vsub.s32 %v928, %v930
  %v932 = vrot.slane %v918, %v931
  %v933 = vcombine.high %v925, %v925
  %v934 = vcombine.high %v932, %v932
  %v935 = vcombine.high %v15, %v15
  %v937 = vunpack.c.l.s4 1983009808
  %v938 = vunpack.c.0.s8 %v937
  %v939 = vlaneseq
  %v940 = vshrl.u32 %v939, 7
  %v941 = vsub.s32 %v938, %v940
  %v942 = vrot.slane %v15, %v941
  %v944 = vunpack.c.l.s4 1983009808
  %v945 = vunpack.c.0.s8 %v944
  %v946 = vlaneseq
  %v947 = vshrl.u32 %v946, 7
  %v948 = vsub.s32 %v945, %v947
  %v949 = vrot.slane %v935, %v948
  %v950 = vcombine.high %v942, %v942
  %v951 = vcombine.high %v949, %v949
  %v952 = vcombine.high %v16, %v16
  %v954 = vunpack.c.l.s4 1983009808
  %v955 = vunpack.c.0.s8 %v954
  %v956 = vlaneseq
  %v957 = vshrl.u32 %v956, 7
  %v958 = vsub.s32 %v955, %v957
  %v959 = vrot.slane %v16, %v958
  %v961 = vunpack.c.l.s4 1983009808
  %v962 = vunpack.c.0.s8 %v961
  %v963 = vlaneseq
  %v964 = vshrl.u32 %v963, 7
  %v965 = vsub.s32 %v962, %v964
  %v966 = vrot.slane %v952, %v965
  %v967 = vcombine.high %v959, %v959
  %v968 = vcombine.high %v966, %v966
  %v969 = vcombine.high %v17, %v17
  %v971 = vunpack.c.l.s4 1983009808
  %v972 = vunpack.c.0.s8 %v971
  %v973 = vlaneseq
  %v974 = vshrl.u32 %v973, 7
  %v975 = vsub.s32 %v972, %v974
  %v976 = vrot.slane %v17, %v975
  %v978 = vunpack.c.l.s4 1983009808
  %v979 = vunpack.c.0.s8 %v978
  %v980 = vlaneseq
  %v981 = vshrl.u32 %v980, 7
  %v982 = vsub.s32 %v979, %v981
  %v983 = vrot.slane %v969, %v982
  %v984 = vcombine.high %v976, %v976
  %v985 = vcombine.high %v983, %v983
  %v986 = vcombine.high %v18, %v18
  %v988 = vunpack.c.l.s4 1983009808
  %v989 = vunpack.c.0.s8 %v988
  %v990 = vlaneseq
  %v991 = vshrl.u32 %v990, 7
  %v992 = vsub.s32 %v989, %v991
  %v993 = vrot.slane %v18, %v992
  %v995 = vunpack.c.l.s4 1983009808
  %v996 = vunpack.c.0.s8 %v995
  %v997 = vlaneseq
  %v998 = vshrl.u32 %v997, 7
  %v999 = vsub.s32 %v996, %v998
  %v1000 = vrot.slane %v986, %v999
  %v1001 = vcombine.high %v993, %v993
  %v1002 = vcombine.high %v1000, %v1000
  %v1003 = vcombine.high %v19, %v19
  %v1005 = vunpack.c.l.s4 1983009808
  %v1006 = vunpack.c.0.s8 %v1005
  %v1007 = vlaneseq
  %v1008 = vshrl.u32 %v1007, 7
  %v1009 = vsub.s32 %v1006, %v1008
  %v1010 = vrot.slane %v19, %v1009
  %v1012 = vunpack.c.l.s4 1983009808
  %v1013 = vunpack.c.0.s8 %v1012
  %v1014 = vlaneseq
  %v1015 = vshrl.u32 %v1014, 7
  %v1016 = vsub.s32 %v1013, %v1015
  %v1017 = vrot.slane %v1003, %v1016
  %v1018 = vcombine.high %v1010, %v1010
  %v1019 = vcombine.high %v1017, %v1017
  %v1020 = vcombine.high %v20, %v20
  %v1022 = vunpack.c.l.s4 1983009808
  %v1023 = vunpack.c.0.s8 %v1022
  %v1024 = vlaneseq
  %v1025 = vshrl.u32 %v1024, 7
  %v1026 = vsub.s32 %v1023, %v1025
  %v1027 = vrot.slane %v20, %v1026
  %v1029 = vunpack.c.l.s4 1983009808
  %v1030 = vunpack.c.0.s8 %v1029
  %v1031 = vlaneseq
  %v1032 = vshrl.u32 %v1031, 7
  %v1033 = vsub.s32 %v1030, %v1032
  %v1034 = vrot.slane %v1020, %v1033
  %v1035 = vcombine.high %v1027, %v1027
  %v1036 = vcombine.high %v1034, %v1034
  %v1037 = vcombine.high %v21, %v21
  %v1039 = vunpack.c.l.s4 1983009808
  %v1040 = vunpack.c.0.s8 %v1039
  %v1041 = vlaneseq
  %v1042 = vshrl.u32 %v1041, 7
  %v1043 = vsub.s32 %v1040, %v1042
  %v1044 = vrot.slane %v21, %v1043
  %v1046 = vunpack.c.l.s4 1983009808
  %v1047 = vunpack.c.0.s8 %v1046
  %v1048 = vlaneseq
  %v1049 = vshrl.u32 %v1048, 7
  %v1050 = vsub.s32 %v1047, %v1049
  %v1051 = vrot.slane %v1037, %v1050
  %v1052 = vcombine.high %v1044, %v1044
  %v1053 = vcombine.high %v1051, %v1051
  %v1054 = vcombine.high %v22, %v22
  %v1056 = vunpack.c.l.s4 1983009808
  %v1057 = vunpack.c.0.s8 %v1056
  %v1058 = vlaneseq
  %v1059 = vshrl.u32 %v1058, 7
  %v1060 = vsub.s32 %v1057, %v1059
  %v1061 = vrot.slane %v22, %v1060
  %v1063 = vunpack.c.l.s4 1983009808
  %v1064 = vunpack.c.0.s8 %v1063
  %v1065 = vlaneseq
  %v1066 = vshrl.u32 %v1065, 7
  %v1067 = vsub.s32 %v1064, %v1066
  %v1068 = vrot.slane %v1054, %v1067
  %v1069 = vcombine.high %v1061, %v1061
  %v1070 = vcombine.high %v1068, %v1068
  %v1071 = vcombine.high %v23, %v23
  %v1073 = vunpack.c.l.s4 1983009808
  %v1074 = vunpack.c.0.s8 %v1073
  %v1075 = vlaneseq
  %v1076 = vshrl.u32 %v1075, 7
  %v1077 = vsub.s32 %v1074, %v1076
  %v1078 = vrot.slane %v23, %v1077
  %v1080 = vunpack.c.l.s4 1983009808
  %v1081 = vunpack.c.0.s8 %v1080
  %v1082 = vlaneseq
  %v1083 = vshrl.u32 %v1082, 7
  %v1084 = vsub.s32 %v1081, %v1083
  %v1085 = vrot.slane %v1071, %v1084
  %v1086 = vcombine.high %v1078, %v1078
  %v1087 = vcombine.high %v1085, %v1085
  %v1088 = vcombine.high %v24, %v24
  %v1090 = vunpack.c.l.s4 1983009808
  %v1091 = vunpack.c.0.s8 %v1090
  %v1092 = vlaneseq
  %v1093 = vshrl.u32 %v1092, 7
  %v1094 = vsub.s32 %v1091, %v1093
  %v1095 = vrot.slane %v24, %v1094
  %v1097 = vunpack.c.l.s4 1983009808
  %v1098 = vunpack.c.0.s8 %v1097
  %v1099 = vlaneseq
  %v1100 = vshrl.u32 %v1099, 7
  %v1101 = vsub.s32 %v1098, %v1100
  %v1102 = vrot.slane %v1088, %v1101
  %v1103 = vcombine.high %v1095, %v1095
  %v1104 = vcombine.high %v1102, %v1102
  %v1105 = vcombine.high %v25, %v25
  %v1107 = vunpack.c.l.s4 1983009808
  %v1108 = vunpack.c.0.s8 %v1107
  %v1109 = vlaneseq
  %v1110 = vshrl.u32 %v1109, 7
  %v1111 = vsub.s32 %v1108, %v1110
  %v1112 = vrot.slane %v25, %v1111
  %v1114 = vunpack.c.l.s4 1983009808
  %v1115 = vunpack.c.0.s8 %v1114
  %v1116 = vlaneseq
  %v1117 = vshrl.u32 %v1116, 7
  %v1118 = vsub.s32 %v1115, %v1117
  %v1119 = vrot.slane %v1105, %v1118
  %v1120 = vcombine.high %v1112, %v1112
  %v1121 = vcombine.high %v1119, %v1119
  %v1122 = vcombine.high %v26, %v26
  %v1124 = vunpack.c.l.s4 1983009808
  %v1125 = vunpack.c.0.s8 %v1124
  %v1126 = vlaneseq
  %v1127 = vshrl.u32 %v1126, 7
  %v1128 = vsub.s32 %v1125, %v1127
  %v1129 = vrot.slane %v26, %v1128
  %v1131 = vunpack.c.l.s4 1983009808
  %v1132 = vunpack.c.0.s8 %v1131
  %v1133 = vlaneseq
  %v1134 = vshrl.u32 %v1133, 7
  %v1135 = vsub.s32 %v1132, %v1134
  %v1136 = vrot.slane %v1122, %v1135
  %v1137 = vcombine.high %v1129, %v1129
  %v1138 = vcombine.high %v1136, %v1136
  %v1140 = vunpack.c.l.s4 1983009808
  %v1141 = vunpack.c.0.s8 %v1140
  %v1142 = vlaneseq
  %v1143 = vshrl.u32 %v1142, 7
  %v1144 = vsub.s32 %v1141, %v1143
  %v1145 = vrot.slane %v27, %v1144
  %v1146 = vcombine.high %v1145, %v1145
  %v2065 = vunpack.c.l.b16 %v28
  %v2066 = vunpack.c.h.b16 %v28
  %v2067 = vunpack.c.l.b16 %v29
  %v2068 = vunpack.c.h.b16 %v29
  %v2069 = vunpack.c.l.b16 %v30
  %v2070 = vunpack.c.h.b16 %v30
  %v2071 = vunpack.c.l.b16 %v31
  %v2072 = vunpack.c.h.b16 %v31
  %v2073 = vunpack.c.l.b16 %v32
  %v2074 = vunpack.c.h.b16 %v32
  %v2075 = vunpack.c.l.b16 %v33
  %v2076 = vunpack.c.h.b16 %v33
  %v2077 = vunpack.c.l.b16 %v34
  %v2078 = vunpack.c.h.b16 %v34
  %v2079 = vunpack.c.l.b16 %v35
  %v2080 = vunpack.c.h.b16 %v35
  %v2081 = vunpack.c.l.b16 %v36
  %v2082 = vunpack.c.h.b16 %v36
  %v2083 = vunpack.c.l.b16 %v37
  %v2084 = vunpack.c.h.b16 %v37
  %v2085 = vunpack.c.l.b16 %v38
  %v2086 = vunpack.c.h.b16 %v38
  %v2087 = vunpack.c.l.b16 %v39
  %v2088 = vunpack.c.h.b16 %v39
  %v2089 = vunpack.c.l.b16 %v40
  %v2090 = vunpack.c.h.b16 %v40
  %v2091 = vunpack.c.l.b16 %v41
  %v2092 = vunpack.c.h.b16 %v41
  %v2093 = vunpack.c.l.b16 %v42
  %v2094 = vunpack.c.h.b16 %v42
  %v2095 = vunpack.c.l.b16 %v43
  %v2096 = vunpack.c.h.b16 %v43
  %v2097 = vunpack.c.l.b16 %v44
  %v2098 = vunpack.c.h.b16 %v44
  %v2099 = vunpack.c.l.b16 %v45
  %v2100 = vunpack.c.h.b16 %v45
  %v2101 = vunpack.c.l.b16 %v46
  %v2102 = vunpack.c.h.b16 %v46
  %v2103 = vunpack.c.l.b16 %v47
  %v2104 = vunpack.c.h.b16 %v47
  %v2105 = vunpack.c.l.b16 %v48
  %v2106 = vunpack.c.h.b16 %v48
  %v2107 = vunpack.c.l.b16 %v49
  %v2108 = vunpack.c.h.b16 %v49
  %v2109 = vunpack.c.l.b16 %v50
  %v2110 = vunpack.c.h.b16 %v50
  %v2111 = vunpack.c.l.b16 %v51
  %v2112 = vunpack.c.h.b16 %v51
  %v2113 = vunpack.c.l.b16 %v52
  %v2114 = vunpack.c.h.b16 %v52
  %v2115 = vunpack.c.l.b16 %v53
  %v2116 = vunpack.c.h.b16 %v53
  %v2117 = vunpack.c.l.b16 %v54
  %v2118 = vunpack.c.h.b16 %v54
  %v2119 = vunpack.c.l.b16 %v55
  %v2120 = vunpack.c.h.b16 %v55
  %v2121 = vunpack.c.l.b16 %v56
  %v2122 = vunpack.c.h.b16 %v56
  %v2123 = vunpack.c.l.b16 %v57
  %v2124 = vunpack.c.h.b16 %v57
  %v2125 = vunpack.c.l.b16 %v58
  %v2126 = vunpack.c.h.b16 %v58
  %v2127 = vunpack.c.l.b16 %v59
  %v2128 = vunpack.c.h.b16 %v59
  %v2129 = vunpack.c.l.b16 %v60
  %v2130 = vunpack.c.h.b16 %v60
  %v2131 = vunpack.c.l.b16 %v61
  %v2132 = vunpack.c.h.b16 %v61
  %v2133 = vunpack.c.l.b16 %v62
  %v2134 = vunpack.c.h.b16 %v62
  %v2135 = vunpack.c.l.b16 %v63
  %v2136 = vunpack.c.h.b16 %v63
  %v2137 = vunpack.c.l.b16 %v64
  %v2138 = vunpack.c.h.b16 %v64
  %v2139 = vunpack.c.l.b16 %v65
  %v2140 = vunpack.c.h.b16 %v65
  %v2141 = vunpack.c.l.b16 %v66
  %v2142 = vunpack.c.h.b16 %v66
  %v2143 = vunpack.c.l.b16 %v67
  %v2144 = vunpack.c.h.b16 %v67
  %v2145 = vunpack.c.l.b16 %v68
  %v2146 = vunpack.c.h.b16 %v68
  %v2147 = vunpack.c.l.b16 %v69
  %v2148 = vunpack.c.h.b16 %v69
  %v2149 = vunpack.c.l.b16 %v70
  %v2150 = vunpack.c.h.b16 %v70
  %v2151 = vunpack.c.l.b16 %v71
  %v2152 = vunpack.c.h.b16 %v71
  %v2153 = vunpack.c.l.b16 %v72
  %v2154 = vunpack.c.h.b16 %v72
  %v2155 = vunpack.c.l.b16 %v73
  %v2156 = vunpack.c.h.b16 %v73
  %v2157 = vunpack.c.l.b16 %v74
  %v2158 = vunpack.c.h.b16 %v74
  %v2159 = vunpack.c.l.b16 %v75
  %v2160 = vunpack.c.h.b16 %v75
  %v2161 = vunpack.c.l.b16 %v76
  %v2162 = vunpack.c.h.b16 %v76
  %v2163 = vunpack.c.l.b16 %v77
  %v2164 = vunpack.c.h.b16 %v77
  %v2165 = vunpack.c.l.b16 %v78
  %v2166 = vunpack.c.h.b16 %v78
  %v2167 = vunpack.c.l.b16 %v79
  %v2168 = vunpack.c.h.b16 %v79
  %v2169 = vunpack.c.l.b16 %v80
  %v2170 = vunpack.c.h.b16 %v80
  %v2171 = vunpack.c.l.b16 %v81
  %v2172 = vunpack.c.h.b16 %v81
  %v2173 = vunpack.c.l.b16 %v82
  %v2174 = vunpack.c.h.b16 %v82
  %v2175 = vunpack.c.l.b16 %v83
  %v2176 = vunpack.c.h.b16 %v83
  %v2177 = vunpack.c.l.b16 %v84
  %v2178 = vunpack.c.h.b16 %v84
  %v2179 = vunpack.c.l.b16 %v85
  %v2180 = vunpack.c.h.b16 %v85
  %v2181 = vunpack.c.l.b16 %v86
  %v2182 = vunpack.c.h.b16 %v86
  %v2183 = vunpack.c.l.b16 %v87
  %v2184 = vunpack.c.h.b16 %v87
  %v2185 = vunpack.c.l.b16 %v88
  %v2186 = vunpack.c.h.b16 %v88
  %v2187 = vunpack.c.l.b16 %v89
  %v2188 = vunpack.c.h.b16 %v89
  %v2189 = vunpack.c.l.b16 %v90
  %v2190 = vunpack.c.h.b16 %v90
  %v2191 = vunpack.c.l.b16 %v91
  %v2192 = vunpack.c.h.b16 %v91
  %v2193 = vunpack.c.l.b16 %v92
  %v2194 = vunpack.c.h.b16 %v92
  %v2195 = vunpack.c.l.b16 %v93
  %v2196 = vunpack.c.h.b16 %v93
  %v2197 = vunpack.c.l.b16 %v94
  %v2198 = vunpack.c.h.b16 %v94
  %v2199 = vunpack.c.l.b16 %v95
  %v2200 = vunpack.c.h.b16 %v95
  %v2201 = vunpack.c.l.b16 %v96
  %v2202 = vunpack.c.h.b16 %v96
  %v2203 = vunpack.c.l.b16 %v97
  %v2204 = vunpack.c.h.b16 %v97
  %v2205 = vunpack.c.l.b16 %v98
  %v2206 = vunpack.c.h.b16 %v98
  %v2207 = vunpack.c.l.b16 %v99
  %v2208 = vunpack.c.h.b16 %v99
  %v2209 = vunpack.c.l.b16 %v100
  %v2210 = vunpack.c.h.b16 %v100
  %v2211 = vunpack.c.l.b16 %v101
  %v2212 = vunpack.c.h.b16 %v101
  %v2213 = vunpack.c.l.b16 %v102
  %v2214 = vunpack.c.h.b16 %v102
  %v2215 = vunpack.c.l.b16 %v103
  %v2216 = vunpack.c.h.b16 %v103
  %v2217 = vunpack.c.l.b16 %v104
  %v2218 = vunpack.c.h.b16 %v104
  %v2219 = vunpack.c.l.b16 %v105
  %v2220 = vunpack.c.h.b16 %v105
  %v2221 = vunpack.c.l.b16 %v106
  %v2222 = vunpack.c.h.b16 %v106
  %v2223 = vunpack.c.l.b16 %v107
  %v2224 = vunpack.c.h.b16 %v107
  %v2225 = vunpack.c.l.b16 %v108
  %v2226 = vunpack.c.h.b16 %v108
  %v2227 = vunpack.c.l.b16 %v109
  %v2228 = vunpack.c.h.b16 %v109
  %v2229 = vunpack.c.l.b16 %v110
  %v2230 = vunpack.c.h.b16 %v110
  %v2231 = vunpack.c.l.b16 %v111
  %v2232 = vunpack.c.h.b16 %v111
  %v2233 = vunpack.c.l.b16 %v112
  %v2234 = vunpack.c.h.b16 %v112
  %v2235 = vunpack.c.l.b16 %v113
  %v2236 = vunpack.c.h.b16 %v113
  %v2237 = vunpack.c.l.b16 %v114
  %v2238 = vunpack.c.h.b16 %v114
  %v2239 = vunpack.c.l.b16 %v115
  %v2240 = vunpack.c.h.b16 %v115
  %v2241 = vunpack.c.l.b16 %v116
  %v2242 = vunpack.c.h.b16 %v116
  %v2243 = vunpack.c.l.b16 %v117
  %v2244 = vunpack.c.h.b16 %v117
  %v2245 = vunpack.c.l.b16 %v118
  %v2246 = vunpack.c.h.b16 %v118
  %v2247 = vunpack.c.l.b16 %v119
  %v2248 = vunpack.c.h.b16 %v119
  %v2249 = vunpack.c.l.b16 %v120
  %v2250 = vunpack.c.h.b16 %v120
  %v2251 = vunpack.c.l.b16 %v121
  %v2252 = vunpack.c.h.b16 %v121
  %v2253 = vunpack.c.l.b16 %v122
  %v2254 = vunpack.c.h.b16 %v122
  %v2255 = vunpack.c.l.b16 %v123
  %v2256 = vunpack.c.h.b16 %v123
  %v2257 = vunpack.c.l.b16 %v124
  %v2258 = vunpack.c.h.b16 %v124
  %v2259 = vunpack.c.l.b16 %v125
  %v2260 = vunpack.c.h.b16 %v125
  %v2261 = vunpack.c.l.b16 %v126
  %v2262 = vunpack.c.h.b16 %v126
  %v2263 = vunpack.c.l.b16 %v127
  %v2264 = vunpack.c.h.b16 %v127
  %v2265 = vunpack.c.l.b16 %v128
  %v2266 = vunpack.c.h.b16 %v128
  %v2267 = vunpack.c.l.b16 %v129
  %v2268 = vunpack.c.h.b16 %v129
  %v2269 = vunpack.c.l.b16 %v130
  %v2270 = vunpack.c.h.b16 %v130
  %v2271 = vunpack.c.l.b16 %v131
  %v2272 = vunpack.c.h.b16 %v131
  %v2273 = vunpack.c.l.b16 %v132
  %v2274 = vunpack.c.h.b16 %v132
  %v2275 = vunpack.c.l.b16 %v133
  %v2276 = vunpack.c.h.b16 %v133
  %v2277 = vunpack.c.l.b16 %v134
  %v2278 = vunpack.c.h.b16 %v134
  %v2279 = vunpack.c.l.b16 %v135
  %v2280 = vunpack.c.h.b16 %v135
  %v2281 = vunpack.c.l.b16 %v136
  %v2282 = vunpack.c.h.b16 %v136
  %v2283 = vunpack.c.l.b16 %v137
  %v2284 = vunpack.c.h.b16 %v137
  %v2285 = vunpack.c.l.b16 %v138
  %v2286 = vunpack.c.h.b16 %v138
  %v2287 = vunpack.c.l.b16 %v139
  %v2288 = vunpack.c.h.b16 %v139
  %v2289 = vunpack.c.l.b16 %v140
  %v2290 = vunpack.c.h.b16 %v140
  %v2291 = vunpack.c.l.b16 %v141
  %v2292 = vunpack.c.h.b16 %v141
  %v2293 = vunpack.c.l.b16 %v142
  %v2294 = vunpack.c.h.b16 %v142
  %v2295 = vunpack.c.l.b16 %v143
  %v2296 = vunpack.c.h.b16 %v143
  %v2297 = vunpack.c.l.b16 %v144
  %v2298 = vunpack.c.h.b16 %v144
  %v2299 = vunpack.c.l.b16 %v145
  %v2300 = vunpack.c.h.b16 %v145
  %v2301 = vunpack.c.l.b16 %v146
  %v2302 = vunpack.c.h.b16 %v146
  %v2303 = vunpack.c.l.b16 %v147
  %v2304 = vunpack.c.h.b16 %v147
  %v2305 = vunpack.c.l.b16 %v148
  %v2306 = vunpack.c.h.b16 %v148
  %v2307 = vunpack.c.l.b16 %v149
  %v2308 = vunpack.c.h.b16 %v149
  %v2309 = vunpack.c.l.b16 %v150
  %v2310 = vunpack.c.h.b16 %v150
  %v2311 = vunpack.c.l.b16 %v151
  %v2312 = vunpack.c.h.b16 %v151
  %v2313 = vunpack.c.l.b16 %v152
  %v2314 = vunpack.c.h.b16 %v152
  %v2315 = vunpack.c.l.b16 %v153
  %v2316 = vunpack.c.h.b16 %v153
  %v2317 = vunpack.c.l.b16 %v154
  %v2318 = vunpack.c.h.b16 %v154
  %v2319 = vunpack.c.l.b16 %v155
  %v2320 = vunpack.c.h.b16 %v155
  %v2321 = vunpack.c.l.b16 %v156
  %v2322 = vunpack.c.h.b16 %v156
  %v2323 = vunpack.c.l.b16 %v157
  %v2324 = vunpack.c.h.b16 %v157
  %v2325 = vunpack.c.l.b16 %v158
  %v2326 = vunpack.c.h.b16 %v158
  %v2327 = vunpack.c.l.b16 %v159
  %v2328 = vunpack.c.h.b16 %v159
  %v2329 = vunpack.c.l.b16 %v160
  %v2330 = vunpack.c.h.b16 %v160
  %v2331 = vunpack.c.l.b16 %v161
  %v2332 = vunpack.c.h.b16 %v161
  %v2333 = vunpack.c.l.b16 %v162
  %v2334 = vunpack.c.h.b16 %v162
  %v2335 = vunpack.c.l.b16 %v163
  %v2336 = vunpack.c.h.b16 %v163
  %v2337 = vunpack.c.l.b16 %v164
  %v2338 = vunpack.c.h.b16 %v164
  %v2339 = vunpack.c.l.b16 %v165
  %v2340 = vunpack.c.h.b16 %v165
  %v2341 = vunpack.c.l.b16 %v166
  %v2342 = vunpack.c.h.b16 %v166
  %v2343 = vunpack.c.l.b16 %v167
  %v2344 = vunpack.c.h.b16 %v167
  %v2345 = vunpack.c.l.b16 %v168
  %v2346 = vunpack.c.h.b16 %v168
  %v2347 = vunpack.c.l.b16 %v169
  %v2348 = vunpack.c.h.b16 %v169
  %v2349 = vunpack.c.l.b16 %v170
  %v2350 = vunpack.c.h.b16 %v170
  %v2351 = vunpack.c.l.b16 %v171
  %v2352 = vunpack.c.h.b16 %v171
  %v2353 = vunpack.c.l.b16 %v172
  %v2354 = vunpack.c.h.b16 %v172
  %v2355 = vunpack.c.l.b16 %v173
  %v2356 = vunpack.c.h.b16 %v173
  %v2357 = vunpack.c.l.b16 %v174
  %v2358 = vunpack.c.h.b16 %v174
  %v2359 = vunpack.c.l.b16 %v175
  %v2360 = vunpack.c.h.b16 %v175
  %v2361 = vunpack.c.l.b16 %v176
  %v2362 = vunpack.c.h.b16 %v176
  %v2363 = vunpack.c.l.b16 %v177
  %v2364 = vunpack.c.h.b16 %v177
  %v2365 = vunpack.c.l.b16 %v178
  %v2366 = vunpack.c.h.b16 %v178
  %v2367 = vunpack.c.l.b16 %v179
  %v2368 = vunpack.c.h.b16 %v179
  %v2369 = vunpack.c.l.b16 %v180
  %v2370 = vunpack.c.h.b16 %v180
  %v2371 = vunpack.c.l.b16 %v181
  %v2372 = vunpack.c.h.b16 %v181
  %v2373 = vunpack.c.l.b16 %v182
  %v2374 = vunpack.c.h.b16 %v182
  %v2375 = vunpack.c.l.b16 %v183
  %v2376 = vunpack.c.h.b16 %v183
  %v2377 = vunpack.c.l.b16 %v184
  %v2378 = vunpack.c.h.b16 %v184
  %v2379 = vunpack.c.l.b16 %v185
  %v2380 = vunpack.c.h.b16 %v185
  %v2381 = vunpack.c.l.b16 %v186
  %v2382 = vunpack.c.h.b16 %v186
  %v2383 = vunpack.c.l.b16 %v187
  %v2384 = vunpack.c.h.b16 %v187
  %v2385 = vunpack.c.l.b16 %v188
  %v2386 = vunpack.c.h.b16 %v188
  %v2387 = vunpack.c.l.b16 %v189
  %v2388 = vunpack.c.h.b16 %v189
  %v2389 = vunpack.c.l.b16 %v190
  %v2390 = vunpack.c.h.b16 %v190
  %v2391 = vunpack.c.l.b16 %v191
  %v2392 = vunpack.c.h.b16 %v191
  %v2393 = vunpack.c.l.b16 %v192
  %v2394 = vunpack.c.h.b16 %v192
  %v2395 = vunpack.c.l.b16 %v193
  %v2396 = vunpack.c.h.b16 %v193
  %v2397 = vunpack.c.l.b16 %v194
  %v2398 = vunpack.c.h.b16 %v194
  %v2399 = vunpack.c.l.b16 %v195
  %v2400 = vunpack.c.h.b16 %v195
  %v2401 = vunpack.c.l.b16 %v196
  %v2402 = vunpack.c.h.b16 %v196
  %v2403 = vunpack.c.l.b16 %v197
  %v2404 = vunpack.c.h.b16 %v197
  %v2405 = vunpack.c.l.b16 %v198
  %v2406 = vunpack.c.h.b16 %v198
  %v2407 = vunpack.c.l.b16 %v199
  %v2408 = vunpack.c.h.b16 %v199
  %v2409 = vunpack.c.l.b16 %v200
  %v2410 = vunpack.c.h.b16 %v200
  %v2411 = vunpack.c.l.b16 %v201
  %v2412 = vunpack.c.h.b16 %v201
  %v2413 = vunpack.c.l.b16 %v202
  %v2414 = vunpack.c.h.b16 %v202
  %v2415 = vunpack.c.l.b16 %v203
  %v2416 = vunpack.c.h.b16 %v203
  %v2417 = vunpack.c.l.b16 %v204
  %v2418 = vunpack.c.h.b16 %v204
  %v2419 = vunpack.c.l.b16 %v205
  %v2420 = vunpack.c.h.b16 %v205
  %v2421 = vunpack.c.l.b16 %v206
  %v2422 = vunpack.c.h.b16 %v206
  %v2423 = vunpack.c.l.b16 %v207
  %v2424 = vunpack.c.h.b16 %v207
  %v2425 = vunpack.c.l.b16 %v208
  %v2426 = vunpack.c.h.b16 %v208
  %v2427 = vunpack.c.l.b16 %v209
  %v2428 = vunpack.c.h.b16 %v209
  %v2429 = vunpack.c.l.b16 %v210
  %v2430 = vunpack.c.h.b16 %v210
  %v2431 = vunpack.c.l.b16 %v211
  %v2432 = vunpack.c.h.b16 %v211
  %v2433 = vunpack.c.l.b16 %v212
  %v2434 = vunpack.c.h.b16 %v212
  %v2435 = vunpack.c.l.b16 %v213
  %v2436 = vunpack.c.h.b16 %v213
  %v2437 = vunpack.c.l.b16 %v214
  %v2438 = vunpack.c.h.b16 %v214
  %v2439 = vunpack.c.l.b16 %v215
  %v2440 = vunpack.c.h.b16 %v215
  %v2441 = vunpack.c.l.b16 %v216
  %v2442 = vunpack.c.h.b16 %v216
  %v2443 = vunpack.c.l.b16 %v217
  %v2444 = vunpack.c.h.b16 %v217
  %v2445 = vunpack.c.l.b16 %v218
  %v2446 = vunpack.c.h.b16 %v218
  %v2447 = vunpack.c.l.b16 %v219
  %v2448 = vunpack.c.h.b16 %v219
  %v2449 = vunpack.c.l.b16 %v220
  %v2450 = vunpack.c.h.b16 %v220
  %v2451 = vunpack.c.l.b16 %v221
  %v2452 = vunpack.c.h.b16 %v221
  %v2453 = vunpack.c.l.b16 %v222
  %v2454 = vunpack.c.h.b16 %v222
  %v2455 = vunpack.c.l.b16 %v223
  %v2456 = vunpack.c.h.b16 %v223
  %v2457 = vunpack.c.l.b16 %v224
  %v2458 = vunpack.c.h.b16 %v224
  %v2459 = vunpack.c.l.b16 %v225
  %v2460 = vunpack.c.h.b16 %v225
  %v2461 = vunpack.c.l.b16 %v226
  %v2462 = vunpack.c.h.b16 %v226
  %v2463 = vunpack.c.l.b16 %v227
  %v2464 = vunpack.c.h.b16 %v227
  %v2465 = vunpack.c.l.b16 %v228
  %v2466 = vunpack.c.h.b16 %v228
  %v2467 = vunpack.c.l.b16 %v229
  %v2468 = vunpack.c.h.b16 %v229
  %v2469 = vunpack.c.l.b16 %v230
  %v2470 = vunpack.c.h.b16 %v230
  %v2471 = vunpack.c.l.b16 %v231
  %v2472 = vunpack.c.h.b16 %v231
  %v2473 = vunpack.c.l.b16 %v232
  %v2474 = vunpack.c.h.b16 %v232
  %v2475 = vunpack.c.l.b16 %v233
  %v2476 = vunpack.c.h.b16 %v233
  %v2477 = vunpack.c.l.b16 %v234
  %v2478 = vunpack.c.h.b16 %v234
  %v2479 = vunpack.c.l.b16 %v235
  %v2480 = vunpack.c.h.b16 %v235
  %v2481 = vunpack.c.l.b16 %v236
  %v2482 = vunpack.c.h.b16 %v236
  %v2483 = vunpack.c.l.b16 %v237
  %v2484 = vunpack.c.h.b16 %v237
  %v2485 = vunpack.c.l.b16 %v238
  %v2486 = vunpack.c.h.b16 %v238
  %v2487 = vunpack.c.l.b16 %v239
  %v2488 = vunpack.c.h.b16 %v239
  %v2489 = vunpack.c.l.b16 %v240
  %v2490 = vunpack.c.h.b16 %v240
  %v2491 = vunpack.c.l.b16 %v241
  %v2492 = vunpack.c.h.b16 %v241
  %v2493 = vunpack.c.l.b16 %v242
  %v2494 = vunpack.c.h.b16 %v242
  %v2495 = vunpack.c.l.b16 %v243
  %v2496 = vunpack.c.h.b16 %v243
  %v2497 = vunpack.c.l.b16 %v244
  %v2498 = vunpack.c.h.b16 %v244
  %v2499 = vunpack.c.l.b16 %v245
  %v2500 = vunpack.c.h.b16 %v245
  %v2501 = vunpack.c.l.b16 %v246
  %v2502 = vunpack.c.h.b16 %v246
  %v2503 = vunpack.c.l.b16 %v247
  %v2504 = vunpack.c.h.b16 %v247
  %v2505 = vunpack.c.l.b16 %v248
  %v2506 = vunpack.c.h.b16 %v248
  %v2507 = vunpack.c.l.b16 %v249
  %v2508 = vunpack.c.h.b16 %v249
  %v2509 = vunpack.c.l.b16 %v250
  %v2510 = vunpack.c.h.b16 %v250
  %v2511 = vunpack.c.l.b16 %v251
  %v2512 = vunpack.c.h.b16 %v251
  %v2513 = vunpack.c.l.b16 %v252
  %v2514 = vunpack.c.h.b16 %v252
  %v2515 = vunpack.c.l.b16 %v253
  %v2516 = vunpack.c.h.b16 %v253
  %v2517 = vunpack.c.l.b16 %v254
  %v2518 = vunpack.c.h.b16 %v254
  %v2519 = vunpack.c.l.b16 %v255
  %v2520 = vunpack.c.h.b16 %v255
  %v2521 = vunpack.c.l.b16 %v256
  %v2522 = vunpack.c.h.b16 %v256
  %v2523 = vunpack.c.l.b16 %v257
  %v2524 = vunpack.c.h.b16 %v257
  %v2525 = vunpack.c.l.b16 %v258
  %v2526 = vunpack.c.h.b16 %v258
  %v2527 = vunpack.c.l.b16 %v259
  %v2528 = vunpack.c.h.b16 %v259
  %v2529 = vunpack.c.l.b16 %v260
  %v2530 = vunpack.c.h.b16 %v260
  %v2531 = vunpack.c.l.b16 %v261
  %v2532 = vunpack.c.h.b16 %v261
  %v2533 = vunpack.c.l.b16 %v262
  %v2534 = vunpack.c.h.b16 %v262
  %v2535 = vunpack.c.l.b16 %v263
  %v2536 = vunpack.c.h.b16 %v263
  %v2537 = vunpack.c.l.b16 %v264
  %v2538 = vunpack.c.h.b16 %v264
  %v2539 = vunpack.c.l.b16 %v265
  %v2540 = vunpack.c.h.b16 %v265
  %v2541 = vunpack.c.l.b16 %v266
  %v2542 = vunpack.c.h.b16 %v266
  %v2543 = vunpack.c.l.b16 %v267
  %v2544 = vunpack.c.h.b16 %v267
  %v2545 = vunpack.c.l.b16 %v268
  %v2546 = vunpack.c.h.b16 %v268
  %v2547 = vunpack.c.l.b16 %v269
  %v2548 = vunpack.c.h.b16 %v269
  %v2549 = vunpack.c.l.b16 %v270
  %v2550 = vunpack.c.h.b16 %v270
  %v2551 = vunpack.c.l.b16 %v271
  %v2552 = vunpack.c.h.b16 %v271
  %v2553 = vunpack.c.l.b16 %v272
  %v2554 = vunpack.c.h.b16 %v272
  %v2555 = vunpack.c.l.b16 %v273
  %v2556 = vunpack.c.h.b16 %v273
  %v2557 = vunpack.c.l.b16 %v274
  %v2558 = vunpack.c.h.b16 %v274
  %v2559 = vunpack.c.l.b16 %v275
  %v2560 = vunpack.c.h.b16 %v275
  %v2561 = vunpack.c.l.b16 %v276
  %v2562 = vunpack.c.h.b16 %v276
  %v2563 = vunpack.c.l.b16 %v277
  %v2564 = vunpack.c.h.b16 %v277
  %v2565 = vunpack.c.l.b16 %v278
  %v2566 = vunpack.c.h.b16 %v278
  %v2567 = vunpack.c.l.b16 %v279
  %v2568 = vunpack.c.h.b16 %v279
  %v2569 = vunpack.c.l.b16 %v280
  %v2570 = vunpack.c.h.b16 %v280
  %v2571 = vunpack.c.l.b16 %v281
  %v2572 = vunpack.c.h.b16 %v281
  %v2573 = vunpack.c.l.b16 %v282
  %v2574 = vunpack.c.h.b16 %v282
  %v2575 = vunpack.c.l.b16 %v283
  %v2576 = vunpack.c.h.b16 %v283
  %v2577 = vunpack.c.l.b16 %v284
  %v2578 = vunpack.c.h.b16 %v284
  %v2579 = vunpack.c.l.b16 %v285
  %v2580 = vunpack.c.h.b16 %v285
  %v2581 = vunpack.c.l.b16 %v286
  %v2582 = vunpack.c.h.b16 %v286
  %v2583 = vunpack.c.l.b16 %v287
  %v2584 = vunpack.c.h.b16 %v287
  %v2585 = vunpack.c.l.b16 %v288
  %v2586 = vunpack.c.h.b16 %v288
  %v2587 = vunpack.c.l.b16 %v289
  %v2588 = vunpack.c.h.b16 %v289
  %v2589 = vunpack.c.l.b16 %v290
  %v2590 = vunpack.c.h.b16 %v290
  %v2591 = vunpack.c.l.b16 %v291
  %v2592 = vunpack.c.h.b16 %v291
  %v2593 = vunpack.c.l.b16 %v292
  %v2594 = vunpack.c.h.b16 %v292
  %v2595 = vunpack.c.l.b16 %v293
  %v2596 = vunpack.c.h.b16 %v293
  %v2597 = vunpack.c.l.b16 %v294
  %v2598 = vunpack.c.h.b16 %v294
  %v2599 = vunpack.c.l.b16 %v295
  %v2600 = vunpack.c.h.b16 %v295
  %v2601 = vunpack.c.l.b16 %v296
  %v2602 = vunpack.c.h.b16 %v296
  %v2603 = vunpack.c.l.b16 %v297
  %v2604 = vunpack.c.h.b16 %v297
  %v2605 = vunpack.c.l.b16 %v298
  %v2606 = vunpack.c.h.b16 %v298
  %v2607 = vunpack.c.l.b16 %v299
  %v2608 = vunpack.c.h.b16 %v299
  %v2609 = vunpack.c.l.b16 %v300
  %v2610 = vunpack.c.h.b16 %v300
  %v2611 = vunpack.c.l.b16 %v301
  %v2612 = vunpack.c.h.b16 %v301
  %v2613 = vunpack.c.l.b16 %v302
  %v2614 = vunpack.c.h.b16 %v302
  %v2615 = vunpack.c.l.b16 %v303
  %v2616 = vunpack.c.h.b16 %v303
  %v2617 = vunpack.c.l.b16 %v304
  %v2618 = vunpack.c.h.b16 %v304
  %v2619 = vunpack.c.l.b16 %v305
  %v2620 = vunpack.c.h.b16 %v305
  %v2621 = vunpack.c.l.b16 %v306
  %v2622 = vunpack.c.h.b16 %v306
  %v2623 = vunpack.c.l.b16 %v307
  %v2624 = vunpack.c.h.b16 %v307
  %v2625 = vunpack.c.l.b16 %v308
  %v2626 = vunpack.c.h.b16 %v308
  %v2627 = vunpack.c.l.b16 %v309
  %v2628 = vunpack.c.h.b16 %v309
  %v2629 = vunpack.c.l.b16 %v310
  %v2630 = vunpack.c.h.b16 %v310
  %v2631 = vunpack.c.l.b16 %v311
  %v2632 = vunpack.c.h.b16 %v311
  %v2633 = vunpack.c.l.b16 %v312
  %v2634 = vunpack.c.h.b16 %v312
  %v2635 = vunpack.c.l.b16 %v313
  %v2636 = vunpack.c.h.b16 %v313
  %v2637 = vunpack.c.l.b16 %v314
  %v2638 = vunpack.c.h.b16 %v314
  %v2639 = vunpack.c.l.b16 %v315
  %v2640 = vunpack.c.h.b16 %v315
  %v2641 = vunpack.c.l.b16 %v316
  %v2642 = vunpack.c.h.b16 %v316
  %v2643 = vunpack.c.l.b16 %v317
  %v2644 = vunpack.c.h.b16 %v317
  %v2645 = vunpack.c.l.b16 %v318
  %v2646 = vunpack.c.h.b16 %v318
  %v2647 = vunpack.c.l.b16 %v319
  %v2648 = vunpack.c.h.b16 %v319
  %v2649 = vunpack.c.l.b16 %v320
  %v2650 = vunpack.c.h.b16 %v320
  %v2651 = vunpack.c.l.b16 %v321
  %v2652 = vunpack.c.h.b16 %v321
  %v2653 = vunpack.c.l.b16 %v322
  %v2654 = vunpack.c.h.b16 %v322
  %v2655 = vunpack.c.l.b16 %v323
  %v2656 = vunpack.c.h.b16 %v323
  %v2657 = vunpack.c.l.b16 %v324
  %v2658 = vunpack.c.h.b16 %v324
  %v2659 = vunpack.c.l.b16 %v325
  %v2660 = vunpack.c.h.b16 %v325
  %v2661 = vunpack.c.l.b16 %v326
  %v2662 = vunpack.c.h.b16 %v326
  %v2663 = vunpack.c.l.b16 %v327
  %v2664 = vunpack.c.h.b16 %v327
  %v2665 = vunpack.c.l.b16 %v328
  %v2666 = vunpack.c.h.b16 %v328
  %v2667 = vunpack.c.l.b16 %v329
  %v2668 = vunpack.c.h.b16 %v329
  %v2669 = vunpack.c.l.b16 %v330
  %v2670 = vunpack.c.h.b16 %v330
  %v2671 = vunpack.c.l.b16 %v331
  %v2672 = vunpack.c.h.b16 %v331
  %v2673 = vunpack.c.l.b16 %v332
  %v2674 = vunpack.c.h.b16 %v332
  %v2675 = vunpack.c.l.b16 %v333
  %v2676 = vunpack.c.h.b16 %v333
  %v2677 = vunpack.c.l.b16 %v334
  %v2678 = vunpack.c.h.b16 %v334
  %v2679 = vunpack.c.l.b16 %v335
  %v2680 = vunpack.c.h.b16 %v335
  %v2681 = vunpack.c.l.b16 %v336
  %v2682 = vunpack.c.h.b16 %v336
  %v2683 = vunpack.c.l.b16 %v337
  %v2684 = vunpack.c.h.b16 %v337
  %v2685 = vunpack.c.l.b16 %v338
  %v2686 = vunpack.c.h.b16 %v338
  %v2687 = vunpack.c.l.b16 %v339
  %v2688 = vunpack.c.h.b16 %v339
  %v2689 = vunpack.c.l.b16 %v340
  %v2690 = vunpack.c.h.b16 %v340
  %v2691 = vunpack.c.l.b16 %v341
  %v2692 = vunpack.c.h.b16 %v341
  %v2693 = vunpack.c.l.b16 %v342
  %v2694 = vunpack.c.h.b16 %v342
  %v2695 = vunpack.c.l.b16 %v343
  %v2696 = vunpack.c.h.b16 %v343
  %v2697 = vunpack.c.l.b16 %v344
  %v2698 = vunpack.c.h.b16 %v344
  %v2699 = vunpack.c.l.b16 %v345
  %v2700 = vunpack.c.h.b16 %v345
  %v2701 = vunpack.c.l.b16 %v346
  %v2702 = vunpack.c.h.b16 %v346
  %v2703 = vunpack.c.l.b16 %v347
  %v2704 = vunpack.c.h.b16 %v347
  %v2705 = vunpack.c.l.b16 %v348
  %v2706 = vunpack.c.h.b16 %v348
  %v2707 = vunpack.c.l.b16 %v349
  %v2708 = vunpack.c.h.b16 %v349
  %v2709 = vunpack.c.l.b16 %v350
  %v2710 = vunpack.c.h.b16 %v350
  %v2711 = vunpack.c.l.b16 %v351
  %v2712 = vunpack.c.h.b16 %v351
  %v2713 = vunpack.c.l.b16 %v352
  %v2714 = vunpack.c.h.b16 %v352
  %v2715 = vunpack.c.l.b16 %v353
  %v2716 = vunpack.c.h.b16 %v353
  %v2717 = vunpack.c.l.b16 %v354
  %v2718 = vunpack.c.h.b16 %v354
  %v2719 = vunpack.c.l.b16 %v355
  %v2720 = vunpack.c.h.b16 %v355
  %v2721 = vunpack.c.l.b16 %v356
  %v2722 = vunpack.c.h.b16 %v356
  %v2723 = vunpack.c.l.b16 %v357
  %v2724 = vunpack.c.h.b16 %v357
  %v2725 = vunpack.c.l.b16 %v358
  %v2726 = vunpack.c.h.b16 %v358
  %v2727 = vunpack.c.l.b16 %v359
  %v2728 = vunpack.c.h.b16 %v359
  %v2729 = vunpack.c.l.b16 %v360
  %v2730 = vunpack.c.h.b16 %v360
  %v2731 = vunpack.c.l.b16 %v361
  %v2732 = vunpack.c.h.b16 %v361
  %v2733 = vunpack.c.l.b16 %v362
  %v2734 = vunpack.c.h.b16 %v362
  %v2735 = vunpack.c.l.b16 %v363
  %v2736 = vunpack.c.h.b16 %v363
  %v2737 = vunpack.c.l.b16 %v364
  %v2738 = vunpack.c.h.b16 %v364
  %v2739 = vunpack.c.l.b16 %v365
  %v2740 = vunpack.c.h.b16 %v365
  %v2741 = vunpack.c.l.b16 %v366
  %v2742 = vunpack.c.h.b16 %v366
  %v2743 = vunpack.c.l.b16 %v367
  %v2744 = vunpack.c.h.b16 %v367
  %v2745 = vunpack.c.l.b16 %v368
  %v2746 = vunpack.c.h.b16 %v368
  %v2747 = vunpack.c.l.b16 %v369
  %v2748 = vunpack.c.h.b16 %v369
  %v2749 = vunpack.c.l.b16 %v370
  %v2750 = vunpack.c.h.b16 %v370
  %v2751 = vunpack.c.l.b16 %v371
  %v2752 = vunpack.c.h.b16 %v371
  %v2753 = vunpack.c.l.b16 %v372
  %v2754 = vunpack.c.h.b16 %v372
  %v2755 = vunpack.c.l.b16 %v373
  %v2756 = vunpack.c.h.b16 %v373
  %v2757 = vunpack.c.l.b16 %v374
  %v2758 = vunpack.c.h.b16 %v374
  %v2759 = vunpack.c.l.b16 %v375
  %v2760 = vunpack.c.h.b16 %v375
  %v2761 = vunpack.c.l.b16 %v376
  %v2762 = vunpack.c.h.b16 %v376
  %v2763 = vunpack.c.l.b16 %v377
  %v2764 = vunpack.c.h.b16 %v377
  %v2765 = vunpack.c.l.b16 %v378
  %v2766 = vunpack.c.h.b16 %v378
  %v2767 = vunpack.c.l.b16 %v379
  %v2768 = vunpack.c.h.b16 %v379
  %v2769 = vunpack.c.l.b16 %v380
  %v2770 = vunpack.c.h.b16 %v380
  %v2771 = vunpack.c.l.b16 %v381
  %v2772 = vunpack.c.h.b16 %v381
  %v2773 = vunpack.c.l.b16 %v382
  %v2774 = vunpack.c.h.b16 %v382
  %v2775 = vunpack.c.l.b16 %v383
  %v2776 = vunpack.c.h.b16 %v383
  %v2777 = vunpack.c.l.b16 %v384
  %v2778 = vunpack.c.h.b16 %v384
  %v2779 = vunpack.c.l.b16 %v385
  %v2780 = vunpack.c.h.b16 %v385
  %v2781 = vunpack.c.l.b16 %v386
  %v2782 = vunpack.c.h.b16 %v386
  %v2783 = vunpack.c.l.b16 %v387
  %v2784 = vunpack.c.h.b16 %v387
  %v2785 = vunpack.c.l.b16 %v388
  %v2786 = vunpack.c.h.b16 %v388
  %v2787 = vunpack.c.l.b16 %v389
  %v2788 = vunpack.c.h.b16 %v389
  %v2789 = vunpack.c.l.b16 %v390
  %v2790 = vunpack.c.h.b16 %v390
  %v2791 = vunpack.c.l.b16 %v391
  %v2792 = vunpack.c.h.b16 %v391
  %v2793 = vunpack.c.l.b16 %v392
  %v2794 = vunpack.c.h.b16 %v392
  %v2795 = vunpack.c.l.b16 %v393
  %v2796 = vunpack.c.h.b16 %v393
  %v2797 = vunpack.c.l.b16 %v394
  %v2798 = vunpack.c.h.b16 %v394
  %v2799 = vunpack.c.l.b16 %v395
  %v2800 = vunpack.c.h.b16 %v395
  %v2801 = vunpack.c.l.b16 %v396
  %v2802 = vunpack.c.h.b16 %v396
  %v2803 = vunpack.c.l.b16 %v397
  %v2804 = vunpack.c.h.b16 %v397
  %v2805 = vunpack.c.l.b16 %v398
  %v2806 = vunpack.c.h.b16 %v398
  %v2807 = vunpack.c.l.b16 %v399
  %v2808 = vunpack.c.h.b16 %v399
  %v2809 = vunpack.c.l.b16 %v400
  %v2810 = vunpack.c.h.b16 %v400
  %v2811 = vunpack.c.l.b16 %v401
  %v2812 = vunpack.c.h.b16 %v401
  %v2813 = vunpack.c.l.b16 %v402
  %v2814 = vunpack.c.h.b16 %v402
  %v2815 = vunpack.c.l.b16 %v403
  %v2816 = vunpack.c.h.b16 %v403
  %v2817 = vunpack.c.l.b16 %v404
  %v2818 = vunpack.c.h.b16 %v404
  %v2819 = vunpack.c.l.b16 %v405
  %v2820 = vunpack.c.h.b16 %v405
  %v2821 = vunpack.c.l.b16 %v406
  %v2822 = vunpack.c.h.b16 %v406
  %v2823 = vunpack.c.l.b16 %v407
  %v2824 = vunpack.c.h.b16 %v407
  %v2825 = vunpack.c.l.b16 %v408
  %v2826 = vunpack.c.h.b16 %v408
  %v2827 = vunpack.c.l.b16 %v409
  %v2828 = vunpack.c.h.b16 %v409
  %v2829 = vunpack.c.l.b16 %v410
  %v2830 = vunpack.c.h.b16 %v410
  %v2831 = vunpack.c.l.b16 %v411
  %v2832 = vunpack.c.h.b16 %v411
  %v2833 = vunpack.c.l.b16 %v412
  %v2834 = vunpack.c.h.b16 %v412
  %v2835 = vunpack.c.l.b16 %v413
  %v2836 = vunpack.c.h.b16 %v413
  %v2837 = vunpack.c.l.b16 %v414
  %v2838 = vunpack.c.h.b16 %v414
  %v2839 = vunpack.c.l.b16 %v415
  %v2840 = vunpack.c.h.b16 %v415
  %v2841 = vunpack.c.l.b16 %v416
  %v2842 = vunpack.c.h.b16 %v416
  %v2843 = vunpack.c.l.b16 %v417
  %v2844 = vunpack.c.h.b16 %v417
  %v2845 = vunpack.c.l.b16 %v418
  %v2846 = vunpack.c.h.b16 %v418
  %v2847 = vunpack.c.l.b16 %v419
  %v2848 = vunpack.c.h.b16 %v419
  %v2849 = vunpack.c.l.b16 %v420
  %v2850 = vunpack.c.h.b16 %v420
  %v2851 = vunpack.c.l.b16 %v421
  %v2852 = vunpack.c.h.b16 %v421
  %v2853 = vunpack.c.l.b16 %v422
  %v2854 = vunpack.c.h.b16 %v422
  %v2855 = vunpack.c.l.b16 %v423
  %v2856 = vunpack.c.h.b16 %v423
  %v2857 = vunpack.c.l.b16 %v424
  %v2858 = vunpack.c.h.b16 %v424
  %v2859 = vunpack.c.l.b16 %v425
  %v2860 = vunpack.c.h.b16 %v425
  %v2861 = vunpack.c.l.b16 %v426
  %v2862 = vunpack.c.h.b16 %v426
  %v2863 = vunpack.c.l.b16 %v427
  %v2864 = vunpack.c.h.b16 %v427
  %v2865 = vunpack.c.l.b16 %v428
  %v2866 = vunpack.c.h.b16 %v428
  %v2867 = vunpack.c.l.b16 %v429
  %v2868 = vunpack.c.h.b16 %v429
  %v2869 = vunpack.c.l.b16 %v430
  %v2870 = vunpack.c.h.b16 %v430
  %v2871 = vunpack.c.l.b16 %v431
  %v2872 = vunpack.c.h.b16 %v431
  %v2873 = vunpack.c.l.b16 %v432
  %v2874 = vunpack.c.h.b16 %v432
  %v2875 = vunpack.c.l.b16 %v433
  %v2876 = vunpack.c.h.b16 %v433
  %v2877 = vunpack.c.l.b16 %v434
  %v2878 = vunpack.c.h.b16 %v434
  %v2879 = vunpack.c.l.b16 %v435
  %v2880 = vunpack.c.h.b16 %v435
  %v2881 = vunpack.c.l.b16 %v436
  %v2882 = vunpack.c.h.b16 %v436
  %v2883 = vunpack.c.l.b16 %v437
  %v2884 = vunpack.c.h.b16 %v437
  %v2885 = vunpack.c.l.b16 %v438
  %v2886 = vunpack.c.h.b16 %v438
  %v2887 = vunpack.c.l.b16 %v439
  %v2888 = vunpack.c.h.b16 %v439
  %v2889 = vunpack.c.l.b16 %v440
  %v2890 = vunpack.c.h.b16 %v440
  %v2891 = vunpack.c.l.b16 %v441
  %v2892 = vunpack.c.h.b16 %v441
  %v2893 = vunpack.c.l.b16 %v442
  %v2894 = vunpack.c.h.b16 %v442
  %v2895 = vunpack.c.l.b16 %v443
  %v2896 = vunpack.c.h.b16 %v443
  %v2897 = vunpack.c.l.b16 %v444
  %v2898 = vunpack.c.h.b16 %v444
  %v2899 = vunpack.c.l.b16 %v445
  %v2900 = vunpack.c.h.b16 %v445
  %v2901 = vunpack.c.l.b16 %v446
  %v2902 = vunpack.c.h.b16 %v446
  %v2903 = vunpack.c.l.b16 %v447
  %v2904 = vunpack.c.h.b16 %v447
  %v2905 = vunpack.c.l.b16 %v448
  %v2906 = vunpack.c.h.b16 %v448
  %v2907 = vunpack.c.l.b16 %v449
  %v2908 = vunpack.c.h.b16 %v449
  %v2909 = vunpack.c.l.b16 %v450
  %v2910 = vunpack.c.h.b16 %v450
  %v2911 = vunpack.c.l.b16 %v451
  %v2912 = vunpack.c.h.b16 %v451
  %v2913 = vunpack.c.l.b16 %v452
  %v2914 = vunpack.c.h.b16 %v452
  %v2915 = vunpack.c.l.b16 %v453
  %v2916 = vunpack.c.h.b16 %v453
  %v2917 = vunpack.c.l.b16 %v454
  %v2918 = vunpack.c.h.b16 %v454
  %v2919 = vunpack.c.l.b16 %v455
  %v2920 = vunpack.c.h.b16 %v455
  %v2921 = vunpack.c.l.b16 %v456
  %v2922 = vunpack.c.h.b16 %v456
  %v2923 = vunpack.c.l.b16 %v457
  %v2924 = vunpack.c.h.b16 %v457
  %v2925 = vunpack.c.l.b16 %v458
  %v2926 = vunpack.c.h.b16 %v458
  %v2927 = vunpack.c.l.b16 %v459
  %v2928 = vunpack.c.h.b16 %v459
  %v2929 = vunpack.c.l.b16 %v460
  %v2930 = vunpack.c.h.b16 %v460
  %v2931 = vunpack.c.l.b16 %v461
  %v2932 = vunpack.c.h.b16 %v461
  %v2933 = vunpack.c.l.b16 %v462
  %v2934 = vunpack.c.h.b16 %v462
  %v2935 = vunpack.c.l.b16 %v463
  %v2936 = vunpack.c.h.b16 %v463
  %v2937 = vunpack.c.l.b16 %v464
  %v2938 = vunpack.c.h.b16 %v464
  %v2939 = vunpack.c.l.b16 %v465
  %v2940 = vunpack.c.h.b16 %v465
  %v2941 = vunpack.c.l.b16 %v466
  %v2942 = vunpack.c.h.b16 %v466
  %v2943 = vunpack.c.l.b16 %v467
  %v2944 = vunpack.c.h.b16 %v467
  %v2945 = vunpack.c.l.b16 %v468
  %v2946 = vunpack.c.h.b16 %v468
  %v2947 = vunpack.c.l.b16 %v469
  %v2948 = vunpack.c.h.b16 %v469
  %v2949 = vunpack.c.l.b16 %v470
  %v2950 = vunpack.c.h.b16 %v470
  %v2951 = vunpack.c.l.b16 %v471
  %v2952 = vunpack.c.h.b16 %v471
  %v2953 = vunpack.c.l.b16 %v472
  %v2954 = vunpack.c.h.b16 %v472
  %v2955 = vunpack.c.l.b16 %v473
  %v2956 = vunpack.c.h.b16 %v473
  %v2957 = vunpack.c.l.b16 %v474
  %v2958 = vunpack.c.h.b16 %v474
  %v2959 = vunpack.c.l.b16 %v475
  %v2960 = vunpack.c.h.b16 %v475
  %v2961 = vunpack.c.l.b16 %v476
  %v2962 = vunpack.c.h.b16 %v476
  %v2963 = vunpack.c.l.b16 %v477
  %v2964 = vunpack.c.h.b16 %v477
  %v2965 = vunpack.c.l.b16 %v478
  %v2966 = vunpack.c.h.b16 %v478
  %v2967 = vunpack.c.l.b16 %v479
  %v2968 = vunpack.c.h.b16 %v479
  %v2969 = vunpack.c.l.b16 %v480
  %v2970 = vunpack.c.h.b16 %v480
  %v2971 = vunpack.c.l.b16 %v481
  %v2972 = vunpack.c.h.b16 %v481
  %v2973 = vunpack.c.l.b16 %v482
  %v2974 = vunpack.c.h.b16 %v482
  %v2975 = vunpack.c.l.b16 %v483
  %v2976 = vunpack.c.h.b16 %v483
  %v2977 = vunpack.c.l.b16 %v484
  %v2978 = vunpack.c.h.b16 %v484
  %v2979 = vunpack.c.l.b16 %v485
  %v2980 = vunpack.c.h.b16 %v485
  %v2981 = vunpack.c.l.b16 %v486
  %v2982 = vunpack.c.h.b16 %v486
  %v2983 = vunpack.c.l.b16 %v487
  %v2984 = vunpack.c.h.b16 %v487
  %v2985 = vunpack.c.l.b16 %v488
  %v2986 = vunpack.c.h.b16 %v488
  %v2987 = vunpack.c.l.b16 %v489
  %v2988 = vunpack.c.h.b16 %v489
  %v2989 = vunpack.c.l.b16 %v490
  %v2990 = vunpack.c.h.b16 %v490
  %v2991 = vunpack.c.l.b16 %v491
  %v2992 = vunpack.c.h.b16 %v491
  %v2993 = vunpack.c.l.b16 %v492
  %v2994 = vunpack.c.h.b16 %v492
  %v2995 = vunpack.c.l.b16 %v493
  %v2996 = vunpack.c.h.b16 %v493
  %v2997 = vunpack.c.l.b16 %v494
  %v2998 = vunpack.c.h.b16 %v494
  %v2999 = vunpack.c.l.b16 %v495
  %v3000 = vunpack.c.h.b16 %v495
  %v3001 = vunpack.c.l.b16 %v496
  %v3002 = vunpack.c.h.b16 %v496
  %v3003 = vunpack.c.l.b16 %v497
  %v3004 = vunpack.c.h.b16 %v497
  %v3005 = vunpack.c.l.b16 %v498
  %v3006 = vunpack.c.h.b16 %v498
  %v3007 = vunpack.c.l.b16 %v499
  %v3008 = vunpack.c.h.b16 %v499
  %v3009 = vunpack.c.l.b16 %v500
  %v3010 = vunpack.c.h.b16 %v500
  %v3011 = vunpack.c.l.b16 %v501
  %v3012 = vunpack.c.h.b16 %v501
  %v3013 = vunpack.c.l.b16 %v502
  %v3014 = vunpack.c.h.b16 %v502
  %v3015 = vunpack.c.l.b16 %v503
  %v3016 = vunpack.c.h.b16 %v503
  %v3017 = vunpack.c.l.b16 %v504
  %v3018 = vunpack.c.h.b16 %v504
  %v3019 = vunpack.c.l.b16 %v505
  %v3020 = vunpack.c.h.b16 %v505
  %v3021 = vunpack.c.l.b16 %v506
  %v3022 = vunpack.c.h.b16 %v506
  %v3023 = vunpack.c.l.b16 %v507
  %v3024 = vunpack.c.h.b16 %v507
  %v3025 = vunpack.c.l.b16 %v508
  %v3026 = vunpack.c.h.b16 %v508
  %v3027 = vunpack.c.l.b16 %v509
  %v3028 = vunpack.c.h.b16 %v509
  %v3029 = vunpack.c.l.b16 %v510
  %v3030 = vunpack.c.h.b16 %v510
  %v3031 = vunpack.c.l.b16 %v511
  %v3032 = vunpack.c.h.b16 %v511
  %v3033 = vunpack.c.l.b16 %v512
  %v3034 = vunpack.c.h.b16 %v512
  %v3035 = vunpack.c.l.b16 %v513
  %v3036 = vunpack.c.h.b16 %v513
  %v3037 = vunpack.c.l.b16 %v514
  %v3038 = vunpack.c.h.b16 %v514
  %v3039 = vunpack.c.l.b16 %v515
  %v3040 = vunpack.c.h.b16 %v515
  %v3041 = vunpack.c.l.b16 %v516
  %v3042 = vunpack.c.h.b16 %v516
  %v3043 = vunpack.c.l.b16 %v517
  %v3044 = vunpack.c.h.b16 %v517
  %v3045 = vunpack.c.l.b16 %v518
  %v3046 = vunpack.c.h.b16 %v518
  %v3047 = vunpack.c.l.b16 %v519
  %v3048 = vunpack.c.h.b16 %v519
  %v3049 = vunpack.c.l.b16 %v520
  %v3050 = vunpack.c.h.b16 %v520
  %v3051 = vunpack.c.l.b16 %v521
  %v3052 = vunpack.c.h.b16 %v521
  %v3053 = vunpack.c.l.b16 %v522
  %v3054 = vunpack.c.h.b16 %v522
  %v3055 = vunpack.c.l.b16 %v523
  %v3056 = vunpack.c.h.b16 %v523
  %v3057 = vunpack.c.l.b16 %v524
  %v3058 = vunpack.c.h.b16 %v524
  %v3059 = vunpack.c.l.b16 %v525
  %v3060 = vunpack.c.h.b16 %v525
  %v3061 = vunpack.c.l.b16 %v526
  %v3062 = vunpack.c.h.b16 %v526
  %v3063 = vunpack.c.l.b16 %v527
  %v3064 = vunpack.c.h.b16 %v527
  %v3065 = vunpack.c.l.b16 %v528
  %v3066 = vunpack.c.h.b16 %v528
  %v3067 = vunpack.c.l.b16 %v529
  %v3068 = vunpack.c.h.b16 %v529
  %v3069 = vunpack.c.l.b16 %v530
  %v3070 = vunpack.c.h.b16 %v530
  %v3071 = vunpack.c.l.b16 %v531
  %v3072 = vunpack.c.h.b16 %v531
  %v3073 = vunpack.c.l.b16 %v532
  %v3074 = vunpack.c.h.b16 %v532
  %v3075 = vunpack.c.l.b16 %v533
  %v3076 = vunpack.c.h.b16 %v533
  %v3077 = vunpack.c.l.b16 %v534
  %v3078 = vunpack.c.h.b16 %v534
  %v3079 = vunpack.c.l.b16 %v535
  %v3080 = vunpack.c.h.b16 %v535
  %v3081 = vunpack.c.l.b16 %v536
  %v3082 = vunpack.c.h.b16 %v536
  %v3083 = vunpack.c.l.b16 %v537
  %v3084 = vunpack.c.h.b16 %v537
  %v3085 = vunpack.c.l.b16 %v538
  %v3086 = vunpack.c.h.b16 %v538
  %v3087 = vunpack.c.l.b16 %v539
  %v3088 = vunpack.c.h.b16 %v539
  %v3089 = vunpack.c.l.b16 %v540
  %v3090 = vunpack.c.h.b16 %v540
  %v3091 = vunpack.c.l.b16 %v541
  %v3092 = vunpack.c.h.b16 %v541
  %v3093 = vunpack.c.l.b16 %v542
  %v3094 = vunpack.c.h.b16 %v542
  %v3095 = vunpack.c.l.b16 %v543
  %v3096 = vunpack.c.h.b16 %v543
  %v3097 = vunpack.c.l.b16 %v544
  %v3098 = vunpack.c.h.b16 %v544
  %v3099 = vunpack.c.l.b16 %v545
  %v3100 = vunpack.c.h.b16 %v545
  %v3101 = vunpack.c.l.b16 %v546
  %v3102 = vunpack.c.h.b16 %v546
  %v3103 = vunpack.c.l.b16 %v547
  %v3104 = vunpack.c.h.b16 %v547
  %v3105 = vunpack.c.l.b16 %v548
  %v3106 = vunpack.c.h.b16 %v548
  %v3107 = vunpack.c.l.b16 %v549
  %v3108 = vunpack.c.h.b16 %v549
  %v3109 = vunpack.c.l.b16 %v550
  %v3110 = vunpack.c.h.b16 %v550
  %v3111 = vunpack.c.l.b16 %v551
  %v3112 = vunpack.c.h.b16 %v551
  %v3113 = vunpack.c.l.b16 %v552
  %v3114 = vunpack.c.h.b16 %v552
  %v3115 = vunpack.c.l.b16 %v553
  %v3116 = vunpack.c.h.b16 %v553
  %v3117 = vunpack.c.l.b16 %v554
  %v3118 = vunpack.c.h.b16 %v554
  %v3119 = vunpack.c.l.b16 %v555
  %v3120 = vunpack.c.h.b16 %v555
  %v3121 = vunpack.c.l.b16 %v556
  %v3122 = vunpack.c.h.b16 %v556
  %v3123 = vunpack.c.l.b16 %v557
  %v3124 = vunpack.c.h.b16 %v557
  %v3125 = vunpack.c.l.b16 %v558
  %v3126 = vunpack.c.h.b16 %v558
  %v3127 = vunpack.c.l.b16 %v559
  %v3128 = vunpack.c.h.b16 %v559
  %v3129 = vunpack.c.l.b16 %v560
  %v3130 = vunpack.c.h.b16 %v560
  %v3131 = vunpack.c.l.b16 %v561
  %v3132 = vunpack.c.h.b16 %v561
  %v3133 = vunpack.c.l.b16 %v562
  %v3134 = vunpack.c.h.b16 %v562
  %v3135 = vunpack.c.l.b16 %v563
  %v3136 = vunpack.c.h.b16 %v563
  %v3137 = vunpack.c.l.b16 %v564
  %v3138 = vunpack.c.h.b16 %v564
  %v3139 = vunpack.c.l.b16 %v565
  %v3140 = vunpack.c.h.b16 %v565
  %v3141 = vunpack.c.l.b16 %v566
  %v3142 = vunpack.c.h.b16 %v566
  %v3143 = vunpack.c.l.b16 %v567
  %v3144 = vunpack.c.h.b16 %v567
  %v3145 = vunpack.c.l.b16 %v568
  %v3146 = vunpack.c.h.b16 %v568
  %v3147 = vunpack.c.l.b16 %v569
  %v3148 = vunpack.c.h.b16 %v569
  %v3149 = vunpack.c.l.b16 %v570
  %v3150 = vunpack.c.h.b16 %v570
  %v3151 = vunpack.c.l.b16 %v571
  %v3152 = vunpack.c.h.b16 %v571
  %v3153 = vunpack.c.l.b16 %v572
  %v3154 = vunpack.c.h.b16 %v572
  %v3155 = vunpack.c.l.b16 %v573
  %v3156 = vunpack.c.h.b16 %v573
  %v3157 = vunpack.c.l.b16 %v574
  %v3158 = vunpack.c.h.b16 %v574
  %v3159 = vunpack.c.l.b16 %v575
  %v3160 = vunpack.c.h.b16 %v575
  %v3161 = vunpack.c.l.b16 %v576
  %v3162 = vunpack.c.h.b16 %v576
  %v3163 = vunpack.c.l.b16 %v577
  %v3164 = vunpack.c.h.b16 %v577
  %v3165 = vunpack.c.l.b16 %v578
  %v3166 = vunpack.c.h.b16 %v578
  %v3167 = vunpack.c.l.b16 %v579
  %v3168 = vunpack.c.h.b16 %v579
  %v3169 = vunpack.c.l.b16 %v580
  %v3170 = vunpack.c.h.b16 %v580
  %v3171 = vunpack.c.l.b16 %v581
  %v3172 = vunpack.c.h.b16 %v581
  %v3173 = vunpack.c.l.b16 %v582
  %v3174 = vunpack.c.h.b16 %v582
  %v3175 = vunpack.c.l.b16 %v583
  %v3176 = vunpack.c.h.b16 %v583
  %v3177 = vunpack.c.l.b16 %v584
  %v3178 = vunpack.c.h.b16 %v584
  %v3179 = vunpack.c.l.b16 %v585
  %v3180 = vunpack.c.h.b16 %v585
  %v3181 = vunpack.c.l.b16 %v586
  %v3182 = vunpack.c.h.b16 %v586
  %v3183 = vunpack.c.l.b16 %v587
  %v3184 = vunpack.c.h.b16 %v587
  %v3185 = vunpack.c.l.b16 %v588
  %v3186 = vunpack.c.h.b16 %v588
  %v3187 = vunpack.c.l.b16 %v589
  %v3188 = vunpack.c.h.b16 %v589
  %v3189 = vunpack.c.l.b16 %v590
  %v3190 = vunpack.c.h.b16 %v590
  %v3191 = vunpack.c.l.b16 %v591
  %v3192 = vunpack.c.h.b16 %v591
  %v3193 = vunpack.c.l.b16 %v592
  %v3194 = vunpack.c.h.b16 %v592
  %v3195 = vunpack.c.l.b16 %v593
  %v3196 = vunpack.c.h.b16 %v593
  %v3197 = vunpack.c.l.b16 %v594
  %v3198 = vunpack.c.h.b16 %v594
  %v3199 = vunpack.c.l.b16 %v595
  %v3200 = vunpack.c.h.b16 %v595
  %v3201 = vunpack.c.l.b16 %v596
  %v3202 = vunpack.c.h.b16 %v596
  %v3203 = vunpack.c.l.b16 %v597
  %v3204 = vunpack.c.h.b16 %v597
  %v3205 = vunpack.c.l.b16 %v598
  %v3206 = vunpack.c.h.b16 %v598
  %v3207 = vunpack.c.l.b16 %v599
  %v3208 = vunpack.c.h.b16 %v599
  %v3209 = vunpack.c.l.b16 %v600
  %v3210 = vunpack.c.h.b16 %v600
  %v3211 = vunpack.c.l.b16 %v601
  %v3212 = vunpack.c.h.b16 %v601
  %v3213 = vunpack.c.l.b16 %v602
  %v3214 = vunpack.c.h.b16 %v602
  %v3215 = vunpack.c.l.b16 %v603
  %v3216 = vunpack.c.h.b16 %v603
  %v3217 = vunpack.c.l.b16 %v604
  %v3218 = vunpack.c.h.b16 %v604
  %v3219 = vunpack.c.l.b16 %v605
  %v3220 = vunpack.c.h.b16 %v605
  %v3221 = vunpack.c.l.b16 %v606
  %v3222 = vunpack.c.h.b16 %v606
  %v3223 = vunpack.c.l.b16 %v607
  %v3224 = vunpack.c.h.b16 %v607
  %v3225 = vunpack.c.l.b16 %v608
  %v3226 = vunpack.c.h.b16 %v608
  %v3227 = vunpack.c.l.b16 %v609
  %v3228 = vunpack.c.h.b16 %v609
  %v3229 = vunpack.c.l.b16 %v610
  %v3230 = vunpack.c.h.b16 %v610
  %v3231 = vunpack.c.l.b16 %v611
  %v3232 = vunpack.c.h.b16 %v611
  %v3233 = vunpack.c.l.b16 %v612
  %v3234 = vunpack.c.h.b16 %v612
  %v3235 = vunpack.c.l.b16 %v613
  %v3236 = vunpack.c.h.b16 %v613
  %v3237 = vunpack.c.l.b16 %v614
  %v3238 = vunpack.c.h.b16 %v614
  %v3239 = vunpack.c.l.b16 %v615
  %v3240 = vunpack.c.h.b16 %v615
  %v3241 = vunpack.c.l.b16 %v616
  %v3242 = vunpack.c.h.b16 %v616
  %v3243 = vunpack.c.l.b16 %v617
  %v3244 = vunpack.c.h.b16 %v617
  %v3245 = vunpack.c.l.b16 %v618
  %v3246 = vunpack.c.h.b16 %v618
  %v3247 = vunpack.c.l.b16 %v619
  %v3248 = vunpack.c.h.b16 %v619
  %v3249 = vunpack.c.l.b16 %v620
  %v3250 = vunpack.c.h.b16 %v620
  %v3251 = vunpack.c.l.b16 %v621
  %v3252 = vunpack.c.h.b16 %v621
  %v3253 = vunpack.c.l.b16 %v622
  %v3254 = vunpack.c.h.b16 %v622
  %v3255 = vunpack.c.l.b16 %v623
  %v3256 = vunpack.c.h.b16 %v623
  %v3257 = vunpack.c.l.b16 %v624
  %v3258 = vunpack.c.h.b16 %v624
  %v3259 = vunpack.c.l.b16 %v625
  %v3260 = vunpack.c.h.b16 %v625
  %v3261 = vunpack.c.l.b16 %v626
  %v3262 = vunpack.c.h.b16 %v626
  %v3263 = vunpack.c.l.b16 %v627
  %v3264 = vunpack.c.h.b16 %v627
  %v3265 = vunpack.c.l.b16 %v628
  %v3266 = vunpack.c.h.b16 %v628
  %v3267 = vunpack.c.l.b16 %v629
  %v3268 = vunpack.c.h.b16 %v629
  %v3269 = vunpack.c.l.b16 %v630
  %v3270 = vunpack.c.h.b16 %v630
  %v3271 = vunpack.c.l.b16 %v631
  %v3272 = vunpack.c.h.b16 %v631
  %v3273 = vunpack.c.l.b16 %v632
  %v3274 = vunpack.c.h.b16 %v632
  %v3275 = vunpack.c.l.b16 %v633
  %v3276 = vunpack.c.h.b16 %v633
  %v3277 = vunpack.c.l.b16 %v634
  %v3278 = vunpack.c.h.b16 %v634
  %v3279 = vunpack.c.l.b16 %v635
  %v3280 = vunpack.c.h.b16 %v635
  %v3281 = vunpack.c.l.b16 %v636
  %v3282 = vunpack.c.h.b16 %v636
  %v3283 = vunpack.c.l.b16 %v637
  %v3284 = vunpack.c.h.b16 %v637
  %v3285 = vunpack.c.l.b16 %v638
  %v3286 = vunpack.c.h.b16 %v638
  %v3287 = vunpack.c.l.b16 %v639
  %v3288 = vunpack.c.h.b16 %v639
  %v3289 = vunpack.c.l.b16 %v640
  %v3290 = vunpack.c.h.b16 %v640
  %v3291 = vunpack.c.l.b16 %v641
  %v3292 = vunpack.c.h.b16 %v641
  %v3293 = vunpack.c.l.b16 %v642
  %v3294 = vunpack.c.h.b16 %v642
  %v3295 = vunpack.c.l.b16 %v643
  %v3296 = vunpack.c.h.b16 %v643
  %v3297 = vunpack.c.l.b16 %v644
  %v3298 = vunpack.c.h.b16 %v644
  %v3299 = vunpack.c.l.b16 %v645
  %v3300 = vunpack.c.h.b16 %v645
  %v3301 = vunpack.c.l.b16 %v646
  %v3302 = vunpack.c.h.b16 %v646
  %v3303 = vunpack.c.l.b16 %v647
  %v3304 = vunpack.c.h.b16 %v647
  %v3305 = vunpack.c.l.b16 %v648
  %v3306 = vunpack.c.h.b16 %v648
  %v3307 = vunpack.c.l.b16 %v649
  %v3308 = vunpack.c.h.b16 %v649
  %v3309 = vunpack.c.l.b16 %v650
  %v3310 = vunpack.c.h.b16 %v650
  %v3311 = vunpack.c.l.b16 %v651
  %v3312 = vunpack.c.h.b16 %v651
  %v3313 = vunpack.c.l.b16 %v652
  %v3314 = vunpack.c.h.b16 %v652
  %v3315 = vunpack.c.l.b16 %v653
  %v3316 = vunpack.c.h.b16 %v653
  %v3317 = vunpack.c.l.b16 %v654
  %v3318 = vunpack.c.h.b16 %v654
  %v3319 = vunpack.c.l.b16 %v655
  %v3320 = vunpack.c.h.b16 %v655
  %v3321 = vunpack.c.l.b16 %v656
  %v3322 = vunpack.c.h.b16 %v656
  %v3323 = vunpack.c.l.b16 %v657
  %v3324 = vunpack.c.h.b16 %v657
  %v3325 = vunpack.c.l.b16 %v658
  %v3326 = vunpack.c.h.b16 %v658
  %v3327 = vunpack.c.l.b16 %v659
  %v3328 = vunpack.c.h.b16 %v659
  %v3329 = vunpack.c.l.b16 %v660
  %v3330 = vunpack.c.h.b16 %v660
  %v3331 = vunpack.c.l.b16 %v661
  %v3332 = vunpack.c.h.b16 %v661
  %v3333 = vunpack.c.l.b16 %v662
  %v3334 = vunpack.c.h.b16 %v662
  %v3335 = vunpack.c.l.b16 %v663
  %v3336 = vunpack.c.h.b16 %v663
  %v3337 = vunpack.c.l.b16 %v664
  %v3338 = vunpack.c.h.b16 %v664
  %v3339 = vunpack.c.l.b16 %v665
  %v3340 = vunpack.c.h.b16 %v665
  %v3341 = vunpack.c.l.b16 %v666
  %v3342 = vunpack.c.h.b16 %v666
  %v3343 = vunpack.c.l.b16 %v667
  %v3344 = vunpack.c.h.b16 %v667
  %v3345 = vunpack.c.l.b16 %v668
  %v3346 = vunpack.c.h.b16 %v668
  %v3347 = vunpack.c.l.b16 %v669
  %v3348 = vunpack.c.h.b16 %v669
  %v3349 = vunpack.c.l.b16 %v670
  %v3350 = vunpack.c.h.b16 %v670
  %v3351 = vunpack.c.l.b16 %v671
  %v3352 = vunpack.c.h.b16 %v671
  %v3353 = vunpack.c.l.b16 %v672
  %v3354 = vunpack.c.h.b16 %v672
  %v3355 = vunpack.c.l.b16 %v673
  %v3356 = vunpack.c.h.b16 %v673
  %v3357 = vunpack.c.l.b16 %v674
  %v3358 = vunpack.c.h.b16 %v674
  %v3359 = vunpack.c.l.b16 %v675
  %v3360 = vunpack.c.h.b16 %v675
  %v3361 = vunpack.c.l.b16 %v676
  %v3362 = vunpack.c.h.b16 %v676
  %v3363 = vunpack.c.l.b16 %v677
  %v3364 = vunpack.c.h.b16 %v677
  %v3365 = vunpack.c.l.b16 %v678
  %v3366 = vunpack.c.h.b16 %v678
  %v3367 = vunpack.c.l.b16 %v679
  %v3368 = vunpack.c.h.b16 %v679
  %v3369 = vunpack.c.l.b16 %v680
  %v3370 = vunpack.c.h.b16 %v680
  %v3371 = vunpack.c.l.b16 %v681
  %v3372 = vunpack.c.h.b16 %v681
  %v3373 = vunpack.c.l.b16 %v682
  %v3374 = vunpack.c.h.b16 %v682
  %v3375 = vunpack.c.l.b16 %v683
  %v3376 = vunpack.c.h.b16 %v683
  %v3377 = vunpack.c.l.b16 %v684
  %v3378 = vunpack.c.h.b16 %v684
  %v3379 = vunpack.c.l.b16 %v685
  %v3380 = vunpack.c.h.b16 %v685
  %v3381 = vunpack.c.l.b16 %v686
  %v3382 = vunpack.c.h.b16 %v686
  %v3383 = vunpack.c.l.b16 %v687
  %v3384 = vunpack.c.h.b16 %v687
  %v3385 = vunpack.c.l.b16 %v688
  %v3386 = vunpack.c.h.b16 %v688
  %v3387 = vunpack.c.l.b16 %v689
  %v3388 = vunpack.c.h.b16 %v689
  %v3389 = vunpack.c.l.b16 %v690
  %v3390 = vunpack.c.h.b16 %v690
  %v3391 = vunpack.c.l.b16 %v691
  %v3392 = vunpack.c.h.b16 %v691
  %v3393 = vunpack.c.l.b16 %v692
  %v3394 = vunpack.c.h.b16 %v692
  %v3395 = vunpack.c.l.b16 %v693
  %v3396 = vunpack.c.h.b16 %v693
  %v3397 = vunpack.c.l.b16 %v694
  %v3398 = vunpack.c.h.b16 %v694
  %v3399 = vunpack.c.l.b16 %v695
  %v3400 = vunpack.c.h.b16 %v695
  %v3401 = vunpack.c.l.b16 %v696
  %v3402 = vunpack.c.h.b16 %v696
  %v3403 = vunpack.c.l.b16 %v697
  %v3404 = vunpack.c.h.b16 %v697
  %v3405 = vunpack.c.l.b16 %v698
  %v3406 = vunpack.c.h.b16 %v698
  %v3407 = vunpack.c.l.b16 %v699
  %v3408 = vunpack.c.h.b16 %v699
  %v3409 = vunpack.c.l.b16 %v700
  %v3410 = vunpack.c.h.b16 %v700
  %v3411 = vunpack.c.l.b16 %v701
  %v3412 = vunpack.c.h.b16 %v701
  %v3413 = vunpack.c.l.b16 %v702
  %v3414 = vunpack.c.h.b16 %v702
  %v3415 = vunpack.c.l.b16 %v703
  %v3416 = vunpack.c.h.b16 %v703
  %v3417 = vunpack.c.l.b16 %v704
  %v3418 = vunpack.c.h.b16 %v704
  %v3419 = vunpack.c.l.b16 %v705
  %v3420 = vunpack.c.h.b16 %v705
  %v3421 = vunpack.c.l.b16 %v706
  %v3422 = vunpack.c.h.b16 %v706
  %v3423 = vunpack.c.l.b16 %v707
  %v3424 = vunpack.c.h.b16 %v707
  %v3425 = vunpack.c.l.b16 %v708
  %v3426 = vunpack.c.h.b16 %v708
  %v3427 = vunpack.c.l.b16 %v709
  %v3428 = vunpack.c.h.b16 %v709
  %v3429 = vunpack.c.l.b16 %v710
  %v3430 = vunpack.c.h.b16 %v710
  %v3431 = vunpack.c.l.b16 %v711
  %v3432 = vunpack.c.h.b16 %v711
  %v3433 = vunpack.c.l.b16 %v712
  %v3434 = vunpack.c.h.b16 %v712
  %v3435 = vunpack.c.l.b16 %v713
  %v3436 = vunpack.c.h.b16 %v713
  %v3437 = vunpack.c.l.b16 %v714
  %v3438 = vunpack.c.h.b16 %v714
  %v3439 = vunpack.c.l.b16 %v715
  %v3440 = vunpack.c.h.b16 %v715
  %v3441 = vunpack.c.l.b16 %v716
  %v3442 = vunpack.c.h.b16 %v716
  %v3443 = vunpack.c.l.b16 %v717
  %v3444 = vunpack.c.h.b16 %v717
  %v3445 = vunpack.c.l.b16 %v718
  %v3446 = vunpack.c.h.b16 %v718
  %v3447 = vunpack.c.l.b16 %v719
  %v3448 = vunpack.c.h.b16 %v719
  %v3449 = vunpack.c.l.b16 %v720
  %v3450 = vunpack.c.h.b16 %v720
  %v3451 = vunpack.c.l.b16 %v721
  %v3452 = vunpack.c.h.b16 %v721
  %v3453 = vunpack.c.l.b16 %v722
  %v3454 = vunpack.c.h.b16 %v722
  %v3455 = vunpack.c.l.b16 %v723
  %v3456 = vunpack.c.h.b16 %v723
  %v3457 = vunpack.c.l.b16 %v724
  %v3458 = vunpack.c.h.b16 %v724
  %v3459 = vunpack.c.l.b16 %v725
  %v3460 = vunpack.c.h.b16 %v725
  %v3461 = vunpack.c.l.b16 %v726
  %v3462 = vunpack.c.h.b16 %v726
  %v3463 = vunpack.c.l.b16 %v727
  %v3464 = vunpack.c.h.b16 %v727
  %v3465 = vunpack.c.l.b16 %v728
  %v3466 = vunpack.c.h.b16 %v728
  %v3467 = vunpack.c.l.b16 %v729
  %v3468 = vunpack.c.h.b16 %v729
  %v3469 = vunpack.c.l.b16 %v730
  %v3470 = vunpack.c.h.b16 %v730
  %v3471 = vunpack.c.l.b16 %v731
  %v3472 = vunpack.c.h.b16 %v731
  %v3473 = vunpack.c.l.b16 %v732
  %v3474 = vunpack.c.h.b16 %v732
  %v3475 = vunpack.c.l.b16 %v733
  %v3476 = vunpack.c.h.b16 %v733
  %v3477 = vunpack.c.l.b16 %v734
  %v3478 = vunpack.c.h.b16 %v734
  %v3479 = vunpack.c.l.b16 %v735
  %v3480 = vunpack.c.h.b16 %v735
  %v3481 = vunpack.c.l.b16 %v736
  %v3482 = vunpack.c.h.b16 %v736
  %v3483 = vunpack.c.l.b16 %v737
  %v3484 = vunpack.c.h.b16 %v737
  %v3485 = vunpack.c.l.b16 %v738
  %v3486 = vunpack.c.h.b16 %v738
  %v3487 = vunpack.c.l.b16 %v739
  %v3488 = vunpack.c.h.b16 %v739
  %v3489 = vunpack.c.l.b16 %v740
  %v3490 = vunpack.c.h.b16 %v740
  %v3491 = vunpack.c.l.b16 %v741
  %v3492 = vunpack.c.h.b16 %v741
  %v3493 = vunpack.c.l.b16 %v742
  %v3494 = vunpack.c.h.b16 %v742
  %v3495 = vunpack.c.l.b16 %v743
  %v3496 = vunpack.c.h.b16 %v743
  %v3497 = vunpack.c.l.b16 %v744
  %v3498 = vunpack.c.h.b16 %v744
  %v3499 = vunpack.c.l.b16 %v745
  %v3500 = vunpack.c.h.b16 %v745
  %v3501 = vunpack.c.l.b16 %v746
  %v3502 = vunpack.c.h.b16 %v746
  %v3503 = vunpack.c.l.b16 %v747
  %v3504 = vunpack.c.h.b16 %v747
  %v3505 = vunpack.c.l.b16 %v748
  %v3506 = vunpack.c.h.b16 %v748
  %v3507 = vunpack.c.l.b16 %v749
  %v3508 = vunpack.c.h.b16 %v749
  %v3509 = vunpack.c.l.b16 %v750
  %v3510 = vunpack.c.h.b16 %v750
  %v3511 = vunpack.c.l.b16 %v751
  %v3512 = vunpack.c.h.b16 %v751
  %v3513 = vunpack.c.l.b16 %v752
  %v3514 = vunpack.c.h.b16 %v752
  %v3515 = vunpack.c.l.b16 %v753
  %v3516 = vunpack.c.h.b16 %v753
  %v3517 = vunpack.c.l.b16 %v754
  %v3518 = vunpack.c.h.b16 %v754
  %v3519 = vunpack.c.l.b16 %v755
  %v3520 = vunpack.c.h.b16 %v755
  %v3521 = vunpack.c.l.b16 %v756
  %v3522 = vunpack.c.h.b16 %v756
  %v3523 = vunpack.c.l.b16 %v757
  %v3524 = vunpack.c.h.b16 %v757
  %v3525 = vunpack.c.l.b16 %v758
  %v3526 = vunpack.c.h.b16 %v758
  %v3527 = vunpack.c.l.b16 %v759
  %v3528 = vunpack.c.h.b16 %v759
  %v3529 = vunpack.c.l.b16 %v760
  %v3530 = vunpack.c.h.b16 %v760
  %v3531 = vunpack.c.l.b16 %v761
  %v3532 = vunpack.c.h.b16 %v761
  %v3533 = vunpack.c.l.b16 %v762
  %v3534 = vunpack.c.h.b16 %v762
  %v3535 = vunpack.c.l.b16 %v763
  %v3536 = vunpack.c.h.b16 %v763
  %v3537 = vunpack.c.l.b16 %v764
  %v3538 = vunpack.c.h.b16 %v764
  %v3539 = vunpack.c.l.b16 %v765
  %v3540 = vunpack.c.h.b16 %v765
  %v3541 = vunpack.c.l.b16 %v766
  %v3542 = vunpack.c.h.b16 %v766
  %v3543 = vunpack.c.l.b16 %v767
  %v3544 = vunpack.c.h.b16 %v767
  %v3545 = vunpack.c.l.b16 %v768
  %v3546 = vunpack.c.h.b16 %v768
  %v3547 = vunpack.c.l.b16 %v769
  %v3548 = vunpack.c.h.b16 %v769
  %v3549 = vunpack.c.l.b16 %v770
  %v3550 = vunpack.c.h.b16 %v770
  %v3551 = vunpack.c.l.b16 %v771
  %v3552 = vunpack.c.h.b16 %v771
  %v3553 = vunpack.c.l.b16 %v772
  %v3554 = vunpack.c.h.b16 %v772
  %v3555 = vunpack.c.l.b16 %v773
  %v3556 = vunpack.c.h.b16 %v773
  %v3557 = vunpack.c.l.b16 %v774
  %v3558 = vunpack.c.h.b16 %v774
  %v3559 = vunpack.c.l.b16 %v775
  %v3560 = vunpack.c.h.b16 %v775
  %v3561 = vunpack.c.l.b16 %v776
  %v3562 = vunpack.c.h.b16 %v776
  %v3563 = vunpack.c.l.b16 %v777
  %v3564 = vunpack.c.h.b16 %v777
  %v3565 = vunpack.c.l.b16 %v778
  %v3566 = vunpack.c.h.b16 %v778
  %v3567 = vunpack.c.l.b16 %v779
  %v3568 = vunpack.c.h.b16 %v779
  %v3569 = vunpack.c.l.b16 %v780
  %v3570 = vunpack.c.h.b16 %v780
  %v3571 = vunpack.c.l.b16 %v781
  %v3572 = vunpack.c.h.b16 %v781
  %v3573 = vunpack.c.l.b16 %v782
  %v3574 = vunpack.c.h.b16 %v782
  %v3575 = vunpack.c.l.b16 %v783
  %v3576 = vunpack.c.h.b16 %v783
  %v3577 = vunpack.c.l.b16 %v784
  %v3578 = vunpack.c.h.b16 %v784
  %v3579 = vunpack.c.l.b16 %v785
  %v3580 = vunpack.c.h.b16 %v785
  %v3581 = vunpack.c.l.b16 %v786
  %v3582 = vunpack.c.h.b16 %v786
  %v3583 = vunpack.c.l.b16 %v787
  %v3584 = vunpack.c.h.b16 %v787
  %v3585 = vunpack.c.l.b16 %v788
  %v3586 = vunpack.c.h.b16 %v788
  %v3587 = vunpack.c.l.b16 %v789
  %v3588 = vunpack.c.h.b16 %v789
  %v3589 = vunpack.c.l.b16 %v790
  %v3590 = vunpack.c.h.b16 %v790
  %v3591 = vunpack.c.l.b16 %v791
  %v3592 = vunpack.c.h.b16 %v791
  %v3593 = vunpack.c.l.b16 %v792
  %v3594 = vunpack.c.h.b16 %v792
  %v3595 = vunpack.c.l.b16 %v793
  %v3596 = vunpack.c.h.b16 %v793
  %v3597 = vunpack.c.l.b16 %v794
  %v3598 = vunpack.c.h.b16 %v794
  %v3599 = vunpack.c.l.b16 %v795
  %v3600 = vunpack.c.h.b16 %v795
  %v3601 = vunpack.c.l.b16 %v796
  %v3602 = vunpack.c.h.b16 %v796
  %v3603 = vunpack.c.l.b16 %v797
  %v3604 = vunpack.c.h.b16 %v797
  %v3605 = vunpack.c.l.b16 %v798
  %v3606 = vunpack.c.h.b16 %v798
  %v3607 = vunpack.c.l.b16 %v799
  %v3608 = vunpack.c.h.b16 %v799
  %v3609 = vunpack.c.l.b16 %v800
  %v3610 = vunpack.c.h.b16 %v800
  %v3611 = vunpack.c.l.b16 %v801
  %v3612 = vunpack.c.h.b16 %v801
  %v3613 = vunpack.c.l.b16 %v802
  %v3614 = vunpack.c.h.b16 %v802
  %v3615 = vunpack.c.l.b16 %v803
  %v3616 = vunpack.c.h.b16 %v803
  %v3617 = vunpack.c.l.b16 %v804
  %v3618 = vunpack.c.h.b16 %v804
  %v3619 = vunpack.c.l.b16 %v805
  %v3620 = vunpack.c.h.b16 %v805
  %v3621 = vunpack.c.l.b16 %v806
  %v3622 = vunpack.c.h.b16 %v806
  %v3623 = vunpack.c.l.b16 %v807
  %v3624 = vunpack.c.h.b16 %v807
  %v3625 = vunpack.c.l.b16 %v808
  %v3626 = vunpack.c.h.b16 %v808
  %v3627 = vunpack.c.l.b16 %v809
  %v3628 = vunpack.c.h.b16 %v809
  %v3629 = vunpack.c.l.b16 %v810
  %v3630 = vunpack.c.h.b16 %v810
  %v3631 = vunpack.c.l.b16 %v811
  %v3632 = vunpack.c.h.b16 %v811
  %v3633 = vunpack.c.l.b16 %v812
  %v3634 = vunpack.c.h.b16 %v812
  %v3635 = vunpack.c.l.b16 %v813
  %v3636 = vunpack.c.h.b16 %v813
  %v3637 = vunpack.c.l.b16 %v814
  %v3638 = vunpack.c.h.b16 %v814
  %v3639 = vunpack.c.l.b16 %v815
  %v3640 = vunpack.c.h.b16 %v815
  %v3641 = vunpack.c.l.b16 %v816
  %v3642 = vunpack.c.h.b16 %v816
  %v3643 = vunpack.c.l.b16 %v817
  %v3644 = vunpack.c.h.b16 %v817
  %v3645 = vunpack.c.l.b16 %v818
  %v3646 = vunpack.c.h.b16 %v818
  %v3647 = vunpack.c.l.b16 %v819
  %v3648 = vunpack.c.h.b16 %v819
  %v3649 = vunpack.c.l.b16 %v820
  %v3650 = vunpack.c.h.b16 %v820
  %v3651 = vunpack.c.l.b16 %v821
  %v3652 = vunpack.c.h.b16 %v821
  %v3653 = vunpack.c.l.b16 %v822
  %v3654 = vunpack.c.h.b16 %v822
  %v3655 = vunpack.c.l.b16 %v823
  %v3656 = vunpack.c.h.b16 %v823
  %v3657 = vunpack.c.l.b16 %v824
  %v3658 = vunpack.c.h.b16 %v824
  %v3659 = vunpack.c.l.b16 %v825
  %v3660 = vunpack.c.h.b16 %v825
  %v3661 = vunpack.c.l.b16 %v826
  %v3662 = vunpack.c.h.b16 %v826
  %v3663 = vunpack.c.l.b16 %v827
  %v3664 = vunpack.c.h.b16 %v827
  %v3665 = vunpack.c.l.b16 %v828
  %v3666 = vunpack.c.h.b16 %v828
  %v3667 = vunpack.c.l.b16 %v829
  %v3668 = vunpack.c.h.b16 %v829
  %v3669 = vunpack.c.l.b16 %v830
  %v3670 = vunpack.c.h.b16 %v830
  %v3671 = vunpack.c.l.b16 %v831
  %v3672 = vunpack.c.h.b16 %v831
  %v3673 = vunpack.c.l.b16 %v832
  %v3674 = vunpack.c.h.b16 %v832
  %v3675 = vunpack.c.l.b16 %v833
  %v3676 = vunpack.c.h.b16 %v833
  %v3677 = vunpack.c.l.b16 %v834
  %v3678 = vunpack.c.h.b16 %v834
  %v3679 = vunpack.c.l.b16 %v835
  %v3680 = vunpack.c.h.b16 %v835
  %v3681 = vunpack.c.l.b16 %v836
  %v3682 = vunpack.c.h.b16 %v836
  %v3683 = vunpack.c.l.b16 %v837
  %v3684 = vunpack.c.h.b16 %v837
  %v3685 = vunpack.c.l.b16 %v838
  %v3686 = vunpack.c.h.b16 %v838
  %v3687 = vunpack.c.l.b16 %v839
  %v3688 = vunpack.c.h.b16 %v839
  %v3689 = vunpack.c.l.b16 %v840
  %v3690 = vunpack.c.h.b16 %v840
  %v3691 = vunpack.c.l.b16 %v841
  %v3692 = vunpack.c.h.b16 %v841
  %v3693 = vunpack.c.l.b16 %v842
  %v3694 = vunpack.c.h.b16 %v842
  %v3695 = vunpack.c.l.b16 %v843
  %v3696 = vunpack.c.h.b16 %v843
  %v3697 = vunpack.c.l.b16 %v844
  %v3698 = vunpack.c.h.b16 %v844
  %v3699 = vunpack.c.l.b16 %v845
  %v3700 = vunpack.c.h.b16 %v845
  %v3701 = vunpack.c.l.b16 %v846
  %v3702 = vunpack.c.h.b16 %v846
  %v3703 = vunpack.c.l.b16 %v847
  %v3704 = vunpack.c.h.b16 %v847
  %v3705 = vunpack.c.l.b16 %v848
  %v3706 = vunpack.c.h.b16 %v848
  %v3707 = vunpack.c.l.b16 %v849
  %v3708 = vunpack.c.h.b16 %v849
  %v3709 = vunpack.c.l.b16 %v850
  %v3710 = vunpack.c.h.b16 %v850
  %v3711 = vunpack.c.l.b16 %v851
  %v3712 = vunpack.c.h.b16 %v851
  %v3713 = vunpack.c.l.b16 %v852
  %v3714 = vunpack.c.h.b16 %v852
  %v3715 = vunpack.c.l.b16 %v853
  %v3716 = vunpack.c.h.b16 %v853
  %v3717 = vunpack.c.l.b16 %v854
  %v3718 = vunpack.c.h.b16 %v854
  %v3719 = vunpack.c.l.b16 %v855
  %v3720 = vunpack.c.h.b16 %v855
  %v3721 = vunpack.c.l.b16 %v856
  %v3722 = vunpack.c.h.b16 %v856
  %v3723 = vunpack.c.l.b16 %v857
  %v3724 = vunpack.c.h.b16 %v857
  %v3725 = vunpack.c.l.b16 %v858
  %v3726 = vunpack.c.h.b16 %v858
  %v3727 = vunpack.c.l.b16 %v859
  %v3728 = vunpack.c.h.b16 %v859
  %v3729 = vunpack.c.l.b16 %v860
  %v3730 = vunpack.c.h.b16 %v860
  %v3731 = vunpack.c.l.b16 %v861
  %v3732 = vunpack.c.h.b16 %v861
  %v3733 = vunpack.c.l.b16 %v862
  %v3734 = vunpack.c.h.b16 %v862
  %v3735 = vunpack.c.l.b16 %v863
  %v3736 = vunpack.c.h.b16 %v863
  %v3737 = vunpack.c.l.b16 %v864
  %v3738 = vunpack.c.h.b16 %v864
  %v3739 = vunpack.c.l.b16 %v865
  %v3740 = vunpack.c.h.b16 %v865
  %v3741 = vunpack.c.l.b16 %v866
  %v3742 = vunpack.c.h.b16 %v866
  %v3743 = vunpack.c.l.b16 %v867
  %v3744 = vunpack.c.h.b16 %v867
  %v3745 = vunpack.c.l.b16 %v868
  %v3746 = vunpack.c.h.b16 %v868
  %v3747 = vunpack.c.l.b16 %v869
  %v3748 = vunpack.c.h.b16 %v869
  %v3749 = vunpack.c.l.b16 %v870
  %v3750 = vunpack.c.h.b16 %v870
  %v3751 = vunpack.c.l.b16 %v871
  %v3752 = vunpack.c.h.b16 %v871
  %v3753 = vunpack.c.l.b16 %v872
  %v3754 = vunpack.c.h.b16 %v872
  %v3755 = vunpack.c.l.b16 %v873
  %v3756 = vunpack.c.h.b16 %v873
  %v3757 = vunpack.c.l.b16 %v874
  %v3758 = vunpack.c.h.b16 %v874
  %v3759 = vunpack.c.l.b16 %v875
  %v3760 = vunpack.c.h.b16 %v875
  %v3761 = vunpack.c.l.b16 %v876
  %v3762 = vunpack.c.h.b16 %v876
  %v3763 = vunpack.c.l.b16 %v877
  %v3764 = vunpack.c.h.b16 %v877
  %v3765 = vunpack.c.l.b16 %v878
  %v3766 = vunpack.c.h.b16 %v878
  %v3767 = vunpack.c.l.b16 %v879
  %v3768 = vunpack.c.h.b16 %v879
  %v3769 = vunpack.c.l.b16 %v880
  %v3770 = vunpack.c.h.b16 %v880
  %v3771 = vunpack.c.l.b16 %v881
  %v3772 = vunpack.c.h.b16 %v881
  %v3773 = vunpack.c.l.b16 %v882
  %v3774 = vunpack.c.h.b16 %v882
  %v3775 = vunpack.c.l.b16 %v883
  %v3776 = vunpack.c.h.b16 %v883
  %v3777 = vunpack.c.l.b16 %v884
  %v3778 = vunpack.c.h.b16 %v884
  %v3779 = vunpack.c.l.b16 %v885
  %v3780 = vunpack.c.h.b16 %v885
  %v3781 = vunpack.c.l.b16 %v886
  %v3782 = vunpack.c.h.b16 %v886
  %v3783 = vunpack.c.l.b16 %v887
  %v3784 = vunpack.c.h.b16 %v887
  %v3785 = vunpack.c.l.b16 %v888
  %v3786 = vunpack.c.h.b16 %v888
  %v3787 = vunpack.c.l.b16 %v889
  %v3788 = vunpack.c.h.b16 %v889
  %v3789 = vunpack.c.l.b16 %v890
  %v3790 = vunpack.c.h.b16 %v890
  %v3791 = vunpack.c.l.b16 %v891
  %v3792 = vunpack.c.h.b16 %v891
  %v3793 = vpack.c.b16 %v2067, %v2065
  %v3794 = vpack.c.b16 %v2068, %v2066
  %v3795 = vpack.c.b16 %v2071, %v2069
  %v3796 = vpack.c.b16 %v2072, %v2070
  %v3797 = vpack.c.b16 %v2075, %v2073
  %v3798 = vpack.c.b16 %v2076, %v2074
  %v3799 = vpack.c.b16 %v2079, %v2077
  %v3800 = vpack.c.b16 %v2080, %v2078
  %v3801 = vpack.c.b16 %v2083, %v2081
  %v3802 = vpack.c.b16 %v2084, %v2082
  %v3803 = vpack.c.b16 %v2087, %v2085
  %v3804 = vpack.c.b16 %v2088, %v2086
  %v3805 = vpack.c.b16 %v2091, %v2089
  %v3806 = vpack.c.b16 %v2092, %v2090
  %v3807 = vpack.c.b16 %v2095, %v2093
  %v3808 = vpack.c.b16 %v2096, %v2094
  %v3809 = vpack.c.b16 %v2099, %v2097
  %v3810 = vpack.c.b16 %v2100, %v2098
  %v3811 = vpack.c.b16 %v2103, %v2101
  %v3812 = vpack.c.b16 %v2104, %v2102
  %v3813 = vpack.c.b16 %v2107, %v2105
  %v3814 = vpack.c.b16 %v2108, %v2106
  %v3815 = vpack.c.b16 %v2111, %v2109
  %v3816 = vpack.c.b16 %v2112, %v2110
  %v3817 = vpack.c.b16 %v2115, %v2113
  %v3818 = vpack.c.b16 %v2116, %v2114
  %v3819 = vpack.c.b16 %v2119, %v2117
  %v3820 = vpack.c.b16 %v2120, %v2118
  %v3821 = vpack.c.b16 %v2123, %v2121
  %v3822 = vpack.c.b16 %v2124, %v2122
  %v3823 = vpack.c.b16 %v2127, %v2125
  %v3824 = vpack.c.b16 %v2128, %v2126
  %v3825 = vpack.c.b16 %v2131, %v2129
  %v3826 = vpack.c.b16 %v2132, %v2130
  %v3827 = vpack.c.b16 %v2135, %v2133
  %v3828 = vpack.c.b16 %v2136, %v2134
  %v3829 = vpack.c.b16 %v2139, %v2137
  %v3830 = vpack.c.b16 %v2140, %v2138
  %v3831 = vpack.c.b16 %v2143, %v2141
  %v3832 = vpack.c.b16 %v2144, %v2142
  %v3833 = vpack.c.b16 %v2147, %v2145
  %v3834 = vpack.c.b16 %v2148, %v2146
  %v3835 = vpack.c.b16 %v2151, %v2149
  %v3836 = vpack.c.b16 %v2152, %v2150
  %v3837 = vpack.c.b16 %v2155, %v2153
  %v3838 = vpack.c.b16 %v2156, %v2154
  %v3839 = vpack.c.b16 %v2159, %v2157
  %v3840 = vpack.c.b16 %v2160, %v2158
  %v3841 = vpack.c.b16 %v2163, %v2161
  %v3842 = vpack.c.b16 %v2164, %v2162
  %v3843 = vpack.c.b16 %v2167, %v2165
  %v3844 = vpack.c.b16 %v2168, %v2166
  %v3845 = vpack.c.b16 %v2171, %v2169
  %v3846 = vpack.c.b16 %v2172, %v2170
  %v3847 = vpack.c.b16 %v2175, %v2173
  %v3848 = vpack.c.b16 %v2176, %v2174
  %v3849 = vpack.c.b16 %v2179, %v2177
  %v3850 = vpack.c.b16 %v2180, %v2178
  %v3851 = vpack.c.b16 %v2183, %v2181
  %v3852 = vpack.c.b16 %v2184, %v2182
  %v3853 = vpack.c.b16 %v2187, %v2185
  %v3854 = vpack.c.b16 %v2188, %v2186
  %v3855 = vpack.c.b16 %v2191, %v2189
  %v3856 = vpack.c.b16 %v2192, %v2190
  %v3857 = vpack.c.b16 %v2195, %v2193
  %v3858 = vpack.c.b16 %v2196, %v2194
  %v3859 = vpack.c.b16 %v2199, %v2197
  %v3860 = vpack.c.b16 %v2200, %v2198
  %v3861 = vpack.c.b16 %v2203, %v2201
  %v3862 = vpack.c.b16 %v2204, %v2202
  %v3863 = vpack.c.b16 %v2207, %v2205
  %v3864 = vpack.c.b16 %v2208, %v2206
  %v3865 = vpack.c.b16 %v2211, %v2209
  %v3866 = vpack.c.b16 %v2212, %v2210
  %v3867 = vpack.c.b16 %v2215, %v2213
  %v3868 = vpack.c.b16 %v2216, %v2214
  %v3869 = vpack.c.b16 %v2219, %v2217
  %v3870 = vpack.c.b16 %v2220, %v2218
  %v3871 = vpack.c.b16 %v2223, %v2221
  %v3872 = vpack.c.b16 %v2224, %v2222
  %v3873 = vpack.c.b16 %v2227, %v2225
  %v3874 = vpack.c.b16 %v2228, %v2226
  %v3875 = vpack.c.b16 %v2231, %v2229
  %v3876 = vpack.c.b16 %v2232, %v2230
  %v3877 = vpack.c.b16 %v2235, %v2233
  %v3878 = vpack.c.b16 %v2236, %v2234
  %v3879 = vpack.c.b16 %v2239, %v2237
  %v3880 = vpack.c.b16 %v2240, %v2238
  %v3881 = vpack.c.b16 %v2243, %v2241
  %v3882 = vpack.c.b16 %v2244, %v2242
  %v3883 = vpack.c.b16 %v2247, %v2245
  %v3884 = vpack.c.b16 %v2248, %v2246
  %v3885 = vpack.c.b16 %v2251, %v2249
  %v3886 = vpack.c.b16 %v2252, %v2250
  %v3887 = vpack.c.b16 %v2255, %v2253
  %v3888 = vpack.c.b16 %v2256, %v2254
  %v3889 = vpack.c.b16 %v2259, %v2257
  %v3890 = vpack.c.b16 %v2260, %v2258
  %v3891 = vpack.c.b16 %v2263, %v2261
  %v3892 = vpack.c.b16 %v2264, %v2262
  %v3893 = vpack.c.b16 %v2267, %v2265
  %v3894 = vpack.c.b16 %v2268, %v2266
  %v3895 = vpack.c.b16 %v2271, %v2269
  %v3896 = vpack.c.b16 %v2272, %v2270
  %v3897 = vpack.c.b16 %v2275, %v2273
  %v3898 = vpack.c.b16 %v2276, %v2274
  %v3899 = vpack.c.b16 %v2279, %v2277
  %v3900 = vpack.c.b16 %v2280, %v2278
  %v3901 = vpack.c.b16 %v2283, %v2281
  %v3902 = vpack.c.b16 %v2284, %v2282
  %v3903 = vpack.c.b16 %v2287, %v2285
  %v3904 = vpack.c.b16 %v2288, %v2286
  %v3905 = vpack.c.b16 %v2291, %v2289
  %v3906 = vpack.c.b16 %v2292, %v2290
  %v3907 = vpack.c.b16 %v2295, %v2293
  %v3908 = vpack.c.b16 %v2296, %v2294
  %v3909 = vpack.c.b16 %v2299, %v2297
  %v3910 = vpack.c.b16 %v2300, %v2298
  %v3911 = vpack.c.b16 %v2303, %v2301
  %v3912 = vpack.c.b16 %v2304, %v2302
  %v3913 = vpack.c.b16 %v2307, %v2305
  %v3914 = vpack.c.b16 %v2308, %v2306
  %v3915 = vpack.c.b16 %v2311, %v2309
  %v3916 = vpack.c.b16 %v2312, %v2310
  %v3917 = vpack.c.b16 %v2315, %v2313
  %v3918 = vpack.c.b16 %v2316, %v2314
  %v3919 = vpack.c.b16 %v2319, %v2317
  %v3920 = vpack.c.b16 %v2320, %v2318
  %v3921 = vpack.c.b16 %v2323, %v2321
  %v3922 = vpack.c.b16 %v2324, %v2322
  %v3923 = vpack.c.b16 %v2327, %v2325
  %v3924 = vpack.c.b16 %v2328, %v2326
  %v3925 = vpack.c.b16 %v2331, %v2329
  %v3926 = vpack.c.b16 %v2332, %v2330
  %v3927 = vpack.c.b16 %v2335, %v2333
  %v3928 = vpack.c.b16 %v2336, %v2334
  %v3929 = vpack.c.b16 %v2339, %v2337
  %v3930 = vpack.c.b16 %v2340, %v2338
  %v3931 = vpack.c.b16 %v2343, %v2341
  %v3932 = vpack.c.b16 %v2344, %v2342
  %v3933 = vpack.c.b16 %v2347, %v2345
  %v3934 = vpack.c.b16 %v2348, %v2346
  %v3935 = vpack.c.b16 %v2351, %v2349
  %v3936 = vpack.c.b16 %v2352, %v2350
  %v3937 = vpack.c.b16 %v2355, %v2353
  %v3938 = vpack.c.b16 %v2356, %v2354
  %v3939 = vpack.c.b16 %v2359, %v2357
  %v3940 = vpack.c.b16 %v2360, %v2358
  %v3941 = vpack.c.b16 %v2363, %v2361
  %v3942 = vpack.c.b16 %v2364, %v2362
  %v3943 = vpack.c.b16 %v2367, %v2365
  %v3944 = vpack.c.b16 %v2368, %v2366
  %v3945 = vpack.c.b16 %v2371, %v2369
  %v3946 = vpack.c.b16 %v2372, %v2370
  %v3947 = vpack.c.b16 %v2375, %v2373
  %v3948 = vpack.c.b16 %v2376, %v2374
  %v3949 = vpack.c.b16 %v2379, %v2377
  %v3950 = vpack.c.b16 %v2380, %v2378
  %v3951 = vpack.c.b16 %v2383, %v2381
  %v3952 = vpack.c.b16 %v2384, %v2382
  %v3953 = vpack.c.b16 %v2387, %v2385
  %v3954 = vpack.c.b16 %v2388, %v2386
  %v3955 = vpack.c.b16 %v2391, %v2389
  %v3956 = vpack.c.b16 %v2392, %v2390
  %v3957 = vpack.c.b16 %v2395, %v2393
  %v3958 = vpack.c.b16 %v2396, %v2394
  %v3959 = vpack.c.b16 %v2399, %v2397
  %v3960 = vpack.c.b16 %v2400, %v2398
  %v3961 = vpack.c.b16 %v2403, %v2401
  %v3962 = vpack.c.b16 %v2404, %v2402
  %v3963 = vpack.c.b16 %v2407, %v2405
  %v3964 = vpack.c.b16 %v2408, %v2406
  %v3965 = vpack.c.b16 %v2411, %v2409
  %v3966 = vpack.c.b16 %v2412, %v2410
  %v3967 = vpack.c.b16 %v2415, %v2413
  %v3968 = vpack.c.b16 %v2416, %v2414
  %v3969 = vpack.c.b16 %v2419, %v2417
  %v3970 = vpack.c.b16 %v2420, %v2418
  %v3971 = vpack.c.b16 %v2423, %v2421
  %v3972 = vpack.c.b16 %v2424, %v2422
  %v3973 = vpack.c.b16 %v2427, %v2425
  %v3974 = vpack.c.b16 %v2428, %v2426
  %v3975 = vpack.c.b16 %v2431, %v2429
  %v3976 = vpack.c.b16 %v2432, %v2430
  %v3977 = vpack.c.b16 %v2435, %v2433
  %v3978 = vpack.c.b16 %v2436, %v2434
  %v3979 = vpack.c.b16 %v2439, %v2437
  %v3980 = vpack.c.b16 %v2440, %v2438
  %v3981 = vpack.c.b16 %v2443, %v2441
  %v3982 = vpack.c.b16 %v2444, %v2442
  %v3983 = vpack.c.b16 %v2447, %v2445
  %v3984 = vpack.c.b16 %v2448, %v2446
  %v3985 = vpack.c.b16 %v2451, %v2449
  %v3986 = vpack.c.b16 %v2452, %v2450
  %v3987 = vpack.c.b16 %v2455, %v2453
  %v3988 = vpack.c.b16 %v2456, %v2454
  %v3989 = vpack.c.b16 %v2459, %v2457
  %v3990 = vpack.c.b16 %v2460, %v2458
  %v3991 = vpack.c.b16 %v2463, %v2461
  %v3992 = vpack.c.b16 %v2464, %v2462
  %v3993 = vpack.c.b16 %v2467, %v2465
  %v3994 = vpack.c.b16 %v2468, %v2466
  %v3995 = vpack.c.b16 %v2471, %v2469
  %v3996 = vpack.c.b16 %v2472, %v2470
  %v3997 = vpack.c.b16 %v2475, %v2473
  %v3998 = vpack.c.b16 %v2476, %v2474
  %v3999 = vpack.c.b16 %v2479, %v2477
  %v4000 = vpack.c.b16 %v2480, %v2478
  %v4001 = vpack.c.b16 %v2483, %v2481
  %v4002 = vpack.c.b16 %v2484, %v2482
  %v4003 = vpack.c.b16 %v2487, %v2485
  %v4004 = vpack.c.b16 %v2488, %v2486
  %v4005 = vpack.c.b16 %v2491, %v2489
  %v4006 = vpack.c.b16 %v2492, %v2490
  %v4007 = vpack.c.b16 %v2495, %v2493
  %v4008 = vpack.c.b16 %v2496, %v2494
  %v4009 = vpack.c.b16 %v2499, %v2497
  %v4010 = vpack.c.b16 %v2500, %v2498
  %v4011 = vpack.c.b16 %v2503, %v2501
  %v4012 = vpack.c.b16 %v2504, %v2502
  %v4013 = vpack.c.b16 %v2507, %v2505
  %v4014 = vpack.c.b16 %v2508, %v2506
  %v4015 = vpack.c.b16 %v2511, %v2509
  %v4016 = vpack.c.b16 %v2512, %v2510
  %v4017 = vpack.c.b16 %v2515, %v2513
  %v4018 = vpack.c.b16 %v2516, %v2514
  %v4019 = vpack.c.b16 %v2519, %v2517
  %v4020 = vpack.c.b16 %v2520, %v2518
  %v4021 = vpack.c.b16 %v2523, %v2521
  %v4022 = vpack.c.b16 %v2524, %v2522
  %v4023 = vpack.c.b16 %v2527, %v2525
  %v4024 = vpack.c.b16 %v2528, %v2526
  %v4025 = vpack.c.b16 %v2531, %v2529
  %v4026 = vpack.c.b16 %v2532, %v2530
  %v4027 = vpack.c.b16 %v2535, %v2533
  %v4028 = vpack.c.b16 %v2536, %v2534
  %v4029 = vpack.c.b16 %v2539, %v2537
  %v4030 = vpack.c.b16 %v2540, %v2538
  %v4031 = vpack.c.b16 %v2543, %v2541
  %v4032 = vpack.c.b16 %v2544, %v2542
  %v4033 = vpack.c.b16 %v2547, %v2545
  %v4034 = vpack.c.b16 %v2548, %v2546
  %v4035 = vpack.c.b16 %v2551, %v2549
  %v4036 = vpack.c.b16 %v2552, %v2550
  %v4037 = vpack.c.b16 %v2555, %v2553
  %v4038 = vpack.c.b16 %v2556, %v2554
  %v4039 = vpack.c.b16 %v2559, %v2557
  %v4040 = vpack.c.b16 %v2560, %v2558
  %v4041 = vpack.c.b16 %v2563, %v2561
  %v4042 = vpack.c.b16 %v2564, %v2562
  %v4043 = vpack.c.b16 %v2567, %v2565
  %v4044 = vpack.c.b16 %v2568, %v2566
  %v4045 = vpack.c.b16 %v2571, %v2569
  %v4046 = vpack.c.b16 %v2572, %v2570
  %v4047 = vpack.c.b16 %v2575, %v2573
  %v4048 = vpack.c.b16 %v2576, %v2574
  %v4049 = vpack.c.b16 %v2579, %v2577
  %v4050 = vpack.c.b16 %v2580, %v2578
  %v4051 = vpack.c.b16 %v2583, %v2581
  %v4052 = vpack.c.b16 %v2584, %v2582
  %v4053 = vpack.c.b16 %v2587, %v2585
  %v4054 = vpack.c.b16 %v2588, %v2586
  %v4055 = vpack.c.b16 %v2591, %v2589
  %v4056 = vpack.c.b16 %v2592, %v2590
  %v4057 = vpack.c.b16 %v2595, %v2593
  %v4058 = vpack.c.b16 %v2596, %v2594
  %v4059 = vpack.c.b16 %v2599, %v2597
  %v4060 = vpack.c.b16 %v2600, %v2598
  %v4061 = vpack.c.b16 %v2603, %v2601
  %v4062 = vpack.c.b16 %v2604, %v2602
  %v4063 = vpack.c.b16 %v2607, %v2605
  %v4064 = vpack.c.b16 %v2608, %v2606
  %v4065 = vpack.c.b16 %v2611, %v2609
  %v4066 = vpack.c.b16 %v2612, %v2610
  %v4067 = vpack.c.b16 %v2615, %v2613
  %v4068 = vpack.c.b16 %v2616, %v2614
  %v4069 = vpack.c.b16 %v2619, %v2617
  %v4070 = vpack.c.b16 %v2620, %v2618
  %v4071 = vpack.c.b16 %v2623, %v2621
  %v4072 = vpack.c.b16 %v2624, %v2622
  %v4073 = vpack.c.b16 %v2627, %v2625
  %v4074 = vpack.c.b16 %v2628, %v2626
  %v4075 = vpack.c.b16 %v2631, %v2629
  %v4076 = vpack.c.b16 %v2632, %v2630
  %v4077 = vpack.c.b16 %v2635, %v2633
  %v4078 = vpack.c.b16 %v2636, %v2634
  %v4079 = vpack.c.b16 %v2639, %v2637
  %v4080 = vpack.c.b16 %v2640, %v2638
  %v4081 = vpack.c.b16 %v2643, %v2641
  %v4082 = vpack.c.b16 %v2644, %v2642
  %v4083 = vpack.c.b16 %v2647, %v2645
  %v4084 = vpack.c.b16 %v2648, %v2646
  %v4085 = vpack.c.b16 %v2651, %v2649
  %v4086 = vpack.c.b16 %v2652, %v2650
  %v4087 = vpack.c.b16 %v2655, %v2653
  %v4088 = vpack.c.b16 %v2656, %v2654
  %v4089 = vpack.c.b16 %v2659, %v2657
  %v4090 = vpack.c.b16 %v2660, %v2658
  %v4091 = vpack.c.b16 %v2663, %v2661
  %v4092 = vpack.c.b16 %v2664, %v2662
  %v4093 = vpack.c.b16 %v2667, %v2665
  %v4094 = vpack.c.b16 %v2668, %v2666
  %v4095 = vpack.c.b16 %v2671, %v2669
  %v4096 = vpack.c.b16 %v2672, %v2670
  %v4097 = vpack.c.b16 %v2675, %v2673
  %v4098 = vpack.c.b16 %v2676, %v2674
  %v4099 = vpack.c.b16 %v2679, %v2677
  %v4100 = vpack.c.b16 %v2680, %v2678
  %v4101 = vpack.c.b16 %v2683, %v2681
  %v4102 = vpack.c.b16 %v2684, %v2682
  %v4103 = vpack.c.b16 %v2687, %v2685
  %v4104 = vpack.c.b16 %v2688, %v2686
  %v4105 = vpack.c.b16 %v2691, %v2689
  %v4106 = vpack.c.b16 %v2692, %v2690
  %v4107 = vpack.c.b16 %v2695, %v2693
  %v4108 = vpack.c.b16 %v2696, %v2694
  %v4109 = vpack.c.b16 %v2699, %v2697
  %v4110 = vpack.c.b16 %v2700, %v2698
  %v4111 = vpack.c.b16 %v2703, %v2701
  %v4112 = vpack.c.b16 %v2704, %v2702
  %v4113 = vpack.c.b16 %v2707, %v2705
  %v4114 = vpack.c.b16 %v2708, %v2706
  %v4115 = vpack.c.b16 %v2711, %v2709
  %v4116 = vpack.c.b16 %v2712, %v2710
  %v4117 = vpack.c.b16 %v2715, %v2713
  %v4118 = vpack.c.b16 %v2716, %v2714
  %v4119 = vpack.c.b16 %v2719, %v2717
  %v4120 = vpack.c.b16 %v2720, %v2718
  %v4121 = vpack.c.b16 %v2723, %v2721
  %v4122 = vpack.c.b16 %v2724, %v2722
  %v4123 = vpack.c.b16 %v2727, %v2725
  %v4124 = vpack.c.b16 %v2728, %v2726
  %v4125 = vpack.c.b16 %v2731, %v2729
  %v4126 = vpack.c.b16 %v2732, %v2730
  %v4127 = vpack.c.b16 %v2735, %v2733
  %v4128 = vpack.c.b16 %v2736, %v2734
  %v4129 = vpack.c.b16 %v2739, %v2737
  %v4130 = vpack.c.b16 %v2740, %v2738
  %v4131 = vpack.c.b16 %v2743, %v2741
  %v4132 = vpack.c.b16 %v2744, %v2742
  %v4133 = vpack.c.b16 %v2747, %v2745
  %v4134 = vpack.c.b16 %v2748, %v2746
  %v4135 = vpack.c.b16 %v2751, %v2749
  %v4136 = vpack.c.b16 %v2752, %v2750
  %v4137 = vpack.c.b16 %v2755, %v2753
  %v4138 = vpack.c.b16 %v2756, %v2754
  %v4139 = vpack.c.b16 %v2759, %v2757
  %v4140 = vpack.c.b16 %v2760, %v2758
  %v4141 = vpack.c.b16 %v2763, %v2761
  %v4142 = vpack.c.b16 %v2764, %v2762
  %v4143 = vpack.c.b16 %v2767, %v2765
  %v4144 = vpack.c.b16 %v2768, %v2766
  %v4145 = vpack.c.b16 %v2771, %v2769
  %v4146 = vpack.c.b16 %v2772, %v2770
  %v4147 = vpack.c.b16 %v2775, %v2773
  %v4148 = vpack.c.b16 %v2776, %v2774
  %v4149 = vpack.c.b16 %v2779, %v2777
  %v4150 = vpack.c.b16 %v2780, %v2778
  %v4151 = vpack.c.b16 %v2783, %v2781
  %v4152 = vpack.c.b16 %v2784, %v2782
  %v4153 = vpack.c.b16 %v2787, %v2785
  %v4154 = vpack.c.b16 %v2788, %v2786
  %v4155 = vpack.c.b16 %v2791, %v2789
  %v4156 = vpack.c.b16 %v2792, %v2790
  %v4157 = vpack.c.b16 %v2795, %v2793
  %v4158 = vpack.c.b16 %v2796, %v2794
  %v4159 = vpack.c.b16 %v2799, %v2797
  %v4160 = vpack.c.b16 %v2800, %v2798
  %v4161 = vpack.c.b16 %v2803, %v2801
  %v4162 = vpack.c.b16 %v2804, %v2802
  %v4163 = vpack.c.b16 %v2807, %v2805
  %v4164 = vpack.c.b16 %v2808, %v2806
  %v4165 = vpack.c.b16 %v2811, %v2809
  %v4166 = vpack.c.b16 %v2812, %v2810
  %v4167 = vpack.c.b16 %v2815, %v2813
  %v4168 = vpack.c.b16 %v2816, %v2814
  %v4169 = vpack.c.b16 %v2819, %v2817
  %v4170 = vpack.c.b16 %v2820, %v2818
  %v4171 = vpack.c.b16 %v2823, %v2821
  %v4172 = vpack.c.b16 %v2824, %v2822
  %v4173 = vpack.c.b16 %v2827, %v2825
  %v4174 = vpack.c.b16 %v2828, %v2826
  %v4175 = vpack.c.b16 %v2831, %v2829
  %v4176 = vpack.c.b16 %v2832, %v2830
  %v4177 = vpack.c.b16 %v2835, %v2833
  %v4178 = vpack.c.b16 %v2836, %v2834
  %v4179 = vpack.c.b16 %v2839, %v2837
  %v4180 = vpack.c.b16 %v2840, %v2838
  %v4181 = vpack.c.b16 %v2843, %v2841
  %v4182 = vpack.c.b16 %v2844, %v2842
  %v4183 = vpack.c.b16 %v2847, %v2845
  %v4184 = vpack.c.b16 %v2848, %v2846
  %v4185 = vpack.c.b16 %v2851, %v2849
  %v4186 = vpack.c.b16 %v2852, %v2850
  %v4187 = vpack.c.b16 %v2855, %v2853
  %v4188 = vpack.c.b16 %v2856, %v2854
  %v4189 = vpack.c.b16 %v2859, %v2857
  %v4190 = vpack.c.b16 %v2860, %v2858
  %v4191 = vpack.c.b16 %v2863, %v2861
  %v4192 = vpack.c.b16 %v2864, %v2862
  %v4193 = vpack.c.b16 %v2867, %v2865
  %v4194 = vpack.c.b16 %v2868, %v2866
  %v4195 = vpack.c.b16 %v2871, %v2869
  %v4196 = vpack.c.b16 %v2872, %v2870
  %v4197 = vpack.c.b16 %v2875, %v2873
  %v4198 = vpack.c.b16 %v2876, %v2874
  %v4199 = vpack.c.b16 %v2879, %v2877
  %v4200 = vpack.c.b16 %v2880, %v2878
  %v4201 = vpack.c.b16 %v2883, %v2881
  %v4202 = vpack.c.b16 %v2884, %v2882
  %v4203 = vpack.c.b16 %v2887, %v2885
  %v4204 = vpack.c.b16 %v2888, %v2886
  %v4205 = vpack.c.b16 %v2891, %v2889
  %v4206 = vpack.c.b16 %v2892, %v2890
  %v4207 = vpack.c.b16 %v2895, %v2893
  %v4208 = vpack.c.b16 %v2896, %v2894
  %v4209 = vpack.c.b16 %v2899, %v2897
  %v4210 = vpack.c.b16 %v2900, %v2898
  %v4211 = vpack.c.b16 %v2903, %v2901
  %v4212 = vpack.c.b16 %v2904, %v2902
  %v4213 = vpack.c.b16 %v2907, %v2905
  %v4214 = vpack.c.b16 %v2908, %v2906
  %v4215 = vpack.c.b16 %v2911, %v2909
  %v4216 = vpack.c.b16 %v2912, %v2910
  %v4217 = vpack.c.b16 %v2915, %v2913
  %v4218 = vpack.c.b16 %v2916, %v2914
  %v4219 = vpack.c.b16 %v2919, %v2917
  %v4220 = vpack.c.b16 %v2920, %v2918
  %v4221 = vpack.c.b16 %v2923, %v2921
  %v4222 = vpack.c.b16 %v2924, %v2922
  %v4223 = vpack.c.b16 %v2927, %v2925
  %v4224 = vpack.c.b16 %v2928, %v2926
  %v4225 = vpack.c.b16 %v2931, %v2929
  %v4226 = vpack.c.b16 %v2932, %v2930
  %v4227 = vpack.c.b16 %v2935, %v2933
  %v4228 = vpack.c.b16 %v2936, %v2934
  %v4229 = vpack.c.b16 %v2939, %v2937
  %v4230 = vpack.c.b16 %v2940, %v2938
  %v4231 = vpack.c.b16 %v2943, %v2941
  %v4232 = vpack.c.b16 %v2944, %v2942
  %v4233 = vpack.c.b16 %v2947, %v2945
  %v4234 = vpack.c.b16 %v2948, %v2946
  %v4235 = vpack.c.b16 %v2951, %v2949
  %v4236 = vpack.c.b16 %v2952, %v2950
  %v4237 = vpack.c.b16 %v2955, %v2953
  %v4238 = vpack.c.b16 %v2956, %v2954
  %v4239 = vpack.c.b16 %v2959, %v2957
  %v4240 = vpack.c.b16 %v2960, %v2958
  %v4241 = vpack.c.b16 %v2963, %v2961
  %v4242 = vpack.c.b16 %v2964, %v2962
  %v4243 = vpack.c.b16 %v2967, %v2965
  %v4244 = vpack.c.b16 %v2968, %v2966
  %v4245 = vpack.c.b16 %v2971, %v2969
  %v4246 = vpack.c.b16 %v2972, %v2970
  %v4247 = vpack.c.b16 %v2975, %v2973
  %v4248 = vpack.c.b16 %v2976, %v2974
  %v4249 = vpack.c.b16 %v2979, %v2977
  %v4250 = vpack.c.b16 %v2980, %v2978
  %v4251 = vpack.c.b16 %v2983, %v2981
  %v4252 = vpack.c.b16 %v2984, %v2982
  %v4253 = vpack.c.b16 %v2987, %v2985
  %v4254 = vpack.c.b16 %v2988, %v2986
  %v4255 = vpack.c.b16 %v2991, %v2989
  %v4256 = vpack.c.b16 %v2992, %v2990
  %v4257 = vpack.c.b16 %v2995, %v2993
  %v4258 = vpack.c.b16 %v2996, %v2994
  %v4259 = vpack.c.b16 %v2999, %v2997
  %v4260 = vpack.c.b16 %v3000, %v2998
  %v4261 = vpack.c.b16 %v3003, %v3001
  %v4262 = vpack.c.b16 %v3004, %v3002
  %v4263 = vpack.c.b16 %v3007, %v3005
  %v4264 = vpack.c.b16 %v3008, %v3006
  %v4265 = vpack.c.b16 %v3011, %v3009
  %v4266 = vpack.c.b16 %v3012, %v3010
  %v4267 = vpack.c.b16 %v3015, %v3013
  %v4268 = vpack.c.b16 %v3016, %v3014
  %v4269 = vpack.c.b16 %v3019, %v3017
  %v4270 = vpack.c.b16 %v3020, %v3018
  %v4271 = vpack.c.b16 %v3023, %v3021
  %v4272 = vpack.c.b16 %v3024, %v3022
  %v4273 = vpack.c.b16 %v3027, %v3025
  %v4274 = vpack.c.b16 %v3028, %v3026
  %v4275 = vpack.c.b16 %v3031, %v3029
  %v4276 = vpack.c.b16 %v3032, %v3030
  %v4277 = vpack.c.b16 %v3035, %v3033
  %v4278 = vpack.c.b16 %v3036, %v3034
  %v4279 = vpack.c.b16 %v3039, %v3037
  %v4280 = vpack.c.b16 %v3040, %v3038
  %v4281 = vpack.c.b16 %v3043, %v3041
  %v4282 = vpack.c.b16 %v3044, %v3042
  %v4283 = vpack.c.b16 %v3047, %v3045
  %v4284 = vpack.c.b16 %v3048, %v3046
  %v4285 = vpack.c.b16 %v3051, %v3049
  %v4286 = vpack.c.b16 %v3052, %v3050
  %v4287 = vpack.c.b16 %v3055, %v3053
  %v4288 = vpack.c.b16 %v3056, %v3054
  %v4289 = vpack.c.b16 %v3059, %v3057
  %v4290 = vpack.c.b16 %v3060, %v3058
  %v4291 = vpack.c.b16 %v3063, %v3061
  %v4292 = vpack.c.b16 %v3064, %v3062
  %v4293 = vpack.c.b16 %v3067, %v3065
  %v4294 = vpack.c.b16 %v3068, %v3066
  %v4295 = vpack.c.b16 %v3071, %v3069
  %v4296 = vpack.c.b16 %v3072, %v3070
  %v4297 = vpack.c.b16 %v3075, %v3073
  %v4298 = vpack.c.b16 %v3076, %v3074
  %v4299 = vpack.c.b16 %v3079, %v3077
  %v4300 = vpack.c.b16 %v3080, %v3078
  %v4301 = vpack.c.b16 %v3083, %v3081
  %v4302 = vpack.c.b16 %v3084, %v3082
  %v4303 = vpack.c.b16 %v3087, %v3085
  %v4304 = vpack.c.b16 %v3088, %v3086
  %v4305 = vpack.c.b16 %v3091, %v3089
  %v4306 = vpack.c.b16 %v3092, %v3090
  %v4307 = vpack.c.b16 %v3095, %v3093
  %v4308 = vpack.c.b16 %v3096, %v3094
  %v4309 = vpack.c.b16 %v3099, %v3097
  %v4310 = vpack.c.b16 %v3100, %v3098
  %v4311 = vpack.c.b16 %v3103, %v3101
  %v4312 = vpack.c.b16 %v3104, %v3102
  %v4313 = vpack.c.b16 %v3107, %v3105
  %v4314 = vpack.c.b16 %v3108, %v3106
  %v4315 = vpack.c.b16 %v3111, %v3109
  %v4316 = vpack.c.b16 %v3112, %v3110
  %v4317 = vpack.c.b16 %v3115, %v3113
  %v4318 = vpack.c.b16 %v3116, %v3114
  %v4319 = vpack.c.b16 %v3119, %v3117
  %v4320 = vpack.c.b16 %v3120, %v3118
  %v4321 = vpack.c.b16 %v3123, %v3121
  %v4322 = vpack.c.b16 %v3124, %v3122
  %v4323 = vpack.c.b16 %v3127, %v3125
  %v4324 = vpack.c.b16 %v3128, %v3126
  %v4325 = vpack.c.b16 %v3131, %v3129
  %v4326 = vpack.c.b16 %v3132, %v3130
  %v4327 = vpack.c.b16 %v3135, %v3133
  %v4328 = vpack.c.b16 %v3136, %v3134
  %v4329 = vpack.c.b16 %v3139, %v3137
  %v4330 = vpack.c.b16 %v3140, %v3138
  %v4331 = vpack.c.b16 %v3143, %v3141
  %v4332 = vpack.c.b16 %v3144, %v3142
  %v4333 = vpack.c.b16 %v3147, %v3145
  %v4334 = vpack.c.b16 %v3148, %v3146
  %v4335 = vpack.c.b16 %v3151, %v3149
  %v4336 = vpack.c.b16 %v3152, %v3150
  %v4337 = vpack.c.b16 %v3155, %v3153
  %v4338 = vpack.c.b16 %v3156, %v3154
  %v4339 = vpack.c.b16 %v3159, %v3157
  %v4340 = vpack.c.b16 %v3160, %v3158
  %v4341 = vpack.c.b16 %v3163, %v3161
  %v4342 = vpack.c.b16 %v3164, %v3162
  %v4343 = vpack.c.b16 %v3167, %v3165
  %v4344 = vpack.c.b16 %v3168, %v3166
  %v4345 = vpack.c.b16 %v3171, %v3169
  %v4346 = vpack.c.b16 %v3172, %v3170
  %v4347 = vpack.c.b16 %v3175, %v3173
  %v4348 = vpack.c.b16 %v3176, %v3174
  %v4349 = vpack.c.b16 %v3179, %v3177
  %v4350 = vpack.c.b16 %v3180, %v3178
  %v4351 = vpack.c.b16 %v3183, %v3181
  %v4352 = vpack.c.b16 %v3184, %v3182
  %v4353 = vpack.c.b16 %v3187, %v3185
  %v4354 = vpack.c.b16 %v3188, %v3186
  %v4355 = vpack.c.b16 %v3191, %v3189
  %v4356 = vpack.c.b16 %v3192, %v3190
  %v4357 = vpack.c.b16 %v3195, %v3193
  %v4358 = vpack.c.b16 %v3196, %v3194
  %v4359 = vpack.c.b16 %v3199, %v3197
  %v4360 = vpack.c.b16 %v3200, %v3198
  %v4361 = vpack.c.b16 %v3203, %v3201
  %v4362 = vpack.c.b16 %v3204, %v3202
  %v4363 = vpack.c.b16 %v3207, %v3205
  %v4364 = vpack.c.b16 %v3208, %v3206
  %v4365 = vpack.c.b16 %v3211, %v3209
  %v4366 = vpack.c.b16 %v3212, %v3210
  %v4367 = vpack.c.b16 %v3215, %v3213
  %v4368 = vpack.c.b16 %v3216, %v3214
  %v4369 = vpack.c.b16 %v3219, %v3217
  %v4370 = vpack.c.b16 %v3220, %v3218
  %v4371 = vpack.c.b16 %v3223, %v3221
  %v4372 = vpack.c.b16 %v3224, %v3222
  %v4373 = vpack.c.b16 %v3227, %v3225
  %v4374 = vpack.c.b16 %v3228, %v3226
  %v4375 = vpack.c.b16 %v3231, %v3229
  %v4376 = vpack.c.b16 %v3232, %v3230
  %v4377 = vpack.c.b16 %v3235, %v3233
  %v4378 = vpack.c.b16 %v3236, %v3234
  %v4379 = vpack.c.b16 %v3239, %v3237
  %v4380 = vpack.c.b16 %v3240, %v3238
  %v4381 = vpack.c.b16 %v3243, %v3241
  %v4382 = vpack.c.b16 %v3244, %v3242
  %v4383 = vpack.c.b16 %v3247, %v3245
  %v4384 = vpack.c.b16 %v3248, %v3246
  %v4385 = vpack.c.b16 %v3251, %v3249
  %v4386 = vpack.c.b16 %v3252, %v3250
  %v4387 = vpack.c.b16 %v3255, %v3253
  %v4388 = vpack.c.b16 %v3256, %v3254
  %v4389 = vpack.c.b16 %v3259, %v3257
  %v4390 = vpack.c.b16 %v3260, %v3258
  %v4391 = vpack.c.b16 %v3263, %v3261
  %v4392 = vpack.c.b16 %v3264, %v3262
  %v4393 = vpack.c.b16 %v3267, %v3265
  %v4394 = vpack.c.b16 %v3268, %v3266
  %v4395 = vpack.c.b16 %v3271, %v3269
  %v4396 = vpack.c.b16 %v3272, %v3270
  %v4397 = vpack.c.b16 %v3275, %v3273
  %v4398 = vpack.c.b16 %v3276, %v3274
  %v4399 = vpack.c.b16 %v3279, %v3277
  %v4400 = vpack.c.b16 %v3280, %v3278
  %v4401 = vpack.c.b16 %v3283, %v3281
  %v4402 = vpack.c.b16 %v3284, %v3282
  %v4403 = vpack.c.b16 %v3287, %v3285
  %v4404 = vpack.c.b16 %v3288, %v3286
  %v4405 = vpack.c.b16 %v3291, %v3289
  %v4406 = vpack.c.b16 %v3292, %v3290
  %v4407 = vpack.c.b16 %v3295, %v3293
  %v4408 = vpack.c.b16 %v3296, %v3294
  %v4409 = vpack.c.b16 %v3299, %v3297
  %v4410 = vpack.c.b16 %v3300, %v3298
  %v4411 = vpack.c.b16 %v3303, %v3301
  %v4412 = vpack.c.b16 %v3304, %v3302
  %v4413 = vpack.c.b16 %v3307, %v3305
  %v4414 = vpack.c.b16 %v3308, %v3306
  %v4415 = vpack.c.b16 %v3311, %v3309
  %v4416 = vpack.c.b16 %v3312, %v3310
  %v4417 = vpack.c.b16 %v3315, %v3313
  %v4418 = vpack.c.b16 %v3316, %v3314
  %v4419 = vpack.c.b16 %v3319, %v3317
  %v4420 = vpack.c.b16 %v3320, %v3318
  %v4421 = vpack.c.b16 %v3323, %v3321
  %v4422 = vpack.c.b16 %v3324, %v3322
  %v4423 = vpack.c.b16 %v3327, %v3325
  %v4424 = vpack.c.b16 %v3328, %v3326
  %v4425 = vpack.c.b16 %v3331, %v3329
  %v4426 = vpack.c.b16 %v3332, %v3330
  %v4427 = vpack.c.b16 %v3335, %v3333
  %v4428 = vpack.c.b16 %v3336, %v3334
  %v4429 = vpack.c.b16 %v3339, %v3337
  %v4430 = vpack.c.b16 %v3340, %v3338
  %v4431 = vpack.c.b16 %v3343, %v3341
  %v4432 = vpack.c.b16 %v3344, %v3342
  %v4433 = vpack.c.b16 %v3347, %v3345
  %v4434 = vpack.c.b16 %v3348, %v3346
  %v4435 = vpack.c.b16 %v3351, %v3349
  %v4436 = vpack.c.b16 %v3352, %v3350
  %v4437 = vpack.c.b16 %v3355, %v3353
  %v4438 = vpack.c.b16 %v3356, %v3354
  %v4439 = vpack.c.b16 %v3359, %v3357
  %v4440 = vpack.c.b16 %v3360, %v3358
  %v4441 = vpack.c.b16 %v3363, %v3361
  %v4442 = vpack.c.b16 %v3364, %v3362
  %v4443 = vpack.c.b16 %v3367, %v3365
  %v4444 = vpack.c.b16 %v3368, %v3366
  %v4445 = vpack.c.b16 %v3371, %v3369
  %v4446 = vpack.c.b16 %v3372, %v3370
  %v4447 = vpack.c.b16 %v3375, %v3373
  %v4448 = vpack.c.b16 %v3376, %v3374
  %v4449 = vpack.c.b16 %v3379, %v3377
  %v4450 = vpack.c.b16 %v3380, %v3378
  %v4451 = vpack.c.b16 %v3383, %v3381
  %v4452 = vpack.c.b16 %v3384, %v3382
  %v4453 = vpack.c.b16 %v3387, %v3385
  %v4454 = vpack.c.b16 %v3388, %v3386
  %v4455 = vpack.c.b16 %v3391, %v3389
  %v4456 = vpack.c.b16 %v3392, %v3390
  %v4457 = vpack.c.b16 %v3395, %v3393
  %v4458 = vpack.c.b16 %v3396, %v3394
  %v4459 = vpack.c.b16 %v3399, %v3397
  %v4460 = vpack.c.b16 %v3400, %v3398
  %v4461 = vpack.c.b16 %v3403, %v3401
  %v4462 = vpack.c.b16 %v3404, %v3402
  %v4463 = vpack.c.b16 %v3407, %v3405
  %v4464 = vpack.c.b16 %v3408, %v3406
  %v4465 = vpack.c.b16 %v3411, %v3409
  %v4466 = vpack.c.b16 %v3412, %v3410
  %v4467 = vpack.c.b16 %v3415, %v3413
  %v4468 = vpack.c.b16 %v3416, %v3414
  %v4469 = vpack.c.b16 %v3419, %v3417
  %v4470 = vpack.c.b16 %v3420, %v3418
  %v4471 = vpack.c.b16 %v3423, %v3421
  %v4472 = vpack.c.b16 %v3424, %v3422
  %v4473 = vpack.c.b16 %v3427, %v3425
  %v4474 = vpack.c.b16 %v3428, %v3426
  %v4475 = vpack.c.b16 %v3431, %v3429
  %v4476 = vpack.c.b16 %v3432, %v3430
  %v4477 = vpack.c.b16 %v3435, %v3433
  %v4478 = vpack.c.b16 %v3436, %v3434
  %v4479 = vpack.c.b16 %v3439, %v3437
  %v4480 = vpack.c.b16 %v3440, %v3438
  %v4481 = vpack.c.b16 %v3443, %v3441
  %v4482 = vpack.c.b16 %v3444, %v3442
  %v4483 = vpack.c.b16 %v3447, %v3445
  %v4484 = vpack.c.b16 %v3448, %v3446
  %v4485 = vpack.c.b16 %v3451, %v3449
  %v4486 = vpack.c.b16 %v3452, %v3450
  %v4487 = vpack.c.b16 %v3455, %v3453
  %v4488 = vpack.c.b16 %v3456, %v3454
  %v4489 = vpack.c.b16 %v3459, %v3457
  %v4490 = vpack.c.b16 %v3460, %v3458
  %v4491 = vpack.c.b16 %v3463, %v3461
  %v4492 = vpack.c.b16 %v3464, %v3462
  %v4493 = vpack.c.b16 %v3467, %v3465
  %v4494 = vpack.c.b16 %v3468, %v3466
  %v4495 = vpack.c.b16 %v3471, %v3469
  %v4496 = vpack.c.b16 %v3472, %v3470
  %v4497 = vpack.c.b16 %v3475, %v3473
  %v4498 = vpack.c.b16 %v3476, %v3474
  %v4499 = vpack.c.b16 %v3479, %v3477
  %v4500 = vpack.c.b16 %v3480, %v3478
  %v4501 = vpack.c.b16 %v3483, %v3481
  %v4502 = vpack.c.b16 %v3484, %v3482
  %v4503 = vpack.c.b16 %v3487, %v3485
  %v4504 = vpack.c.b16 %v3488, %v3486
  %v4505 = vpack.c.b16 %v3491, %v3489
  %v4506 = vpack.c.b16 %v3492, %v3490
  %v4507 = vpack.c.b16 %v3495, %v3493
  %v4508 = vpack.c.b16 %v3496, %v3494
  %v4509 = vpack.c.b16 %v3499, %v3497
  %v4510 = vpack.c.b16 %v3500, %v3498
  %v4511 = vpack.c.b16 %v3503, %v3501
  %v4512 = vpack.c.b16 %v3504, %v3502
  %v4513 = vpack.c.b16 %v3507, %v3505
  %v4514 = vpack.c.b16 %v3508, %v3506
  %v4515 = vpack.c.b16 %v3511, %v3509
  %v4516 = vpack.c.b16 %v3512, %v3510
  %v4517 = vpack.c.b16 %v3515, %v3513
  %v4518 = vpack.c.b16 %v3516, %v3514
  %v4519 = vpack.c.b16 %v3519, %v3517
  %v4520 = vpack.c.b16 %v3520, %v3518
  %v4521 = vpack.c.b16 %v3523, %v3521
  %v4522 = vpack.c.b16 %v3524, %v3522
  %v4523 = vpack.c.b16 %v3527, %v3525
  %v4524 = vpack.c.b16 %v3528, %v3526
  %v4525 = vpack.c.b16 %v3531, %v3529
  %v4526 = vpack.c.b16 %v3532, %v3530
  %v4527 = vpack.c.b16 %v3535, %v3533
  %v4528 = vpack.c.b16 %v3536, %v3534
  %v4529 = vpack.c.b16 %v3539, %v3537
  %v4530 = vpack.c.b16 %v3540, %v3538
  %v4531 = vpack.c.b16 %v3543, %v3541
  %v4532 = vpack.c.b16 %v3544, %v3542
  %v4533 = vpack.c.b16 %v3547, %v3545
  %v4534 = vpack.c.b16 %v3548, %v3546
  %v4535 = vpack.c.b16 %v3551, %v3549
  %v4536 = vpack.c.b16 %v3552, %v3550
  %v4537 = vpack.c.b16 %v3555, %v3553
  %v4538 = vpack.c.b16 %v3556, %v3554
  %v4539 = vpack.c.b16 %v3559, %v3557
  %v4540 = vpack.c.b16 %v3560, %v3558
  %v4541 = vpack.c.b16 %v3563, %v3561
  %v4542 = vpack.c.b16 %v3564, %v3562
  %v4543 = vpack.c.b16 %v3567, %v3565
  %v4544 = vpack.c.b16 %v3568, %v3566
  %v4545 = vpack.c.b16 %v3571, %v3569
  %v4546 = vpack.c.b16 %v3572, %v3570
  %v4547 = vpack.c.b16 %v3575, %v3573
  %v4548 = vpack.c.b16 %v3576, %v3574
  %v4549 = vpack.c.b16 %v3579, %v3577
  %v4550 = vpack.c.b16 %v3580, %v3578
  %v4551 = vpack.c.b16 %v3583, %v3581
  %v4552 = vpack.c.b16 %v3584, %v3582
  %v4553 = vpack.c.b16 %v3587, %v3585
  %v4554 = vpack.c.b16 %v3588, %v3586
  %v4555 = vpack.c.b16 %v3591, %v3589
  %v4556 = vpack.c.b16 %v3592, %v3590
  %v4557 = vpack.c.b16 %v3595, %v3593
  %v4558 = vpack.c.b16 %v3596, %v3594
  %v4559 = vpack.c.b16 %v3599, %v3597
  %v4560 = vpack.c.b16 %v3600, %v3598
  %v4561 = vpack.c.b16 %v3603, %v3601
  %v4562 = vpack.c.b16 %v3604, %v3602
  %v4563 = vpack.c.b16 %v3607, %v3605
  %v4564 = vpack.c.b16 %v3608, %v3606
  %v4565 = vpack.c.b16 %v3611, %v3609
  %v4566 = vpack.c.b16 %v3612, %v3610
  %v4567 = vpack.c.b16 %v3615, %v3613
  %v4568 = vpack.c.b16 %v3616, %v3614
  %v4569 = vpack.c.b16 %v3619, %v3617
  %v4570 = vpack.c.b16 %v3620, %v3618
  %v4571 = vpack.c.b16 %v3623, %v3621
  %v4572 = vpack.c.b16 %v3624, %v3622
  %v4573 = vpack.c.b16 %v3627, %v3625
  %v4574 = vpack.c.b16 %v3628, %v3626
  %v4575 = vpack.c.b16 %v3631, %v3629
  %v4576 = vpack.c.b16 %v3632, %v3630
  %v4577 = vpack.c.b16 %v3635, %v3633
  %v4578 = vpack.c.b16 %v3636, %v3634
  %v4579 = vpack.c.b16 %v3639, %v3637
  %v4580 = vpack.c.b16 %v3640, %v3638
  %v4581 = vpack.c.b16 %v3643, %v3641
  %v4582 = vpack.c.b16 %v3644, %v3642
  %v4583 = vpack.c.b16 %v3647, %v3645
  %v4584 = vpack.c.b16 %v3648, %v3646
  %v4585 = vpack.c.b16 %v3651, %v3649
  %v4586 = vpack.c.b16 %v3652, %v3650
  %v4587 = vpack.c.b16 %v3655, %v3653
  %v4588 = vpack.c.b16 %v3656, %v3654
  %v4589 = vpack.c.b16 %v3659, %v3657
  %v4590 = vpack.c.b16 %v3660, %v3658
  %v4591 = vpack.c.b16 %v3663, %v3661
  %v4592 = vpack.c.b16 %v3664, %v3662
  %v4593 = vpack.c.b16 %v3667, %v3665
  %v4594 = vpack.c.b16 %v3668, %v3666
  %v4595 = vpack.c.b16 %v3671, %v3669
  %v4596 = vpack.c.b16 %v3672, %v3670
  %v4597 = vpack.c.b16 %v3675, %v3673
  %v4598 = vpack.c.b16 %v3676, %v3674
  %v4599 = vpack.c.b16 %v3679, %v3677
  %v4600 = vpack.c.b16 %v3680, %v3678
  %v4601 = vpack.c.b16 %v3683, %v3681
  %v4602 = vpack.c.b16 %v3684, %v3682
  %v4603 = vpack.c.b16 %v3687, %v3685
  %v4604 = vpack.c.b16 %v3688, %v3686
  %v4605 = vpack.c.b16 %v3691, %v3689
  %v4606 = vpack.c.b16 %v3692, %v3690
  %v4607 = vpack.c.b16 %v3695, %v3693
  %v4608 = vpack.c.b16 %v3696, %v3694
  %v4609 = vpack.c.b16 %v3699, %v3697
  %v4610 = vpack.c.b16 %v3700, %v3698
  %v4611 = vpack.c.b16 %v3703, %v3701
  %v4612 = vpack.c.b16 %v3704, %v3702
  %v4613 = vpack.c.b16 %v3707, %v3705
  %v4614 = vpack.c.b16 %v3708, %v3706
  %v4615 = vpack.c.b16 %v3711, %v3709
  %v4616 = vpack.c.b16 %v3712, %v3710
  %v4617 = vpack.c.b16 %v3715, %v3713
  %v4618 = vpack.c.b16 %v3716, %v3714
  %v4619 = vpack.c.b16 %v3719, %v3717
  %v4620 = vpack.c.b16 %v3720, %v3718
  %v4621 = vpack.c.b16 %v3723, %v3721
  %v4622 = vpack.c.b16 %v3724, %v3722
  %v4623 = vpack.c.b16 %v3727, %v3725
  %v4624 = vpack.c.b16 %v3728, %v3726
  %v4625 = vpack.c.b16 %v3731, %v3729
  %v4626 = vpack.c.b16 %v3732, %v3730
  %v4627 = vpack.c.b16 %v3735, %v3733
  %v4628 = vpack.c.b16 %v3736, %v3734
  %v4629 = vpack.c.b16 %v3739, %v3737
  %v4630 = vpack.c.b16 %v3740, %v3738
  %v4631 = vpack.c.b16 %v3743, %v3741
  %v4632 = vpack.c.b16 %v3744, %v3742
  %v4633 = vpack.c.b16 %v3747, %v3745
  %v4634 = vpack.c.b16 %v3748, %v3746
  %v4635 = vpack.c.b16 %v3751, %v3749
  %v4636 = vpack.c.b16 %v3752, %v3750
  %v4637 = vpack.c.b16 %v3755, %v3753
  %v4638 = vpack.c.b16 %v3756, %v3754
  %v4639 = vpack.c.b16 %v3759, %v3757
  %v4640 = vpack.c.b16 %v3760, %v3758
  %v4641 = vpack.c.b16 %v3763, %v3761
  %v4642 = vpack.c.b16 %v3764, %v3762
  %v4643 = vpack.c.b16 %v3767, %v3765
  %v4644 = vpack.c.b16 %v3768, %v3766
  %v4645 = vpack.c.b16 %v3771, %v3769
  %v4646 = vpack.c.b16 %v3772, %v3770
  %v4647 = vpack.c.b16 %v3775, %v3773
  %v4648 = vpack.c.b16 %v3776, %v3774
  %v4649 = vpack.c.b16 %v3779, %v3777
  %v4650 = vpack.c.b16 %v3780, %v3778
  %v4651 = vpack.c.b16 %v3783, %v3781
  %v4652 = vpack.c.b16 %v3784, %v3782
  %v4653 = vpack.c.b16 %v3787, %v3785
  %v4654 = vpack.c.b16 %v3788, %v3786
  %v4655 = vpack.c.b16 %v3791, %v3789
  %v4656 = vpack.c.b16 %v3792, %v3790
  %5521 = vmatprep.subr.bf16.mxu0 %v3808
  %5522 = vmatpush1.bf16.msra.mxu0 %v3807
  %5523 = vmatprep.subr.bf16.mxu0 %v3806
  %5524 = vmatpush1.bf16.msra.mxu0 %v3805
  %5525 = vmatprep.subr.bf16.mxu0 %v3804
  %5526 = vmatpush1.bf16.msra.mxu0 %v3803
  %5527 = vmatprep.subr.bf16.mxu0 %v3802
  %5528 = vmatpush1.bf16.msra.mxu0 %v3801
  %5529 = vmatprep.subr.bf16.mxu0 %v3800
  %5530 = vmatpush1.bf16.msra.mxu0 %v3799
  %5531 = vmatprep.subr.bf16.mxu0 %v3798
  %5532 = vmatpush1.bf16.msra.mxu0 %v3797
  %5533 = vmatprep.subr.bf16.mxu0 %v3796
  %5534 = vmatpush1.bf16.msra.mxu0 %v3795
  %5535 = vmatprep.subr.bf16.mxu0 %v3794
  %5536 = vmatpush1.bf16.msra.mxu0 %v3793
  %5537 = vmatprep.subr.bf16.mxu0 %v3824
  %5538 = vmatpush2.bf16.msra.mxu0 %v3823
  %5539 = vmatprep.subr.bf16.mxu0 %v3822
  %5540 = vmatpush2.bf16.msra.mxu0 %v3821
  %5541 = vmatprep.subr.bf16.mxu0 %v3820
  %5542 = vmatpush2.bf16.msra.mxu0 %v3819
  %5543 = vmatprep.subr.bf16.mxu0 %v3818
  %5544 = vmatpush2.bf16.msra.mxu0 %v3817
  %5545 = vmatprep.subr.bf16.mxu0 %v3816
  %5546 = vmatpush2.bf16.msra.mxu0 %v3815
  %5547 = vmatprep.subr.bf16.mxu0 %v3814
  %5548 = vmatpush2.bf16.msra.mxu0 %v3813
  %5549 = vmatprep.subr.bf16.mxu0 %v3812
  %5550 = vmatpush2.bf16.msra.mxu0 %v3811
  %5551 = vmatprep.subr.bf16.mxu0 %v3810
  %5552 = vmatpush2.bf16.msra.mxu0 %v3809
  %5553 = vmatprep.mubr.bf16.mxu0 %v933
  %5554 = vmatmul.mubr.bf16.gmra.mxu0 %v925
  %v5555 = vpop.f32.mrf.mxu0
  %v5556 = vadd.f32 %v897, %v5555
  %v5557 = vpop.f32.mrf.mxu0
  %v5558 = vadd.f32 %v901, %v5557
  %v5559 = vpop.f32.mrf.mxu0
  %v5560 = vpop.f32.mrf.mxu0
  %5561 = vdwg.mxu0
  %5562 = vmatprep.subr.bf16.mxu0 %v3840
  %5563 = vmatpush1.bf16.msra.mxu0 %v3839
  %5564 = vmatprep.subr.bf16.mxu0 %v3838
  %5565 = vmatpush1.bf16.msra.mxu0 %v3837
  %5566 = vmatprep.subr.bf16.mxu0 %v3836
  %5567 = vmatpush1.bf16.msra.mxu0 %v3835
  %5568 = vmatprep.subr.bf16.mxu0 %v3834
  %5569 = vmatpush1.bf16.msra.mxu0 %v3833
  %5570 = vmatprep.subr.bf16.mxu0 %v3832
  %5571 = vmatpush1.bf16.msra.mxu0 %v3831
  %5572 = vmatprep.subr.bf16.mxu0 %v3830
  %5573 = vmatpush1.bf16.msra.mxu0 %v3829
  %5574 = vmatprep.subr.bf16.mxu0 %v3828
  %5575 = vmatpush1.bf16.msra.mxu0 %v3827
  %5576 = vmatprep.subr.bf16.mxu0 %v3826
  %5577 = vmatpush1.bf16.msra.mxu0 %v3825
  %5578 = vmatprep.subr.bf16.mxu0 %v3856
  %5579 = vmatpush2.bf16.msra.mxu0 %v3855
  %5580 = vmatprep.subr.bf16.mxu0 %v3854
  %5581 = vmatpush2.bf16.msra.mxu0 %v3853
  %5582 = vmatprep.subr.bf16.mxu0 %v3852
  %5583 = vmatpush2.bf16.msra.mxu0 %v3851
  %5584 = vmatprep.subr.bf16.mxu0 %v3850
  %5585 = vmatpush2.bf16.msra.mxu0 %v3849
  %5586 = vmatprep.subr.bf16.mxu0 %v3848
  %5587 = vmatpush2.bf16.msra.mxu0 %v3847
  %5588 = vmatprep.subr.bf16.mxu0 %v3846
  %5589 = vmatpush2.bf16.msra.mxu0 %v3845
  %5590 = vmatprep.subr.bf16.mxu0 %v3844
  %5591 = vmatpush2.bf16.msra.mxu0 %v3843
  %5592 = vmatprep.subr.bf16.mxu0 %v3842
  %5593 = vmatpush2.bf16.msra.mxu0 %v3841
  %5594 = vmatprep.mubr.bf16.mxu0 %v934
  %5595 = vmatmul.mubr.bf16.gmra.mxu0 %v932
  %v5596 = vpop.f32.mrf.mxu0
  %v5597 = vadd.f32 %v5556, %v5596
  %v5598 = vpop.f32.mrf.mxu0
  %v5599 = vadd.f32 %v5558, %v5598
  %v5600 = vpop.f32.mrf.mxu0
  %v5601 = vpop.f32.mrf.mxu0
  %5602 = vdwg.mxu0
  %5603 = vmatprep.subr.bf16.mxu0 %v3872
  %5604 = vmatpush1.bf16.msra.mxu0 %v3871
  %5605 = vmatprep.subr.bf16.mxu0 %v3870
  %5606 = vmatpush1.bf16.msra.mxu0 %v3869
  %5607 = vmatprep.subr.bf16.mxu0 %v3868
  %5608 = vmatpush1.bf16.msra.mxu0 %v3867
  %5609 = vmatprep.subr.bf16.mxu0 %v3866
  %5610 = vmatpush1.bf16.msra.mxu0 %v3865
  %5611 = vmatprep.subr.bf16.mxu0 %v3864
  %5612 = vmatpush1.bf16.msra.mxu0 %v3863
  %5613 = vmatprep.subr.bf16.mxu0 %v3862
  %5614 = vmatpush1.bf16.msra.mxu0 %v3861
  %5615 = vmatprep.subr.bf16.mxu0 %v3860
  %5616 = vmatpush1.bf16.msra.mxu0 %v3859
  %5617 = vmatprep.subr.bf16.mxu0 %v3858
  %5618 = vmatpush1.bf16.msra.mxu0 %v3857
  %5619 = vmatprep.subr.bf16.mxu0 %v3888
  %5620 = vmatpush2.bf16.msra.mxu0 %v3887
  %5621 = vmatprep.subr.bf16.mxu0 %v3886
  %5622 = vmatpush2.bf16.msra.mxu0 %v3885
  %5623 = vmatprep.subr.bf16.mxu0 %v3884
  %5624 = vmatpush2.bf16.msra.mxu0 %v3883
  %5625 = vmatprep.subr.bf16.mxu0 %v3882
  %5626 = vmatpush2.bf16.msra.mxu0 %v3881
  %5627 = vmatprep.subr.bf16.mxu0 %v3880
  %5628 = vmatpush2.bf16.msra.mxu0 %v3879
  %5629 = vmatprep.subr.bf16.mxu0 %v3878
  %5630 = vmatpush2.bf16.msra.mxu0 %v3877
  %5631 = vmatprep.subr.bf16.mxu0 %v3876
  %5632 = vmatpush2.bf16.msra.mxu0 %v3875
  %5633 = vmatprep.subr.bf16.mxu0 %v3874
  %5634 = vmatpush2.bf16.msra.mxu0 %v3873
  %5635 = vmatprep.mubr.bf16.mxu0 %v950
  %5636 = vmatmul.mubr.bf16.gmra.mxu0 %v942
  %v5637 = vpop.f32.mrf.mxu0
  %v5638 = vadd.f32 %v5597, %v5637
  %v5639 = vpop.f32.mrf.mxu0
  %v5640 = vadd.f32 %v5599, %v5639
  %v5641 = vpop.f32.mrf.mxu0
  %v5642 = vpop.f32.mrf.mxu0
  %5643 = vdwg.mxu0
  %5644 = vmatprep.subr.bf16.mxu0 %v3904
  %5645 = vmatpush1.bf16.msra.mxu0 %v3903
  %5646 = vmatprep.subr.bf16.mxu0 %v3902
  %5647 = vmatpush1.bf16.msra.mxu0 %v3901
  %5648 = vmatprep.subr.bf16.mxu0 %v3900
  %5649 = vmatpush1.bf16.msra.mxu0 %v3899
  %5650 = vmatprep.subr.bf16.mxu0 %v3898
  %5651 = vmatpush1.bf16.msra.mxu0 %v3897
  %5652 = vmatprep.subr.bf16.mxu0 %v3896
  %5653 = vmatpush1.bf16.msra.mxu0 %v3895
  %5654 = vmatprep.subr.bf16.mxu0 %v3894
  %5655 = vmatpush1.bf16.msra.mxu0 %v3893
  %5656 = vmatprep.subr.bf16.mxu0 %v3892
  %5657 = vmatpush1.bf16.msra.mxu0 %v3891
  %5658 = vmatprep.subr.bf16.mxu0 %v3890
  %5659 = vmatpush1.bf16.msra.mxu0 %v3889
  %5660 = vmatprep.subr.bf16.mxu0 %v3920
  %5661 = vmatpush2.bf16.msra.mxu0 %v3919
  %5662 = vmatprep.subr.bf16.mxu0 %v3918
  %5663 = vmatpush2.bf16.msra.mxu0 %v3917
  %5664 = vmatprep.subr.bf16.mxu0 %v3916
  %5665 = vmatpush2.bf16.msra.mxu0 %v3915
  %5666 = vmatprep.subr.bf16.mxu0 %v3914
  %5667 = vmatpush2.bf16.msra.mxu0 %v3913
  %5668 = vmatprep.subr.bf16.mxu0 %v3912
  %5669 = vmatpush2.bf16.msra.mxu0 %v3911
  %5670 = vmatprep.subr.bf16.mxu0 %v3910
  %5671 = vmatpush2.bf16.msra.mxu0 %v3909
  %5672 = vmatprep.subr.bf16.mxu0 %v3908
  %5673 = vmatpush2.bf16.msra.mxu0 %v3907
  %5674 = vmatprep.subr.bf16.mxu0 %v3906
  %5675 = vmatpush2.bf16.msra.mxu0 %v3905
  %5676 = vmatprep.mubr.bf16.mxu0 %v951
  %5677 = vmatmul.mubr.bf16.gmra.mxu0 %v949
  %v5678 = vpop.f32.mrf.mxu0
  %v5679 = vadd.f32 %v5638, %v5678
  %v5680 = vpop.f32.mrf.mxu0
  %v5681 = vadd.f32 %v5640, %v5680
  %v5682 = vpop.f32.mrf.mxu0
  %v5683 = vpop.f32.mrf.mxu0
  %5684 = vdwg.mxu0
  %5685 = vmatprep.subr.bf16.mxu0 %v3936
  %5686 = vmatpush1.bf16.msra.mxu0 %v3935
  %5687 = vmatprep.subr.bf16.mxu0 %v3934
  %5688 = vmatpush1.bf16.msra.mxu0 %v3933
  %5689 = vmatprep.subr.bf16.mxu0 %v3932
  %5690 = vmatpush1.bf16.msra.mxu0 %v3931
  %5691 = vmatprep.subr.bf16.mxu0 %v3930
  %5692 = vmatpush1.bf16.msra.mxu0 %v3929
  %5693 = vmatprep.subr.bf16.mxu0 %v3928
  %5694 = vmatpush1.bf16.msra.mxu0 %v3927
  %5695 = vmatprep.subr.bf16.mxu0 %v3926
  %5696 = vmatpush1.bf16.msra.mxu0 %v3925
  %5697 = vmatprep.subr.bf16.mxu0 %v3924
  %5698 = vmatpush1.bf16.msra.mxu0 %v3923
  %5699 = vmatprep.subr.bf16.mxu0 %v3922
  %5700 = vmatpush1.bf16.msra.mxu0 %v3921
  %5701 = vmatprep.subr.bf16.mxu0 %v3952
  %5702 = vmatpush2.bf16.msra.mxu0 %v3951
  %5703 = vmatprep.subr.bf16.mxu0 %v3950
  %5704 = vmatpush2.bf16.msra.mxu0 %v3949
  %5705 = vmatprep.subr.bf16.mxu0 %v3948
  %5706 = vmatpush2.bf16.msra.mxu0 %v3947
  %5707 = vmatprep.subr.bf16.mxu0 %v3946
  %5708 = vmatpush2.bf16.msra.mxu0 %v3945
  %5709 = vmatprep.subr.bf16.mxu0 %v3944
  %5710 = vmatpush2.bf16.msra.mxu0 %v3943
  %5711 = vmatprep.subr.bf16.mxu0 %v3942
  %5712 = vmatpush2.bf16.msra.mxu0 %v3941
  %5713 = vmatprep.subr.bf16.mxu0 %v3940
  %5714 = vmatpush2.bf16.msra.mxu0 %v3939
  %5715 = vmatprep.subr.bf16.mxu0 %v3938
  %5716 = vmatpush2.bf16.msra.mxu0 %v3937
  %5717 = vmatprep.mubr.bf16.mxu0 %v967
  %5718 = vmatmul.mubr.bf16.gmra.mxu0 %v959
  %v5719 = vpop.f32.mrf.mxu0
  %v5720 = vadd.f32 %v5679, %v5719
  %v5721 = vpop.f32.mrf.mxu0
  %v5722 = vadd.f32 %v5681, %v5721
  %v5723 = vpop.f32.mrf.mxu0
  %v5724 = vpop.f32.mrf.mxu0
  %5725 = vdwg.mxu0
  %5726 = vmatprep.subr.bf16.mxu0 %v3968
  %5727 = vmatpush1.bf16.msra.mxu0 %v3967
  %5728 = vmatprep.subr.bf16.mxu0 %v3966
  %5729 = vmatpush1.bf16.msra.mxu0 %v3965
  %5730 = vmatprep.subr.bf16.mxu0 %v3964
  %5731 = vmatpush1.bf16.msra.mxu0 %v3963
  %5732 = vmatprep.subr.bf16.mxu0 %v3962
  %5733 = vmatpush1.bf16.msra.mxu0 %v3961
  %5734 = vmatprep.subr.bf16.mxu0 %v3960
  %5735 = vmatpush1.bf16.msra.mxu0 %v3959
  %5736 = vmatprep.subr.bf16.mxu0 %v3958
  %5737 = vmatpush1.bf16.msra.mxu0 %v3957
  %5738 = vmatprep.subr.bf16.mxu0 %v3956
  %5739 = vmatpush1.bf16.msra.mxu0 %v3955
  %5740 = vmatprep.subr.bf16.mxu0 %v3954
  %5741 = vmatpush1.bf16.msra.mxu0 %v3953
  %5742 = vmatprep.subr.bf16.mxu0 %v3984
  %5743 = vmatpush2.bf16.msra.mxu0 %v3983
  %5744 = vmatprep.subr.bf16.mxu0 %v3982
  %5745 = vmatpush2.bf16.msra.mxu0 %v3981
  %5746 = vmatprep.subr.bf16.mxu0 %v3980
  %5747 = vmatpush2.bf16.msra.mxu0 %v3979
  %5748 = vmatprep.subr.bf16.mxu0 %v3978
  %5749 = vmatpush2.bf16.msra.mxu0 %v3977
  %5750 = vmatprep.subr.bf16.mxu0 %v3976
  %5751 = vmatpush2.bf16.msra.mxu0 %v3975
  %5752 = vmatprep.subr.bf16.mxu0 %v3974
  %5753 = vmatpush2.bf16.msra.mxu0 %v3973
  %5754 = vmatprep.subr.bf16.mxu0 %v3972
  %5755 = vmatpush2.bf16.msra.mxu0 %v3971
  %5756 = vmatprep.subr.bf16.mxu0 %v3970
  %5757 = vmatpush2.bf16.msra.mxu0 %v3969
  %5758 = vmatprep.mubr.bf16.mxu0 %v968
  %5759 = vmatmul.mubr.bf16.gmra.mxu0 %v966
  %v5760 = vpop.f32.mrf.mxu0
  %v5761 = vadd.f32 %v5720, %v5760
  %v5762 = vpop.f32.mrf.mxu0
  %v5763 = vadd.f32 %v5722, %v5762
  %v5764 = vpop.f32.mrf.mxu0
  %v5765 = vpop.f32.mrf.mxu0
  %5766 = vdwg.mxu0
  %5767 = vmatprep.subr.bf16.mxu0 %v4000
  %5768 = vmatpush1.bf16.msra.mxu0 %v3999
  %5769 = vmatprep.subr.bf16.mxu0 %v3998
  %5770 = vmatpush1.bf16.msra.mxu0 %v3997
  %5771 = vmatprep.subr.bf16.mxu0 %v3996
  %5772 = vmatpush1.bf16.msra.mxu0 %v3995
  %5773 = vmatprep.subr.bf16.mxu0 %v3994
  %5774 = vmatpush1.bf16.msra.mxu0 %v3993
  %5775 = vmatprep.subr.bf16.mxu0 %v3992
  %5776 = vmatpush1.bf16.msra.mxu0 %v3991
  %5777 = vmatprep.subr.bf16.mxu0 %v3990
  %5778 = vmatpush1.bf16.msra.mxu0 %v3989
  %5779 = vmatprep.subr.bf16.mxu0 %v3988
  %5780 = vmatpush1.bf16.msra.mxu0 %v3987
  %5781 = vmatprep.subr.bf16.mxu0 %v3986
  %5782 = vmatpush1.bf16.msra.mxu0 %v3985
  %5783 = vmatprep.subr.bf16.mxu0 %v4016
  %5784 = vmatpush2.bf16.msra.mxu0 %v4015
  %5785 = vmatprep.subr.bf16.mxu0 %v4014
  %5786 = vmatpush2.bf16.msra.mxu0 %v4013
  %5787 = vmatprep.subr.bf16.mxu0 %v4012
  %5788 = vmatpush2.bf16.msra.mxu0 %v4011
  %5789 = vmatprep.subr.bf16.mxu0 %v4010
  %5790 = vmatpush2.bf16.msra.mxu0 %v4009
  %5791 = vmatprep.subr.bf16.mxu0 %v4008
  %5792 = vmatpush2.bf16.msra.mxu0 %v4007
  %5793 = vmatprep.subr.bf16.mxu0 %v4006
  %5794 = vmatpush2.bf16.msra.mxu0 %v4005
  %5795 = vmatprep.subr.bf16.mxu0 %v4004
  %5796 = vmatpush2.bf16.msra.mxu0 %v4003
  %5797 = vmatprep.subr.bf16.mxu0 %v4002
  %5798 = vmatpush2.bf16.msra.mxu0 %v4001
  %5799 = vmatprep.mubr.bf16.mxu0 %v984
  %5800 = vmatmul.mubr.bf16.gmra.mxu0 %v976
  %v5801 = vpop.f32.mrf.mxu0
  %v5802 = vadd.f32 %v5761, %v5801
  %v5803 = vpop.f32.mrf.mxu0
  %v5804 = vadd.f32 %v5763, %v5803
  %v5805 = vpop.f32.mrf.mxu0
  %v5806 = vpop.f32.mrf.mxu0
  %5807 = vdwg.mxu0
  %5808 = vmatprep.subr.bf16.mxu0 %v4032
  %5809 = vmatpush1.bf16.msra.mxu0 %v4031
  %5810 = vmatprep.subr.bf16.mxu0 %v4030
  %5811 = vmatpush1.bf16.msra.mxu0 %v4029
  %5812 = vmatprep.subr.bf16.mxu0 %v4028
  %5813 = vmatpush1.bf16.msra.mxu0 %v4027
  %5814 = vmatprep.subr.bf16.mxu0 %v4026
  %5815 = vmatpush1.bf16.msra.mxu0 %v4025
  %5816 = vmatprep.subr.bf16.mxu0 %v4024
  %5817 = vmatpush1.bf16.msra.mxu0 %v4023
  %5818 = vmatprep.subr.bf16.mxu0 %v4022
  %5819 = vmatpush1.bf16.msra.mxu0 %v4021
  %5820 = vmatprep.subr.bf16.mxu0 %v4020
  %5821 = vmatpush1.bf16.msra.mxu0 %v4019
  %5822 = vmatprep.subr.bf16.mxu0 %v4018
  %5823 = vmatpush1.bf16.msra.mxu0 %v4017
  %5824 = vmatprep.subr.bf16.mxu0 %v4048
  %5825 = vmatpush2.bf16.msra.mxu0 %v4047
  %5826 = vmatprep.subr.bf16.mxu0 %v4046
  %5827 = vmatpush2.bf16.msra.mxu0 %v4045
  %5828 = vmatprep.subr.bf16.mxu0 %v4044
  %5829 = vmatpush2.bf16.msra.mxu0 %v4043
  %5830 = vmatprep.subr.bf16.mxu0 %v4042
  %5831 = vmatpush2.bf16.msra.mxu0 %v4041
  %5832 = vmatprep.subr.bf16.mxu0 %v4040
  %5833 = vmatpush2.bf16.msra.mxu0 %v4039
  %5834 = vmatprep.subr.bf16.mxu0 %v4038
  %5835 = vmatpush2.bf16.msra.mxu0 %v4037
  %5836 = vmatprep.subr.bf16.mxu0 %v4036
  %5837 = vmatpush2.bf16.msra.mxu0 %v4035
  %5838 = vmatprep.subr.bf16.mxu0 %v4034
  %5839 = vmatpush2.bf16.msra.mxu0 %v4033
  %5840 = vmatprep.mubr.bf16.mxu0 %v985
  %5841 = vmatmul.mubr.bf16.gmra.mxu0 %v983
  %v5842 = vpop.f32.mrf.mxu0
  %v5843 = vadd.f32 %v5802, %v5842
  %v5844 = vpop.f32.mrf.mxu0
  %v5845 = vadd.f32 %v5804, %v5844
  %v5846 = vpop.f32.mrf.mxu0
  %v5847 = vpop.f32.mrf.mxu0
  %5848 = vdwg.mxu0
  %5849 = vmatprep.subr.bf16.mxu0 %v4064
  %5850 = vmatpush1.bf16.msra.mxu0 %v4063
  %5851 = vmatprep.subr.bf16.mxu0 %v4062
  %5852 = vmatpush1.bf16.msra.mxu0 %v4061
  %5853 = vmatprep.subr.bf16.mxu0 %v4060
  %5854 = vmatpush1.bf16.msra.mxu0 %v4059
  %5855 = vmatprep.subr.bf16.mxu0 %v4058
  %5856 = vmatpush1.bf16.msra.mxu0 %v4057
  %5857 = vmatprep.subr.bf16.mxu0 %v4056
  %5858 = vmatpush1.bf16.msra.mxu0 %v4055
  %5859 = vmatprep.subr.bf16.mxu0 %v4054
  %5860 = vmatpush1.bf16.msra.mxu0 %v4053
  %5861 = vmatprep.subr.bf16.mxu0 %v4052
  %5862 = vmatpush1.bf16.msra.mxu0 %v4051
  %5863 = vmatprep.subr.bf16.mxu0 %v4050
  %5864 = vmatpush1.bf16.msra.mxu0 %v4049
  %5865 = vmatprep.subr.bf16.mxu0 %v4080
  %5866 = vmatpush2.bf16.msra.mxu0 %v4079
  %5867 = vmatprep.subr.bf16.mxu0 %v4078
  %5868 = vmatpush2.bf16.msra.mxu0 %v4077
  %5869 = vmatprep.subr.bf16.mxu0 %v4076
  %5870 = vmatpush2.bf16.msra.mxu0 %v4075
  %5871 = vmatprep.subr.bf16.mxu0 %v4074
  %5872 = vmatpush2.bf16.msra.mxu0 %v4073
  %5873 = vmatprep.subr.bf16.mxu0 %v4072
  %5874 = vmatpush2.bf16.msra.mxu0 %v4071
  %5875 = vmatprep.subr.bf16.mxu0 %v4070
  %5876 = vmatpush2.bf16.msra.mxu0 %v4069
  %5877 = vmatprep.subr.bf16.mxu0 %v4068
  %5878 = vmatpush2.bf16.msra.mxu0 %v4067
  %5879 = vmatprep.subr.bf16.mxu0 %v4066
  %5880 = vmatpush2.bf16.msra.mxu0 %v4065
  %5881 = vmatprep.mubr.bf16.mxu0 %v1001
  %5882 = vmatmul.mubr.bf16.gmra.mxu0 %v993
  %v5883 = vpop.f32.mrf.mxu0
  %v5884 = vadd.f32 %v5843, %v5883
  %v5885 = vpop.f32.mrf.mxu0
  %v5886 = vadd.f32 %v5845, %v5885
  %v5887 = vpop.f32.mrf.mxu0
  %v5888 = vpop.f32.mrf.mxu0
  %5889 = vdwg.mxu0
  %5890 = vmatprep.subr.bf16.mxu0 %v4096
  %5891 = vmatpush1.bf16.msra.mxu0 %v4095
  %5892 = vmatprep.subr.bf16.mxu0 %v4094
  %5893 = vmatpush1.bf16.msra.mxu0 %v4093
  %5894 = vmatprep.subr.bf16.mxu0 %v4092
  %5895 = vmatpush1.bf16.msra.mxu0 %v4091
  %5896 = vmatprep.subr.bf16.mxu0 %v4090
  %5897 = vmatpush1.bf16.msra.mxu0 %v4089
  %5898 = vmatprep.subr.bf16.mxu0 %v4088
  %5899 = vmatpush1.bf16.msra.mxu0 %v4087
  %5900 = vmatprep.subr.bf16.mxu0 %v4086
  %5901 = vmatpush1.bf16.msra.mxu0 %v4085
  %5902 = vmatprep.subr.bf16.mxu0 %v4084
  %5903 = vmatpush1.bf16.msra.mxu0 %v4083
  %5904 = vmatprep.subr.bf16.mxu0 %v4082
  %5905 = vmatpush1.bf16.msra.mxu0 %v4081
  %5906 = vmatprep.subr.bf16.mxu0 %v4112
  %5907 = vmatpush2.bf16.msra.mxu0 %v4111
  %5908 = vmatprep.subr.bf16.mxu0 %v4110
  %5909 = vmatpush2.bf16.msra.mxu0 %v4109
  %5910 = vmatprep.subr.bf16.mxu0 %v4108
  %5911 = vmatpush2.bf16.msra.mxu0 %v4107
  %5912 = vmatprep.subr.bf16.mxu0 %v4106
  %5913 = vmatpush2.bf16.msra.mxu0 %v4105
  %5914 = vmatprep.subr.bf16.mxu0 %v4104
  %5915 = vmatpush2.bf16.msra.mxu0 %v4103
  %5916 = vmatprep.subr.bf16.mxu0 %v4102
  %5917 = vmatpush2.bf16.msra.mxu0 %v4101
  %5918 = vmatprep.subr.bf16.mxu0 %v4100
  %5919 = vmatpush2.bf16.msra.mxu0 %v4099
  %5920 = vmatprep.subr.bf16.mxu0 %v4098
  %5921 = vmatpush2.bf16.msra.mxu0 %v4097
  %5922 = vmatprep.mubr.bf16.mxu0 %v1002
  %5923 = vmatmul.mubr.bf16.gmra.mxu0 %v1000
  %v5924 = vpop.f32.mrf.mxu0
  %v5925 = vadd.f32 %v5884, %v5924
  %v5926 = vpop.f32.mrf.mxu0
  %v5927 = vadd.f32 %v5886, %v5926
  %v5928 = vpop.f32.mrf.mxu0
  %v5929 = vpop.f32.mrf.mxu0
  %5930 = vdwg.mxu0
  %5931 = vmatprep.subr.bf16.mxu0 %v4128
  %5932 = vmatpush1.bf16.msra.mxu0 %v4127
  %5933 = vmatprep.subr.bf16.mxu0 %v4126
  %5934 = vmatpush1.bf16.msra.mxu0 %v4125
  %5935 = vmatprep.subr.bf16.mxu0 %v4124
  %5936 = vmatpush1.bf16.msra.mxu0 %v4123
  %5937 = vmatprep.subr.bf16.mxu0 %v4122
  %5938 = vmatpush1.bf16.msra.mxu0 %v4121
  %5939 = vmatprep.subr.bf16.mxu0 %v4120
  %5940 = vmatpush1.bf16.msra.mxu0 %v4119
  %5941 = vmatprep.subr.bf16.mxu0 %v4118
  %5942 = vmatpush1.bf16.msra.mxu0 %v4117
  %5943 = vmatprep.subr.bf16.mxu0 %v4116
  %5944 = vmatpush1.bf16.msra.mxu0 %v4115
  %5945 = vmatprep.subr.bf16.mxu0 %v4114
  %5946 = vmatpush1.bf16.msra.mxu0 %v4113
  %5947 = vmatprep.subr.bf16.mxu0 %v4144
  %5948 = vmatpush2.bf16.msra.mxu0 %v4143
  %5949 = vmatprep.subr.bf16.mxu0 %v4142
  %5950 = vmatpush2.bf16.msra.mxu0 %v4141
  %5951 = vmatprep.subr.bf16.mxu0 %v4140
  %5952 = vmatpush2.bf16.msra.mxu0 %v4139
  %5953 = vmatprep.subr.bf16.mxu0 %v4138
  %5954 = vmatpush2.bf16.msra.mxu0 %v4137
  %5955 = vmatprep.subr.bf16.mxu0 %v4136
  %5956 = vmatpush2.bf16.msra.mxu0 %v4135
  %5957 = vmatprep.subr.bf16.mxu0 %v4134
  %5958 = vmatpush2.bf16.msra.mxu0 %v4133
  %5959 = vmatprep.subr.bf16.mxu0 %v4132
  %5960 = vmatpush2.bf16.msra.mxu0 %v4131
  %5961 = vmatprep.subr.bf16.mxu0 %v4130
  %5962 = vmatpush2.bf16.msra.mxu0 %v4129
  %5963 = vmatprep.mubr.bf16.mxu0 %v1018
  %5964 = vmatmul.mubr.bf16.gmra.mxu0 %v1010
  %v5965 = vpop.f32.mrf.mxu0
  %v5966 = vadd.f32 %v5925, %v5965
  %v5967 = vpop.f32.mrf.mxu0
  %v5968 = vadd.f32 %v5927, %v5967
  %v5969 = vpop.f32.mrf.mxu0
  %v5970 = vpop.f32.mrf.mxu0
  %5971 = vdwg.mxu0
  %5972 = vmatprep.subr.bf16.mxu0 %v4160
  %5973 = vmatpush1.bf16.msra.mxu0 %v4159
  %5974 = vmatprep.subr.bf16.mxu0 %v4158
  %5975 = vmatpush1.bf16.msra.mxu0 %v4157
  %5976 = vmatprep.subr.bf16.mxu0 %v4156
  %5977 = vmatpush1.bf16.msra.mxu0 %v4155
  %5978 = vmatprep.subr.bf16.mxu0 %v4154
  %5979 = vmatpush1.bf16.msra.mxu0 %v4153
  %5980 = vmatprep.subr.bf16.mxu0 %v4152
  %5981 = vmatpush1.bf16.msra.mxu0 %v4151
  %5982 = vmatprep.subr.bf16.mxu0 %v4150
  %5983 = vmatpush1.bf16.msra.mxu0 %v4149
  %5984 = vmatprep.subr.bf16.mxu0 %v4148
  %5985 = vmatpush1.bf16.msra.mxu0 %v4147
  %5986 = vmatprep.subr.bf16.mxu0 %v4146
  %5987 = vmatpush1.bf16.msra.mxu0 %v4145
  %5988 = vmatprep.subr.bf16.mxu0 %v4176
  %5989 = vmatpush2.bf16.msra.mxu0 %v4175
  %5990 = vmatprep.subr.bf16.mxu0 %v4174
  %5991 = vmatpush2.bf16.msra.mxu0 %v4173
  %5992 = vmatprep.subr.bf16.mxu0 %v4172
  %5993 = vmatpush2.bf16.msra.mxu0 %v4171
  %5994 = vmatprep.subr.bf16.mxu0 %v4170
  %5995 = vmatpush2.bf16.msra.mxu0 %v4169
  %5996 = vmatprep.subr.bf16.mxu0 %v4168
  %5997 = vmatpush2.bf16.msra.mxu0 %v4167
  %5998 = vmatprep.subr.bf16.mxu0 %v4166
  %5999 = vmatpush2.bf16.msra.mxu0 %v4165
  %6000 = vmatprep.subr.bf16.mxu0 %v4164
  %6001 = vmatpush2.bf16.msra.mxu0 %v4163
  %6002 = vmatprep.subr.bf16.mxu0 %v4162
  %6003 = vmatpush2.bf16.msra.mxu0 %v4161
  %6004 = vmatprep.mubr.bf16.mxu0 %v1019
  %6005 = vmatmul.mubr.bf16.gmra.mxu0 %v1017
  %v6006 = vpop.f32.mrf.mxu0
  %v6007 = vadd.f32 %v5966, %v6006
  %v6008 = vpop.f32.mrf.mxu0
  %v6009 = vadd.f32 %v5968, %v6008
  %v6010 = vpop.f32.mrf.mxu0
  %v6011 = vpop.f32.mrf.mxu0
  %6012 = vdwg.mxu0
  %6013 = vmatprep.subr.bf16.mxu0 %v4192
  %6014 = vmatpush1.bf16.msra.mxu0 %v4191
  %6015 = vmatprep.subr.bf16.mxu0 %v4190
  %6016 = vmatpush1.bf16.msra.mxu0 %v4189
  %6017 = vmatprep.subr.bf16.mxu0 %v4188
  %6018 = vmatpush1.bf16.msra.mxu0 %v4187
  %6019 = vmatprep.subr.bf16.mxu0 %v4186
  %6020 = vmatpush1.bf16.msra.mxu0 %v4185
  %6021 = vmatprep.subr.bf16.mxu0 %v4184
  %6022 = vmatpush1.bf16.msra.mxu0 %v4183
  %6023 = vmatprep.subr.bf16.mxu0 %v4182
  %6024 = vmatpush1.bf16.msra.mxu0 %v4181
  %6025 = vmatprep.subr.bf16.mxu0 %v4180
  %6026 = vmatpush1.bf16.msra.mxu0 %v4179
  %6027 = vmatprep.subr.bf16.mxu0 %v4178
  %6028 = vmatpush1.bf16.msra.mxu0 %v4177
  %6029 = vmatprep.subr.bf16.mxu0 %v4208
  %6030 = vmatpush2.bf16.msra.mxu0 %v4207
  %6031 = vmatprep.subr.bf16.mxu0 %v4206
  %6032 = vmatpush2.bf16.msra.mxu0 %v4205
  %6033 = vmatprep.subr.bf16.mxu0 %v4204
  %6034 = vmatpush2.bf16.msra.mxu0 %v4203
  %6035 = vmatprep.subr.bf16.mxu0 %v4202
  %6036 = vmatpush2.bf16.msra.mxu0 %v4201
  %6037 = vmatprep.subr.bf16.mxu0 %v4200
  %6038 = vmatpush2.bf16.msra.mxu0 %v4199
  %6039 = vmatprep.subr.bf16.mxu0 %v4198
  %6040 = vmatpush2.bf16.msra.mxu0 %v4197
  %6041 = vmatprep.subr.bf16.mxu0 %v4196
  %6042 = vmatpush2.bf16.msra.mxu0 %v4195
  %6043 = vmatprep.subr.bf16.mxu0 %v4194
  %6044 = vmatpush2.bf16.msra.mxu0 %v4193
  %6045 = vmatprep.mubr.bf16.mxu0 %v1035
  %6046 = vmatmul.mubr.bf16.gmra.mxu0 %v1027
  %v6047 = vpop.f32.mrf.mxu0
  %v6048 = vadd.f32 %v6007, %v6047
  %v6049 = vpop.f32.mrf.mxu0
  %v6050 = vadd.f32 %v6009, %v6049
  %v6051 = vpop.f32.mrf.mxu0
  %v6052 = vpop.f32.mrf.mxu0
  %6053 = vdwg.mxu0
  %6054 = vmatprep.subr.bf16.mxu0 %v4224
  %6055 = vmatpush1.bf16.msra.mxu0 %v4223
  %6056 = vmatprep.subr.bf16.mxu0 %v4222
  %6057 = vmatpush1.bf16.msra.mxu0 %v4221
  %6058 = vmatprep.subr.bf16.mxu0 %v4220
  %6059 = vmatpush1.bf16.msra.mxu0 %v4219
  %6060 = vmatprep.subr.bf16.mxu0 %v4218
  %6061 = vmatpush1.bf16.msra.mxu0 %v4217
  %6062 = vmatprep.subr.bf16.mxu0 %v4216
  %6063 = vmatpush1.bf16.msra.mxu0 %v4215
  %6064 = vmatprep.subr.bf16.mxu0 %v4214
  %6065 = vmatpush1.bf16.msra.mxu0 %v4213
  %6066 = vmatprep.subr.bf16.mxu0 %v4212
  %6067 = vmatpush1.bf16.msra.mxu0 %v4211
  %6068 = vmatprep.subr.bf16.mxu0 %v4210
  %6069 = vmatpush1.bf16.msra.mxu0 %v4209
  %6070 = vmatprep.subr.bf16.mxu0 %v4240
  %6071 = vmatpush2.bf16.msra.mxu0 %v4239
  %6072 = vmatprep.subr.bf16.mxu0 %v4238
  %6073 = vmatpush2.bf16.msra.mxu0 %v4237
  %6074 = vmatprep.subr.bf16.mxu0 %v4236
  %6075 = vmatpush2.bf16.msra.mxu0 %v4235
  %6076 = vmatprep.subr.bf16.mxu0 %v4234
  %6077 = vmatpush2.bf16.msra.mxu0 %v4233
  %6078 = vmatprep.subr.bf16.mxu0 %v4232
  %6079 = vmatpush2.bf16.msra.mxu0 %v4231
  %6080 = vmatprep.subr.bf16.mxu0 %v4230
  %6081 = vmatpush2.bf16.msra.mxu0 %v4229
  %6082 = vmatprep.subr.bf16.mxu0 %v4228
  %6083 = vmatpush2.bf16.msra.mxu0 %v4227
  %6084 = vmatprep.subr.bf16.mxu0 %v4226
  %6085 = vmatpush2.bf16.msra.mxu0 %v4225
  %6086 = vmatprep.mubr.bf16.mxu0 %v1036
  %6087 = vmatmul.mubr.bf16.gmra.mxu0 %v1034
  %v6088 = vpop.f32.mrf.mxu0
  %v6089 = vadd.f32 %v6048, %v6088
  %v6090 = vpop.f32.mrf.mxu0
  %v6091 = vadd.f32 %v6050, %v6090
  %v6092 = vpop.f32.mrf.mxu0
  %v6093 = vpop.f32.mrf.mxu0
  %6094 = vdwg.mxu0
  %6095 = vmatprep.subr.bf16.mxu0 %v4256
  %6096 = vmatpush1.bf16.msra.mxu0 %v4255
  %6097 = vmatprep.subr.bf16.mxu0 %v4254
  %6098 = vmatpush1.bf16.msra.mxu0 %v4253
  %6099 = vmatprep.subr.bf16.mxu0 %v4252
  %6100 = vmatpush1.bf16.msra.mxu0 %v4251
  %6101 = vmatprep.subr.bf16.mxu0 %v4250
  %6102 = vmatpush1.bf16.msra.mxu0 %v4249
  %6103 = vmatprep.subr.bf16.mxu0 %v4248
  %6104 = vmatpush1.bf16.msra.mxu0 %v4247
  %6105 = vmatprep.subr.bf16.mxu0 %v4246
  %6106 = vmatpush1.bf16.msra.mxu0 %v4245
  %6107 = vmatprep.subr.bf16.mxu0 %v4244
  %6108 = vmatpush1.bf16.msra.mxu0 %v4243
  %6109 = vmatprep.subr.bf16.mxu0 %v4242
  %6110 = vmatpush1.bf16.msra.mxu0 %v4241
  %6111 = vmatprep.subr.bf16.mxu0 %v4272
  %6112 = vmatpush2.bf16.msra.mxu0 %v4271
  %6113 = vmatprep.subr.bf16.mxu0 %v4270
  %6114 = vmatpush2.bf16.msra.mxu0 %v4269
  %6115 = vmatprep.subr.bf16.mxu0 %v4268
  %6116 = vmatpush2.bf16.msra.mxu0 %v4267
  %6117 = vmatprep.subr.bf16.mxu0 %v4266
  %6118 = vmatpush2.bf16.msra.mxu0 %v4265
  %6119 = vmatprep.subr.bf16.mxu0 %v4264
  %6120 = vmatpush2.bf16.msra.mxu0 %v4263
  %6121 = vmatprep.subr.bf16.mxu0 %v4262
  %6122 = vmatpush2.bf16.msra.mxu0 %v4261
  %6123 = vmatprep.subr.bf16.mxu0 %v4260
  %6124 = vmatpush2.bf16.msra.mxu0 %v4259
  %6125 = vmatprep.subr.bf16.mxu0 %v4258
  %6126 = vmatpush2.bf16.msra.mxu0 %v4257
  %6127 = vmatprep.mubr.bf16.mxu0 %v1052
  %6128 = vmatmul.mubr.bf16.gmra.mxu0 %v1044
  %v6129 = vpop.f32.mrf.mxu0
  %v6130 = vadd.f32 %v6089, %v6129
  %v6131 = vpop.f32.mrf.mxu0
  %v6132 = vadd.f32 %v6091, %v6131
  %v6133 = vpop.f32.mrf.mxu0
  %v6134 = vpop.f32.mrf.mxu0
  %6135 = vdwg.mxu0
  %6136 = vmatprep.subr.bf16.mxu0 %v4288
  %6137 = vmatpush1.bf16.msra.mxu0 %v4287
  %6138 = vmatprep.subr.bf16.mxu0 %v4286
  %6139 = vmatpush1.bf16.msra.mxu0 %v4285
  %6140 = vmatprep.subr.bf16.mxu0 %v4284
  %6141 = vmatpush1.bf16.msra.mxu0 %v4283
  %6142 = vmatprep.subr.bf16.mxu0 %v4282
  %6143 = vmatpush1.bf16.msra.mxu0 %v4281
  %6144 = vmatprep.subr.bf16.mxu0 %v4280
  %6145 = vmatpush1.bf16.msra.mxu0 %v4279
  %6146 = vmatprep.subr.bf16.mxu0 %v4278
  %6147 = vmatpush1.bf16.msra.mxu0 %v4277
  %6148 = vmatprep.subr.bf16.mxu0 %v4276
  %6149 = vmatpush1.bf16.msra.mxu0 %v4275
  %6150 = vmatprep.subr.bf16.mxu0 %v4274
  %6151 = vmatpush1.bf16.msra.mxu0 %v4273
  %6152 = vmatprep.subr.bf16.mxu0 %v4304
  %6153 = vmatpush2.bf16.msra.mxu0 %v4303
  %6154 = vmatprep.subr.bf16.mxu0 %v4302
  %6155 = vmatpush2.bf16.msra.mxu0 %v4301
  %6156 = vmatprep.subr.bf16.mxu0 %v4300
  %6157 = vmatpush2.bf16.msra.mxu0 %v4299
  %6158 = vmatprep.subr.bf16.mxu0 %v4298
  %6159 = vmatpush2.bf16.msra.mxu0 %v4297
  %6160 = vmatprep.subr.bf16.mxu0 %v4296
  %6161 = vmatpush2.bf16.msra.mxu0 %v4295
  %6162 = vmatprep.subr.bf16.mxu0 %v4294
  %6163 = vmatpush2.bf16.msra.mxu0 %v4293
  %6164 = vmatprep.subr.bf16.mxu0 %v4292
  %6165 = vmatpush2.bf16.msra.mxu0 %v4291
  %6166 = vmatprep.subr.bf16.mxu0 %v4290
  %6167 = vmatpush2.bf16.msra.mxu0 %v4289
  %6168 = vmatprep.mubr.bf16.mxu0 %v1053
  %6169 = vmatmul.mubr.bf16.gmra.mxu0 %v1051
  %v6170 = vpop.f32.mrf.mxu0
  %v6171 = vadd.f32 %v6130, %v6170
  %v6172 = vpop.f32.mrf.mxu0
  %v6173 = vadd.f32 %v6132, %v6172
  %v6174 = vpop.f32.mrf.mxu0
  %v6175 = vpop.f32.mrf.mxu0
  %6176 = vdwg.mxu0
  %6177 = vmatprep.subr.bf16.mxu0 %v4320
  %6178 = vmatpush1.bf16.msra.mxu0 %v4319
  %6179 = vmatprep.subr.bf16.mxu0 %v4318
  %6180 = vmatpush1.bf16.msra.mxu0 %v4317
  %6181 = vmatprep.subr.bf16.mxu0 %v4316
  %6182 = vmatpush1.bf16.msra.mxu0 %v4315
  %6183 = vmatprep.subr.bf16.mxu0 %v4314
  %6184 = vmatpush1.bf16.msra.mxu0 %v4313
  %6185 = vmatprep.subr.bf16.mxu0 %v4312
  %6186 = vmatpush1.bf16.msra.mxu0 %v4311
  %6187 = vmatprep.subr.bf16.mxu0 %v4310
  %6188 = vmatpush1.bf16.msra.mxu0 %v4309
  %6189 = vmatprep.subr.bf16.mxu0 %v4308
  %6190 = vmatpush1.bf16.msra.mxu0 %v4307
  %6191 = vmatprep.subr.bf16.mxu0 %v4306
  %6192 = vmatpush1.bf16.msra.mxu0 %v4305
  %6193 = vmatprep.subr.bf16.mxu0 %v4336
  %6194 = vmatpush2.bf16.msra.mxu0 %v4335
  %6195 = vmatprep.subr.bf16.mxu0 %v4334
  %6196 = vmatpush2.bf16.msra.mxu0 %v4333
  %6197 = vmatprep.subr.bf16.mxu0 %v4332
  %6198 = vmatpush2.bf16.msra.mxu0 %v4331
  %6199 = vmatprep.subr.bf16.mxu0 %v4330
  %6200 = vmatpush2.bf16.msra.mxu0 %v4329
  %6201 = vmatprep.subr.bf16.mxu0 %v4328
  %6202 = vmatpush2.bf16.msra.mxu0 %v4327
  %6203 = vmatprep.subr.bf16.mxu0 %v4326
  %6204 = vmatpush2.bf16.msra.mxu0 %v4325
  %6205 = vmatprep.subr.bf16.mxu0 %v4324
  %6206 = vmatpush2.bf16.msra.mxu0 %v4323
  %6207 = vmatprep.subr.bf16.mxu0 %v4322
  %6208 = vmatpush2.bf16.msra.mxu0 %v4321
  %6209 = vmatprep.mubr.bf16.mxu0 %v1069
  %6210 = vmatmul.mubr.bf16.gmra.mxu0 %v1061
  %v6211 = vpop.f32.mrf.mxu0
  %v6212 = vadd.f32 %v6171, %v6211
  %v6213 = vpop.f32.mrf.mxu0
  %v6214 = vadd.f32 %v6173, %v6213
  %v6215 = vpop.f32.mrf.mxu0
  %v6216 = vpop.f32.mrf.mxu0
  %6217 = vdwg.mxu0
  %6218 = vmatprep.subr.bf16.mxu0 %v4352
  %6219 = vmatpush1.bf16.msra.mxu0 %v4351
  %6220 = vmatprep.subr.bf16.mxu0 %v4350
  %6221 = vmatpush1.bf16.msra.mxu0 %v4349
  %6222 = vmatprep.subr.bf16.mxu0 %v4348
  %6223 = vmatpush1.bf16.msra.mxu0 %v4347
  %6224 = vmatprep.subr.bf16.mxu0 %v4346
  %6225 = vmatpush1.bf16.msra.mxu0 %v4345
  %6226 = vmatprep.subr.bf16.mxu0 %v4344
  %6227 = vmatpush1.bf16.msra.mxu0 %v4343
  %6228 = vmatprep.subr.bf16.mxu0 %v4342
  %6229 = vmatpush1.bf16.msra.mxu0 %v4341
  %6230 = vmatprep.subr.bf16.mxu0 %v4340
  %6231 = vmatpush1.bf16.msra.mxu0 %v4339
  %6232 = vmatprep.subr.bf16.mxu0 %v4338
  %6233 = vmatpush1.bf16.msra.mxu0 %v4337
  %6234 = vmatprep.subr.bf16.mxu0 %v4368
  %6235 = vmatpush2.bf16.msra.mxu0 %v4367
  %6236 = vmatprep.subr.bf16.mxu0 %v4366
  %6237 = vmatpush2.bf16.msra.mxu0 %v4365
  %6238 = vmatprep.subr.bf16.mxu0 %v4364
  %6239 = vmatpush2.bf16.msra.mxu0 %v4363
  %6240 = vmatprep.subr.bf16.mxu0 %v4362
  %6241 = vmatpush2.bf16.msra.mxu0 %v4361
  %6242 = vmatprep.subr.bf16.mxu0 %v4360
  %6243 = vmatpush2.bf16.msra.mxu0 %v4359
  %6244 = vmatprep.subr.bf16.mxu0 %v4358
  %6245 = vmatpush2.bf16.msra.mxu0 %v4357
  %6246 = vmatprep.subr.bf16.mxu0 %v4356
  %6247 = vmatpush2.bf16.msra.mxu0 %v4355
  %6248 = vmatprep.subr.bf16.mxu0 %v4354
  %6249 = vmatpush2.bf16.msra.mxu0 %v4353
  %6250 = vmatprep.mubr.bf16.mxu0 %v1070
  %6251 = vmatmul.mubr.bf16.gmra.mxu0 %v1068
  %v6252 = vpop.f32.mrf.mxu0
  %v6253 = vadd.f32 %v6212, %v6252
  %v6254 = vpop.f32.mrf.mxu0
  %v6255 = vadd.f32 %v6214, %v6254
  %v6256 = vpop.f32.mrf.mxu0
  %v6257 = vpop.f32.mrf.mxu0
  %6258 = vdwg.mxu0
  %6259 = vmatprep.subr.bf16.mxu0 %v4384
  %6260 = vmatpush1.bf16.msra.mxu0 %v4383
  %6261 = vmatprep.subr.bf16.mxu0 %v4382
  %6262 = vmatpush1.bf16.msra.mxu0 %v4381
  %6263 = vmatprep.subr.bf16.mxu0 %v4380
  %6264 = vmatpush1.bf16.msra.mxu0 %v4379
  %6265 = vmatprep.subr.bf16.mxu0 %v4378
  %6266 = vmatpush1.bf16.msra.mxu0 %v4377
  %6267 = vmatprep.subr.bf16.mxu0 %v4376
  %6268 = vmatpush1.bf16.msra.mxu0 %v4375
  %6269 = vmatprep.subr.bf16.mxu0 %v4374
  %6270 = vmatpush1.bf16.msra.mxu0 %v4373
  %6271 = vmatprep.subr.bf16.mxu0 %v4372
  %6272 = vmatpush1.bf16.msra.mxu0 %v4371
  %6273 = vmatprep.subr.bf16.mxu0 %v4370
  %6274 = vmatpush1.bf16.msra.mxu0 %v4369
  %6275 = vmatprep.subr.bf16.mxu0 %v4400
  %6276 = vmatpush2.bf16.msra.mxu0 %v4399
  %6277 = vmatprep.subr.bf16.mxu0 %v4398
  %6278 = vmatpush2.bf16.msra.mxu0 %v4397
  %6279 = vmatprep.subr.bf16.mxu0 %v4396
  %6280 = vmatpush2.bf16.msra.mxu0 %v4395
  %6281 = vmatprep.subr.bf16.mxu0 %v4394
  %6282 = vmatpush2.bf16.msra.mxu0 %v4393
  %6283 = vmatprep.subr.bf16.mxu0 %v4392
  %6284 = vmatpush2.bf16.msra.mxu0 %v4391
  %6285 = vmatprep.subr.bf16.mxu0 %v4390
  %6286 = vmatpush2.bf16.msra.mxu0 %v4389
  %6287 = vmatprep.subr.bf16.mxu0 %v4388
  %6288 = vmatpush2.bf16.msra.mxu0 %v4387
  %6289 = vmatprep.subr.bf16.mxu0 %v4386
  %6290 = vmatpush2.bf16.msra.mxu0 %v4385
  %6291 = vmatprep.mubr.bf16.mxu0 %v1086
  %6292 = vmatmul.mubr.bf16.gmra.mxu0 %v1078
  %v6293 = vpop.f32.mrf.mxu0
  %v6294 = vadd.f32 %v6253, %v6293
  %v6295 = vpop.f32.mrf.mxu0
  %v6296 = vadd.f32 %v6255, %v6295
  %v6297 = vpop.f32.mrf.mxu0
  %v6298 = vpop.f32.mrf.mxu0
  %6299 = vdwg.mxu0
  %6300 = vmatprep.subr.bf16.mxu0 %v4416
  %6301 = vmatpush1.bf16.msra.mxu0 %v4415
  %6302 = vmatprep.subr.bf16.mxu0 %v4414
  %6303 = vmatpush1.bf16.msra.mxu0 %v4413
  %6304 = vmatprep.subr.bf16.mxu0 %v4412
  %6305 = vmatpush1.bf16.msra.mxu0 %v4411
  %6306 = vmatprep.subr.bf16.mxu0 %v4410
  %6307 = vmatpush1.bf16.msra.mxu0 %v4409
  %6308 = vmatprep.subr.bf16.mxu0 %v4408
  %6309 = vmatpush1.bf16.msra.mxu0 %v4407
  %6310 = vmatprep.subr.bf16.mxu0 %v4406
  %6311 = vmatpush1.bf16.msra.mxu0 %v4405
  %6312 = vmatprep.subr.bf16.mxu0 %v4404
  %6313 = vmatpush1.bf16.msra.mxu0 %v4403
  %6314 = vmatprep.subr.bf16.mxu0 %v4402
  %6315 = vmatpush1.bf16.msra.mxu0 %v4401
  %6316 = vmatprep.subr.bf16.mxu0 %v4432
  %6317 = vmatpush2.bf16.msra.mxu0 %v4431
  %6318 = vmatprep.subr.bf16.mxu0 %v4430
  %6319 = vmatpush2.bf16.msra.mxu0 %v4429
  %6320 = vmatprep.subr.bf16.mxu0 %v4428
  %6321 = vmatpush2.bf16.msra.mxu0 %v4427
  %6322 = vmatprep.subr.bf16.mxu0 %v4426
  %6323 = vmatpush2.bf16.msra.mxu0 %v4425
  %6324 = vmatprep.subr.bf16.mxu0 %v4424
  %6325 = vmatpush2.bf16.msra.mxu0 %v4423
  %6326 = vmatprep.subr.bf16.mxu0 %v4422
  %6327 = vmatpush2.bf16.msra.mxu0 %v4421
  %6328 = vmatprep.subr.bf16.mxu0 %v4420
  %6329 = vmatpush2.bf16.msra.mxu0 %v4419
  %6330 = vmatprep.subr.bf16.mxu0 %v4418
  %6331 = vmatpush2.bf16.msra.mxu0 %v4417
  %6332 = vmatprep.mubr.bf16.mxu0 %v1087
  %6333 = vmatmul.mubr.bf16.gmra.mxu0 %v1085
  %v6334 = vpop.f32.mrf.mxu0
  %v6335 = vadd.f32 %v6294, %v6334
  %v6336 = vpop.f32.mrf.mxu0
  %v6337 = vadd.f32 %v6296, %v6336
  %v6338 = vpop.f32.mrf.mxu0
  %v6339 = vpop.f32.mrf.mxu0
  %6340 = vdwg.mxu0
  %6341 = vmatprep.subr.bf16.mxu0 %v4448
  %6342 = vmatpush1.bf16.msra.mxu0 %v4447
  %6343 = vmatprep.subr.bf16.mxu0 %v4446
  %6344 = vmatpush1.bf16.msra.mxu0 %v4445
  %6345 = vmatprep.subr.bf16.mxu0 %v4444
  %6346 = vmatpush1.bf16.msra.mxu0 %v4443
  %6347 = vmatprep.subr.bf16.mxu0 %v4442
  %6348 = vmatpush1.bf16.msra.mxu0 %v4441
  %6349 = vmatprep.subr.bf16.mxu0 %v4440
  %6350 = vmatpush1.bf16.msra.mxu0 %v4439
  %6351 = vmatprep.subr.bf16.mxu0 %v4438
  %6352 = vmatpush1.bf16.msra.mxu0 %v4437
  %6353 = vmatprep.subr.bf16.mxu0 %v4436
  %6354 = vmatpush1.bf16.msra.mxu0 %v4435
  %6355 = vmatprep.subr.bf16.mxu0 %v4434
  %6356 = vmatpush1.bf16.msra.mxu0 %v4433
  %6357 = vmatprep.subr.bf16.mxu0 %v4464
  %6358 = vmatpush2.bf16.msra.mxu0 %v4463
  %6359 = vmatprep.subr.bf16.mxu0 %v4462
  %6360 = vmatpush2.bf16.msra.mxu0 %v4461
  %6361 = vmatprep.subr.bf16.mxu0 %v4460
  %6362 = vmatpush2.bf16.msra.mxu0 %v4459
  %6363 = vmatprep.subr.bf16.mxu0 %v4458
  %6364 = vmatpush2.bf16.msra.mxu0 %v4457
  %6365 = vmatprep.subr.bf16.mxu0 %v4456
  %6366 = vmatpush2.bf16.msra.mxu0 %v4455
  %6367 = vmatprep.subr.bf16.mxu0 %v4454
  %6368 = vmatpush2.bf16.msra.mxu0 %v4453
  %6369 = vmatprep.subr.bf16.mxu0 %v4452
  %6370 = vmatpush2.bf16.msra.mxu0 %v4451
  %6371 = vmatprep.subr.bf16.mxu0 %v4450
  %6372 = vmatpush2.bf16.msra.mxu0 %v4449
  %6373 = vmatprep.mubr.bf16.mxu0 %v1103
  %6374 = vmatmul.mubr.bf16.gmra.mxu0 %v1095
  %v6375 = vpop.f32.mrf.mxu0
  %v6376 = vadd.f32 %v6335, %v6375
  %v6377 = vpop.f32.mrf.mxu0
  %v6378 = vadd.f32 %v6337, %v6377
  %v6379 = vpop.f32.mrf.mxu0
  %v6380 = vpop.f32.mrf.mxu0
  %6381 = vdwg.mxu0
  %6382 = vmatprep.subr.bf16.mxu0 %v4480
  %6383 = vmatpush1.bf16.msra.mxu0 %v4479
  %6384 = vmatprep.subr.bf16.mxu0 %v4478
  %6385 = vmatpush1.bf16.msra.mxu0 %v4477
  %6386 = vmatprep.subr.bf16.mxu0 %v4476
  %6387 = vmatpush1.bf16.msra.mxu0 %v4475
  %6388 = vmatprep.subr.bf16.mxu0 %v4474
  %6389 = vmatpush1.bf16.msra.mxu0 %v4473
  %6390 = vmatprep.subr.bf16.mxu0 %v4472
  %6391 = vmatpush1.bf16.msra.mxu0 %v4471
  %6392 = vmatprep.subr.bf16.mxu0 %v4470
  %6393 = vmatpush1.bf16.msra.mxu0 %v4469
  %6394 = vmatprep.subr.bf16.mxu0 %v4468
  %6395 = vmatpush1.bf16.msra.mxu0 %v4467
  %6396 = vmatprep.subr.bf16.mxu0 %v4466
  %6397 = vmatpush1.bf16.msra.mxu0 %v4465
  %6398 = vmatprep.subr.bf16.mxu0 %v4496
  %6399 = vmatpush2.bf16.msra.mxu0 %v4495
  %6400 = vmatprep.subr.bf16.mxu0 %v4494
  %6401 = vmatpush2.bf16.msra.mxu0 %v4493
  %6402 = vmatprep.subr.bf16.mxu0 %v4492
  %6403 = vmatpush2.bf16.msra.mxu0 %v4491
  %6404 = vmatprep.subr.bf16.mxu0 %v4490
  %6405 = vmatpush2.bf16.msra.mxu0 %v4489
  %6406 = vmatprep.subr.bf16.mxu0 %v4488
  %6407 = vmatpush2.bf16.msra.mxu0 %v4487
  %6408 = vmatprep.subr.bf16.mxu0 %v4486
  %6409 = vmatpush2.bf16.msra.mxu0 %v4485
  %6410 = vmatprep.subr.bf16.mxu0 %v4484
  %6411 = vmatpush2.bf16.msra.mxu0 %v4483
  %6412 = vmatprep.subr.bf16.mxu0 %v4482
  %6413 = vmatpush2.bf16.msra.mxu0 %v4481
  %6414 = vmatprep.mubr.bf16.mxu0 %v1104
  %6415 = vmatmul.mubr.bf16.gmra.mxu0 %v1102
  %v6416 = vpop.f32.mrf.mxu0
  %v6417 = vadd.f32 %v6376, %v6416
  %v6418 = vpop.f32.mrf.mxu0
  %v6419 = vadd.f32 %v6378, %v6418
  %v6420 = vpop.f32.mrf.mxu0
  %v6421 = vpop.f32.mrf.mxu0
  %6422 = vdwg.mxu0
  %6423 = vmatprep.subr.bf16.mxu0 %v4512
  %6424 = vmatpush1.bf16.msra.mxu0 %v4511
  %6425 = vmatprep.subr.bf16.mxu0 %v4510
  %6426 = vmatpush1.bf16.msra.mxu0 %v4509
  %6427 = vmatprep.subr.bf16.mxu0 %v4508
  %6428 = vmatpush1.bf16.msra.mxu0 %v4507
  %6429 = vmatprep.subr.bf16.mxu0 %v4506
  %6430 = vmatpush1.bf16.msra.mxu0 %v4505
  %6431 = vmatprep.subr.bf16.mxu0 %v4504
  %6432 = vmatpush1.bf16.msra.mxu0 %v4503
  %6433 = vmatprep.subr.bf16.mxu0 %v4502
  %6434 = vmatpush1.bf16.msra.mxu0 %v4501
  %6435 = vmatprep.subr.bf16.mxu0 %v4500
  %6436 = vmatpush1.bf16.msra.mxu0 %v4499
  %6437 = vmatprep.subr.bf16.mxu0 %v4498
  %6438 = vmatpush1.bf16.msra.mxu0 %v4497
  %6439 = vmatprep.subr.bf16.mxu0 %v4528
  %6440 = vmatpush2.bf16.msra.mxu0 %v4527
  %6441 = vmatprep.subr.bf16.mxu0 %v4526
  %6442 = vmatpush2.bf16.msra.mxu0 %v4525
  %6443 = vmatprep.subr.bf16.mxu0 %v4524
  %6444 = vmatpush2.bf16.msra.mxu0 %v4523
  %6445 = vmatprep.subr.bf16.mxu0 %v4522
  %6446 = vmatpush2.bf16.msra.mxu0 %v4521
  %6447 = vmatprep.subr.bf16.mxu0 %v4520
  %6448 = vmatpush2.bf16.msra.mxu0 %v4519
  %6449 = vmatprep.subr.bf16.mxu0 %v4518
  %6450 = vmatpush2.bf16.msra.mxu0 %v4517
  %6451 = vmatprep.subr.bf16.mxu0 %v4516
  %6452 = vmatpush2.bf16.msra.mxu0 %v4515
  %6453 = vmatprep.subr.bf16.mxu0 %v4514
  %6454 = vmatpush2.bf16.msra.mxu0 %v4513
  %6455 = vmatprep.mubr.bf16.mxu0 %v1120
  %6456 = vmatmul.mubr.bf16.gmra.mxu0 %v1112
  %v6457 = vpop.f32.mrf.mxu0
  %v6458 = vadd.f32 %v6417, %v6457
  %v6459 = vpop.f32.mrf.mxu0
  %v6460 = vadd.f32 %v6419, %v6459
  %v6461 = vpop.f32.mrf.mxu0
  %v6462 = vpop.f32.mrf.mxu0
  %6463 = vdwg.mxu0
  %6464 = vmatprep.subr.bf16.mxu0 %v4544
  %6465 = vmatpush1.bf16.msra.mxu0 %v4543
  %6466 = vmatprep.subr.bf16.mxu0 %v4542
  %6467 = vmatpush1.bf16.msra.mxu0 %v4541
  %6468 = vmatprep.subr.bf16.mxu0 %v4540
  %6469 = vmatpush1.bf16.msra.mxu0 %v4539
  %6470 = vmatprep.subr.bf16.mxu0 %v4538
  %6471 = vmatpush1.bf16.msra.mxu0 %v4537
  %6472 = vmatprep.subr.bf16.mxu0 %v4536
  %6473 = vmatpush1.bf16.msra.mxu0 %v4535
  %6474 = vmatprep.subr.bf16.mxu0 %v4534
  %6475 = vmatpush1.bf16.msra.mxu0 %v4533
  %6476 = vmatprep.subr.bf16.mxu0 %v4532
  %6477 = vmatpush1.bf16.msra.mxu0 %v4531
  %6478 = vmatprep.subr.bf16.mxu0 %v4530
  %6479 = vmatpush1.bf16.msra.mxu0 %v4529
  %6480 = vmatprep.subr.bf16.mxu0 %v4560
  %6481 = vmatpush2.bf16.msra.mxu0 %v4559
  %6482 = vmatprep.subr.bf16.mxu0 %v4558
  %6483 = vmatpush2.bf16.msra.mxu0 %v4557
  %6484 = vmatprep.subr.bf16.mxu0 %v4556
  %6485 = vmatpush2.bf16.msra.mxu0 %v4555
  %6486 = vmatprep.subr.bf16.mxu0 %v4554
  %6487 = vmatpush2.bf16.msra.mxu0 %v4553
  %6488 = vmatprep.subr.bf16.mxu0 %v4552
  %6489 = vmatpush2.bf16.msra.mxu0 %v4551
  %6490 = vmatprep.subr.bf16.mxu0 %v4550
  %6491 = vmatpush2.bf16.msra.mxu0 %v4549
  %6492 = vmatprep.subr.bf16.mxu0 %v4548
  %6493 = vmatpush2.bf16.msra.mxu0 %v4547
  %6494 = vmatprep.subr.bf16.mxu0 %v4546
  %6495 = vmatpush2.bf16.msra.mxu0 %v4545
  %6496 = vmatprep.mubr.bf16.mxu0 %v1121
  %6497 = vmatmul.mubr.bf16.gmra.mxu0 %v1119
  %v6498 = vpop.f32.mrf.mxu0
  %v6499 = vadd.f32 %v6458, %v6498
  %v6500 = vpop.f32.mrf.mxu0
  %v6501 = vadd.f32 %v6460, %v6500
  %v6502 = vpop.f32.mrf.mxu0
  %v6503 = vpop.f32.mrf.mxu0
  %6504 = vdwg.mxu0
  %6505 = vmatprep.subr.bf16.mxu0 %v4576
  %6506 = vmatpush1.bf16.msra.mxu0 %v4575
  %6507 = vmatprep.subr.bf16.mxu0 %v4574
  %6508 = vmatpush1.bf16.msra.mxu0 %v4573
  %6509 = vmatprep.subr.bf16.mxu0 %v4572
  %6510 = vmatpush1.bf16.msra.mxu0 %v4571
  %6511 = vmatprep.subr.bf16.mxu0 %v4570
  %6512 = vmatpush1.bf16.msra.mxu0 %v4569
  %6513 = vmatprep.subr.bf16.mxu0 %v4568
  %6514 = vmatpush1.bf16.msra.mxu0 %v4567
  %6515 = vmatprep.subr.bf16.mxu0 %v4566
  %6516 = vmatpush1.bf16.msra.mxu0 %v4565
  %6517 = vmatprep.subr.bf16.mxu0 %v4564
  %6518 = vmatpush1.bf16.msra.mxu0 %v4563
  %6519 = vmatprep.subr.bf16.mxu0 %v4562
  %6520 = vmatpush1.bf16.msra.mxu0 %v4561
  %6521 = vmatprep.subr.bf16.mxu0 %v4592
  %6522 = vmatpush2.bf16.msra.mxu0 %v4591
  %6523 = vmatprep.subr.bf16.mxu0 %v4590
  %6524 = vmatpush2.bf16.msra.mxu0 %v4589
  %6525 = vmatprep.subr.bf16.mxu0 %v4588
  %6526 = vmatpush2.bf16.msra.mxu0 %v4587
  %6527 = vmatprep.subr.bf16.mxu0 %v4586
  %6528 = vmatpush2.bf16.msra.mxu0 %v4585
  %6529 = vmatprep.subr.bf16.mxu0 %v4584
  %6530 = vmatpush2.bf16.msra.mxu0 %v4583
  %6531 = vmatprep.subr.bf16.mxu0 %v4582
  %6532 = vmatpush2.bf16.msra.mxu0 %v4581
  %6533 = vmatprep.subr.bf16.mxu0 %v4580
  %6534 = vmatpush2.bf16.msra.mxu0 %v4579
  %6535 = vmatprep.subr.bf16.mxu0 %v4578
  %6536 = vmatpush2.bf16.msra.mxu0 %v4577
  %6537 = vmatprep.mubr.bf16.mxu0 %v1137
  %6538 = vmatmul.mubr.bf16.gmra.mxu0 %v1129
  %v6539 = vpop.f32.mrf.mxu0
  %v6540 = vadd.f32 %v6499, %v6539
  %v6541 = vpop.f32.mrf.mxu0
  %v6542 = vadd.f32 %v6501, %v6541
  %v6543 = vpop.f32.mrf.mxu0
  %v6544 = vpop.f32.mrf.mxu0
  %6545 = vdwg.mxu0
  %6546 = vmatprep.subr.bf16.mxu0 %v4608
  %6547 = vmatpush1.bf16.msra.mxu0 %v4607
  %6548 = vmatprep.subr.bf16.mxu0 %v4606
  %6549 = vmatpush1.bf16.msra.mxu0 %v4605
  %6550 = vmatprep.subr.bf16.mxu0 %v4604
  %6551 = vmatpush1.bf16.msra.mxu0 %v4603
  %6552 = vmatprep.subr.bf16.mxu0 %v4602
  %6553 = vmatpush1.bf16.msra.mxu0 %v4601
  %6554 = vmatprep.subr.bf16.mxu0 %v4600
  %6555 = vmatpush1.bf16.msra.mxu0 %v4599
  %6556 = vmatprep.subr.bf16.mxu0 %v4598
  %6557 = vmatpush1.bf16.msra.mxu0 %v4597
  %6558 = vmatprep.subr.bf16.mxu0 %v4596
  %6559 = vmatpush1.bf16.msra.mxu0 %v4595
  %6560 = vmatprep.subr.bf16.mxu0 %v4594
  %6561 = vmatpush1.bf16.msra.mxu0 %v4593
  %6562 = vmatprep.subr.bf16.mxu0 %v4624
  %6563 = vmatpush2.bf16.msra.mxu0 %v4623
  %6564 = vmatprep.subr.bf16.mxu0 %v4622
  %6565 = vmatpush2.bf16.msra.mxu0 %v4621
  %6566 = vmatprep.subr.bf16.mxu0 %v4620
  %6567 = vmatpush2.bf16.msra.mxu0 %v4619
  %6568 = vmatprep.subr.bf16.mxu0 %v4618
  %6569 = vmatpush2.bf16.msra.mxu0 %v4617
  %6570 = vmatprep.subr.bf16.mxu0 %v4616
  %6571 = vmatpush2.bf16.msra.mxu0 %v4615
  %6572 = vmatprep.subr.bf16.mxu0 %v4614
  %6573 = vmatpush2.bf16.msra.mxu0 %v4613
  %6574 = vmatprep.subr.bf16.mxu0 %v4612
  %6575 = vmatpush2.bf16.msra.mxu0 %v4611
  %6576 = vmatprep.subr.bf16.mxu0 %v4610
  %6577 = vmatpush2.bf16.msra.mxu0 %v4609
  %6578 = vmatprep.mubr.bf16.mxu0 %v1138
  %6579 = vmatmul.mubr.bf16.gmra.mxu0 %v1136
  %v6580 = vpop.f32.mrf.mxu0
  %v6581 = vadd.f32 %v6540, %v6580
  %v6582 = vpop.f32.mrf.mxu0
  %v6583 = vadd.f32 %v6542, %v6582
  %v6584 = vpop.f32.mrf.mxu0
  %v6585 = vpop.f32.mrf.mxu0
  %6586 = vdwg.mxu0
  %6587 = vmatprep.subr.bf16.mxu0 %v4640
  %6588 = vmatpush1.bf16.msra.mxu0 %v4639
  %6589 = vmatprep.subr.bf16.mxu0 %v4638
  %6590 = vmatpush1.bf16.msra.mxu0 %v4637
  %6591 = vmatprep.subr.bf16.mxu0 %v4636
  %6592 = vmatpush1.bf16.msra.mxu0 %v4635
  %6593 = vmatprep.subr.bf16.mxu0 %v4634
  %6594 = vmatpush1.bf16.msra.mxu0 %v4633
  %6595 = vmatprep.subr.bf16.mxu0 %v4632
  %6596 = vmatpush1.bf16.msra.mxu0 %v4631
  %6597 = vmatprep.subr.bf16.mxu0 %v4630
  %6598 = vmatpush1.bf16.msra.mxu0 %v4629
  %6599 = vmatprep.subr.bf16.mxu0 %v4628
  %6600 = vmatpush1.bf16.msra.mxu0 %v4627
  %6601 = vmatprep.subr.bf16.mxu0 %v4626
  %6602 = vmatpush1.bf16.msra.mxu0 %v4625
  %6603 = vmatprep.subr.bf16.mxu0 %v4656
  %6604 = vmatpush2.bf16.msra.mxu0 %v4655
  %6605 = vmatprep.subr.bf16.mxu0 %v4654
  %6606 = vmatpush2.bf16.msra.mxu0 %v4653
  %6607 = vmatprep.subr.bf16.mxu0 %v4652
  %6608 = vmatpush2.bf16.msra.mxu0 %v4651
  %6609 = vmatprep.subr.bf16.mxu0 %v4650
  %6610 = vmatpush2.bf16.msra.mxu0 %v4649
  %6611 = vmatprep.subr.bf16.mxu0 %v4648
  %6612 = vmatpush2.bf16.msra.mxu0 %v4647
  %6613 = vmatprep.subr.bf16.mxu0 %v4646
  %6614 = vmatpush2.bf16.msra.mxu0 %v4645
  %6615 = vmatprep.subr.bf16.mxu0 %v4644
  %6616 = vmatpush2.bf16.msra.mxu0 %v4643
  %6617 = vmatprep.subr.bf16.mxu0 %v4642
  %6618 = vmatpush2.bf16.msra.mxu0 %v4641
  %6619 = vmatprep.mubr.bf16.mxu0 %v1146
  %6620 = vmatmul.mubr.bf16.gmra.mxu0 %v1145
  %v6621 = vpop.f32.mrf.mxu0
  %v6622 = vadd.f32 %v6581, %v6621
  %v6623 = vpop.f32.mrf.mxu0
  %v6624 = vadd.f32 %v6583, %v6623
  %v6625 = vpop.f32.mrf.mxu0
  %v6626 = vpop.f32.mrf.mxu0
  %6627 = vdwg.mxu0
  %v6628 = vmax.f32 %v6622, 0.0
  %v6629 = vmax.f32 %v6624, 0.0
  %s6630 = scalar_lea.vmem %s2, 1
  %v6631 = vld [vmem:[%s6630] ss:$4 sm:$0x3]
  %v6633 = vlaneseq
  %v6634 = vshrl.u32 %v6633, 7
  %v6635 = vsub.s32 0, %v6634
  %v6636 = vrot.slane %v6631, %v6635
  %v6637 = vlaneseq
  %v6638 = vshrl.u32 %v6637, 7
  %v6639 = vsub.s32 1, %v6638
  %v6640 = vrot.slane %v6631, %v6639
  %v6643 = vmul.f32 %v6628, %v6636
  %v6644 = vmul.f32 %v6629, %v6640
  %s6645 = scalar_lea.vmem %s2, 2
  %v6646 = vld [vmem:[%s6645] ss:$4 sm:$0x3]
  %v6648 = vlaneseq
  %v6649 = vshrl.u32 %v6648, 7
  %v6650 = vsub.s32 0, %v6649
  %v6651 = vrot.slane %v6646, %v6650
  %v6652 = vlaneseq
  %v6653 = vshrl.u32 %v6652, 7
  %v6654 = vsub.s32 1, %v6653
  %v6655 = vrot.slane %v6646, %v6654
  %v6658 = vadd.f32 %v6643, %v6651
  %v6659 = vadd.f32 %v6644, %v6655
  %v6660 = vpack.c.bf16 %v6658, %v6658
  %v6661 = vpack.c.bf16 %v6659, %v6659
  %v6664 = vcombine.low %v6660, %v6661
  %v6666 = vunpack.c.l.s4 1983009808
  %v6667 = vunpack.c.0.s8 %v6666
  %v6668 = vlaneseq
  %v6669 = vshrl.u32 %v6668, 7
  %v6670 = vsub.s32 %v6667, %v6669
  %v6671 = vrot.slane %v6664, %v6670
  %6673 = vst [vmem:[%s3] sm:$0xf] %v6671
  // Predicated region
  $region14: #{baby_c3d_forward.10} parent=0 // pred_check
    _
  $region15: #{baby_c3d_forward.10} parent=0 // pred_check_branch
    %6675 = sbr.rel (0) target = $region17
  $region16: #{baby_c3d_forward.10} parent=0 // pred_region
    _
  $region17: #{baby_c3d_forward.10} parent=0 // pred_fallthru
    _
  // Predicated region
  $region18: #{baby_c3d_forward.10} parent=0 // pred_check
    _
  $region19: #{baby_c3d_forward.10} parent=0 // pred_check_branch
    %6677 = sbr.rel (0) target = $region21
  $region20: #{baby_c3d_forward.10} parent=0 // pred_region
    _
  $region21: #{baby_c3d_forward.10} parent=0 // pred_fallthru
    _

</llo_original>
